<compile_context>
chip_gen: v5e
topology: v5e:2x2
jax: 0.10.0
libtpu: 0.0.40
codegen_flags: <defaults>
</compile_context>

<pallas_src>
import functools
import math

import jax
import jax.numpy as jnp
from jax.experimental import pallas as pl
from jax.experimental.pallas import tpu as pltpu

# ----------------------------- model config ---------------------------------
# (C_out, kernel, stride) -- same kernels/strides as wav2vec2 => downsample 320
CONV_LAYERS = [(24, 10, 5), (24, 3, 2), (24, 3, 2), (24, 3, 2),
               (24, 3, 2), (24, 2, 2), (24, 2, 2)]
CONV_DIM = 24          # conv extractor embed dim (synthetic)
ENC_DIM = 32           # transformer encoder_embed_dim (synthetic)
NUM_HEADS = 4
HEAD_DIM = ENC_DIM // NUM_HEADS
FFN_DIM = 64
NUM_LAYERS = 2
POS_CONV_KERNEL = 8    # even kernel -> SamePad drops the trailing frame
POS_CONV_GROUPS = 4
EPS = 1e-5
NEG_INF = -1e9

_PARAMS = pltpu.CompilerParams(dimension_semantics=("parallel",),
                               vmem_limit_bytes=32 * 1024 * 1024)


def _round_up(x, m):
    return (x + m - 1) // m * m


# ----------------------------- spec helpers ---------------------------------
def _rep_spec(shape):
    """Whole-array block, re-used at every grid step (weights / biases)."""
    zeros = (0,) * len(shape)
    return pl.BlockSpec(tuple(shape), lambda b, _z=zeros: _z)


def _batch_spec(shape):
    """Per-batch block: squeeze the leading batch dim, full extent elsewhere."""
    zeros = (0,) * len(shape)
    return pl.BlockSpec((None,) + tuple(shape), lambda b, _z=zeros: (b,) + _z)


# ----------------------------- in-kernel math --------------------------------
_GELU_C = math.sqrt(2.0 / math.pi)


def _gelu(x):
    # TODO(synk): fairseq uses erf-GELU; tanh approximation used here.
    return 0.5 * x * (1.0 + jnp.tanh(_GELU_C * (x + 0.044715 * x * x * x)))


def _layer_norm(x, g, b):
    mu = jnp.mean(x, axis=-1, keepdims=True)
    xc = x - mu
    var = jnp.mean(xc * xc, axis=-1, keepdims=True)
    return xc * jax.lax.rsqrt(var + EPS) * g + b


# -------------------- fused conv feature-extractor kernel --------------------
def _conv_stack_kernel(*refs, meta):
    """All conv layers fused; intermediates live in VMEM ping-pong scratch.

    refs = (x, w0..w6, gn_g, gn_b, out, bufA, bufB)
    meta = ((n_taps, stride, t_out), ...) per layer, static at trace time.
    """
    n_layers = len(meta)
    x_ref = refs[0]
    w_refs = refs[1:1 + n_layers]
    g_ref, b_ref = refs[1 + n_layers], refs[2 + n_layers]
    o_ref = refs[3 + n_layers]
    bufs = (refs[4 + n_layers], refs[5 + n_layers])

    src = x_ref
    dst = 0
    for i, (n_taps, stride, t_out) in enumerate(meta):
        w = w_refs[i]
        c_out = w.shape[-1]
        acc = jnp.zeros((t_out, c_out), jnp.float32)
        for tau in range(n_taps):
            if stride == 1:
                win = src[pl.ds(tau, t_out), :]
            else:
                win = src[pl.ds(tau, t_out, stride=stride), :]
            acc = acc + jnp.dot(win.astype(jnp.bfloat16), w[tau],
                                preferred_element_type=jnp.float32)
        if i == 0:
            # GroupNorm(C, C): per-channel normalization over (padded) time.
            mu = jnp.mean(acc, axis=0, keepdims=True)
            xc = acc - mu
            var = jnp.mean(xc * xc, axis=0, keepdims=True)
            acc = xc * jax.lax.rsqrt(var + EPS) * g_ref[...] + b_ref[...]
        acc = _gelu(acc)
        if i == n_layers - 1:
            o_ref[...] = acc
        else:
            bufs[dst][0:t_out, :] = acc
            src = bufs[dst]
            dst = 1 - dst


def conv_stack(x0, taps_list, gn_g, gn_b, meta):
    B, rows, cin0 = x0.shape
    t_final = meta[-1][2]
    buf_rows = _round_up(max(m[2] for m in meta[:-1]), 8)
    kernel = functools.partial(_conv_stack_kernel, meta=tuple(meta))
    in_specs = ([_batch_spec((rows, cin0))]
                + [_rep_spec(w.shape) for w in taps_list]
                + [_rep_spec(gn_g.shape), _rep_spec(gn_b.shape)])
    return pl.pallas_call(
        kernel,
        grid=(B,),
        out_shape=jax.ShapeDtypeStruct((B, t_final, CONV_DIM), jnp.float32),
        in_specs=in_specs,
        out_specs=_batch_spec((t_final, CONV_DIM)),
        scratch_shapes=[pltpu.VMEM((buf_rows, CONV_DIM), jnp.float32),
                        pltpu.VMEM((buf_rows, CONV_DIM), jnp.float32)],
        compiler_params=_PARAMS,
    )(x0, *taps_list, gn_g, gn_b)


# ------------------ fully fused encoder (pre-encoder + layers) ----------------
def _encoder_stack_kernel(f_ref, valid_ref, bias_ref,
                          feg_ref, feb_ref, pw_ref, pb_ref,
                          posw_ref, posb_ref, eng_ref, enb_ref,
                          qkvw_ref, qkvb_ref, ow_ref, ob_ref,
                          ln1g_ref, ln1b_ref, fc1w_ref, fc1b_ref,
                          fc2w_ref, fc2b_ref, ln2g_ref, ln2b_ref,
                          o_ref):
    T, E = o_ref.shape
    H, Dh = NUM_HEADS, HEAD_DIM
    scale = Dh ** -0.5

    # ---- feature layer-norm + post-extract projection + padding zeroing ----
    f = _layer_norm(f_ref[...], feg_ref[...], feb_ref[...])
    x = jnp.dot(f.astype(jnp.bfloat16), pw_ref[...],
                preferred_element_type=jnp.float32) + pb_ref[...]
    x = x * valid_ref[...]                                  # (T, 1) broadcast

    # ---- grouped positional conv: XLU sublane rolls + boundary masks -------
    # out[t] = sum_tau x[t + tau - K/2] @ W[tau]   (SamePad trims last frame)
    t_idx = jax.lax.broadcasted_iota(jnp.int32, (T, 1), 0)
    pos = jnp.zeros((T, E), jnp.float32)
    for tau in range(POS_CONV_KERNEL):
        d = tau - POS_CONV_KERNEL // 2
        shifted = x if d == 0 else pltpu.roll(x, (-d) % T, axis=0)
        keep = (t_idx + d >= 0) & (t_idx + d < T)
        shifted = jnp.where(keep, shifted, 0.0)
        pos = pos + jnp.dot(shifted.astype(jnp.bfloat16), posw_ref[tau],
                            preferred_element_type=jnp.float32)
    x = x + _gelu(pos + posb_ref[...])

    # ---- encoder layer-norm (layer_norm_first=False) ------------------------
    x = _layer_norm(x, eng_ref[...], enb_ref[...])

    bias = bias_ref[...]                                    # (1, T) key bias

    # ---- transformer layers, weights resident, static Python loop ----------
    # TODO(synk): like fairseq, padded *query* rows are not masked; their
    # outputs are trimmed outside the model.
    for l in range(NUM_LAYERS):
        x_bf = x.astype(jnp.bfloat16)                       # cast once / layer
        ctx_heads = []
        for h in range(H):
            iq = (l * 3 + 0) * H + h
            ik = (l * 3 + 1) * H + h
            iv = (l * 3 + 2) * H + h
            qh = (jnp.dot(x_bf, qkvw_ref[iq], preferred_element_type=jnp.float32)
                  + qkvb_ref[iq]) * scale
            kh = jnp.dot(x_bf, qkvw_ref[ik],
                         preferred_element_type=jnp.float32) + qkvb_ref[ik]
            vh = jnp.dot(x_bf, qkvw_ref[iv],
                         preferred_element_type=jnp.float32) + qkvb_ref[iv]
            s = jax.lax.dot_general(
                qh.astype(jnp.bfloat16), kh.astype(jnp.bfloat16),
                (((1,), (1,)), ((), ())), preferred_element_type=jnp.float32)
            s = s + bias
            s = s - jnp.max(s, axis=-1, keepdims=True)
            p = jnp.exp(s)
            p = p * pl.reciprocal(jnp.sum(p, axis=-1, keepdims=True),
                                  approx=True)
            ctx_heads.append(jnp.dot(p.astype(jnp.bfloat16),
                                     vh.astype(jnp.bfloat16),
                                     preferred_element_type=jnp.float32))
        ctx = jnp.concatenate(ctx_heads, axis=-1)           # (T, E)
        attn = jnp.dot(ctx.astype(jnp.bfloat16), ow_ref[l],
                       preferred_element_type=jnp.float32) + ob_ref[l]

        # post-norm transformer block (layer_norm_first=False)
        y = _layer_norm(x + attn, ln1g_ref[l], ln1b_ref[l])
        h1 = _gelu(jnp.dot(y.astype(jnp.bfloat16), fc1w_ref[l],
                           preferred_element_type=jnp.float32) + fc1b_ref[l])
        ffn = jnp.dot(h1.astype(jnp.bfloat16), fc2w_ref[l],
                      preferred_element_type=jnp.float32) + fc2b_ref[l]
        x = _layer_norm(y + ffn, ln2g_ref[l], ln2b_ref[l])

    o_ref[...] = x


def encoder_stack(feats, valid, key_bias, params):
    B, T, C = feats.shape
    args = (feats, valid, key_bias,
            params["fe_ln_g"], params["fe_ln_b"],
            params["proj_w"], params["proj_b"],
            params["pos_taps"], params["pos_b"],
            params["enc_ln_g"], params["enc_ln_b"],
            params["qkv_w"], params["qkv_b"], params["o_w"], params["o_b"],
            params["ln1_g"], params["ln1_b"],
            params["fc1_w"], params["fc1_b"],
            params["fc2_w"], params["fc2_b"],
            params["ln2_g"], params["ln2_b"])
    in_specs = ([_batch_spec((T, C)), _batch_spec((T, 1)), _batch_spec((1, T))]
                + [_rep_spec(a.shape) for a in args[3:]])
    return pl.pallas_call(
        _encoder_stack_kernel,
        grid=(B,),
        out_shape=jax.ShapeDtypeStruct((B, T, ENC_DIM), jnp.float32),
        in_specs=in_specs,
        out_specs=_batch_spec((T, ENC_DIM)),
        compiler_params=_PARAMS,
    )(*args)


# ----------------------------- parameter init --------------------------------
def init_params(key):
    keys = iter(jax.random.split(key, 32))

    def nrm(shape, s=0.05, dtype=jnp.float32):
        return (s * jax.random.normal(next(keys), shape, jnp.float32)).astype(dtype)

    params = {}

    # conv feature extractor: weights pre-reshaped to per-tap (k, C_in, C_out)
    conv_taps = []
    c_in = 1
    for i, (c_out, k, _s) in enumerate(CONV_LAYERS):
        w = nrm((c_out, c_in, k))                     # PyTorch Conv1d layout
        if i == 0:
            # fold the kernel=10 / stride=5 conv over the (T//5, 5)-reshaped
            # waveform into a 2-tap, stride-1 conv with 5 "channels"
            w = w.reshape(c_out, 2, 5)                # (co, tap, ci_eff)
            taps = jnp.transpose(w, (1, 2, 0))        # (2, 5, co)
        else:
            taps = jnp.transpose(w, (2, 1, 0))        # (k, ci, co)
        conv_taps.append(taps.astype(jnp.bfloat16))
        c_in = c_out
    params["conv_taps"] = conv_taps
    params["gn_g"] = jnp.ones((1, CONV_DIM), jnp.float32)
    params["gn_b"] = jnp.zeros((1, CONV_DIM), jnp.float32)

    params["fe_ln_g"] = jnp.ones((1, CONV_DIM), jnp.float32)
    params["fe_ln_b"] = jnp.zeros((1, CONV_DIM), jnp.float32)
    params["proj_w"] = nrm((CONV_DIM, ENC_DIM), dtype=jnp.bfloat16)  # (in,out)
    params["proj_b"] = jnp.zeros((1, ENC_DIM), jnp.float32)

    # grouped positional conv folded into block-diagonal per-tap (E, E) weights
    # TODO(synk): fairseq applies weight_norm to pos_conv; folded into the
    # synthetic static weight here.
    cg = ENC_DIM // POS_CONV_GROUPS
    pw = nrm((ENC_DIM, cg, POS_CONV_KERNEL))          # PyTorch (out, in/g, k)
    taps = jnp.zeros((POS_CONV_KERNEL, ENC_DIM, ENC_DIM), jnp.float32)
    for g in range(POS_CONV_GROUPS):
        blk = jnp.transpose(pw[g * cg:(g + 1) * cg], (2, 1, 0))   # (k, ci, co)
        taps = taps.at[:, g * cg:(g + 1) * cg, g * cg:(g + 1) * cg].set(blk)
    params["pos_taps"] = taps.astype(jnp.bfloat16)
    params["pos_b"] = jnp.zeros((1, ENC_DIM), jnp.float32)
    params["enc_ln_g"] = jnp.ones((1, ENC_DIM), jnp.float32)
    params["enc_ln_b"] = jnp.zeros((1, ENC_DIM), jnp.float32)

    # transformer layers: weights stacked with a leading layer axis; Q/K/V
    # stored per-head as (L*3*H, E, Dh) so head selection is a static view.
    L, H, E, Dh, F = NUM_LAYERS, NUM_HEADS, ENC_DIM, HEAD_DIM, FFN_DIM
    params["qkv_w"] = nrm((L * 3 * H, E, Dh), dtype=jnp.bfloat16)
    params["qkv_b"] = jnp.zeros((L * 3 * H, 1, Dh), jnp.float32)
    params["o_w"] = nrm((L, E, E), dtype=jnp.bfloat16)       # rows = [head, dh]
    params["o_b"] = jnp.zeros((L, 1, E), jnp.float32)
    params["ln1_g"] = jnp.ones((L, 1, E), jnp.float32)
    params["ln1_b"] = jnp.zeros((L, 1, E), jnp.float32)
    params["fc1_w"] = nrm((L, E, F), dtype=jnp.bfloat16)
    params["fc1_b"] = jnp.zeros((L, 1, F), jnp.float32)
    params["fc2_w"] = nrm((L, F, E), dtype=jnp.bfloat16)
    params["fc2_b"] = jnp.zeros((L, 1, E), jnp.float32)
    params["ln2_g"] = jnp.ones((L, 1, E), jnp.float32)
    params["ln2_b"] = jnp.zeros((L, 1, E), jnp.float32)
    return params


# ----------------------------- model forward ---------------------------------
@jax.jit
def extract_features(padded_wav, wav_lengths, params):
    """Equivalent of Wav2Vec2Model.extract_features(source, padding_mask)."""
    B, max_len = padded_wav.shape

    # ---- fused conv feature extractor (single pallas_call) -----------------
    rows = -(-max_len // 5)                                  # ceil(max_len/5)
    wav_r = jnp.pad(padded_wav, ((0, 0), (0, rows * 5 - max_len)))
    x0 = wav_r.reshape(B, rows, 5)                           # layer-0 fold

    meta = []
    t = max_len
    for i, (_c, k, s) in enumerate(CONV_LAYERS):
        t = (t - k) // s + 1
        meta.append((2 if i == 0 else k, 1 if i == 0 else s, t))
    feats = conv_stack(x0, params["conv_taps"], params["gn_g"], params["gn_b"],
                       meta)                                 # (B, T_real, 24)
    T_real = meta[-1][2]

    # pad the time axis to a sublane multiple; padded frames are key-masked
    # and zeroed, so real-frame outputs are unchanged.
    T_pad = _round_up(max(T_real, 8), 8)
    feats = jnp.pad(feats, ((0, 0), (0, T_pad - T_real), (0, 0)))

    # ---- downsampled padding mask (True = padded) --------------------------
    out_len = wav_lengths
    for (_c, k, s) in CONV_LAYERS:
        out_len = (out_len - k) // s + 1
    feat_mask = jnp.arange(T_pad)[None, :] >= out_len[:, None]
    valid = (~feat_mask).astype(jnp.float32)[:, :, None]     # (B, T_pad, 1)
    key_bias = jnp.where(feat_mask, NEG_INF, 0.0).astype(jnp.float32)[:, None, :]

    # ---- fused encoder: LN + proj + pos-conv + all transformer layers ------
    h = encoder_stack(feats, valid, key_bias, params)
    return h, feat_mask


def upstream_forward(wavs, params):
    """UpstreamExpert.forward: list of unpadded wavs -> list of unpadded feats."""
    wav_lengths = [int(w.shape[0]) for w in wavs]
    max_len = max(wav_lengths)
    padded_wav = jnp.stack([jnp.pad(w, (0, max_len - w.shape[0])) for w in wavs])
    features, feat_mask = extract_features(
        padded_wav, jnp.asarray(wav_lengths, jnp.int32), params)
    feat_lengths = features.shape[1] - jnp.sum(feat_mask, axis=-1)
    feat_lengths = [int(l) for l in jax.device_get(feat_lengths)]
    return [features[i, :l] for i, l in enumerate(feat_lengths)]


# ----------------------------- main -------------------------------------------
if __name__ == "__main__":
    key = jax.random.PRNGKey(0)
    pkey, w1key, w2key = jax.random.split(key, 3)
    params = init_params(pkey)

    # two unpadded waveforms of different lengths (downsample rate ~320)
    wav0 = jax.random.normal(w1key, (3200,), jnp.float32)
    wav1 = jax.random.normal(w2key, (2400,), jnp.float32)

    feats = upstream_forward([wav0, wav1], params)
    feats = jax.block_until_ready(feats)

    assert feats[0].shape == (9, ENC_DIM), feats[0].shape
    assert feats[1].shape == (7, ENC_DIM), feats[1].shape
    assert all(bool(jnp.all(jnp.isfinite(f))) for f in feats)
    print("KERNEL_OK")
</pallas_src>

<mosaic_0001>
module attributes {stable_mosaic.version = 11 : i64} {
  func.func @_conv_stack_kernel(%arg0: i32, %arg1: memref<1x640x5xf32, #tpu.memory_space<vmem>>, %arg2: memref<2x5x24xbf16, #tpu.memory_space<vmem>>, %arg3: memref<3x24x24xbf16, #tpu.memory_space<vmem>>, %arg4: memref<3x24x24xbf16, #tpu.memory_space<vmem>>, %arg5: memref<3x24x24xbf16, #tpu.memory_space<vmem>>, %arg6: memref<3x24x24xbf16, #tpu.memory_space<vmem>>, %arg7: memref<2x24x24xbf16, #tpu.memory_space<vmem>>, %arg8: memref<2x24x24xbf16, #tpu.memory_space<vmem>>, %arg9: memref<1x24xf32, #tpu.memory_space<vmem>>, %arg10: memref<1x24xf32, #tpu.memory_space<vmem>>, %arg11: memref<1x9x24xf32, #tpu.memory_space<vmem>>, %arg12: memref<640x24xf32, #tpu.memory_space<vmem>>, %arg13: memref<640x24xf32, #tpu.memory_space<vmem>>) attributes {dimension_semantics = [#tpu.dimension_semantics<parallel>], iteration_bounds = array<i64: 2>, scalar_prefetch = 0 : i64, scratch_operands = 2 : i64, tpu.core_type = #tpu.core_type<tc>, window_params = [{transform_indices = @transform_0, window_bounds = array<i64: 1, 640, 5>}, {pipeline_mode = #tpu.pipeline_mode<synchronous>, transform_indices = @transform_1, window_bounds = array<i64: 2, 5, 24>}, {pipeline_mode = #tpu.pipeline_mode<synchronous>, transform_indices = @transform_2, window_bounds = array<i64: 3, 24, 24>}, {pipeline_mode = #tpu.pipeline_mode<synchronous>, transform_indices = @transform_3, window_bounds = array<i64: 3, 24, 24>}, {pipeline_mode = #tpu.pipeline_mode<synchronous>, transform_indices = @transform_4, window_bounds = array<i64: 3, 24, 24>}, {pipeline_mode = #tpu.pipeline_mode<synchronous>, transform_indices = @transform_5, window_bounds = array<i64: 3, 24, 24>}, {pipeline_mode = #tpu.pipeline_mode<synchronous>, transform_indices = @transform_6, window_bounds = array<i64: 2, 24, 24>}, {pipeline_mode = #tpu.pipeline_mode<synchronous>, transform_indices = @transform_7, window_bounds = array<i64: 2, 24, 24>}, {pipeline_mode = #tpu.pipeline_mode<synchronous>, transform_indices = @transform_8, window_bounds = array<i64: 1, 24>}, {pipeline_mode = #tpu.pipeline_mode<synchronous>, transform_indices = @transform_9, window_bounds = array<i64: 1, 24>}, {transform_indices = @transform_10, window_bounds = array<i64: 1, 9, 24>}]} {
    %cst = arith.constant 0.000000e+00 : f32
    %0 = vector.broadcast %cst : f32 to vector<639x24xf32>
    %c0 = arith.constant 0 : index
    %c0_0 = arith.constant 0 : index
    %c0_1 = arith.constant 0 : index
    %1 = vector.load %arg1[%c0, %c0_0, %c0_1] : memref<1x640x5xf32, #tpu.memory_space<vmem>>, vector<1x639x5xf32>
    %2 = vector.shape_cast %1 : vector<1x639x5xf32> to vector<639x5xf32>
    %3 = arith.truncf %2 : vector<639x5xf32> to vector<639x5xbf16>
    %c0_2 = arith.constant 0 : index
    %c0_3 = arith.constant 0 : index
    %c0_4 = arith.constant 0 : index
    %4 = vector.load %arg2[%c0_2, %c0_3, %c0_4] : memref<2x5x24xbf16, #tpu.memory_space<vmem>>, vector<1x5x24xbf16>
    %5 = vector.shape_cast %4 : vector<1x5x24xbf16> to vector<5x24xbf16>
    %cst_5 = arith.constant dense<0.000000e+00> : vector<639x24xf32>
    %6 = tpu.matmul %3, %5, %cst_5 {dimension_numbers = #tpu.dot_dimension_numbers<[1], [0], [0], [1], [0, 0, 1, 1], [], []>} : vector<639x5xbf16>, vector<5x24xbf16>, vector<639x24xf32> -> vector<639x24xf32>
    %7 = arith.addf %0, %6 : vector<639x24xf32>
    %c0_6 = arith.constant 0 : index
    %c1 = arith.constant 1 : index
    %c0_7 = arith.constant 0 : index
    %8 = vector.load %arg1[%c0_6, %c1, %c0_7] : memref<1x640x5xf32, #tpu.memory_space<vmem>>, vector<1x639x5xf32>
    %9 = vector.shape_cast %8 : vector<1x639x5xf32> to vector<639x5xf32>
    %10 = arith.truncf %9 : vector<639x5xf32> to vector<639x5xbf16>
    %c1_8 = arith.constant 1 : index
    %c0_9 = arith.constant 0 : index
    %c0_10 = arith.constant 0 : index
    %11 = vector.load %arg2[%c1_8, %c0_9, %c0_10] : memref<2x5x24xbf16, #tpu.memory_space<vmem>>, vector<1x5x24xbf16>
    %12 = vector.shape_cast %11 : vector<1x5x24xbf16> to vector<5x24xbf16>
    %cst_11 = arith.constant dense<0.000000e+00> : vector<639x24xf32>
    %13 = tpu.matmul %10, %12, %cst_11 {dimension_numbers = #tpu.dot_dimension_numbers<[1], [0], [0], [1], [0, 0, 1, 1], [], []>} : vector<639x5xbf16>, vector<5x24xbf16>, vector<639x24xf32> -> vector<639x24xf32>
    %14 = arith.addf %7, %13 : vector<639x24xf32>
    %cst_12 = arith.constant dense<0.000000e+00> : vector<24xf32>
    %15 = vector.multi_reduction <add>, %14, %cst_12 [0] : vector<639x24xf32> to vector<24xf32>
    %16 = vector.shape_cast %15 : vector<24xf32> to vector<1x24xf32>
    %cst_13 = arith.constant 6.390000e+02 : f32
    %17 = vector.broadcast %cst_13 : f32 to vector<1x24xf32>
    %18 = arith.divf %16, %17 : vector<1x24xf32>
    %19 = vector.broadcast %18 : vector<1x24xf32> to vector<639x24xf32>
    %20 = arith.subf %14, %19 : vector<639x24xf32>
    %21 = arith.mulf %20, %20 : vector<639x24xf32>
    %cst_14 = arith.constant dense<0.000000e+00> : vector<24xf32>
    %22 = vector.multi_reduction <add>, %21, %cst_14 [0] : vector<639x24xf32> to vector<24xf32>
    %23 = vector.shape_cast %22 : vector<24xf32> to vector<1x24xf32>
    %cst_15 = arith.constant 6.390000e+02 : f32
    %24 = vector.broadcast %cst_15 : f32 to vector<1x24xf32>
    %25 = arith.divf %23, %24 : vector<1x24xf32>
    %cst_16 = arith.constant 9.99999974E-6 : f32
    %26 = vector.broadcast %cst_16 : f32 to vector<1x24xf32>
    %27 = arith.addf %25, %26 : vector<1x24xf32>
    %28 = math.rsqrt %27 : vector<1x24xf32>
    %29 = vector.broadcast %28 : vector<1x24xf32> to vector<639x24xf32>
    %30 = arith.mulf %20, %29 : vector<639x24xf32>
    %c0_17 = arith.constant 0 : index
    %c0_18 = arith.constant 0 : index
    %31 = vector.load %arg9[%c0_17, %c0_18] : memref<1x24xf32, #tpu.memory_space<vmem>>, vector<1x24xf32>
    %32 = vector.broadcast %31 : vector<1x24xf32> to vector<639x24xf32>
    %33 = arith.mulf %30, %32 : vector<639x24xf32>
    %c0_19 = arith.constant 0 : index
    %c0_20 = arith.constant 0 : index
    %34 = vector.load %arg10[%c0_19, %c0_20] : memref<1x24xf32, #tpu.memory_space<vmem>>, vector<1x24xf32>
    %35 = vector.broadcast %34 : vector<1x24xf32> to vector<639x24xf32>
    %36 = arith.addf %33, %35 : vector<639x24xf32>
    %cst_21 = arith.constant 5.000000e-01 : f32
    %37 = vector.broadcast %cst_21 : f32 to vector<639x24xf32>
    %38 = arith.mulf %37, %36 : vector<639x24xf32>
    %cst_22 = arith.constant 4.471500e-02 : f32
    %39 = vector.broadcast %cst_22 : f32 to vector<639x24xf32>
    %40 = arith.mulf %39, %36 : vector<639x24xf32>
    %41 = arith.mulf %40, %36 : vector<639x24xf32>
    %42 = arith.mulf %41, %36 : vector<639x24xf32>
    %43 = arith.addf %36, %42 : vector<639x24xf32>
    %cst_23 = arith.constant 0.797884583 : f32
    %44 = vector.broadcast %cst_23 : f32 to vector<639x24xf32>
    %45 = arith.mulf %44, %43 : vector<639x24xf32>
    %46 = math.tanh %45 : vector<639x24xf32>
    %cst_24 = arith.constant 1.000000e+00 : f32
    %47 = vector.broadcast %cst_24 : f32 to vector<639x24xf32>
    %48 = arith.addf %47, %46 : vector<639x24xf32>
    %49 = arith.mulf %38, %48 : vector<639x24xf32>
    %c0_25 = arith.constant 0 : index
    %c0_26 = arith.constant 0 : index
    %50 = vector.load %arg12[%c0_25, %c0_26] : memref<640x24xf32, #tpu.memory_space<vmem>>, vector<639x24xf32>
    tpu.vector_store %arg12[%c0_25, %c0_26], %49 {strides = array<i32>} : memref<640x24xf32, #tpu.memory_space<vmem>>, vector<639x24xf32>,
    %cst_27 = arith.constant 0.000000e+00 : f32
    %51 = vector.broadcast %cst_27 : f32 to vector<319x24xf32>
    %c0_28 = arith.constant 0 : index
    %c0_29 = arith.constant 0 : index
    %52 = tpu.strided_load %arg12[%c0_28, %c0_29] {strides = array<i32: 2, 1>} : memref<640x24xf32, #tpu.memory_space<vmem>>, vector<319x24xf32>
    %53 = arith.truncf %52 : vector<319x24xf32> to vector<319x24xbf16>
    %c0_30 = arith.constant 0 : index
    %c0_31 = arith.constant 0 : index
    %c0_32 = arith.constant 0 : index
    %54 = vector.load %arg3[%c0_30, %c0_31, %c0_32] : memref<3x24x24xbf16, #tpu.memory_space<vmem>>, vector<1x24x24xbf16>
    %55 = vector.shape_cast %54 : vector<1x24x24xbf16> to vector<24x24xbf16>
    %cst_33 = arith.constant dense<0.000000e+00> : vector<319x24xf32>
    %56 = tpu.matmul %53, %55, %cst_33 {dimension_numbers = #tpu.dot_dimension_numbers<[1], [0], [0], [1], [0, 0, 1, 1], [], []>} : vector<319x24xbf16>, vector<24x24xbf16>, vector<319x24xf32> -> vector<319x24xf32>
    %57 = arith.addf %51, %56 : vector<319x24xf32>
    %c1_34 = arith.constant 1 : index
    %c0_35 = arith.constant 0 : index
    %58 = tpu.strided_load %arg12[%c1_34, %c0_35] {strides = array<i32: 2, 1>} : memref<640x24xf32, #tpu.memory_space<vmem>>, vector<319x24xf32>
    %59 = arith.truncf %58 : vector<319x24xf32> to vector<319x24xbf16>
    %c1_36 = arith.constant 1 : index
    %c0_37 = arith.constant 0 : index
    %c0_38 = arith.constant 0 : index
    %60 = vector.load %arg3[%c1_36, %c0_37, %c0_38] : memref<3x24x24xbf16, #tpu.memory_space<vmem>>, vector<1x24x24xbf16>
    %61 = vector.shape_cast %60 : vector<1x24x24xbf16> to vector<24x24xbf16>
    %cst_39 = arith.constant dense<0.000000e+00> : vector<319x24xf32>
    %62 = tpu.matmul %59, %61, %cst_39 {dimension_numbers = #tpu.dot_dimension_numbers<[1], [0], [0], [1], [0, 0, 1, 1], [], []>} : vector<319x24xbf16>, vector<24x24xbf16>, vector<319x24xf32> -> vector<319x24xf32>
    %63 = arith.addf %57, %62 : vector<319x24xf32>
    %c2 = arith.constant 2 : index
    %c0_40 = arith.constant 0 : index
    %64 = tpu.strided_load %arg12[%c2, %c0_40] {strides = array<i32: 2, 1>} : memref<640x24xf32, #tpu.memory_space<vmem>>, vector<319x24xf32>
    %65 = arith.truncf %64 : vector<319x24xf32> to vector<319x24xbf16>
    %c2_41 = arith.constant 2 : index
    %c0_42 = arith.constant 0 : index
    %c0_43 = arith.constant 0 : index
    %66 = vector.load %arg3[%c2_41, %c0_42, %c0_43] : memref<3x24x24xbf16, #tpu.memory_space<vmem>>, vector<1x24x24xbf16>
    %67 = vector.shape_cast %66 : vector<1x24x24xbf16> to vector<24x24xbf16>
    %cst_44 = arith.constant dense<0.000000e+00> : vector<319x24xf32>
    %68 = tpu.matmul %65, %67, %cst_44 {dimension_numbers = #tpu.dot_dimension_numbers<[1], [0], [0], [1], [0, 0, 1, 1], [], []>} : vector<319x24xbf16>, vector<24x24xbf16>, vector<319x24xf32> -> vector<319x24xf32>
    %69 = arith.addf %63, %68 : vector<319x24xf32>
    %cst_45 = arith.constant 5.000000e-01 : f32
    %70 = vector.broadcast %cst_45 : f32 to vector<319x24xf32>
    %71 = arith.mulf %70, %69 : vector<319x24xf32>
    %cst_46 = arith.constant 4.471500e-02 : f32
    %72 = vector.broadcast %cst_46 : f32 to vector<319x24xf32>
    %73 = arith.mulf %72, %69 : vector<319x24xf32>
    %74 = arith.mulf %73, %69 : vector<319x24xf32>
    %75 = arith.mulf %74, %69 : vector<319x24xf32>
    %76 = arith.addf %69, %75 : vector<319x24xf32>
    %cst_47 = arith.constant 0.797884583 : f32
    %77 = vector.broadcast %cst_47 : f32 to vector<319x24xf32>
    %78 = arith.mulf %77, %76 : vector<319x24xf32>
    %79 = math.tanh %78 : vector<319x24xf32>
    %cst_48 = arith.constant 1.000000e+00 : f32
    %80 = vector.broadcast %cst_48 : f32 to vector<319x24xf32>
    %81 = arith.addf %80, %79 : vector<319x24xf32>
    %82 = arith.mulf %71, %81 : vector<319x24xf32>
    %c0_49 = arith.constant 0 : index
    %c0_50 = arith.constant 0 : index
    %83 = vector.load %arg13[%c0_49, %c0_50] : memref<640x24xf32, #tpu.memory_space<vmem>>, vector<319x24xf32>
    tpu.vector_store %arg13[%c0_49, %c0_50], %82 {strides = array<i32>} : memref<640x24xf32, #tpu.memory_space<vmem>>, vector<319x24xf32>,
    %cst_51 = arith.constant 0.000000e+00 : f32
    %84 = vector.broadcast %cst_51 : f32 to vector<159x24xf32>
    %c0_52 = arith.constant 0 : index
    %c0_53 = arith.constant 0 : index
    %85 = tpu.strided_load %arg13[%c0_52, %c0_53] {strides = array<i32: 2, 1>} : memref<640x24xf32, #tpu.memory_space<vmem>>, vector<159x24xf32>
    %86 = arith.truncf %85 : vector<159x24xf32> to vector<159x24xbf16>
    %c0_54 = arith.constant 0 : index
    %c0_55 = arith.constant 0 : index
    %c0_56 = arith.constant 0 : index
    %87 = vector.load %arg4[%c0_54, %c0_55, %c0_56] : memref<3x24x24xbf16, #tpu.memory_space<vmem>>, vector<1x24x24xbf16>
    %88 = vector.shape_cast %87 : vector<1x24x24xbf16> to vector<24x24xbf16>
    %cst_57 = arith.constant dense<0.000000e+00> : vector<159x24xf32>
    %89 = tpu.matmul %86, %88, %cst_57 {dimension_numbers = #tpu.dot_dimension_numbers<[1], [0], [0], [1], [0, 0, 1, 1], [], []>} : vector<159x24xbf16>, vector<24x24xbf16>, vector<159x24xf32> -> vector<159x24xf32>
    %90 = arith.addf %84, %89 : vector<159x24xf32>
    %c1_58 = arith.constant 1 : index
    %c0_59 = arith.constant 0 : index
    %91 = tpu.strided_load %arg13[%c1_58, %c0_59] {strides = array<i32: 2, 1>} : memref<640x24xf32, #tpu.memory_space<vmem>>, vector<159x24xf32>
    %92 = arith.truncf %91 : vector<159x24xf32> to vector<159x24xbf16>
    %c1_60 = arith.constant 1 : index
    %c0_61 = arith.constant 0 : index
    %c0_62 = arith.constant 0 : index
    %93 = vector.load %arg4[%c1_60, %c0_61, %c0_62] : memref<3x24x24xbf16, #tpu.memory_space<vmem>>, vector<1x24x24xbf16>
    %94 = vector.shape_cast %93 : vector<1x24x24xbf16> to vector<24x24xbf16>
    %cst_63 = arith.constant dense<0.000000e+00> : vector<159x24xf32>
    %95 = tpu.matmul %92, %94, %cst_63 {dimension_numbers = #tpu.dot_dimension_numbers<[1], [0], [0], [1], [0, 0, 1, 1], [], []>} : vector<159x24xbf16>, vector<24x24xbf16>, vector<159x24xf32> -> vector<159x24xf32>
    %96 = arith.addf %90, %95 : vector<159x24xf32>
    %c2_64 = arith.constant 2 : index
    %c0_65 = arith.constant 0 : index
    %97 = tpu.strided_load %arg13[%c2_64, %c0_65] {strides = array<i32: 2, 1>} : memref<640x24xf32, #tpu.memory_space<vmem>>, vector<159x24xf32>
    %98 = arith.truncf %97 : vector<159x24xf32> to vector<159x24xbf16>
    %c2_66 = arith.constant 2 : index
    %c0_67 = arith.constant 0 : index
    %c0_68 = arith.constant 0 : index
    %99 = vector.load %arg4[%c2_66, %c0_67, %c0_68] : memref<3x24x24xbf16, #tpu.memory_space<vmem>>, vector<1x24x24xbf16>
    %100 = vector.shape_cast %99 : vector<1x24x24xbf16> to vector<24x24xbf16>
    %cst_69 = arith.constant dense<0.000000e+00> : vector<159x24xf32>
    %101 = tpu.matmul %98, %100, %cst_69 {dimension_numbers = #tpu.dot_dimension_numbers<[1], [0], [0], [1], [0, 0, 1, 1], [], []>} : vector<159x24xbf16>, vector<24x24xbf16>, vector<159x24xf32> -> vector<159x24xf32>
    %102 = arith.addf %96, %101 : vector<159x24xf32>
    %cst_70 = arith.constant 5.000000e-01 : f32
    %103 = vector.broadcast %cst_70 : f32 to vector<159x24xf32>
    %104 = arith.mulf %103, %102 : vector<159x24xf32>
    %cst_71 = arith.constant 4.471500e-02 : f32
    %105 = vector.broadcast %cst_71 : f32 to vector<159x24xf32>
    %106 = arith.mulf %105, %102 : vector<159x24xf32>
    %107 = arith.mulf %106, %102 : vector<159x24xf32>
    %108 = arith.mulf %107, %102 : vector<159x24xf32>
    %109 = arith.addf %102, %108 : vector<159x24xf32>
    %cst_72 = arith.constant 0.797884583 : f32
    %110 = vector.broadcast %cst_72 : f32 to vector<159x24xf32>
    %111 = arith.mulf %110, %109 : vector<159x24xf32>
    %112 = math.tanh %111 : vector<159x24xf32>
    %cst_73 = arith.constant 1.000000e+00 : f32
    %113 = vector.broadcast %cst_73 : f32 to vector<159x24xf32>
    %114 = arith.addf %113, %112 : vector<159x24xf32>
    %115 = arith.mulf %104, %114 : vector<159x24xf32>
    %c0_74 = arith.constant 0 : index
    %c0_75 = arith.constant 0 : index
    %116 = vector.load %arg12[%c0_74, %c0_75] : memref<640x24xf32, #tpu.memory_space<vmem>>, vector<159x24xf32>
    tpu.vector_store %arg12[%c0_74, %c0_75], %115 {strides = array<i32>} : memref<640x24xf32, #tpu.memory_space<vmem>>, vector<159x24xf32>,
    %cst_76 = arith.constant 0.000000e+00 : f32
    %117 = vector.broadcast %cst_76 : f32 to vector<79x24xf32>
    %c0_77 = arith.constant 0 : index
    %c0_78 = arith.constant 0 : index
    %118 = tpu.strided_load %arg12[%c0_77, %c0_78] {strides = array<i32: 2, 1>} : memref<640x24xf32, #tpu.memory_space<vmem>>, vector<79x24xf32>
    %119 = arith.truncf %118 : vector<79x24xf32> to vector<79x24xbf16>
    %c0_79 = arith.constant 0 : index
    %c0_80 = arith.constant 0 : index
    %c0_81 = arith.constant 0 : index
    %120 = vector.load %arg5[%c0_79, %c0_80, %c0_81] : memref<3x24x24xbf16, #tpu.memory_space<vmem>>, vector<1x24x24xbf16>
    %121 = vector.shape_cast %120 : vector<1x24x24xbf16> to vector<24x24xbf16>
    %cst_82 = arith.constant dense<0.000000e+00> : vector<79x24xf32>
    %122 = tpu.matmul %119, %121, %cst_82 {dimension_numbers = #tpu.dot_dimension_numbers<[1], [0], [0], [1], [0, 0, 1, 1], [], []>} : vector<79x24xbf16>, vector<24x24xbf16>, vector<79x24xf32> -> vector<79x24xf32>
    %123 = arith.addf %117, %122 : vector<79x24xf32>
    %c1_83 = arith.constant 1 : index
    %c0_84 = arith.constant 0 : index
    %124 = tpu.strided_load %arg12[%c1_83, %c0_84] {strides = array<i32: 2, 1>} : memref<640x24xf32, #tpu.memory_space<vmem>>, vector<79x24xf32>
    %125 = arith.truncf %124 : vector<79x24xf32> to vector<79x24xbf16>
    %c1_85 = arith.constant 1 : index
    %c0_86 = arith.constant 0 : index
    %c0_87 = arith.constant 0 : index
    %126 = vector.load %arg5[%c1_85, %c0_86, %c0_87] : memref<3x24x24xbf16, #tpu.memory_space<vmem>>, vector<1x24x24xbf16>
    %127 = vector.shape_cast %126 : vector<1x24x24xbf16> to vector<24x24xbf16>
    %cst_88 = arith.constant dense<0.000000e+00> : vector<79x24xf32>
    %128 = tpu.matmul %125, %127, %cst_88 {dimension_numbers = #tpu.dot_dimension_numbers<[1], [0], [0], [1], [0, 0, 1, 1], [], []>} : vector<79x24xbf16>, vector<24x24xbf16>, vector<79x24xf32> -> vector<79x24xf32>
    %129 = arith.addf %123, %128 : vector<79x24xf32>
    %c2_89 = arith.constant 2 : index
    %c0_90 = arith.constant 0 : index
    %130 = tpu.strided_load %arg12[%c2_89, %c0_90] {strides = array<i32: 2, 1>} : memref<640x24xf32, #tpu.memory_space<vmem>>, vector<79x24xf32>
    %131 = arith.truncf %130 : vector<79x24xf32> to vector<79x24xbf16>
    %c2_91 = arith.constant 2 : index
    %c0_92 = arith.constant 0 : index
    %c0_93 = arith.constant 0 : index
    %132 = vector.load %arg5[%c2_91, %c0_92, %c0_93] : memref<3x24x24xbf16, #tpu.memory_space<vmem>>, vector<1x24x24xbf16>
    %133 = vector.shape_cast %132 : vector<1x24x24xbf16> to vector<24x24xbf16>
    %cst_94 = arith.constant dense<0.000000e+00> : vector<79x24xf32>
    %134 = tpu.matmul %131, %133, %cst_94 {dimension_numbers = #tpu.dot_dimension_numbers<[1], [0], [0], [1], [0, 0, 1, 1], [], []>} : vector<79x24xbf16>, vector<24x24xbf16>, vector<79x24xf32> -> vector<79x24xf32>
    %135 = arith.addf %129, %134 : vector<79x24xf32>
    %cst_95 = arith.constant 5.000000e-01 : f32
    %136 = vector.broadcast %cst_95 : f32 to vector<79x24xf32>
    %137 = arith.mulf %136, %135 : vector<79x24xf32>
    %cst_96 = arith.constant 4.471500e-02 : f32
    %138 = vector.broadcast %cst_96 : f32 to vector<79x24xf32>
    %139 = arith.mulf %138, %135 : vector<79x24xf32>
    %140 = arith.mulf %139, %135 : vector<79x24xf32>
    %141 = arith.mulf %140, %135 : vector<79x24xf32>
    %142 = arith.addf %135, %141 : vector<79x24xf32>
    %cst_97 = arith.constant 0.797884583 : f32
    %143 = vector.broadcast %cst_97 : f32 to vector<79x24xf32>
    %144 = arith.mulf %143, %142 : vector<79x24xf32>
    %145 = math.tanh %144 : vector<79x24xf32>
    %cst_98 = arith.constant 1.000000e+00 : f32
    %146 = vector.broadcast %cst_98 : f32 to vector<79x24xf32>
    %147 = arith.addf %146, %145 : vector<79x24xf32>
    %148 = arith.mulf %137, %147 : vector<79x24xf32>
    %c0_99 = arith.constant 0 : index
    %c0_100 = arith.constant 0 : index
    %149 = vector.load %arg13[%c0_99, %c0_100] : memref<640x24xf32, #tpu.memory_space<vmem>>, vector<79x24xf32>
    tpu.vector_store %arg13[%c0_99, %c0_100], %148 {strides = array<i32>} : memref<640x24xf32, #tpu.memory_space<vmem>>, vector<79x24xf32>,
    %cst_101 = arith.constant 0.000000e+00 : f32
    %150 = vector.broadcast %cst_101 : f32 to vector<39x24xf32>
    %c0_102 = arith.constant 0 : index
    %c0_103 = arith.constant 0 : index
    %151 = tpu.strided_load %arg13[%c0_102, %c0_103] {strides = array<i32: 2, 1>} : memref<640x24xf32, #tpu.memory_space<vmem>>, vector<39x24xf32>
    %152 = arith.truncf %151 : vector<39x24xf32> to vector<39x24xbf16>
    %c0_104 = arith.constant 0 : index
    %c0_105 = arith.constant 0 : index
    %c0_106 = arith.constant 0 : index
    %153 = vector.load %arg6[%c0_104, %c0_105, %c0_106] : memref<3x24x24xbf16, #tpu.memory_space<vmem>>, vector<1x24x24xbf16>
    %154 = vector.shape_cast %153 : vector<1x24x24xbf16> to vector<24x24xbf16>
    %cst_107 = arith.constant dense<0.000000e+00> : vector<39x24xf32>
    %155 = tpu.matmul %152, %154, %cst_107 {dimension_numbers = #tpu.dot_dimension_numbers<[1], [0], [0], [1], [0, 0, 1, 1], [], []>} : vector<39x24xbf16>, vector<24x24xbf16>, vector<39x24xf32> -> vector<39x24xf32>
    %156 = arith.addf %150, %155 : vector<39x24xf32>
    %c1_108 = arith.constant 1 : index
    %c0_109 = arith.constant 0 : index
    %157 = tpu.strided_load %arg13[%c1_108, %c0_109] {strides = array<i32: 2, 1>} : memref<640x24xf32, #tpu.memory_space<vmem>>, vector<39x24xf32>
    %158 = arith.truncf %157 : vector<39x24xf32> to vector<39x24xbf16>
    %c1_110 = arith.constant 1 : index
    %c0_111 = arith.constant 0 : index
    %c0_112 = arith.constant 0 : index
    %159 = vector.load %arg6[%c1_110, %c0_111, %c0_112] : memref<3x24x24xbf16, #tpu.memory_space<vmem>>, vector<1x24x24xbf16>
    %160 = vector.shape_cast %159 : vector<1x24x24xbf16> to vector<24x24xbf16>
    %cst_113 = arith.constant dense<0.000000e+00> : vector<39x24xf32>
    %161 = tpu.matmul %158, %160, %cst_113 {dimension_numbers = #tpu.dot_dimension_numbers<[1], [0], [0], [1], [0, 0, 1, 1], [], []>} : vector<39x24xbf16>, vector<24x24xbf16>, vector<39x24xf32> -> vector<39x24xf32>
    %162 = arith.addf %156, %161 : vector<39x24xf32>
    %c2_114 = arith.constant 2 : index
    %c0_115 = arith.constant 0 : index
    %163 = tpu.strided_load %arg13[%c2_114, %c0_115] {strides = array<i32: 2, 1>} : memref<640x24xf32, #tpu.memory_space<vmem>>, vector<39x24xf32>
    %164 = arith.truncf %163 : vector<39x24xf32> to vector<39x24xbf16>
    %c2_116 = arith.constant 2 : index
    %c0_117 = arith.constant 0 : index
    %c0_118 = arith.constant 0 : index
    %165 = vector.load %arg6[%c2_116, %c0_117, %c0_118] : memref<3x24x24xbf16, #tpu.memory_space<vmem>>, vector<1x24x24xbf16>
    %166 = vector.shape_cast %165 : vector<1x24x24xbf16> to vector<24x24xbf16>
    %cst_119 = arith.constant dense<0.000000e+00> : vector<39x24xf32>
    %167 = tpu.matmul %164, %166, %cst_119 {dimension_numbers = #tpu.dot_dimension_numbers<[1], [0], [0], [1], [0, 0, 1, 1], [], []>} : vector<39x24xbf16>, vector<24x24xbf16>, vector<39x24xf32> -> vector<39x24xf32>
    %168 = arith.addf %162, %167 : vector<39x24xf32>
    %cst_120 = arith.constant 5.000000e-01 : f32
    %169 = vector.broadcast %cst_120 : f32 to vector<39x24xf32>
    %170 = arith.mulf %169, %168 : vector<39x24xf32>
    %cst_121 = arith.constant 4.471500e-02 : f32
    %171 = vector.broadcast %cst_121 : f32 to vector<39x24xf32>
    %172 = arith.mulf %171, %168 : vector<39x24xf32>
    %173 = arith.mulf %172, %168 : vector<39x24xf32>
    %174 = arith.mulf %173, %168 : vector<39x24xf32>
    %175 = arith.addf %168, %174 : vector<39x24xf32>
    %cst_122 = arith.constant 0.797884583 : f32
    %176 = vector.broadcast %cst_122 : f32 to vector<39x24xf32>
    %177 = arith.mulf %176, %175 : vector<39x24xf32>
    %178 = math.tanh %177 : vector<39x24xf32>
    %cst_123 = arith.constant 1.000000e+00 : f32
    %179 = vector.broadcast %cst_123 : f32 to vector<39x24xf32>
    %180 = arith.addf %179, %178 : vector<39x24xf32>
    %181 = arith.mulf %170, %180 : vector<39x24xf32>
    %c0_124 = arith.constant 0 : index
    %c0_125 = arith.constant 0 : index
    %182 = vector.load %arg12[%c0_124, %c0_125] : memref<640x24xf32, #tpu.memory_space<vmem>>, vector<39x24xf32>
    tpu.vector_store %arg12[%c0_124, %c0_125], %181 {strides = array<i32>} : memref<640x24xf32, #tpu.memory_space<vmem>>, vector<39x24xf32>,
    %cst_126 = arith.constant 0.000000e+00 : f32
    %183 = vector.broadcast %cst_126 : f32 to vector<19x24xf32>
    %c0_127 = arith.constant 0 : index
    %c0_128 = arith.constant 0 : index
    %184 = tpu.strided_load %arg12[%c0_127, %c0_128] {strides = array<i32: 2, 1>} : memref<640x24xf32, #tpu.memory_space<vmem>>, vector<19x24xf32>
    %185 = arith.truncf %184 : vector<19x24xf32> to vector<19x24xbf16>
    %c0_129 = arith.constant 0 : index
    %c0_130 = arith.constant 0 : index
    %c0_131 = arith.constant 0 : index
    %186 = vector.load %arg7[%c0_129, %c0_130, %c0_131] : memref<2x24x24xbf16, #tpu.memory_space<vmem>>, vector<1x24x24xbf16>
    %187 = vector.shape_cast %186 : vector<1x24x24xbf16> to vector<24x24xbf16>
    %cst_132 = arith.constant dense<0.000000e+00> : vector<19x24xf32>
    %188 = tpu.matmul %185, %187, %cst_132 {dimension_numbers = #tpu.dot_dimension_numbers<[1], [0], [0], [1], [0, 0, 1, 1], [], []>} : vector<19x24xbf16>, vector<24x24xbf16>, vector<19x24xf32> -> vector<19x24xf32>
    %189 = arith.addf %183, %188 : vector<19x24xf32>
    %c1_133 = arith.constant 1 : index
    %c0_134 = arith.constant 0 : index
    %190 = tpu.strided_load %arg12[%c1_133, %c0_134] {strides = array<i32: 2, 1>} : memref<640x24xf32, #tpu.memory_space<vmem>>, vector<19x24xf32>
    %191 = arith.truncf %190 : vector<19x24xf32> to vector<19x24xbf16>
    %c1_135 = arith.constant 1 : index
    %c0_136 = arith.constant 0 : index
    %c0_137 = arith.constant 0 : index
    %192 = vector.load %arg7[%c1_135, %c0_136, %c0_137] : memref<2x24x24xbf16, #tpu.memory_space<vmem>>, vector<1x24x24xbf16>
    %193 = vector.shape_cast %192 : vector<1x24x24xbf16> to vector<24x24xbf16>
    %cst_138 = arith.constant dense<0.000000e+00> : vector<19x24xf32>
    %194 = tpu.matmul %191, %193, %cst_138 {dimension_numbers = #tpu.dot_dimension_numbers<[1], [0], [0], [1], [0, 0, 1, 1], [], []>} : vector<19x24xbf16>, vector<24x24xbf16>, vector<19x24xf32> -> vector<19x24xf32>
    %195 = arith.addf %189, %194 : vector<19x24xf32>
    %cst_139 = arith.constant 5.000000e-01 : f32
    %196 = vector.broadcast %cst_139 : f32 to vector<19x24xf32>
    %197 = arith.mulf %196, %195 : vector<19x24xf32>
    %cst_140 = arith.constant 4.471500e-02 : f32
    %198 = vector.broadcast %cst_140 : f32 to vector<19x24xf32>
    %199 = arith.mulf %198, %195 : vector<19x24xf32>
    %200 = arith.mulf %199, %195 : vector<19x24xf32>
    %201 = arith.mulf %200, %195 : vector<19x24xf32>
    %202 = arith.addf %195, %201 : vector<19x24xf32>
    %cst_141 = arith.constant 0.797884583 : f32
    %203 = vector.broadcast %cst_141 : f32 to vector<19x24xf32>
    %204 = arith.mulf %203, %202 : vector<19x24xf32>
    %205 = math.tanh %204 : vector<19x24xf32>
    %cst_142 = arith.constant 1.000000e+00 : f32
    %206 = vector.broadcast %cst_142 : f32 to vector<19x24xf32>
    %207 = arith.addf %206, %205 : vector<19x24xf32>
    %208 = arith.mulf %197, %207 : vector<19x24xf32>
    %c0_143 = arith.constant 0 : index
    %c0_144 = arith.constant 0 : index
    %209 = vector.load %arg13[%c0_143, %c0_144] : memref<640x24xf32, #tpu.memory_space<vmem>>, vector<19x24xf32>
    tpu.vector_store %arg13[%c0_143, %c0_144], %208 {strides = array<i32>} : memref<640x24xf32, #tpu.memory_space<vmem>>, vector<19x24xf32>,
    %cst_145 = arith.constant 0.000000e+00 : f32
    %210 = vector.broadcast %cst_145 : f32 to vector<9x24xf32>
    %c0_146 = arith.constant 0 : index
    %c0_147 = arith.constant 0 : index
    %211 = tpu.strided_load %arg13[%c0_146, %c0_147] {strides = array<i32: 2, 1>} : memref<640x24xf32, #tpu.memory_space<vmem>>, vector<9x24xf32>
    %212 = arith.truncf %211 : vector<9x24xf32> to vector<9x24xbf16>
    %c0_148 = arith.constant 0 : index
    %c0_149 = arith.constant 0 : index
    %c0_150 = arith.constant 0 : index
    %213 = vector.load %arg8[%c0_148, %c0_149, %c0_150] : memref<2x24x24xbf16, #tpu.memory_space<vmem>>, vector<1x24x24xbf16>
    %214 = vector.shape_cast %213 : vector<1x24x24xbf16> to vector<24x24xbf16>
    %cst_151 = arith.constant dense<0.000000e+00> : vector<9x24xf32>
    %215 = tpu.matmul %212, %214, %cst_151 {dimension_numbers = #tpu.dot_dimension_numbers<[1], [0], [0], [1], [0, 0, 1, 1], [], []>} : vector<9x24xbf16>, vector<24x24xbf16>, vector<9x24xf32> -> vector<9x24xf32>
    %216 = arith.addf %210, %215 : vector<9x24xf32>
    %c1_152 = arith.constant 1 : index
    %c0_153 = arith.constant 0 : index
    %217 = tpu.strided_load %arg13[%c1_152, %c0_153] {strides = array<i32: 2, 1>} : memref<640x24xf32, #tpu.memory_space<vmem>>, vector<9x24xf32>
    %218 = arith.truncf %217 : vector<9x24xf32> to vector<9x24xbf16>
    %c1_154 = arith.constant 1 : index
    %c0_155 = arith.constant 0 : index
    %c0_156 = arith.constant 0 : index
    %219 = vector.load %arg8[%c1_154, %c0_155, %c0_156] : memref<2x24x24xbf16, #tpu.memory_space<vmem>>, vector<1x24x24xbf16>
    %220 = vector.shape_cast %219 : vector<1x24x24xbf16> to vector<24x24xbf16>
    %cst_157 = arith.constant dense<0.000000e+00> : vector<9x24xf32>
    %221 = tpu.matmul %218, %220, %cst_157 {dimension_numbers = #tpu.dot_dimension_numbers<[1], [0], [0], [1], [0, 0, 1, 1], [], []>} : vector<9x24xbf16>, vector<24x24xbf16>, vector<9x24xf32> -> vector<9x24xf32>
    %222 = arith.addf %216, %221 : vector<9x24xf32>
    %cst_158 = arith.constant 5.000000e-01 : f32
    %223 = vector.broadcast %cst_158 : f32 to vector<9x24xf32>
    %224 = arith.mulf %223, %222 : vector<9x24xf32>
    %cst_159 = arith.constant 4.471500e-02 : f32
    %225 = vector.broadcast %cst_159 : f32 to vector<9x24xf32>
    %226 = arith.mulf %225, %222 : vector<9x24xf32>
    %227 = arith.mulf %226, %222 : vector<9x24xf32>
    %228 = arith.mulf %227, %222 : vector<9x24xf32>
    %229 = arith.addf %222, %228 : vector<9x24xf32>
    %cst_160 = arith.constant 0.797884583 : f32
    %230 = vector.broadcast %cst_160 : f32 to vector<9x24xf32>
    %231 = arith.mulf %230, %229 : vector<9x24xf32>
    %232 = math.tanh %231 : vector<9x24xf32>
    %cst_161 = arith.constant 1.000000e+00 : f32
    %233 = vector.broadcast %cst_161 : f32 to vector<9x24xf32>
    %234 = arith.addf %233, %232 : vector<9x24xf32>
    %235 = arith.mulf %224, %234 : vector<9x24xf32>
    %c0_162 = arith.constant 0 : index
    %c0_163 = arith.constant 0 : index
    %c0_164 = arith.constant 0 : index
    %236 = vector.load %arg11[%c0_162, %c0_163, %c0_164] : memref<1x9x24xf32, #tpu.memory_space<vmem>>, vector<1x9x24xf32>
    %237 = vector.shape_cast %236 : vector<1x9x24xf32> to vector<9x24xf32>
    %238 = vector.shape_cast %235 : vector<9x24xf32> to vector<1x9x24xf32>
    tpu.vector_store %arg11[%c0_162, %c0_163, %c0_164], %238 {strides = array<i32>} : memref<1x9x24xf32, #tpu.memory_space<vmem>>, vector<1x9x24xf32>,
    return
  }
  func.func @transform_0(%arg0: i32) -> (i32, i32, i32) {
    %c0_i32 = arith.constant 0 : i32
    %c0_i32_0 = arith.constant 0 : i32
    %c0_i32_1 = arith.constant 0 : i32
    return %arg0, %c0_i32, %c0_i32_0 : i32, i32, i32
  }
  func.func @transform_1(%arg0: i32) -> (i32, i32, i32) {
    %c0_i32 = arith.constant 0 : i32
    %c0_i32_0 = arith.constant 0 : i32
    %c0_i32_1 = arith.constant 0 : i32
    %c0_i32_2 = arith.constant 0 : i32
    return %c0_i32, %c0_i32_0, %c0_i32_1 : i32, i32, i32
  }
  func.func @transform_2(%arg0: i32) -> (i32, i32, i32) {
    %c0_i32 = arith.constant 0 : i32
    %c0_i32_0 = arith.constant 0 : i32
    %c0_i32_1 = arith.constant 0 : i32
    %c0_i32_2 = arith.constant 0 : i32
    return %c0_i32, %c0_i32_0, %c0_i32_1 : i32, i32, i32
  }
  func.func @transform_3(%arg0: i32) -> (i32, i32, i32) {
    %c0_i32 = arith.constant 0 : i32
    %c0_i32_0 = arith.constant 0 : i32
    %c0_i32_1 = arith.constant 0 : i32
    %c0_i32_2 = arith.constant 0 : i32
    return %c0_i32, %c0_i32_0, %c0_i32_1 : i32, i32, i32
  }
  func.func @transform_4(%arg0: i32) -> (i32, i32, i32) {
    %c0_i32 = arith.constant 0 : i32
    %c0_i32_0 = arith.constant 0 : i32
    %c0_i32_1 = arith.constant 0 : i32
    %c0_i32_2 = arith.constant 0 : i32
    return %c0_i32, %c0_i32_0, %c0_i32_1 : i32, i32, i32
  }
  func.func @transform_5(%arg0: i32) -> (i32, i32, i32) {
    %c0_i32 = arith.constant 0 : i32
    %c0_i32_0 = arith.constant 0 : i32
    %c0_i32_1 = arith.constant 0 : i32
    %c0_i32_2 = arith.constant 0 : i32
    return %c0_i32, %c0_i32_0, %c0_i32_1 : i32, i32, i32
  }
  func.func @transform_6(%arg0: i32) -> (i32, i32, i32) {
    %c0_i32 = arith.constant 0 : i32
    %c0_i32_0 = arith.constant 0 : i32
    %c0_i32_1 = arith.constant 0 : i32
    %c0_i32_2 = arith.constant 0 : i32
    return %c0_i32, %c0_i32_0, %c0_i32_1 : i32, i32, i32
  }
  func.func @transform_7(%arg0: i32) -> (i32, i32, i32) {
    %c0_i32 = arith.constant 0 : i32
    %c0_i32_0 = arith.constant 0 : i32
    %c0_i32_1 = arith.constant 0 : i32
    %c0_i32_2 = arith.constant 0 : i32
    return %c0_i32, %c0_i32_0, %c0_i32_1 : i32, i32, i32
  }
  func.func @transform_8(%arg0: i32) -> (i32, i32) {
    %c0_i32 = arith.constant 0 : i32
    %c0_i32_0 = arith.constant 0 : i32
    %c0_i32_1 = arith.constant 0 : i32
    return %c0_i32, %c0_i32_0 : i32, i32
  }
  func.func @transform_9(%arg0: i32) -> (i32, i32) {
    %c0_i32 = arith.constant 0 : i32
    %c0_i32_0 = arith.constant 0 : i32
    %c0_i32_1 = arith.constant 0 : i32
    return %c0_i32, %c0_i32_0 : i32, i32
  }
  func.func @transform_10(%arg0: i32) -> (i32, i32, i32) {
    %c0_i32 = arith.constant 0 : i32
    %c0_i32_0 = arith.constant 0 : i32
    %c0_i32_1 = arith.constant 0 : i32
    return %arg0, %c0_i32, %c0_i32_0 : i32, i32, i32
  }
}

module attributes {stable_mosaic.version = 11 : i64} {
  func.func @_encoder_stack_kernel(%arg0: i32, %arg1: memref<1x16x24xf32, #tpu.memory_space<vmem>>, %arg2: memref<1x16x1xf32, #tpu.memory_space<vmem>>, %arg3: memref<1x1x16xf32, #tpu.memory_space<vmem>>, %arg4: memref<1x24xf32, #tpu.memory_space<vmem>>, %arg5: memref<1x24xf32, #tpu.memory_space<vmem>>, %arg6: memref<24x32xbf16, #tpu.memory_space<vmem>>, %arg7: memref<1x32xf32, #tpu.memory_space<vmem>>, %arg8: memref<8x32x32xbf16, #tpu.memory_space<vmem>>, %arg9: memref<1x32xf32, #tpu.memory_space<vmem>>, %arg10: memref<1x32xf32, #tpu.memory_space<vmem>>, %arg11: memref<1x32xf32, #tpu.memory_space<vmem>>, %arg12: memref<24x32x8xbf16, #tpu.memory_space<vmem>>, %arg13: memref<24x1x8xf32, #tpu.memory_space<vmem>>, %arg14: memref<2x32x32xbf16, #tpu.memory_space<vmem>>, %arg15: memref<2x1x32xf32, #tpu.memory_space<vmem>>, %arg16: memref<2x1x32xf32, #tpu.memory_space<vmem>>, %arg17: memref<2x1x32xf32, #tpu.memory_space<vmem>>, %arg18: memref<2x32x64xbf16, #tpu.memory_space<vmem>>, %arg19: memref<2x1x64xf32, #tpu.memory_space<vmem>>, %arg20: memref<2x64x32xbf16, #tpu.memory_space<vmem>>, %arg21: memref<2x1x32xf32, #tpu.memory_space<vmem>>, %arg22: memref<2x1x32xf32, #tpu.memory_space<vmem>>, %arg23: memref<2x1x32xf32, #tpu.memory_space<vmem>>, %arg24: memref<1x16x32xf32, #tpu.memory_space<vmem>>) attributes {dimension_semantics = [#tpu.dimension_semantics<parallel>], iteration_bounds = array<i64: 2>, scalar_prefetch = 0 : i64, scratch_operands = 0 : i64, tpu.core_type = #tpu.core_type<tc>, window_params = [{transform_indices = @transform_0, window_bounds = array<i64: 1, 16, 24>}, {transform_indices = @transform_1, window_bounds = array<i64: 1, 16, 1>}, {transform_indices = @transform_2, window_bounds = array<i64: 1, 1, 16>}, {pipeline_mode = #tpu.pipeline_mode<synchronous>, transform_indices = @transform_3, window_bounds = array<i64: 1, 24>}, {pipeline_mode = #tpu.pipeline_mode<synchronous>, transform_indices = @transform_4, window_bounds = array<i64: 1, 24>}, {pipeline_mode = #tpu.pipeline_mode<synchronous>, transform_indices = @transform_5, window_bounds = array<i64: 24, 32>}, {pipeline_mode = #tpu.pipeline_mode<synchronous>, transform_indices = @transform_6, window_bounds = array<i64: 1, 32>}, {pipeline_mode = #tpu.pipeline_mode<synchronous>, transform_indices = @transform_7, window_bounds = array<i64: 8, 32, 32>}, {pipeline_mode = #tpu.pipeline_mode<synchronous>, transform_indices = @transform_8, window_bounds = array<i64: 1, 32>}, {pipeline_mode = #tpu.pipeline_mode<synchronous>, transform_indices = @transform_9, window_bounds = array<i64: 1, 32>}, {pipeline_mode = #tpu.pipeline_mode<synchronous>, transform_indices = @transform_10, window_bounds = array<i64: 1, 32>}, {pipeline_mode = #tpu.pipeline_mode<synchronous>, transform_indices = @transform_11, window_bounds = array<i64: 24, 32, 8>}, {pipeline_mode = #tpu.pipeline_mode<synchronous>, transform_indices = @transform_12, window_bounds = array<i64: 24, 1, 8>}, {pipeline_mode = #tpu.pipeline_mode<synchronous>, transform_indices = @transform_13, window_bounds = array<i64: 2, 32, 32>}, {pipeline_mode = #tpu.pipeline_mode<synchronous>, transform_indices = @transform_14, window_bounds = array<i64: 2, 1, 32>}, {pipeline_mode = #tpu.pipeline_mode<synchronous>, transform_indices = @transform_15, window_bounds = array<i64: 2, 1, 32>}, {pipeline_mode = #tpu.pipeline_mode<synchronous>, transform_indices = @transform_16, window_bounds = array<i64: 2, 1, 32>}, {pipeline_mode = #tpu.pipeline_mode<synchronous>, transform_indices = @transform_17, window_bounds = array<i64: 2, 32, 64>}, {pipeline_mode = #tpu.pipeline_mode<synchronous>, transform_indices = @transform_18, window_bounds = array<i64: 2, 1, 64>}, {pipeline_mode = #tpu.pipeline_mode<synchronous>, transform_indices = @transform_19, window_bounds = array<i64: 2, 64, 32>}, {pipeline_mode = #tpu.pipeline_mode<synchronous>, transform_indices = @transform_20, window_bounds = array<i64: 2, 1, 32>}, {pipeline_mode = #tpu.pipeline_mode<synchronous>, transform_indices = @transform_21, window_bounds = array<i64: 2, 1, 32>}, {pipeline_mode = #tpu.pipeline_mode<synchronous>, transform_indices = @transform_22, window_bounds = array<i64: 2, 1, 32>}, {transform_indices = @transform_23, window_bounds = array<i64: 1, 16, 32>}]} {
    %c0 = arith.constant 0 : index
    %c0_0 = arith.constant 0 : index
    %c0_1 = arith.constant 0 : index
    %0 = vector.load %arg1[%c0, %c0_0, %c0_1] : memref<1x16x24xf32, #tpu.memory_space<vmem>>, vector<1x16x24xf32>
    %1 = vector.shape_cast %0 : vector<1x16x24xf32> to vector<16x24xf32>
    %c0_2 = arith.constant 0 : index
    %c0_3 = arith.constant 0 : index
    %2 = vector.load %arg4[%c0_2, %c0_3] : memref<1x24xf32, #tpu.memory_space<vmem>>, vector<1x24xf32>
    %c0_4 = arith.constant 0 : index
    %c0_5 = arith.constant 0 : index
    %3 = vector.load %arg5[%c0_4, %c0_5] : memref<1x24xf32, #tpu.memory_space<vmem>>, vector<1x24xf32>
    %cst = arith.constant dense<0.000000e+00> : vector<16xf32>
    %4 = vector.multi_reduction <add>, %1, %cst [1] : vector<16x24xf32> to vector<16xf32>
    %5 = vector.shape_cast %4 : vector<16xf32> to vector<16x1xf32>
    %cst_6 = arith.constant 2.400000e+01 : f32
    %6 = vector.broadcast %cst_6 : f32 to vector<16x1xf32>
    %7 = arith.divf %5, %6 : vector<16x1xf32>
    %8 = vector.broadcast %7 : vector<16x1xf32> to vector<16x24xf32>
    %9 = arith.subf %1, %8 : vector<16x24xf32>
    %10 = arith.mulf %9, %9 : vector<16x24xf32>
    %cst_7 = arith.constant dense<0.000000e+00> : vector<16xf32>
    %11 = vector.multi_reduction <add>, %10, %cst_7 [1] : vector<16x24xf32> to vector<16xf32>
    %12 = vector.shape_cast %11 : vector<16xf32> to vector<16x1xf32>
    %cst_8 = arith.constant 2.400000e+01 : f32
    %13 = vector.broadcast %cst_8 : f32 to vector<16x1xf32>
    %14 = arith.divf %12, %13 : vector<16x1xf32>
    %cst_9 = arith.constant 9.99999974E-6 : f32
    %15 = vector.broadcast %cst_9 : f32 to vector<16x1xf32>
    %16 = arith.addf %14, %15 : vector<16x1xf32>
    %17 = math.rsqrt %16 : vector<16x1xf32>
    %18 = vector.broadcast %17 : vector<16x1xf32> to vector<16x24xf32>
    %19 = arith.mulf %9, %18 : vector<16x24xf32>
    %20 = vector.broadcast %2 : vector<1x24xf32> to vector<16x24xf32>
    %21 = arith.mulf %19, %20 : vector<16x24xf32>
    %22 = vector.broadcast %3 : vector<1x24xf32> to vector<16x24xf32>
    %23 = arith.addf %21, %22 : vector<16x24xf32>
    %24 = arith.truncf %23 : vector<16x24xf32> to vector<16x24xbf16>
    %c0_10 = arith.constant 0 : index
    %c0_11 = arith.constant 0 : index
    %25 = vector.load %arg6[%c0_10, %c0_11] : memref<24x32xbf16, #tpu.memory_space<vmem>>, vector<24x32xbf16>
    %cst_12 = arith.constant dense<0.000000e+00> : vector<16x32xf32>
    %26 = tpu.matmul %24, %25, %cst_12 {dimension_numbers = #tpu.dot_dimension_numbers<[1], [0], [0], [1], [0, 0, 1, 1], [], []>} : vector<16x24xbf16>, vector<24x32xbf16>, vector<16x32xf32> -> vector<16x32xf32>
    %c0_13 = arith.constant 0 : index
    %c0_14 = arith.constant 0 : index
    %27 = vector.load %arg7[%c0_13, %c0_14] : memref<1x32xf32, #tpu.memory_space<vmem>>, vector<1x32xf32>
    %28 = vector.broadcast %27 : vector<1x32xf32> to vector<16x32xf32>
    %29 = arith.addf %26, %28 : vector<16x32xf32>
    %c0_15 = arith.constant 0 : index
    %c0_16 = arith.constant 0 : index
    %c0_17 = arith.constant 0 : index
    %30 = vector.load %arg2[%c0_15, %c0_16, %c0_17] : memref<1x16x1xf32, #tpu.memory_space<vmem>>, vector<1x16x1xf32>
    %31 = vector.shape_cast %30 : vector<1x16x1xf32> to vector<16x1xf32>
    %32 = vector.broadcast %31 : vector<16x1xf32> to vector<16x32xf32>
    %33 = arith.mulf %29, %32 : vector<16x32xf32>
    %34 = tpu.iota {dimensions = array<i32: 0>} : vector<16x1xi32>
    %cst_18 = arith.constant 0.000000e+00 : f32
    %35 = vector.broadcast %cst_18 : f32 to vector<16x32xf32>
    %c4_i32 = arith.constant 4 : i32
    %36 = tpu.dynamic_rotate %33 by %c4_i32 dim 0 : vector<16x32xf32>, i32 -> vector<16x32xf32>
    %c-4_i32 = arith.constant -4 : i32
    %37 = vector.broadcast %c-4_i32 : i32 to vector<16x1xi32>
    %38 = arith.addi %34, %37 : vector<16x1xi32>
    %c0_i32 = arith.constant 0 : i32
    %39 = vector.broadcast %c0_i32 : i32 to vector<16x1xi32>
    %40 = arith.cmpi sge, %38, %39 : vector<16x1xi32>
    %c-4_i32_19 = arith.constant -4 : i32
    %41 = vector.broadcast %c-4_i32_19 : i32 to vector<16x1xi32>
    %42 = arith.addi %34, %41 : vector<16x1xi32>
    %c16_i32 = arith.constant 16 : i32
    %43 = vector.broadcast %c16_i32 : i32 to vector<16x1xi32>
    %44 = arith.cmpi slt, %42, %43 : vector<16x1xi32>
    %45 = arith.andi %40, %44 : vector<16x1xi1>
    %cst_20 = arith.constant 0.000000e+00 : f32
    %46 = vector.shape_cast %45 : vector<16x1xi1> to vector<16x1xi1>
    %47 = vector.broadcast %46 : vector<16x1xi1> to vector<16x32xi1>
    %48 = vector.broadcast %cst_20 : f32 to vector<16x32xf32>
    %49 = arith.select %47, %36, %48 : vector<16x32xi1>, vector<16x32xf32>
    %50 = arith.truncf %49 : vector<16x32xf32> to vector<16x32xbf16>
    %c0_21 = arith.constant 0 : index
    %c0_22 = arith.constant 0 : index
    %c0_23 = arith.constant 0 : index
    %51 = vector.load %arg8[%c0_21, %c0_22, %c0_23] : memref<8x32x32xbf16, #tpu.memory_space<vmem>>, vector<1x32x32xbf16>
    %52 = vector.shape_cast %51 : vector<1x32x32xbf16> to vector<32x32xbf16>
    %cst_24 = arith.constant dense<0.000000e+00> : vector<16x32xf32>
    %53 = tpu.matmul %50, %52, %cst_24 {dimension_numbers = #tpu.dot_dimension_numbers<[1], [0], [0], [1], [0, 0, 1, 1], [], []>} : vector<16x32xbf16>, vector<32x32xbf16>, vector<16x32xf32> -> vector<16x32xf32>
    %54 = arith.addf %35, %53 : vector<16x32xf32>
    %c3_i32 = arith.constant 3 : i32
    %55 = tpu.dynamic_rotate %33 by %c3_i32 dim 0 : vector<16x32xf32>, i32 -> vector<16x32xf32>
    %c-3_i32 = arith.constant -3 : i32
    %56 = vector.broadcast %c-3_i32 : i32 to vector<16x1xi32>
    %57 = arith.addi %34, %56 : vector<16x1xi32>
    %c0_i32_25 = arith.constant 0 : i32
    %58 = vector.broadcast %c0_i32_25 : i32 to vector<16x1xi32>
    %59 = arith.cmpi sge, %57, %58 : vector<16x1xi32>
    %c-3_i32_26 = arith.constant -3 : i32
    %60 = vector.broadcast %c-3_i32_26 : i32 to vector<16x1xi32>
    %61 = arith.addi %34, %60 : vector<16x1xi32>
    %c16_i32_27 = arith.constant 16 : i32
    %62 = vector.broadcast %c16_i32_27 : i32 to vector<16x1xi32>
    %63 = arith.cmpi slt, %61, %62 : vector<16x1xi32>
    %64 = arith.andi %59, %63 : vector<16x1xi1>
    %cst_28 = arith.constant 0.000000e+00 : f32
    %65 = vector.shape_cast %64 : vector<16x1xi1> to vector<16x1xi1>
    %66 = vector.broadcast %65 : vector<16x1xi1> to vector<16x32xi1>
    %67 = vector.broadcast %cst_28 : f32 to vector<16x32xf32>
    %68 = arith.select %66, %55, %67 : vector<16x32xi1>, vector<16x32xf32>
    %69 = arith.truncf %68 : vector<16x32xf32> to vector<16x32xbf16>
    %c1 = arith.constant 1 : index
    %c0_29 = arith.constant 0 : index
    %c0_30 = arith.constant 0 : index
    %70 = vector.load %arg8[%c1, %c0_29, %c0_30] : memref<8x32x32xbf16, #tpu.memory_space<vmem>>, vector<1x32x32xbf16>
    %71 = vector.shape_cast %70 : vector<1x32x32xbf16> to vector<32x32xbf16>
    %cst_31 = arith.constant dense<0.000000e+00> : vector<16x32xf32>
    %72 = tpu.matmul %69, %71, %cst_31 {dimension_numbers = #tpu.dot_dimension_numbers<[1], [0], [0], [1], [0, 0, 1, 1], [], []>} : vector<16x32xbf16>, vector<32x32xbf16>, vector<16x32xf32> -> vector<16x32xf32>
    %73 = arith.addf %54, %72 : vector<16x32xf32>
    %c2_i32 = arith.constant 2 : i32
    %74 = tpu.dynamic_rotate %33 by %c2_i32 dim 0 : vector<16x32xf32>, i32 -> vector<16x32xf32>
    %c-2_i32 = arith.constant -2 : i32
    %75 = vector.broadcast %c-2_i32 : i32 to vector<16x1xi32>
    %76 = arith.addi %34, %75 : vector<16x1xi32>
    %c0_i32_32 = arith.constant 0 : i32
    %77 = vector.broadcast %c0_i32_32 : i32 to vector<16x1xi32>
    %78 = arith.cmpi sge, %76, %77 : vector<16x1xi32>
    %c-2_i32_33 = arith.constant -2 : i32
    %79 = vector.broadcast %c-2_i32_33 : i32 to vector<16x1xi32>
    %80 = arith.addi %34, %79 : vector<16x1xi32>
    %c16_i32_34 = arith.constant 16 : i32
    %81 = vector.broadcast %c16_i32_34 : i32 to vector<16x1xi32>
    %82 = arith.cmpi slt, %80, %81 : vector<16x1xi32>
    %83 = arith.andi %78, %82 : vector<16x1xi1>
    %cst_35 = arith.constant 0.000000e+00 : f32
    %84 = vector.shape_cast %83 : vector<16x1xi1> to vector<16x1xi1>
    %85 = vector.broadcast %84 : vector<16x1xi1> to vector<16x32xi1>
    %86 = vector.broadcast %cst_35 : f32 to vector<16x32xf32>
    %87 = arith.select %85, %74, %86 : vector<16x32xi1>, vector<16x32xf32>
    %88 = arith.truncf %87 : vector<16x32xf32> to vector<16x32xbf16>
    %c2 = arith.constant 2 : index
    %c0_36 = arith.constant 0 : index
    %c0_37 = arith.constant 0 : index
    %89 = vector.load %arg8[%c2, %c0_36, %c0_37] : memref<8x32x32xbf16, #tpu.memory_space<vmem>>, vector<1x32x32xbf16>
    %90 = vector.shape_cast %89 : vector<1x32x32xbf16> to vector<32x32xbf16>
    %cst_38 = arith.constant dense<0.000000e+00> : vector<16x32xf32>
    %91 = tpu.matmul %88, %90, %cst_38 {dimension_numbers = #tpu.dot_dimension_numbers<[1], [0], [0], [1], [0, 0, 1, 1], [], []>} : vector<16x32xbf16>, vector<32x32xbf16>, vector<16x32xf32> -> vector<16x32xf32>
    %92 = arith.addf %73, %91 : vector<16x32xf32>
    %c1_i32 = arith.constant 1 : i32
    %93 = tpu.dynamic_rotate %33 by %c1_i32 dim 0 : vector<16x32xf32>, i32 -> vector<16x32xf32>
    %c-1_i32 = arith.constant -1 : i32
    %94 = vector.broadcast %c-1_i32 : i32 to vector<16x1xi32>
    %95 = arith.addi %34, %94 : vector<16x1xi32>
    %c0_i32_39 = arith.constant 0 : i32
    %96 = vector.broadcast %c0_i32_39 : i32 to vector<16x1xi32>
    %97 = arith.cmpi sge, %95, %96 : vector<16x1xi32>
    %c-1_i32_40 = arith.constant -1 : i32
    %98 = vector.broadcast %c-1_i32_40 : i32 to vector<16x1xi32>
    %99 = arith.addi %34, %98 : vector<16x1xi32>
    %c16_i32_41 = arith.constant 16 : i32
    %100 = vector.broadcast %c16_i32_41 : i32 to vector<16x1xi32>
    %101 = arith.cmpi slt, %99, %100 : vector<16x1xi32>
    %102 = arith.andi %97, %101 : vector<16x1xi1>
    %cst_42 = arith.constant 0.000000e+00 : f32
    %103 = vector.shape_cast %102 : vector<16x1xi1> to vector<16x1xi1>
    %104 = vector.broadcast %103 : vector<16x1xi1> to vector<16x32xi1>
    %105 = vector.broadcast %cst_42 : f32 to vector<16x32xf32>
    %106 = arith.select %104, %93, %105 : vector<16x32xi1>, vector<16x32xf32>
    %107 = arith.truncf %106 : vector<16x32xf32> to vector<16x32xbf16>
    %c3 = arith.constant 3 : index
    %c0_43 = arith.constant 0 : index
    %c0_44 = arith.constant 0 : index
    %108 = vector.load %arg8[%c3, %c0_43, %c0_44] : memref<8x32x32xbf16, #tpu.memory_space<vmem>>, vector<1x32x32xbf16>
    %109 = vector.shape_cast %108 : vector<1x32x32xbf16> to vector<32x32xbf16>
    %cst_45 = arith.constant dense<0.000000e+00> : vector<16x32xf32>
    %110 = tpu.matmul %107, %109, %cst_45 {dimension_numbers = #tpu.dot_dimension_numbers<[1], [0], [0], [1], [0, 0, 1, 1], [], []>} : vector<16x32xbf16>, vector<32x32xbf16>, vector<16x32xf32> -> vector<16x32xf32>
    %111 = arith.addf %92, %110 : vector<16x32xf32>
    %c0_i32_46 = arith.constant 0 : i32
    %112 = vector.broadcast %c0_i32_46 : i32 to vector<16x1xi32>
    %113 = arith.addi %34, %112 : vector<16x1xi32>
    %c0_i32_47 = arith.constant 0 : i32
    %114 = vector.broadcast %c0_i32_47 : i32 to vector<16x1xi32>
    %115 = arith.cmpi sge, %113, %114 : vector<16x1xi32>
    %c0_i32_48 = arith.constant 0 : i32
    %116 = vector.broadcast %c0_i32_48 : i32 to vector<16x1xi32>
    %117 = arith.addi %34, %116 : vector<16x1xi32>
    %c16_i32_49 = arith.constant 16 : i32
    %118 = vector.broadcast %c16_i32_49 : i32 to vector<16x1xi32>
    %119 = arith.cmpi slt, %117, %118 : vector<16x1xi32>
    %120 = arith.andi %115, %119 : vector<16x1xi1>
    %cst_50 = arith.constant 0.000000e+00 : f32
    %121 = vector.shape_cast %120 : vector<16x1xi1> to vector<16x1xi1>
    %122 = vector.broadcast %121 : vector<16x1xi1> to vector<16x32xi1>
    %123 = vector.broadcast %cst_50 : f32 to vector<16x32xf32>
    %124 = arith.select %122, %33, %123 : vector<16x32xi1>, vector<16x32xf32>
    %125 = arith.truncf %124 : vector<16x32xf32> to vector<16x32xbf16>
    %c4 = arith.constant 4 : index
    %c0_51 = arith.constant 0 : index
    %c0_52 = arith.constant 0 : index
    %126 = vector.load %arg8[%c4, %c0_51, %c0_52] : memref<8x32x32xbf16, #tpu.memory_space<vmem>>, vector<1x32x32xbf16>
    %127 = vector.shape_cast %126 : vector<1x32x32xbf16> to vector<32x32xbf16>
    %cst_53 = arith.constant dense<0.000000e+00> : vector<16x32xf32>
    %128 = tpu.matmul %125, %127, %cst_53 {dimension_numbers = #tpu.dot_dimension_numbers<[1], [0], [0], [1], [0, 0, 1, 1], [], []>} : vector<16x32xbf16>, vector<32x32xbf16>, vector<16x32xf32> -> vector<16x32xf32>
    %129 = arith.addf %111, %128 : vector<16x32xf32>
    %c15_i32 = arith.constant 15 : i32
    %130 = tpu.dynamic_rotate %33 by %c15_i32 dim 0 : vector<16x32xf32>, i32 -> vector<16x32xf32>
    %c1_i32_54 = arith.constant 1 : i32
    %131 = vector.broadcast %c1_i32_54 : i32 to vector<16x1xi32>
    %132 = arith.addi %34, %131 : vector<16x1xi32>
    %c0_i32_55 = arith.constant 0 : i32
    %133 = vector.broadcast %c0_i32_55 : i32 to vector<16x1xi32>
    %134 = arith.cmpi sge, %132, %133 : vector<16x1xi32>
    %c1_i32_56 = arith.constant 1 : i32
    %135 = vector.broadcast %c1_i32_56 : i32 to vector<16x1xi32>
    %136 = arith.addi %34, %135 : vector<16x1xi32>
    %c16_i32_57 = arith.constant 16 : i32
    %137 = vector.broadcast %c16_i32_57 : i32 to vector<16x1xi32>
    %138 = arith.cmpi slt, %136, %137 : vector<16x1xi32>
    %139 = arith.andi %134, %138 : vector<16x1xi1>
    %cst_58 = arith.constant 0.000000e+00 : f32
    %140 = vector.shape_cast %139 : vector<16x1xi1> to vector<16x1xi1>
    %141 = vector.broadcast %140 : vector<16x1xi1> to vector<16x32xi1>
    %142 = vector.broadcast %cst_58 : f32 to vector<16x32xf32>
    %143 = arith.select %141, %130, %142 : vector<16x32xi1>, vector<16x32xf32>
    %144 = arith.truncf %143 : vector<16x32xf32> to vector<16x32xbf16>
    %c5 = arith.constant 5 : index
    %c0_59 = arith.constant 0 : index
    %c0_60 = arith.constant 0 : index
    %145 = vector.load %arg8[%c5, %c0_59, %c0_60] : memref<8x32x32xbf16, #tpu.memory_space<vmem>>, vector<1x32x32xbf16>
    %146 = vector.shape_cast %145 : vector<1x32x32xbf16> to vector<32x32xbf16>
    %cst_61 = arith.constant dense<0.000000e+00> : vector<16x32xf32>
    %147 = tpu.matmul %144, %146, %cst_61 {dimension_numbers = #tpu.dot_dimension_numbers<[1], [0], [0], [1], [0, 0, 1, 1], [], []>} : vector<16x32xbf16>, vector<32x32xbf16>, vector<16x32xf32> -> vector<16x32xf32>
    %148 = arith.addf %129, %147 : vector<16x32xf32>
    %c14_i32 = arith.constant 14 : i32
    %149 = tpu.dynamic_rotate %33 by %c14_i32 dim 0 : vector<16x32xf32>, i32 -> vector<16x32xf32>
    %c2_i32_62 = arith.constant 2 : i32
    %150 = vector.broadcast %c2_i32_62 : i32 to vector<16x1xi32>
    %151 = arith.addi %34, %150 : vector<16x1xi32>
    %c0_i32_63 = arith.constant 0 : i32
    %152 = vector.broadcast %c0_i32_63 : i32 to vector<16x1xi32>
    %153 = arith.cmpi sge, %151, %152 : vector<16x1xi32>
    %c2_i32_64 = arith.constant 2 : i32
    %154 = vector.broadcast %c2_i32_64 : i32 to vector<16x1xi32>
    %155 = arith.addi %34, %154 : vector<16x1xi32>
    %c16_i32_65 = arith.constant 16 : i32
    %156 = vector.broadcast %c16_i32_65 : i32 to vector<16x1xi32>
    %157 = arith.cmpi slt, %155, %156 : vector<16x1xi32>
    %158 = arith.andi %153, %157 : vector<16x1xi1>
    %cst_66 = arith.constant 0.000000e+00 : f32
    %159 = vector.shape_cast %158 : vector<16x1xi1> to vector<16x1xi1>
    %160 = vector.broadcast %159 : vector<16x1xi1> to vector<16x32xi1>
    %161 = vector.broadcast %cst_66 : f32 to vector<16x32xf32>
    %162 = arith.select %160, %149, %161 : vector<16x32xi1>, vector<16x32xf32>
    %163 = arith.truncf %162 : vector<16x32xf32> to vector<16x32xbf16>
    %c6 = arith.constant 6 : index
    %c0_67 = arith.constant 0 : index
    %c0_68 = arith.constant 0 : index
    %164 = vector.load %arg8[%c6, %c0_67, %c0_68] : memref<8x32x32xbf16, #tpu.memory_space<vmem>>, vector<1x32x32xbf16>
    %165 = vector.shape_cast %164 : vector<1x32x32xbf16> to vector<32x32xbf16>
    %cst_69 = arith.constant dense<0.000000e+00> : vector<16x32xf32>
    %166 = tpu.matmul %163, %165, %cst_69 {dimension_numbers = #tpu.dot_dimension_numbers<[1], [0], [0], [1], [0, 0, 1, 1], [], []>} : vector<16x32xbf16>, vector<32x32xbf16>, vector<16x32xf32> -> vector<16x32xf32>
    %167 = arith.addf %148, %166 : vector<16x32xf32>
    %c13_i32 = arith.constant 13 : i32
    %168 = tpu.dynamic_rotate %33 by %c13_i32 dim 0 : vector<16x32xf32>, i32 -> vector<16x32xf32>
    %c3_i32_70 = arith.constant 3 : i32
    %169 = vector.broadcast %c3_i32_70 : i32 to vector<16x1xi32>
    %170 = arith.addi %34, %169 : vector<16x1xi32>
    %c0_i32_71 = arith.constant 0 : i32
    %171 = vector.broadcast %c0_i32_71 : i32 to vector<16x1xi32>
    %172 = arith.cmpi sge, %170, %171 : vector<16x1xi32>
    %c3_i32_72 = arith.constant 3 : i32
    %173 = vector.broadcast %c3_i32_72 : i32 to vector<16x1xi32>
    %174 = arith.addi %34, %173 : vector<16x1xi32>
    %c16_i32_73 = arith.constant 16 : i32
    %175 = vector.broadcast %c16_i32_73 : i32 to vector<16x1xi32>
    %176 = arith.cmpi slt, %174, %175 : vector<16x1xi32>
    %177 = arith.andi %172, %176 : vector<16x1xi1>
    %cst_74 = arith.constant 0.000000e+00 : f32
    %178 = vector.shape_cast %177 : vector<16x1xi1> to vector<16x1xi1>
    %179 = vector.broadcast %178 : vector<16x1xi1> to vector<16x32xi1>
    %180 = vector.broadcast %cst_74 : f32 to vector<16x32xf32>
    %181 = arith.select %179, %168, %180 : vector<16x32xi1>, vector<16x32xf32>
    %182 = arith.truncf %181 : vector<16x32xf32> to vector<16x32xbf16>
    %c7 = arith.constant 7 : index
    %c0_75 = arith.constant 0 : index
    %c0_76 = arith.constant 0 : index
    %183 = vector.load %arg8[%c7, %c0_75, %c0_76] : memref<8x32x32xbf16, #tpu.memory_space<vmem>>, vector<1x32x32xbf16>
    %184 = vector.shape_cast %183 : vector<1x32x32xbf16> to vector<32x32xbf16>
    %cst_77 = arith.constant dense<0.000000e+00> : vector<16x32xf32>
    %185 = tpu.matmul %182, %184, %cst_77 {dimension_numbers = #tpu.dot_dimension_numbers<[1], [0], [0], [1], [0, 0, 1, 1], [], []>} : vector<16x32xbf16>, vector<32x32xbf16>, vector<16x32xf32> -> vector<16x32xf32>
    %186 = arith.addf %167, %185 : vector<16x32xf32>
    %c0_78 = arith.constant 0 : index
    %c0_79 = arith.constant 0 : index
    %187 = vector.load %arg9[%c0_78, %c0_79] : memref<1x32xf32, #tpu.memory_space<vmem>>, vector<1x32xf32>
    %188 = vector.broadcast %187 : vector<1x32xf32> to vector<16x32xf32>
    %189 = arith.addf %186, %188 : vector<16x32xf32>
    %cst_80 = arith.constant 5.000000e-01 : f32
    %190 = vector.broadcast %cst_80 : f32 to vector<16x32xf32>
    %191 = arith.mulf %190, %189 : vector<16x32xf32>
    %cst_81 = arith.constant 4.471500e-02 : f32
    %192 = vector.broadcast %cst_81 : f32 to vector<16x32xf32>
    %193 = arith.mulf %192, %189 : vector<16x32xf32>
    %194 = arith.mulf %193, %189 : vector<16x32xf32>
    %195 = arith.mulf %194, %189 : vector<16x32xf32>
    %196 = arith.addf %189, %195 : vector<16x32xf32>
    %cst_82 = arith.constant 0.797884583 : f32
    %197 = vector.broadcast %cst_82 : f32 to vector<16x32xf32>
    %198 = arith.mulf %197, %196 : vector<16x32xf32>
    %199 = math.tanh %198 : vector<16x32xf32>
    %cst_83 = arith.constant 1.000000e+00 : f32
    %200 = vector.broadcast %cst_83 : f32 to vector<16x32xf32>
    %201 = arith.addf %200, %199 : vector<16x32xf32>
    %202 = arith.mulf %191, %201 : vector<16x32xf32>
    %203 = arith.addf %33, %202 : vector<16x32xf32>
    %c0_84 = arith.constant 0 : index
    %c0_85 = arith.constant 0 : index
    %204 = vector.load %arg10[%c0_84, %c0_85] : memref<1x32xf32, #tpu.memory_space<vmem>>, vector<1x32xf32>
    %c0_86 = arith.constant 0 : index
    %c0_87 = arith.constant 0 : index
    %205 = vector.load %arg11[%c0_86, %c0_87] : memref<1x32xf32, #tpu.memory_space<vmem>>, vector<1x32xf32>
    %cst_88 = arith.constant dense<0.000000e+00> : vector<16xf32>
    %206 = vector.multi_reduction <add>, %203, %cst_88 [1] : vector<16x32xf32> to vector<16xf32>
    %207 = vector.shape_cast %206 : vector<16xf32> to vector<16x1xf32>
    %cst_89 = arith.constant 3.200000e+01 : f32
    %208 = vector.broadcast %cst_89 : f32 to vector<16x1xf32>
    %209 = arith.divf %207, %208 : vector<16x1xf32>
    %210 = vector.broadcast %209 : vector<16x1xf32> to vector<16x32xf32>
    %211 = arith.subf %203, %210 : vector<16x32xf32>
    %212 = arith.mulf %211, %211 : vector<16x32xf32>
    %cst_90 = arith.constant dense<0.000000e+00> : vector<16xf32>
    %213 = vector.multi_reduction <add>, %212, %cst_90 [1] : vector<16x32xf32> to vector<16xf32>
    %214 = vector.shape_cast %213 : vector<16xf32> to vector<16x1xf32>
    %cst_91 = arith.constant 3.200000e+01 : f32
    %215 = vector.broadcast %cst_91 : f32 to vector<16x1xf32>
    %216 = arith.divf %214, %215 : vector<16x1xf32>
    %cst_92 = arith.constant 9.99999974E-6 : f32
    %217 = vector.broadcast %cst_92 : f32 to vector<16x1xf32>
    %218 = arith.addf %216, %217 : vector<16x1xf32>
    %219 = math.rsqrt %218 : vector<16x1xf32>
    %220 = vector.broadcast %219 : vector<16x1xf32> to vector<16x32xf32>
    %221 = arith.mulf %211, %220 : vector<16x32xf32>
    %222 = vector.broadcast %204 : vector<1x32xf32> to vector<16x32xf32>
    %223 = arith.mulf %221, %222 : vector<16x32xf32>
    %224 = vector.broadcast %205 : vector<1x32xf32> to vector<16x32xf32>
    %225 = arith.addf %223, %224 : vector<16x32xf32>
    %c0_93 = arith.constant 0 : index
    %c0_94 = arith.constant 0 : index
    %c0_95 = arith.constant 0 : index
    %226 = vector.load %arg3[%c0_93, %c0_94, %c0_95] : memref<1x1x16xf32, #tpu.memory_space<vmem>>, vector<1x1x16xf32>
    %227 = vector.shape_cast %226 : vector<1x1x16xf32> to vector<1x16xf32>
    %228 = arith.truncf %225 : vector<16x32xf32> to vector<16x32xbf16>
    %c0_96 = arith.constant 0 : index
    %c0_97 = arith.constant 0 : index
    %c0_98 = arith.constant 0 : index
    %229 = vector.load %arg12[%c0_96, %c0_97, %c0_98] : memref<24x32x8xbf16, #tpu.memory_space<vmem>>, vector<1x32x8xbf16>
    %230 = vector.shape_cast %229 : vector<1x32x8xbf16> to vector<32x8xbf16>
    %cst_99 = arith.constant dense<0.000000e+00> : vector<16x8xf32>
    %231 = tpu.matmul %228, %230, %cst_99 {dimension_numbers = #tpu.dot_dimension_numbers<[1], [0], [0], [1], [0, 0, 1, 1], [], []>} : vector<16x32xbf16>, vector<32x8xbf16>, vector<16x8xf32> -> vector<16x8xf32>
    %c0_100 = arith.constant 0 : index
    %c0_101 = arith.constant 0 : index
    %c0_102 = arith.constant 0 : index
    %232 = vector.load %arg13[%c0_100, %c0_101, %c0_102] : memref<24x1x8xf32, #tpu.memory_space<vmem>>, vector<1x1x8xf32>
    %233 = vector.shape_cast %232 : vector<1x1x8xf32> to vector<1x8xf32>
    %234 = vector.broadcast %233 : vector<1x8xf32> to vector<16x8xf32>
    %235 = arith.addf %231, %234 : vector<16x8xf32>
    %cst_103 = arith.constant 0.353553385 : f32
    %236 = vector.broadcast %cst_103 : f32 to vector<16x8xf32>
    %237 = arith.mulf %235, %236 : vector<16x8xf32>
    %c4_104 = arith.constant 4 : index
    %c0_105 = arith.constant 0 : index
    %c0_106 = arith.constant 0 : index
    %238 = vector.load %arg12[%c4_104, %c0_105, %c0_106] : memref<24x32x8xbf16, #tpu.memory_space<vmem>>, vector<1x32x8xbf16>
    %239 = vector.shape_cast %238 : vector<1x32x8xbf16> to vector<32x8xbf16>
    %cst_107 = arith.constant dense<0.000000e+00> : vector<16x8xf32>
    %240 = tpu.matmul %228, %239, %cst_107 {dimension_numbers = #tpu.dot_dimension_numbers<[1], [0], [0], [1], [0, 0, 1, 1], [], []>} : vector<16x32xbf16>, vector<32x8xbf16>, vector<16x8xf32> -> vector<16x8xf32>
    %c4_108 = arith.constant 4 : index
    %c0_109 = arith.constant 0 : index
    %c0_110 = arith.constant 0 : index
    %241 = vector.load %arg13[%c4_108, %c0_109, %c0_110] : memref<24x1x8xf32, #tpu.memory_space<vmem>>, vector<1x1x8xf32>
    %242 = vector.shape_cast %241 : vector<1x1x8xf32> to vector<1x8xf32>
    %243 = vector.broadcast %242 : vector<1x8xf32> to vector<16x8xf32>
    %244 = arith.addf %240, %243 : vector<16x8xf32>
    %c8 = arith.constant 8 : index
    %c0_111 = arith.constant 0 : index
    %c0_112 = arith.constant 0 : index
    %245 = vector.load %arg12[%c8, %c0_111, %c0_112] : memref<24x32x8xbf16, #tpu.memory_space<vmem>>, vector<1x32x8xbf16>
    %246 = vector.shape_cast %245 : vector<1x32x8xbf16> to vector<32x8xbf16>
    %cst_113 = arith.constant dense<0.000000e+00> : vector<16x8xf32>
    %247 = tpu.matmul %228, %246, %cst_113 {dimension_numbers = #tpu.dot_dimension_numbers<[1], [0], [0], [1], [0, 0, 1, 1], [], []>} : vector<16x32xbf16>, vector<32x8xbf16>, vector<16x8xf32> -> vector<16x8xf32>
    %c8_114 = arith.constant 8 : index
    %c0_115 = arith.constant 0 : index
    %c0_116 = arith.constant 0 : index
    %248 = vector.load %arg13[%c8_114, %c0_115, %c0_116] : memref<24x1x8xf32, #tpu.memory_space<vmem>>, vector<1x1x8xf32>
    %249 = vector.shape_cast %248 : vector<1x1x8xf32> to vector<1x8xf32>
    %250 = vector.broadcast %249 : vector<1x8xf32> to vector<16x8xf32>
    %251 = arith.addf %247, %250 : vector<16x8xf32>
    %252 = arith.truncf %237 : vector<16x8xf32> to vector<16x8xbf16>
    %253 = arith.truncf %244 : vector<16x8xf32> to vector<16x8xbf16>
    %cst_117 = arith.constant dense<0.000000e+00> : vector<16x16xf32>
    %254 = tpu.matmul %252, %253, %cst_117 {dimension_numbers = #tpu.dot_dimension_numbers<[1], [1], [0], [0], [0, 0, 1, 0], [], []>} : vector<16x8xbf16>, vector<16x8xbf16>, vector<16x16xf32> -> vector<16x16xf32>
    %255 = vector.broadcast %227 : vector<1x16xf32> to vector<16x16xf32>
    %256 = arith.addf %254, %255 : vector<16x16xf32>
    %cst_118 = arith.constant dense<0xFF800000> : vector<16xf32>
    %257 = vector.multi_reduction <maximumf>, %256, %cst_118 [1] : vector<16x16xf32> to vector<16xf32>
    %258 = vector.shape_cast %257 : vector<16xf32> to vector<16x1xf32>
    %259 = vector.broadcast %258 : vector<16x1xf32> to vector<16x16xf32>
    %260 = arith.subf %256, %259 : vector<16x16xf32>
    %261 = math.exp %260 : vector<16x16xf32>
    %cst_119 = arith.constant dense<0.000000e+00> : vector<16xf32>
    %262 = vector.multi_reduction <add>, %261, %cst_119 [1] : vector<16x16xf32> to vector<16xf32>
    %263 = vector.shape_cast %262 : vector<16xf32> to vector<16x1xf32>
    %264 = tpu.reciprocal %263 {approx = true} : vector<16x1xf32> -> vector<16x1xf32>
    %265 = vector.broadcast %264 : vector<16x1xf32> to vector<16x16xf32>
    %266 = arith.mulf %261, %265 : vector<16x16xf32>
    %267 = arith.truncf %266 : vector<16x16xf32> to vector<16x16xbf16>
    %268 = arith.truncf %251 : vector<16x8xf32> to vector<16x8xbf16>
    %cst_120 = arith.constant dense<0.000000e+00> : vector<16x8xf32>
    %269 = tpu.matmul %267, %268, %cst_120 {dimension_numbers = #tpu.dot_dimension_numbers<[1], [0], [0], [1], [0, 0, 1, 1], [], []>} : vector<16x16xbf16>, vector<16x8xbf16>, vector<16x8xf32> -> vector<16x8xf32>
    %c1_121 = arith.constant 1 : index
    %c0_122 = arith.constant 0 : index
    %c0_123 = arith.constant 0 : index
    %270 = vector.load %arg12[%c1_121, %c0_122, %c0_123] : memref<24x32x8xbf16, #tpu.memory_space<vmem>>, vector<1x32x8xbf16>
    %271 = vector.shape_cast %270 : vector<1x32x8xbf16> to vector<32x8xbf16>
    %cst_124 = arith.constant dense<0.000000e+00> : vector<16x8xf32>
    %272 = tpu.matmul %228, %271, %cst_124 {dimension_numbers = #tpu.dot_dimension_numbers<[1], [0], [0], [1], [0, 0, 1, 1], [], []>} : vector<16x32xbf16>, vector<32x8xbf16>, vector<16x8xf32> -> vector<16x8xf32>
    %c1_125 = arith.constant 1 : index
    %c0_126 = arith.constant 0 : index
    %c0_127 = arith.constant 0 : index
    %273 = vector.load %arg13[%c1_125, %c0_126, %c0_127] : memref<24x1x8xf32, #tpu.memory_space<vmem>>, vector<1x1x8xf32>
    %274 = vector.shape_cast %273 : vector<1x1x8xf32> to vector<1x8xf32>
    %275 = vector.broadcast %274 : vector<1x8xf32> to vector<16x8xf32>
    %276 = arith.addf %272, %275 : vector<16x8xf32>
    %cst_128 = arith.constant 0.353553385 : f32
    %277 = vector.broadcast %cst_128 : f32 to vector<16x8xf32>
    %278 = arith.mulf %276, %277 : vector<16x8xf32>
    %c5_129 = arith.constant 5 : index
    %c0_130 = arith.constant 0 : index
    %c0_131 = arith.constant 0 : index
    %279 = vector.load %arg12[%c5_129, %c0_130, %c0_131] : memref<24x32x8xbf16, #tpu.memory_space<vmem>>, vector<1x32x8xbf16>
    %280 = vector.shape_cast %279 : vector<1x32x8xbf16> to vector<32x8xbf16>
    %cst_132 = arith.constant dense<0.000000e+00> : vector<16x8xf32>
    %281 = tpu.matmul %228, %280, %cst_132 {dimension_numbers = #tpu.dot_dimension_numbers<[1], [0], [0], [1], [0, 0, 1, 1], [], []>} : vector<16x32xbf16>, vector<32x8xbf16>, vector<16x8xf32> -> vector<16x8xf32>
    %c5_133 = arith.constant 5 : index
    %c0_134 = arith.constant 0 : index
    %c0_135 = arith.constant 0 : index
    %282 = vector.load %arg13[%c5_133, %c0_134, %c0_135] : memref<24x1x8xf32, #tpu.memory_space<vmem>>, vector<1x1x8xf32>
    %283 = vector.shape_cast %282 : vector<1x1x8xf32> to vector<1x8xf32>
    %284 = vector.broadcast %283 : vector<1x8xf32> to vector<16x8xf32>
    %285 = arith.addf %281, %284 : vector<16x8xf32>
    %c9 = arith.constant 9 : index
    %c0_136 = arith.constant 0 : index
    %c0_137 = arith.constant 0 : index
    %286 = vector.load %arg12[%c9, %c0_136, %c0_137] : memref<24x32x8xbf16, #tpu.memory_space<vmem>>, vector<1x32x8xbf16>
    %287 = vector.shape_cast %286 : vector<1x32x8xbf16> to vector<32x8xbf16>
    %cst_138 = arith.constant dense<0.000000e+00> : vector<16x8xf32>
    %288 = tpu.matmul %228, %287, %cst_138 {dimension_numbers = #tpu.dot_dimension_numbers<[1], [0], [0], [1], [0, 0, 1, 1], [], []>} : vector<16x32xbf16>, vector<32x8xbf16>, vector<16x8xf32> -> vector<16x8xf32>
    %c9_139 = arith.constant 9 : index
    %c0_140 = arith.constant 0 : index
    %c0_141 = arith.constant 0 : index
    %289 = vector.load %arg13[%c9_139, %c0_140, %c0_141] : memref<24x1x8xf32, #tpu.memory_space<vmem>>, vector<1x1x8xf32>
    %290 = vector.shape_cast %289 : vector<1x1x8xf32> to vector<1x8xf32>
    %291 = vector.broadcast %290 : vector<1x8xf32> to vector<16x8xf32>
    %292 = arith.addf %288, %291 : vector<16x8xf32>
    %293 = arith.truncf %278 : vector<16x8xf32> to vector<16x8xbf16>
    %294 = arith.truncf %285 : vector<16x8xf32> to vector<16x8xbf16>
    %cst_142 = arith.constant dense<0.000000e+00> : vector<16x16xf32>
    %295 = tpu.matmul %293, %294, %cst_142 {dimension_numbers = #tpu.dot_dimension_numbers<[1], [1], [0], [0], [0, 0, 1, 0], [], []>} : vector<16x8xbf16>, vector<16x8xbf16>, vector<16x16xf32> -> vector<16x16xf32>
    %296 = vector.broadcast %227 : vector<1x16xf32> to vector<16x16xf32>
    %297 = arith.addf %295, %296 : vector<16x16xf32>
    %cst_143 = arith.constant dense<0xFF800000> : vector<16xf32>
    %298 = vector.multi_reduction <maximumf>, %297, %cst_143 [1] : vector<16x16xf32> to vector<16xf32>
    %299 = vector.shape_cast %298 : vector<16xf32> to vector<16x1xf32>
    %300 = vector.broadcast %299 : vector<16x1xf32> to vector<16x16xf32>
    %301 = arith.subf %297, %300 : vector<16x16xf32>
    %302 = math.exp %301 : vector<16x16xf32>
    %cst_144 = arith.constant dense<0.000000e+00> : vector<16xf32>
    %303 = vector.multi_reduction <add>, %302, %cst_144 [1] : vector<16x16xf32> to vector<16xf32>
    %304 = vector.shape_cast %303 : vector<16xf32> to vector<16x1xf32>
    %305 = tpu.reciprocal %304 {approx = true} : vector<16x1xf32> -> vector<16x1xf32>
    %306 = vector.broadcast %305 : vector<16x1xf32> to vector<16x16xf32>
    %307 = arith.mulf %302, %306 : vector<16x16xf32>
    %308 = arith.truncf %307 : vector<16x16xf32> to vector<16x16xbf16>
    %309 = arith.truncf %292 : vector<16x8xf32> to vector<16x8xbf16>
    %cst_145 = arith.constant dense<0.000000e+00> : vector<16x8xf32>
    %310 = tpu.matmul %308, %309, %cst_145 {dimension_numbers = #tpu.dot_dimension_numbers<[1], [0], [0], [1], [0, 0, 1, 1], [], []>} : vector<16x16xbf16>, vector<16x8xbf16>, vector<16x8xf32> -> vector<16x8xf32>
    %c2_146 = arith.constant 2 : index
    %c0_147 = arith.constant 0 : index
    %c0_148 = arith.constant 0 : index
    %311 = vector.load %arg12[%c2_146, %c0_147, %c0_148] : memref<24x32x8xbf16, #tpu.memory_space<vmem>>, vector<1x32x8xbf16>
    %312 = vector.shape_cast %311 : vector<1x32x8xbf16> to vector<32x8xbf16>
    %cst_149 = arith.constant dense<0.000000e+00> : vector<16x8xf32>
    %313 = tpu.matmul %228, %312, %cst_149 {dimension_numbers = #tpu.dot_dimension_numbers<[1], [0], [0], [1], [0, 0, 1, 1], [], []>} : vector<16x32xbf16>, vector<32x8xbf16>, vector<16x8xf32> -> vector<16x8xf32>
    %c2_150 = arith.constant 2 : index
    %c0_151 = arith.constant 0 : index
    %c0_152 = arith.constant 0 : index
    %314 = vector.load %arg13[%c2_150, %c0_151, %c0_152] : memref<24x1x8xf32, #tpu.memory_space<vmem>>, vector<1x1x8xf32>
    %315 = vector.shape_cast %314 : vector<1x1x8xf32> to vector<1x8xf32>
    %316 = vector.broadcast %315 : vector<1x8xf32> to vector<16x8xf32>
    %317 = arith.addf %313, %316 : vector<16x8xf32>
    %cst_153 = arith.constant 0.353553385 : f32
    %318 = vector.broadcast %cst_153 : f32 to vector<16x8xf32>
    %319 = arith.mulf %317, %318 : vector<16x8xf32>
    %c6_154 = arith.constant 6 : index
    %c0_155 = arith.constant 0 : index
    %c0_156 = arith.constant 0 : index
    %320 = vector.load %arg12[%c6_154, %c0_155, %c0_156] : memref<24x32x8xbf16, #tpu.memory_space<vmem>>, vector<1x32x8xbf16>
    %321 = vector.shape_cast %320 : vector<1x32x8xbf16> to vector<32x8xbf16>
    %cst_157 = arith.constant dense<0.000000e+00> : vector<16x8xf32>
    %322 = tpu.matmul %228, %321, %cst_157 {dimension_numbers = #tpu.dot_dimension_numbers<[1], [0], [0], [1], [0, 0, 1, 1], [], []>} : vector<16x32xbf16>, vector<32x8xbf16>, vector<16x8xf32> -> vector<16x8xf32>
    %c6_158 = arith.constant 6 : index
    %c0_159 = arith.constant 0 : index
    %c0_160 = arith.constant 0 : index
    %323 = vector.load %arg13[%c6_158, %c0_159, %c0_160] : memref<24x1x8xf32, #tpu.memory_space<vmem>>, vector<1x1x8xf32>
    %324 = vector.shape_cast %323 : vector<1x1x8xf32> to vector<1x8xf32>
    %325 = vector.broadcast %324 : vector<1x8xf32> to vector<16x8xf32>
    %326 = arith.addf %322, %325 : vector<16x8xf32>
    %c10 = arith.constant 10 : index
    %c0_161 = arith.constant 0 : index
    %c0_162 = arith.constant 0 : index
    %327 = vector.load %arg12[%c10, %c0_161, %c0_162] : memref<24x32x8xbf16, #tpu.memory_space<vmem>>, vector<1x32x8xbf16>
    %328 = vector.shape_cast %327 : vector<1x32x8xbf16> to vector<32x8xbf16>
    %cst_163 = arith.constant dense<0.000000e+00> : vector<16x8xf32>
    %329 = tpu.matmul %228, %328, %cst_163 {dimension_numbers = #tpu.dot_dimension_numbers<[1], [0], [0], [1], [0, 0, 1, 1], [], []>} : vector<16x32xbf16>, vector<32x8xbf16>, vector<16x8xf32> -> vector<16x8xf32>
    %c10_164 = arith.constant 10 : index
    %c0_165 = arith.constant 0 : index
    %c0_166 = arith.constant 0 : index
    %330 = vector.load %arg13[%c10_164, %c0_165, %c0_166] : memref<24x1x8xf32, #tpu.memory_space<vmem>>, vector<1x1x8xf32>
    %331 = vector.shape_cast %330 : vector<1x1x8xf32> to vector<1x8xf32>
    %332 = vector.broadcast %331 : vector<1x8xf32> to vector<16x8xf32>
    %333 = arith.addf %329, %332 : vector<16x8xf32>
    %334 = arith.truncf %319 : vector<16x8xf32> to vector<16x8xbf16>
    %335 = arith.truncf %326 : vector<16x8xf32> to vector<16x8xbf16>
    %cst_167 = arith.constant dense<0.000000e+00> : vector<16x16xf32>
    %336 = tpu.matmul %334, %335, %cst_167 {dimension_numbers = #tpu.dot_dimension_numbers<[1], [1], [0], [0], [0, 0, 1, 0], [], []>} : vector<16x8xbf16>, vector<16x8xbf16>, vector<16x16xf32> -> vector<16x16xf32>
    %337 = vector.broadcast %227 : vector<1x16xf32> to vector<16x16xf32>
    %338 = arith.addf %336, %337 : vector<16x16xf32>
    %cst_168 = arith.constant dense<0xFF800000> : vector<16xf32>
    %339 = vector.multi_reduction <maximumf>, %338, %cst_168 [1] : vector<16x16xf32> to vector<16xf32>
    %340 = vector.shape_cast %339 : vector<16xf32> to vector<16x1xf32>
    %341 = vector.broadcast %340 : vector<16x1xf32> to vector<16x16xf32>
    %342 = arith.subf %338, %341 : vector<16x16xf32>
    %343 = math.exp %342 : vector<16x16xf32>
    %cst_169 = arith.constant dense<0.000000e+00> : vector<16xf32>
    %344 = vector.multi_reduction <add>, %343, %cst_169 [1] : vector<16x16xf32> to vector<16xf32>
    %345 = vector.shape_cast %344 : vector<16xf32> to vector<16x1xf32>
    %346 = tpu.reciprocal %345 {approx = true} : vector<16x1xf32> -> vector<16x1xf32>
    %347 = vector.broadcast %346 : vector<16x1xf32> to vector<16x16xf32>
    %348 = arith.mulf %343, %347 : vector<16x16xf32>
    %349 = arith.truncf %348 : vector<16x16xf32> to vector<16x16xbf16>
    %350 = arith.truncf %333 : vector<16x8xf32> to vector<16x8xbf16>
    %cst_170 = arith.constant dense<0.000000e+00> : vector<16x8xf32>
    %351 = tpu.matmul %349, %350, %cst_170 {dimension_numbers = #tpu.dot_dimension_numbers<[1], [0], [0], [1], [0, 0, 1, 1], [], []>} : vector<16x16xbf16>, vector<16x8xbf16>, vector<16x8xf32> -> vector<16x8xf32>
    %c3_171 = arith.constant 3 : index
    %c0_172 = arith.constant 0 : index
    %c0_173 = arith.constant 0 : index
    %352 = vector.load %arg12[%c3_171, %c0_172, %c0_173] : memref<24x32x8xbf16, #tpu.memory_space<vmem>>, vector<1x32x8xbf16>
    %353 = vector.shape_cast %352 : vector<1x32x8xbf16> to vector<32x8xbf16>
    %cst_174 = arith.constant dense<0.000000e+00> : vector<16x8xf32>
    %354 = tpu.matmul %228, %353, %cst_174 {dimension_numbers = #tpu.dot_dimension_numbers<[1], [0], [0], [1], [0, 0, 1, 1], [], []>} : vector<16x32xbf16>, vector<32x8xbf16>, vector<16x8xf32> -> vector<16x8xf32>
    %c3_175 = arith.constant 3 : index
    %c0_176 = arith.constant 0 : index
    %c0_177 = arith.constant 0 : index
    %355 = vector.load %arg13[%c3_175, %c0_176, %c0_177] : memref<24x1x8xf32, #tpu.memory_space<vmem>>, vector<1x1x8xf32>
    %356 = vector.shape_cast %355 : vector<1x1x8xf32> to vector<1x8xf32>
    %357 = vector.broadcast %356 : vector<1x8xf32> to vector<16x8xf32>
    %358 = arith.addf %354, %357 : vector<16x8xf32>
    %cst_178 = arith.constant 0.353553385 : f32
    %359 = vector.broadcast %cst_178 : f32 to vector<16x8xf32>
    %360 = arith.mulf %358, %359 : vector<16x8xf32>
    %c7_179 = arith.constant 7 : index
    %c0_180 = arith.constant 0 : index
    %c0_181 = arith.constant 0 : index
    %361 = vector.load %arg12[%c7_179, %c0_180, %c0_181] : memref<24x32x8xbf16, #tpu.memory_space<vmem>>, vector<1x32x8xbf16>
    %362 = vector.shape_cast %361 : vector<1x32x8xbf16> to vector<32x8xbf16>
    %cst_182 = arith.constant dense<0.000000e+00> : vector<16x8xf32>
    %363 = tpu.matmul %228, %362, %cst_182 {dimension_numbers = #tpu.dot_dimension_numbers<[1], [0], [0], [1], [0, 0, 1, 1], [], []>} : vector<16x32xbf16>, vector<32x8xbf16>, vector<16x8xf32> -> vector<16x8xf32>
    %c7_183 = arith.constant 7 : index
    %c0_184 = arith.constant 0 : index
    %c0_185 = arith.constant 0 : index
    %364 = vector.load %arg13[%c7_183, %c0_184, %c0_185] : memref<24x1x8xf32, #tpu.memory_space<vmem>>, vector<1x1x8xf32>
    %365 = vector.shape_cast %364 : vector<1x1x8xf32> to vector<1x8xf32>
    %366 = vector.broadcast %365 : vector<1x8xf32> to vector<16x8xf32>
    %367 = arith.addf %363, %366 : vector<16x8xf32>
    %c11 = arith.constant 11 : index
    %c0_186 = arith.constant 0 : index
    %c0_187 = arith.constant 0 : index
    %368 = vector.load %arg12[%c11, %c0_186, %c0_187] : memref<24x32x8xbf16, #tpu.memory_space<vmem>>, vector<1x32x8xbf16>
    %369 = vector.shape_cast %368 : vector<1x32x8xbf16> to vector<32x8xbf16>
    %cst_188 = arith.constant dense<0.000000e+00> : vector<16x8xf32>
    %370 = tpu.matmul %228, %369, %cst_188 {dimension_numbers = #tpu.dot_dimension_numbers<[1], [0], [0], [1], [0, 0, 1, 1], [], []>} : vector<16x32xbf16>, vector<32x8xbf16>, vector<16x8xf32> -> vector<16x8xf32>
    %c11_189 = arith.constant 11 : index
    %c0_190 = arith.constant 0 : index
    %c0_191 = arith.constant 0 : index
    %371 = vector.load %arg13[%c11_189, %c0_190, %c0_191] : memref<24x1x8xf32, #tpu.memory_space<vmem>>, vector<1x1x8xf32>
    %372 = vector.shape_cast %371 : vector<1x1x8xf32> to vector<1x8xf32>
    %373 = vector.broadcast %372 : vector<1x8xf32> to vector<16x8xf32>
    %374 = arith.addf %370, %373 : vector<16x8xf32>
    %375 = arith.truncf %360 : vector<16x8xf32> to vector<16x8xbf16>
    %376 = arith.truncf %367 : vector<16x8xf32> to vector<16x8xbf16>
    %cst_192 = arith.constant dense<0.000000e+00> : vector<16x16xf32>
    %377 = tpu.matmul %375, %376, %cst_192 {dimension_numbers = #tpu.dot_dimension_numbers<[1], [1], [0], [0], [0, 0, 1, 0], [], []>} : vector<16x8xbf16>, vector<16x8xbf16>, vector<16x16xf32> -> vector<16x16xf32>
    %378 = vector.broadcast %227 : vector<1x16xf32> to vector<16x16xf32>
    %379 = arith.addf %377, %378 : vector<16x16xf32>
    %cst_193 = arith.constant dense<0xFF800000> : vector<16xf32>
    %380 = vector.multi_reduction <maximumf>, %379, %cst_193 [1] : vector<16x16xf32> to vector<16xf32>
    %381 = vector.shape_cast %380 : vector<16xf32> to vector<16x1xf32>
    %382 = vector.broadcast %381 : vector<16x1xf32> to vector<16x16xf32>
    %383 = arith.subf %379, %382 : vector<16x16xf32>
    %384 = math.exp %383 : vector<16x16xf32>
    %cst_194 = arith.constant dense<0.000000e+00> : vector<16xf32>
    %385 = vector.multi_reduction <add>, %384, %cst_194 [1] : vector<16x16xf32> to vector<16xf32>
    %386 = vector.shape_cast %385 : vector<16xf32> to vector<16x1xf32>
    %387 = tpu.reciprocal %386 {approx = true} : vector<16x1xf32> -> vector<16x1xf32>
    %388 = vector.broadcast %387 : vector<16x1xf32> to vector<16x16xf32>
    %389 = arith.mulf %384, %388 : vector<16x16xf32>
    %390 = arith.truncf %389 : vector<16x16xf32> to vector<16x16xbf16>
    %391 = arith.truncf %374 : vector<16x8xf32> to vector<16x8xbf16>
    %cst_195 = arith.constant dense<0.000000e+00> : vector<16x8xf32>
    %392 = tpu.matmul %390, %391, %cst_195 {dimension_numbers = #tpu.dot_dimension_numbers<[1], [0], [0], [1], [0, 0, 1, 1], [], []>} : vector<16x16xbf16>, vector<16x8xbf16>, vector<16x8xf32> -> vector<16x8xf32>
    %393 = tpu.concatenate %269, %310, %351, %392 in 1 : vector<16x8xf32>, vector<16x8xf32>, vector<16x8xf32>, vector<16x8xf32> -> vector<16x32xf32>
    %394 = arith.truncf %393 : vector<16x32xf32> to vector<16x32xbf16>
    %c0_196 = arith.constant 0 : index
    %c0_197 = arith.constant 0 : index
    %c0_198 = arith.constant 0 : index
    %395 = vector.load %arg14[%c0_196, %c0_197, %c0_198] : memref<2x32x32xbf16, #tpu.memory_space<vmem>>, vector<1x32x32xbf16>
    %396 = vector.shape_cast %395 : vector<1x32x32xbf16> to vector<32x32xbf16>
    %cst_199 = arith.constant dense<0.000000e+00> : vector<16x32xf32>
    %397 = tpu.matmul %394, %396, %cst_199 {dimension_numbers = #tpu.dot_dimension_numbers<[1], [0], [0], [1], [0, 0, 1, 1], [], []>} : vector<16x32xbf16>, vector<32x32xbf16>, vector<16x32xf32> -> vector<16x32xf32>
    %c0_200 = arith.constant 0 : index
    %c0_201 = arith.constant 0 : index
    %c0_202 = arith.constant 0 : index
    %398 = vector.load %arg15[%c0_200, %c0_201, %c0_202] : memref<2x1x32xf32, #tpu.memory_space<vmem>>, vector<1x1x32xf32>
    %399 = vector.shape_cast %398 : vector<1x1x32xf32> to vector<1x32xf32>
    %400 = vector.broadcast %399 : vector<1x32xf32> to vector<16x32xf32>
    %401 = arith.addf %397, %400 : vector<16x32xf32>
    %402 = arith.addf %225, %401 : vector<16x32xf32>
    %c0_203 = arith.constant 0 : index
    %c0_204 = arith.constant 0 : index
    %c0_205 = arith.constant 0 : index
    %403 = vector.load %arg16[%c0_203, %c0_204, %c0_205] : memref<2x1x32xf32, #tpu.memory_space<vmem>>, vector<1x1x32xf32>
    %404 = vector.shape_cast %403 : vector<1x1x32xf32> to vector<1x32xf32>
    %c0_206 = arith.constant 0 : index
    %c0_207 = arith.constant 0 : index
    %c0_208 = arith.constant 0 : index
    %405 = vector.load %arg17[%c0_206, %c0_207, %c0_208] : memref<2x1x32xf32, #tpu.memory_space<vmem>>, vector<1x1x32xf32>
    %406 = vector.shape_cast %405 : vector<1x1x32xf32> to vector<1x32xf32>
    %cst_209 = arith.constant dense<0.000000e+00> : vector<16xf32>
    %407 = vector.multi_reduction <add>, %402, %cst_209 [1] : vector<16x32xf32> to vector<16xf32>
    %408 = vector.shape_cast %407 : vector<16xf32> to vector<16x1xf32>
    %cst_210 = arith.constant 3.200000e+01 : f32
    %409 = vector.broadcast %cst_210 : f32 to vector<16x1xf32>
    %410 = arith.divf %408, %409 : vector<16x1xf32>
    %411 = vector.broadcast %410 : vector<16x1xf32> to vector<16x32xf32>
    %412 = arith.subf %402, %411 : vector<16x32xf32>
    %413 = arith.mulf %412, %412 : vector<16x32xf32>
    %cst_211 = arith.constant dense<0.000000e+00> : vector<16xf32>
    %414 = vector.multi_reduction <add>, %413, %cst_211 [1] : vector<16x32xf32> to vector<16xf32>
    %415 = vector.shape_cast %414 : vector<16xf32> to vector<16x1xf32>
    %cst_212 = arith.constant 3.200000e+01 : f32
    %416 = vector.broadcast %cst_212 : f32 to vector<16x1xf32>
    %417 = arith.divf %415, %416 : vector<16x1xf32>
    %cst_213 = arith.constant 9.99999974E-6 : f32
    %418 = vector.broadcast %cst_213 : f32 to vector<16x1xf32>
    %419 = arith.addf %417, %418 : vector<16x1xf32>
    %420 = math.rsqrt %419 : vector<16x1xf32>
    %421 = vector.broadcast %420 : vector<16x1xf32> to vector<16x32xf32>
    %422 = arith.mulf %412, %421 : vector<16x32xf32>
    %423 = vector.broadcast %404 : vector<1x32xf32> to vector<16x32xf32>
    %424 = arith.mulf %422, %423 : vector<16x32xf32>
    %425 = vector.broadcast %406 : vector<1x32xf32> to vector<16x32xf32>
    %426 = arith.addf %424, %425 : vector<16x32xf32>
    %427 = arith.truncf %426 : vector<16x32xf32> to vector<16x32xbf16>
    %c0_214 = arith.constant 0 : index
    %c0_215 = arith.constant 0 : index
    %c0_216 = arith.constant 0 : index
    %428 = vector.load %arg18[%c0_214, %c0_215, %c0_216] : memref<2x32x64xbf16, #tpu.memory_space<vmem>>, vector<1x32x64xbf16>
    %429 = vector.shape_cast %428 : vector<1x32x64xbf16> to vector<32x64xbf16>
    %cst_217 = arith.constant dense<0.000000e+00> : vector<16x64xf32>
    %430 = tpu.matmul %427, %429, %cst_217 {dimension_numbers = #tpu.dot_dimension_numbers<[1], [0], [0], [1], [0, 0, 1, 1], [], []>} : vector<16x32xbf16>, vector<32x64xbf16>, vector<16x64xf32> -> vector<16x64xf32>
    %c0_218 = arith.constant 0 : index
    %c0_219 = arith.constant 0 : index
    %c0_220 = arith.constant 0 : index
    %431 = vector.load %arg19[%c0_218, %c0_219, %c0_220] : memref<2x1x64xf32, #tpu.memory_space<vmem>>, vector<1x1x64xf32>
    %432 = vector.shape_cast %431 : vector<1x1x64xf32> to vector<1x64xf32>
    %433 = vector.broadcast %432 : vector<1x64xf32> to vector<16x64xf32>
    %434 = arith.addf %430, %433 : vector<16x64xf32>
    %cst_221 = arith.constant 5.000000e-01 : f32
    %435 = vector.broadcast %cst_221 : f32 to vector<16x64xf32>
    %436 = arith.mulf %435, %434 : vector<16x64xf32>
    %cst_222 = arith.constant 4.471500e-02 : f32
    %437 = vector.broadcast %cst_222 : f32 to vector<16x64xf32>
    %438 = arith.mulf %437, %434 : vector<16x64xf32>
    %439 = arith.mulf %438, %434 : vector<16x64xf32>
    %440 = arith.mulf %439, %434 : vector<16x64xf32>
    %441 = arith.addf %434, %440 : vector<16x64xf32>
    %cst_223 = arith.constant 0.797884583 : f32
    %442 = vector.broadcast %cst_223 : f32 to vector<16x64xf32>
    %443 = arith.mulf %442, %441 : vector<16x64xf32>
    %444 = math.tanh %443 : vector<16x64xf32>
    %cst_224 = arith.constant 1.000000e+00 : f32
    %445 = vector.broadcast %cst_224 : f32 to vector<16x64xf32>
    %446 = arith.addf %445, %444 : vector<16x64xf32>
    %447 = arith.mulf %436, %446 : vector<16x64xf32>
    %448 = arith.truncf %447 : vector<16x64xf32> to vector<16x64xbf16>
    %c0_225 = arith.constant 0 : index
    %c0_226 = arith.constant 0 : index
    %c0_227 = arith.constant 0 : index
    %449 = vector.load %arg20[%c0_225, %c0_226, %c0_227] : memref<2x64x32xbf16, #tpu.memory_space<vmem>>, vector<1x64x32xbf16>
    %450 = vector.shape_cast %449 : vector<1x64x32xbf16> to vector<64x32xbf16>
    %cst_228 = arith.constant dense<0.000000e+00> : vector<16x32xf32>
    %451 = tpu.matmul %448, %450, %cst_228 {dimension_numbers = #tpu.dot_dimension_numbers<[1], [0], [0], [1], [0, 0, 1, 1], [], []>} : vector<16x64xbf16>, vector<64x32xbf16>, vector<16x32xf32> -> vector<16x32xf32>
    %c0_229 = arith.constant 0 : index
    %c0_230 = arith.constant 0 : index
    %c0_231 = arith.constant 0 : index
    %452 = vector.load %arg21[%c0_229, %c0_230, %c0_231] : memref<2x1x32xf32, #tpu.memory_space<vmem>>, vector<1x1x32xf32>
    %453 = vector.shape_cast %452 : vector<1x1x32xf32> to vector<1x32xf32>
    %454 = vector.broadcast %453 : vector<1x32xf32> to vector<16x32xf32>
    %455 = arith.addf %451, %454 : vector<16x32xf32>
    %456 = arith.addf %426, %455 : vector<16x32xf32>
    %c0_232 = arith.constant 0 : index
    %c0_233 = arith.constant 0 : index
    %c0_234 = arith.constant 0 : index
    %457 = vector.load %arg22[%c0_232, %c0_233, %c0_234] : memref<2x1x32xf32, #tpu.memory_space<vmem>>, vector<1x1x32xf32>
    %458 = vector.shape_cast %457 : vector<1x1x32xf32> to vector<1x32xf32>
    %c0_235 = arith.constant 0 : index
    %c0_236 = arith.constant 0 : index
    %c0_237 = arith.constant 0 : index
    %459 = vector.load %arg23[%c0_235, %c0_236, %c0_237] : memref<2x1x32xf32, #tpu.memory_space<vmem>>, vector<1x1x32xf32>
    %460 = vector.shape_cast %459 : vector<1x1x32xf32> to vector<1x32xf32>
    %cst_238 = arith.constant dense<0.000000e+00> : vector<16xf32>
    %461 = vector.multi_reduction <add>, %456, %cst_238 [1] : vector<16x32xf32> to vector<16xf32>
    %462 = vector.shape_cast %461 : vector<16xf32> to vector<16x1xf32>
    %cst_239 = arith.constant 3.200000e+01 : f32
    %463 = vector.broadcast %cst_239 : f32 to vector<16x1xf32>
    %464 = arith.divf %462, %463 : vector<16x1xf32>
    %465 = vector.broadcast %464 : vector<16x1xf32> to vector<16x32xf32>
    %466 = arith.subf %456, %465 : vector<16x32xf32>
    %467 = arith.mulf %466, %466 : vector<16x32xf32>
    %cst_240 = arith.constant dense<0.000000e+00> : vector<16xf32>
    %468 = vector.multi_reduction <add>, %467, %cst_240 [1] : vector<16x32xf32> to vector<16xf32>
    %469 = vector.shape_cast %468 : vector<16xf32> to vector<16x1xf32>
    %cst_241 = arith.constant 3.200000e+01 : f32
    %470 = vector.broadcast %cst_241 : f32 to vector<16x1xf32>
    %471 = arith.divf %469, %470 : vector<16x1xf32>
    %cst_242 = arith.constant 9.99999974E-6 : f32
    %472 = vector.broadcast %cst_242 : f32 to vector<16x1xf32>
    %473 = arith.addf %471, %472 : vector<16x1xf32>
    %474 = math.rsqrt %473 : vector<16x1xf32>
    %475 = vector.broadcast %474 : vector<16x1xf32> to vector<16x32xf32>
    %476 = arith.mulf %466, %475 : vector<16x32xf32>
    %477 = vector.broadcast %458 : vector<1x32xf32> to vector<16x32xf32>
    %478 = arith.mulf %476, %477 : vector<16x32xf32>
    %479 = vector.broadcast %460 : vector<1x32xf32> to vector<16x32xf32>
    %480 = arith.addf %478, %479 : vector<16x32xf32>
    %481 = arith.truncf %480 : vector<16x32xf32> to vector<16x32xbf16>
    %c12 = arith.constant 12 : index
    %c0_243 = arith.constant 0 : index
    %c0_244 = arith.constant 0 : index
    %482 = vector.load %arg12[%c12, %c0_243, %c0_244] : memref<24x32x8xbf16, #tpu.memory_space<vmem>>, vector<1x32x8xbf16>
    %483 = vector.shape_cast %482 : vector<1x32x8xbf16> to vector<32x8xbf16>
    %cst_245 = arith.constant dense<0.000000e+00> : vector<16x8xf32>
    %484 = tpu.matmul %481, %483, %cst_245 {dimension_numbers = #tpu.dot_dimension_numbers<[1], [0], [0], [1], [0, 0, 1, 1], [], []>} : vector<16x32xbf16>, vector<32x8xbf16>, vector<16x8xf32> -> vector<16x8xf32>
    %c12_246 = arith.constant 12 : index
    %c0_247 = arith.constant 0 : index
    %c0_248 = arith.constant 0 : index
    %485 = vector.load %arg13[%c12_246, %c0_247, %c0_248] : memref<24x1x8xf32, #tpu.memory_space<vmem>>, vector<1x1x8xf32>
    %486 = vector.shape_cast %485 : vector<1x1x8xf32> to vector<1x8xf32>
    %487 = vector.broadcast %486 : vector<1x8xf32> to vector<16x8xf32>
    %488 = arith.addf %484, %487 : vector<16x8xf32>
    %cst_249 = arith.constant 0.353553385 : f32
    %489 = vector.broadcast %cst_249 : f32 to vector<16x8xf32>
    %490 = arith.mulf %488, %489 : vector<16x8xf32>
    %c16 = arith.constant 16 : index
    %c0_250 = arith.constant 0 : index
    %c0_251 = arith.constant 0 : index
    %491 = vector.load %arg12[%c16, %c0_250, %c0_251] : memref<24x32x8xbf16, #tpu.memory_space<vmem>>, vector<1x32x8xbf16>
    %492 = vector.shape_cast %491 : vector<1x32x8xbf16> to vector<32x8xbf16>
    %cst_252 = arith.constant dense<0.000000e+00> : vector<16x8xf32>
    %493 = tpu.matmul %481, %492, %cst_252 {dimension_numbers = #tpu.dot_dimension_numbers<[1], [0], [0], [1], [0, 0, 1, 1], [], []>} : vector<16x32xbf16>, vector<32x8xbf16>, vector<16x8xf32> -> vector<16x8xf32>
    %c16_253 = arith.constant 16 : index
    %c0_254 = arith.constant 0 : index
    %c0_255 = arith.constant 0 : index
    %494 = vector.load %arg13[%c16_253, %c0_254, %c0_255] : memref<24x1x8xf32, #tpu.memory_space<vmem>>, vector<1x1x8xf32>
    %495 = vector.shape_cast %494 : vector<1x1x8xf32> to vector<1x8xf32>
    %496 = vector.broadcast %495 : vector<1x8xf32> to vector<16x8xf32>
    %497 = arith.addf %493, %496 : vector<16x8xf32>
    %c20 = arith.constant 20 : index
    %c0_256 = arith.constant 0 : index
    %c0_257 = arith.constant 0 : index
    %498 = vector.load %arg12[%c20, %c0_256, %c0_257] : memref<24x32x8xbf16, #tpu.memory_space<vmem>>, vector<1x32x8xbf16>
    %499 = vector.shape_cast %498 : vector<1x32x8xbf16> to vector<32x8xbf16>
    %cst_258 = arith.constant dense<0.000000e+00> : vector<16x8xf32>
    %500 = tpu.matmul %481, %499, %cst_258 {dimension_numbers = #tpu.dot_dimension_numbers<[1], [0], [0], [1], [0, 0, 1, 1], [], []>} : vector<16x32xbf16>, vector<32x8xbf16>, vector<16x8xf32> -> vector<16x8xf32>
    %c20_259 = arith.constant 20 : index
    %c0_260 = arith.constant 0 : index
    %c0_261 = arith.constant 0 : index
    %501 = vector.load %arg13[%c20_259, %c0_260, %c0_261] : memref<24x1x8xf32, #tpu.memory_space<vmem>>, vector<1x1x8xf32>
    %502 = vector.shape_cast %501 : vector<1x1x8xf32> to vector<1x8xf32>
    %503 = vector.broadcast %502 : vector<1x8xf32> to vector<16x8xf32>
    %504 = arith.addf %500, %503 : vector<16x8xf32>
    %505 = arith.truncf %490 : vector<16x8xf32> to vector<16x8xbf16>
    %506 = arith.truncf %497 : vector<16x8xf32> to vector<16x8xbf16>
    %cst_262 = arith.constant dense<0.000000e+00> : vector<16x16xf32>
    %507 = tpu.matmul %505, %506, %cst_262 {dimension_numbers = #tpu.dot_dimension_numbers<[1], [1], [0], [0], [0, 0, 1, 0], [], []>} : vector<16x8xbf16>, vector<16x8xbf16>, vector<16x16xf32> -> vector<16x16xf32>
    %508 = vector.broadcast %227 : vector<1x16xf32> to vector<16x16xf32>
    %509 = arith.addf %507, %508 : vector<16x16xf32>
    %cst_263 = arith.constant dense<0xFF800000> : vector<16xf32>
    %510 = vector.multi_reduction <maximumf>, %509, %cst_263 [1] : vector<16x16xf32> to vector<16xf32>
    %511 = vector.shape_cast %510 : vector<16xf32> to vector<16x1xf32>
    %512 = vector.broadcast %511 : vector<16x1xf32> to vector<16x16xf32>
    %513 = arith.subf %509, %512 : vector<16x16xf32>
    %514 = math.exp %513 : vector<16x16xf32>
    %cst_264 = arith.constant dense<0.000000e+00> : vector<16xf32>
    %515 = vector.multi_reduction <add>, %514, %cst_264 [1] : vector<16x16xf32> to vector<16xf32>
    %516 = vector.shape_cast %515 : vector<16xf32> to vector<16x1xf32>
    %517 = tpu.reciprocal %516 {approx = true} : vector<16x1xf32> -> vector<16x1xf32>
    %518 = vector.broadcast %517 : vector<16x1xf32> to vector<16x16xf32>
    %519 = arith.mulf %514, %518 : vector<16x16xf32>
    %520 = arith.truncf %519 : vector<16x16xf32> to vector<16x16xbf16>
    %521 = arith.truncf %504 : vector<16x8xf32> to vector<16x8xbf16>
    %cst_265 = arith.constant dense<0.000000e+00> : vector<16x8xf32>
    %522 = tpu.matmul %520, %521, %cst_265 {dimension_numbers = #tpu.dot_dimension_numbers<[1], [0], [0], [1], [0, 0, 1, 1], [], []>} : vector<16x16xbf16>, vector<16x8xbf16>, vector<16x8xf32> -> vector<16x8xf32>
    %c13 = arith.constant 13 : index
    %c0_266 = arith.constant 0 : index
    %c0_267 = arith.constant 0 : index
    %523 = vector.load %arg12[%c13, %c0_266, %c0_267] : memref<24x32x8xbf16, #tpu.memory_space<vmem>>, vector<1x32x8xbf16>
    %524 = vector.shape_cast %523 : vector<1x32x8xbf16> to vector<32x8xbf16>
    %cst_268 = arith.constant dense<0.000000e+00> : vector<16x8xf32>
    %525 = tpu.matmul %481, %524, %cst_268 {dimension_numbers = #tpu.dot_dimension_numbers<[1], [0], [0], [1], [0, 0, 1, 1], [], []>} : vector<16x32xbf16>, vector<32x8xbf16>, vector<16x8xf32> -> vector<16x8xf32>
    %c13_269 = arith.constant 13 : index
    %c0_270 = arith.constant 0 : index
    %c0_271 = arith.constant 0 : index
    %526 = vector.load %arg13[%c13_269, %c0_270, %c0_271] : memref<24x1x8xf32, #tpu.memory_space<vmem>>, vector<1x1x8xf32>
    %527 = vector.shape_cast %526 : vector<1x1x8xf32> to vector<1x8xf32>
    %528 = vector.broadcast %527 : vector<1x8xf32> to vector<16x8xf32>
    %529 = arith.addf %525, %528 : vector<16x8xf32>
    %cst_272 = arith.constant 0.353553385 : f32
    %530 = vector.broadcast %cst_272 : f32 to vector<16x8xf32>
    %531 = arith.mulf %529, %530 : vector<16x8xf32>
    %c17 = arith.constant 17 : index
    %c0_273 = arith.constant 0 : index
    %c0_274 = arith.constant 0 : index
    %532 = vector.load %arg12[%c17, %c0_273, %c0_274] : memref<24x32x8xbf16, #tpu.memory_space<vmem>>, vector<1x32x8xbf16>
    %533 = vector.shape_cast %532 : vector<1x32x8xbf16> to vector<32x8xbf16>
    %cst_275 = arith.constant dense<0.000000e+00> : vector<16x8xf32>
    %534 = tpu.matmul %481, %533, %cst_275 {dimension_numbers = #tpu.dot_dimension_numbers<[1], [0], [0], [1], [0, 0, 1, 1], [], []>} : vector<16x32xbf16>, vector<32x8xbf16>, vector<16x8xf32> -> vector<16x8xf32>
    %c17_276 = arith.constant 17 : index
    %c0_277 = arith.constant 0 : index
    %c0_278 = arith.constant 0 : index
    %535 = vector.load %arg13[%c17_276, %c0_277, %c0_278] : memref<24x1x8xf32, #tpu.memory_space<vmem>>, vector<1x1x8xf32>
    %536 = vector.shape_cast %535 : vector<1x1x8xf32> to vector<1x8xf32>
    %537 = vector.broadcast %536 : vector<1x8xf32> to vector<16x8xf32>
    %538 = arith.addf %534, %537 : vector<16x8xf32>
    %c21 = arith.constant 21 : index
    %c0_279 = arith.constant 0 : index
    %c0_280 = arith.constant 0 : index
    %539 = vector.load %arg12[%c21, %c0_279, %c0_280] : memref<24x32x8xbf16, #tpu.memory_space<vmem>>, vector<1x32x8xbf16>
    %540 = vector.shape_cast %539 : vector<1x32x8xbf16> to vector<32x8xbf16>
    %cst_281 = arith.constant dense<0.000000e+00> : vector<16x8xf32>
    %541 = tpu.matmul %481, %540, %cst_281 {dimension_numbers = #tpu.dot_dimension_numbers<[1], [0], [0], [1], [0, 0, 1, 1], [], []>} : vector<16x32xbf16>, vector<32x8xbf16>, vector<16x8xf32> -> vector<16x8xf32>
    %c21_282 = arith.constant 21 : index
    %c0_283 = arith.constant 0 : index
    %c0_284 = arith.constant 0 : index
    %542 = vector.load %arg13[%c21_282, %c0_283, %c0_284] : memref<24x1x8xf32, #tpu.memory_space<vmem>>, vector<1x1x8xf32>
    %543 = vector.shape_cast %542 : vector<1x1x8xf32> to vector<1x8xf32>
    %544 = vector.broadcast %543 : vector<1x8xf32> to vector<16x8xf32>
    %545 = arith.addf %541, %544 : vector<16x8xf32>
    %546 = arith.truncf %531 : vector<16x8xf32> to vector<16x8xbf16>
    %547 = arith.truncf %538 : vector<16x8xf32> to vector<16x8xbf16>
    %cst_285 = arith.constant dense<0.000000e+00> : vector<16x16xf32>
    %548 = tpu.matmul %546, %547, %cst_285 {dimension_numbers = #tpu.dot_dimension_numbers<[1], [1], [0], [0], [0, 0, 1, 0], [], []>} : vector<16x8xbf16>, vector<16x8xbf16>, vector<16x16xf32> -> vector<16x16xf32>
    %549 = vector.broadcast %227 : vector<1x16xf32> to vector<16x16xf32>
    %550 = arith.addf %548, %549 : vector<16x16xf32>
    %cst_286 = arith.constant dense<0xFF800000> : vector<16xf32>
    %551 = vector.multi_reduction <maximumf>, %550, %cst_286 [1] : vector<16x16xf32> to vector<16xf32>
    %552 = vector.shape_cast %551 : vector<16xf32> to vector<16x1xf32>
    %553 = vector.broadcast %552 : vector<16x1xf32> to vector<16x16xf32>
    %554 = arith.subf %550, %553 : vector<16x16xf32>
    %555 = math.exp %554 : vector<16x16xf32>
    %cst_287 = arith.constant dense<0.000000e+00> : vector<16xf32>
    %556 = vector.multi_reduction <add>, %555, %cst_287 [1] : vector<16x16xf32> to vector<16xf32>
    %557 = vector.shape_cast %556 : vector<16xf32> to vector<16x1xf32>
    %558 = tpu.reciprocal %557 {approx = true} : vector<16x1xf32> -> vector<16x1xf32>
    %559 = vector.broadcast %558 : vector<16x1xf32> to vector<16x16xf32>
    %560 = arith.mulf %555, %559 : vector<16x16xf32>
    %561 = arith.truncf %560 : vector<16x16xf32> to vector<16x16xbf16>
    %562 = arith.truncf %545 : vector<16x8xf32> to vector<16x8xbf16>
    %cst_288 = arith.constant dense<0.000000e+00> : vector<16x8xf32>
    %563 = tpu.matmul %561, %562, %cst_288 {dimension_numbers = #tpu.dot_dimension_numbers<[1], [0], [0], [1], [0, 0, 1, 1], [], []>} : vector<16x16xbf16>, vector<16x8xbf16>, vector<16x8xf32> -> vector<16x8xf32>
    %c14 = arith.constant 14 : index
    %c0_289 = arith.constant 0 : index
    %c0_290 = arith.constant 0 : index
    %564 = vector.load %arg12[%c14, %c0_289, %c0_290] : memref<24x32x8xbf16, #tpu.memory_space<vmem>>, vector<1x32x8xbf16>
    %565 = vector.shape_cast %564 : vector<1x32x8xbf16> to vector<32x8xbf16>
    %cst_291 = arith.constant dense<0.000000e+00> : vector<16x8xf32>
    %566 = tpu.matmul %481, %565, %cst_291 {dimension_numbers = #tpu.dot_dimension_numbers<[1], [0], [0], [1], [0, 0, 1, 1], [], []>} : vector<16x32xbf16>, vector<32x8xbf16>, vector<16x8xf32> -> vector<16x8xf32>
    %c14_292 = arith.constant 14 : index
    %c0_293 = arith.constant 0 : index
    %c0_294 = arith.constant 0 : index
    %567 = vector.load %arg13[%c14_292, %c0_293, %c0_294] : memref<24x1x8xf32, #tpu.memory_space<vmem>>, vector<1x1x8xf32>
    %568 = vector.shape_cast %567 : vector<1x1x8xf32> to vector<1x8xf32>
    %569 = vector.broadcast %568 : vector<1x8xf32> to vector<16x8xf32>
    %570 = arith.addf %566, %569 : vector<16x8xf32>
    %cst_295 = arith.constant 0.353553385 : f32
    %571 = vector.broadcast %cst_295 : f32 to vector<16x8xf32>
    %572 = arith.mulf %570, %571 : vector<16x8xf32>
    %c18 = arith.constant 18 : index
    %c0_296 = arith.constant 0 : index
    %c0_297 = arith.constant 0 : index
    %573 = vector.load %arg12[%c18, %c0_296, %c0_297] : memref<24x32x8xbf16, #tpu.memory_space<vmem>>, vector<1x32x8xbf16>
    %574 = vector.shape_cast %573 : vector<1x32x8xbf16> to vector<32x8xbf16>
    %cst_298 = arith.constant dense<0.000000e+00> : vector<16x8xf32>
    %575 = tpu.matmul %481, %574, %cst_298 {dimension_numbers = #tpu.dot_dimension_numbers<[1], [0], [0], [1], [0, 0, 1, 1], [], []>} : vector<16x32xbf16>, vector<32x8xbf16>, vector<16x8xf32> -> vector<16x8xf32>
    %c18_299 = arith.constant 18 : index
    %c0_300 = arith.constant 0 : index
    %c0_301 = arith.constant 0 : index
    %576 = vector.load %arg13[%c18_299, %c0_300, %c0_301] : memref<24x1x8xf32, #tpu.memory_space<vmem>>, vector<1x1x8xf32>
    %577 = vector.shape_cast %576 : vector<1x1x8xf32> to vector<1x8xf32>
    %578 = vector.broadcast %577 : vector<1x8xf32> to vector<16x8xf32>
    %579 = arith.addf %575, %578 : vector<16x8xf32>
    %c22 = arith.constant 22 : index
    %c0_302 = arith.constant 0 : index
    %c0_303 = arith.constant 0 : index
    %580 = vector.load %arg12[%c22, %c0_302, %c0_303] : memref<24x32x8xbf16, #tpu.memory_space<vmem>>, vector<1x32x8xbf16>
    %581 = vector.shape_cast %580 : vector<1x32x8xbf16> to vector<32x8xbf16>
    %cst_304 = arith.constant dense<0.000000e+00> : vector<16x8xf32>
    %582 = tpu.matmul %481, %581, %cst_304 {dimension_numbers = #tpu.dot_dimension_numbers<[1], [0], [0], [1], [0, 0, 1, 1], [], []>} : vector<16x32xbf16>, vector<32x8xbf16>, vector<16x8xf32> -> vector<16x8xf32>
    %c22_305 = arith.constant 22 : index
    %c0_306 = arith.constant 0 : index
    %c0_307 = arith.constant 0 : index
    %583 = vector.load %arg13[%c22_305, %c0_306, %c0_307] : memref<24x1x8xf32, #tpu.memory_space<vmem>>, vector<1x1x8xf32>
    %584 = vector.shape_cast %583 : vector<1x1x8xf32> to vector<1x8xf32>
    %585 = vector.broadcast %584 : vector<1x8xf32> to vector<16x8xf32>
    %586 = arith.addf %582, %585 : vector<16x8xf32>
    %587 = arith.truncf %572 : vector<16x8xf32> to vector<16x8xbf16>
    %588 = arith.truncf %579 : vector<16x8xf32> to vector<16x8xbf16>
    %cst_308 = arith.constant dense<0.000000e+00> : vector<16x16xf32>
    %589 = tpu.matmul %587, %588, %cst_308 {dimension_numbers = #tpu.dot_dimension_numbers<[1], [1], [0], [0], [0, 0, 1, 0], [], []>} : vector<16x8xbf16>, vector<16x8xbf16>, vector<16x16xf32> -> vector<16x16xf32>
    %590 = vector.broadcast %227 : vector<1x16xf32> to vector<16x16xf32>
    %591 = arith.addf %589, %590 : vector<16x16xf32>
    %cst_309 = arith.constant dense<0xFF800000> : vector<16xf32>
    %592 = vector.multi_reduction <maximumf>, %591, %cst_309 [1] : vector<16x16xf32> to vector<16xf32>
    %593 = vector.shape_cast %592 : vector<16xf32> to vector<16x1xf32>
    %594 = vector.broadcast %593 : vector<16x1xf32> to vector<16x16xf32>
    %595 = arith.subf %591, %594 : vector<16x16xf32>
    %596 = math.exp %595 : vector<16x16xf32>
    %cst_310 = arith.constant dense<0.000000e+00> : vector<16xf32>
    %597 = vector.multi_reduction <add>, %596, %cst_310 [1] : vector<16x16xf32> to vector<16xf32>
    %598 = vector.shape_cast %597 : vector<16xf32> to vector<16x1xf32>
    %599 = tpu.reciprocal %598 {approx = true} : vector<16x1xf32> -> vector<16x1xf32>
    %600 = vector.broadcast %599 : vector<16x1xf32> to vector<16x16xf32>
    %601 = arith.mulf %596, %600 : vector<16x16xf32>
    %602 = arith.truncf %601 : vector<16x16xf32> to vector<16x16xbf16>
    %603 = arith.truncf %586 : vector<16x8xf32> to vector<16x8xbf16>
    %cst_311 = arith.constant dense<0.000000e+00> : vector<16x8xf32>
    %604 = tpu.matmul %602, %603, %cst_311 {dimension_numbers = #tpu.dot_dimension_numbers<[1], [0], [0], [1], [0, 0, 1, 1], [], []>} : vector<16x16xbf16>, vector<16x8xbf16>, vector<16x8xf32> -> vector<16x8xf32>
    %c15 = arith.constant 15 : index
    %c0_312 = arith.constant 0 : index
    %c0_313 = arith.constant 0 : index
    %605 = vector.load %arg12[%c15, %c0_312, %c0_313] : memref<24x32x8xbf16, #tpu.memory_space<vmem>>, vector<1x32x8xbf16>
    %606 = vector.shape_cast %605 : vector<1x32x8xbf16> to vector<32x8xbf16>
    %cst_314 = arith.constant dense<0.000000e+00> : vector<16x8xf32>
    %607 = tpu.matmul %481, %606, %cst_314 {dimension_numbers = #tpu.dot_dimension_numbers<[1], [0], [0], [1], [0, 0, 1, 1], [], []>} : vector<16x32xbf16>, vector<32x8xbf16>, vector<16x8xf32> -> vector<16x8xf32>
    %c15_315 = arith.constant 15 : index
    %c0_316 = arith.constant 0 : index
    %c0_317 = arith.constant 0 : index
    %608 = vector.load %arg13[%c15_315, %c0_316, %c0_317] : memref<24x1x8xf32, #tpu.memory_space<vmem>>, vector<1x1x8xf32>
    %609 = vector.shape_cast %608 : vector<1x1x8xf32> to vector<1x8xf32>
    %610 = vector.broadcast %609 : vector<1x8xf32> to vector<16x8xf32>
    %611 = arith.addf %607, %610 : vector<16x8xf32>
    %cst_318 = arith.constant 0.353553385 : f32
    %612 = vector.broadcast %cst_318 : f32 to vector<16x8xf32>
    %613 = arith.mulf %611, %612 : vector<16x8xf32>
    %c19 = arith.constant 19 : index
    %c0_319 = arith.constant 0 : index
    %c0_320 = arith.constant 0 : index
    %614 = vector.load %arg12[%c19, %c0_319, %c0_320] : memref<24x32x8xbf16, #tpu.memory_space<vmem>>, vector<1x32x8xbf16>
    %615 = vector.shape_cast %614 : vector<1x32x8xbf16> to vector<32x8xbf16>
    %cst_321 = arith.constant dense<0.000000e+00> : vector<16x8xf32>
    %616 = tpu.matmul %481, %615, %cst_321 {dimension_numbers = #tpu.dot_dimension_numbers<[1], [0], [0], [1], [0, 0, 1, 1], [], []>} : vector<16x32xbf16>, vector<32x8xbf16>, vector<16x8xf32> -> vector<16x8xf32>
    %c19_322 = arith.constant 19 : index
    %c0_323 = arith.constant 0 : index
    %c0_324 = arith.constant 0 : index
    %617 = vector.load %arg13[%c19_322, %c0_323, %c0_324] : memref<24x1x8xf32, #tpu.memory_space<vmem>>, vector<1x1x8xf32>
    %618 = vector.shape_cast %617 : vector<1x1x8xf32> to vector<1x8xf32>
    %619 = vector.broadcast %618 : vector<1x8xf32> to vector<16x8xf32>
    %620 = arith.addf %616, %619 : vector<16x8xf32>
    %c23 = arith.constant 23 : index
    %c0_325 = arith.constant 0 : index
    %c0_326 = arith.constant 0 : index
    %621 = vector.load %arg12[%c23, %c0_325, %c0_326] : memref<24x32x8xbf16, #tpu.memory_space<vmem>>, vector<1x32x8xbf16>
    %622 = vector.shape_cast %621 : vector<1x32x8xbf16> to vector<32x8xbf16>
    %cst_327 = arith.constant dense<0.000000e+00> : vector<16x8xf32>
    %623 = tpu.matmul %481, %622, %cst_327 {dimension_numbers = #tpu.dot_dimension_numbers<[1], [0], [0], [1], [0, 0, 1, 1], [], []>} : vector<16x32xbf16>, vector<32x8xbf16>, vector<16x8xf32> -> vector<16x8xf32>
    %c23_328 = arith.constant 23 : index
    %c0_329 = arith.constant 0 : index
    %c0_330 = arith.constant 0 : index
    %624 = vector.load %arg13[%c23_328, %c0_329, %c0_330] : memref<24x1x8xf32, #tpu.memory_space<vmem>>, vector<1x1x8xf32>
    %625 = vector.shape_cast %624 : vector<1x1x8xf32> to vector<1x8xf32>
    %626 = vector.broadcast %625 : vector<1x8xf32> to vector<16x8xf32>
    %627 = arith.addf %623, %626 : vector<16x8xf32>
    %628 = arith.truncf %613 : vector<16x8xf32> to vector<16x8xbf16>
    %629 = arith.truncf %620 : vector<16x8xf32> to vector<16x8xbf16>
    %cst_331 = arith.constant dense<0.000000e+00> : vector<16x16xf32>
    %630 = tpu.matmul %628, %629, %cst_331 {dimension_numbers = #tpu.dot_dimension_numbers<[1], [1], [0], [0], [0, 0, 1, 0], [], []>} : vector<16x8xbf16>, vector<16x8xbf16>, vector<16x16xf32> -> vector<16x16xf32>
    %631 = vector.broadcast %227 : vector<1x16xf32> to vector<16x16xf32>
    %632 = arith.addf %630, %631 : vector<16x16xf32>
    %cst_332 = arith.constant dense<0xFF800000> : vector<16xf32>
    %633 = vector.multi_reduction <maximumf>, %632, %cst_332 [1] : vector<16x16xf32> to vector<16xf32>
    %634 = vector.shape_cast %633 : vector<16xf32> to vector<16x1xf32>
    %635 = vector.broadcast %634 : vector<16x1xf32> to vector<16x16xf32>
    %636 = arith.subf %632, %635 : vector<16x16xf32>
    %637 = math.exp %636 : vector<16x16xf32>
    %cst_333 = arith.constant dense<0.000000e+00> : vector<16xf32>
    %638 = vector.multi_reduction <add>, %637, %cst_333 [1] : vector<16x16xf32> to vector<16xf32>
    %639 = vector.shape_cast %638 : vector<16xf32> to vector<16x1xf32>
    %640 = tpu.reciprocal %639 {approx = true} : vector<16x1xf32> -> vector<16x1xf32>
    %641 = vector.broadcast %640 : vector<16x1xf32> to vector<16x16xf32>
    %642 = arith.mulf %637, %641 : vector<16x16xf32>
    %643 = arith.truncf %642 : vector<16x16xf32> to vector<16x16xbf16>
    %644 = arith.truncf %627 : vector<16x8xf32> to vector<16x8xbf16>
    %cst_334 = arith.constant dense<0.000000e+00> : vector<16x8xf32>
    %645 = tpu.matmul %643, %644, %cst_334 {dimension_numbers = #tpu.dot_dimension_numbers<[1], [0], [0], [1], [0, 0, 1, 1], [], []>} : vector<16x16xbf16>, vector<16x8xbf16>, vector<16x8xf32> -> vector<16x8xf32>
    %646 = tpu.concatenate %522, %563, %604, %645 in 1 : vector<16x8xf32>, vector<16x8xf32>, vector<16x8xf32>, vector<16x8xf32> -> vector<16x32xf32>
    %647 = arith.truncf %646 : vector<16x32xf32> to vector<16x32xbf16>
    %c1_335 = arith.constant 1 : index
    %c0_336 = arith.constant 0 : index
    %c0_337 = arith.constant 0 : index
    %648 = vector.load %arg14[%c1_335, %c0_336, %c0_337] : memref<2x32x32xbf16, #tpu.memory_space<vmem>>, vector<1x32x32xbf16>
    %649 = vector.shape_cast %648 : vector<1x32x32xbf16> to vector<32x32xbf16>
    %cst_338 = arith.constant dense<0.000000e+00> : vector<16x32xf32>
    %650 = tpu.matmul %647, %649, %cst_338 {dimension_numbers = #tpu.dot_dimension_numbers<[1], [0], [0], [1], [0, 0, 1, 1], [], []>} : vector<16x32xbf16>, vector<32x32xbf16>, vector<16x32xf32> -> vector<16x32xf32>
    %c1_339 = arith.constant 1 : index
    %c0_340 = arith.constant 0 : index
    %c0_341 = arith.constant 0 : index
    %651 = vector.load %arg15[%c1_339, %c0_340, %c0_341] : memref<2x1x32xf32, #tpu.memory_space<vmem>>, vector<1x1x32xf32>
    %652 = vector.shape_cast %651 : vector<1x1x32xf32> to vector<1x32xf32>
    %653 = vector.broadcast %652 : vector<1x32xf32> to vector<16x32xf32>
    %654 = arith.addf %650, %653 : vector<16x32xf32>
    %655 = arith.addf %480, %654 : vector<16x32xf32>
    %c1_342 = arith.constant 1 : index
    %c0_343 = arith.constant 0 : index
    %c0_344 = arith.constant 0 : index
    %656 = vector.load %arg16[%c1_342, %c0_343, %c0_344] : memref<2x1x32xf32, #tpu.memory_space<vmem>>, vector<1x1x32xf32>
    %657 = vector.shape_cast %656 : vector<1x1x32xf32> to vector<1x32xf32>
    %c1_345 = arith.constant 1 : index
    %c0_346 = arith.constant 0 : index
    %c0_347 = arith.constant 0 : index
    %658 = vector.load %arg17[%c1_345, %c0_346, %c0_347] : memref<2x1x32xf32, #tpu.memory_space<vmem>>, vector<1x1x32xf32>
    %659 = vector.shape_cast %658 : vector<1x1x32xf32> to vector<1x32xf32>
    %cst_348 = arith.constant dense<0.000000e+00> : vector<16xf32>
    %660 = vector.multi_reduction <add>, %655, %cst_348 [1] : vector<16x32xf32> to vector<16xf32>
    %661 = vector.shape_cast %660 : vector<16xf32> to vector<16x1xf32>
    %cst_349 = arith.constant 3.200000e+01 : f32
    %662 = vector.broadcast %cst_349 : f32 to vector<16x1xf32>
    %663 = arith.divf %661, %662 : vector<16x1xf32>
    %664 = vector.broadcast %663 : vector<16x1xf32> to vector<16x32xf32>
    %665 = arith.subf %655, %664 : vector<16x32xf32>
    %666 = arith.mulf %665, %665 : vector<16x32xf32>
    %cst_350 = arith.constant dense<0.000000e+00> : vector<16xf32>
    %667 = vector.multi_reduction <add>, %666, %cst_350 [1] : vector<16x32xf32> to vector<16xf32>
    %668 = vector.shape_cast %667 : vector<16xf32> to vector<16x1xf32>
    %cst_351 = arith.constant 3.200000e+01 : f32
    %669 = vector.broadcast %cst_351 : f32 to vector<16x1xf32>
    %670 = arith.divf %668, %669 : vector<16x1xf32>
    %cst_352 = arith.constant 9.99999974E-6 : f32
    %671 = vector.broadcast %cst_352 : f32 to vector<16x1xf32>
    %672 = arith.addf %670, %671 : vector<16x1xf32>
    %673 = math.rsqrt %672 : vector<16x1xf32>
    %674 = vector.broadcast %673 : vector<16x1xf32> to vector<16x32xf32>
    %675 = arith.mulf %665, %674 : vector<16x32xf32>
    %676 = vector.broadcast %657 : vector<1x32xf32> to vector<16x32xf32>
    %677 = arith.mulf %675, %676 : vector<16x32xf32>
    %678 = vector.broadcast %659 : vector<1x32xf32> to vector<16x32xf32>
    %679 = arith.addf %677, %678 : vector<16x32xf32>
    %680 = arith.truncf %679 : vector<16x32xf32> to vector<16x32xbf16>
    %c1_353 = arith.constant 1 : index
    %c0_354 = arith.constant 0 : index
    %c0_355 = arith.constant 0 : index
    %681 = vector.load %arg18[%c1_353, %c0_354, %c0_355] : memref<2x32x64xbf16, #tpu.memory_space<vmem>>, vector<1x32x64xbf16>
    %682 = vector.shape_cast %681 : vector<1x32x64xbf16> to vector<32x64xbf16>
    %cst_356 = arith.constant dense<0.000000e+00> : vector<16x64xf32>
    %683 = tpu.matmul %680, %682, %cst_356 {dimension_numbers = #tpu.dot_dimension_numbers<[1], [0], [0], [1], [0, 0, 1, 1], [], []>} : vector<16x32xbf16>, vector<32x64xbf16>, vector<16x64xf32> -> vector<16x64xf32>
    %c1_357 = arith.constant 1 : index
    %c0_358 = arith.constant 0 : index
    %c0_359 = arith.constant 0 : index
    %684 = vector.load %arg19[%c1_357, %c0_358, %c0_359] : memref<2x1x64xf32, #tpu.memory_space<vmem>>, vector<1x1x64xf32>
    %685 = vector.shape_cast %684 : vector<1x1x64xf32> to vector<1x64xf32>
    %686 = vector.broadcast %685 : vector<1x64xf32> to vector<16x64xf32>
    %687 = arith.addf %683, %686 : vector<16x64xf32>
    %cst_360 = arith.constant 5.000000e-01 : f32
    %688 = vector.broadcast %cst_360 : f32 to vector<16x64xf32>
    %689 = arith.mulf %688, %687 : vector<16x64xf32>
    %cst_361 = arith.constant 4.471500e-02 : f32
    %690 = vector.broadcast %cst_361 : f32 to vector<16x64xf32>
    %691 = arith.mulf %690, %687 : vector<16x64xf32>
    %692 = arith.mulf %691, %687 : vector<16x64xf32>
    %693 = arith.mulf %692, %687 : vector<16x64xf32>
    %694 = arith.addf %687, %693 : vector<16x64xf32>
    %cst_362 = arith.constant 0.797884583 : f32
    %695 = vector.broadcast %cst_362 : f32 to vector<16x64xf32>
    %696 = arith.mulf %695, %694 : vector<16x64xf32>
    %697 = math.tanh %696 : vector<16x64xf32>
    %cst_363 = arith.constant 1.000000e+00 : f32
    %698 = vector.broadcast %cst_363 : f32 to vector<16x64xf32>
    %699 = arith.addf %698, %697 : vector<16x64xf32>
    %700 = arith.mulf %689, %699 : vector<16x64xf32>
    %701 = arith.truncf %700 : vector<16x64xf32> to vector<16x64xbf16>
    %c1_364 = arith.constant 1 : index
    %c0_365 = arith.constant 0 : index
    %c0_366 = arith.constant 0 : index
    %702 = vector.load %arg20[%c1_364, %c0_365, %c0_366] : memref<2x64x32xbf16, #tpu.memory_space<vmem>>, vector<1x64x32xbf16>
    %703 = vector.shape_cast %702 : vector<1x64x32xbf16> to vector<64x32xbf16>
    %cst_367 = arith.constant dense<0.000000e+00> : vector<16x32xf32>
    %704 = tpu.matmul %701, %703, %cst_367 {dimension_numbers = #tpu.dot_dimension_numbers<[1], [0], [0], [1], [0, 0, 1, 1], [], []>} : vector<16x64xbf16>, vector<64x32xbf16>, vector<16x32xf32> -> vector<16x32xf32>
    %c1_368 = arith.constant 1 : index
    %c0_369 = arith.constant 0 : index
    %c0_370 = arith.constant 0 : index
    %705 = vector.load %arg21[%c1_368, %c0_369, %c0_370] : memref<2x1x32xf32, #tpu.memory_space<vmem>>, vector<1x1x32xf32>
    %706 = vector.shape_cast %705 : vector<1x1x32xf32> to vector<1x32xf32>
    %707 = vector.broadcast %706 : vector<1x32xf32> to vector<16x32xf32>
    %708 = arith.addf %704, %707 : vector<16x32xf32>
    %709 = arith.addf %679, %708 : vector<16x32xf32>
    %c1_371 = arith.constant 1 : index
    %c0_372 = arith.constant 0 : index
    %c0_373 = arith.constant 0 : index
    %710 = vector.load %arg22[%c1_371, %c0_372, %c0_373] : memref<2x1x32xf32, #tpu.memory_space<vmem>>, vector<1x1x32xf32>
    %711 = vector.shape_cast %710 : vector<1x1x32xf32> to vector<1x32xf32>
    %c1_374 = arith.constant 1 : index
    %c0_375 = arith.constant 0 : index
    %c0_376 = arith.constant 0 : index
    %712 = vector.load %arg23[%c1_374, %c0_375, %c0_376] : memref<2x1x32xf32, #tpu.memory_space<vmem>>, vector<1x1x32xf32>
    %713 = vector.shape_cast %712 : vector<1x1x32xf32> to vector<1x32xf32>
    %cst_377 = arith.constant dense<0.000000e+00> : vector<16xf32>
    %714 = vector.multi_reduction <add>, %709, %cst_377 [1] : vector<16x32xf32> to vector<16xf32>
    %715 = vector.shape_cast %714 : vector<16xf32> to vector<16x1xf32>
    %cst_378 = arith.constant 3.200000e+01 : f32
    %716 = vector.broadcast %cst_378 : f32 to vector<16x1xf32>
    %717 = arith.divf %715, %716 : vector<16x1xf32>
    %718 = vector.broadcast %717 : vector<16x1xf32> to vector<16x32xf32>
    %719 = arith.subf %709, %718 : vector<16x32xf32>
    %720 = arith.mulf %719, %719 : vector<16x32xf32>
    %cst_379 = arith.constant dense<0.000000e+00> : vector<16xf32>
    %721 = vector.multi_reduction <add>, %720, %cst_379 [1] : vector<16x32xf32> to vector<16xf32>
    %722 = vector.shape_cast %721 : vector<16xf32> to vector<16x1xf32>
    %cst_380 = arith.constant 3.200000e+01 : f32
    %723 = vector.broadcast %cst_380 : f32 to vector<16x1xf32>
    %724 = arith.divf %722, %723 : vector<16x1xf32>
    %cst_381 = arith.constant 9.99999974E-6 : f32
    %725 = vector.broadcast %cst_381 : f32 to vector<16x1xf32>
    %726 = arith.addf %724, %725 : vector<16x1xf32>
    %727 = math.rsqrt %726 : vector<16x1xf32>
    %728 = vector.broadcast %727 : vector<16x1xf32> to vector<16x32xf32>
    %729 = arith.mulf %719, %728 : vector<16x32xf32>
    %730 = vector.broadcast %711 : vector<1x32xf32> to vector<16x32xf32>
    %731 = arith.mulf %729, %730 : vector<16x32xf32>
    %732 = vector.broadcast %713 : vector<1x32xf32> to vector<16x32xf32>
    %733 = arith.addf %731, %732 : vector<16x32xf32>
    %c0_382 = arith.constant 0 : index
    %c0_383 = arith.constant 0 : index
    %c0_384 = arith.constant 0 : index
    %734 = vector.load %arg24[%c0_382, %c0_383, %c0_384] : memref<1x16x32xf32, #tpu.memory_space<vmem>>, vector<1x16x32xf32>
    %735 = vector.shape_cast %734 : vector<1x16x32xf32> to vector<16x32xf32>
    %736 = vector.shape_cast %733 : vector<16x32xf32> to vector<1x16x32xf32>
    tpu.vector_store %arg24[%c0_382, %c0_383, %c0_384], %736 {strides = array<i32>} : memref<1x16x32xf32, #tpu.memory_space<vmem>>, vector<1x16x32xf32>,
    return
  }
  func.func @transform_0(%arg0: i32) -> (i32, i32, i32) {
    %c0_i32 = arith.constant 0 : i32
    %c0_i32_0 = arith.constant 0 : i32
    %c0_i32_1 = arith.constant 0 : i32
    return %arg0, %c0_i32, %c0_i32_0 : i32, i32, i32
  }
  func.func @transform_1(%arg0: i32) -> (i32, i32, i32) {
    %c0_i32 = arith.constant 0 : i32
    %c0_i32_0 = arith.constant 0 : i32
    %c0_i32_1 = arith.constant 0 : i32
    return %arg0, %c0_i32, %c0_i32_0 : i32, i32, i32
  }
  func.func @transform_2(%arg0: i32) -> (i32, i32, i32) {
    %c0_i32 = arith.constant 0 : i32
    %c0_i32_0 = arith.constant 0 : i32
    %c0_i32_1 = arith.constant 0 : i32
    return %arg0, %c0_i32, %c0_i32_0 : i32, i32, i32
  }
  func.func @transform_3(%arg0: i32) -> (i32, i32) {
    %c0_i32 = arith.constant 0 : i32
    %c0_i32_0 = arith.constant 0 : i32
    %c0_i32_1 = arith.constant 0 : i32
    return %c0_i32, %c0_i32_0 : i32, i32
  }
  func.func @transform_4(%arg0: i32) -> (i32, i32) {
    %c0_i32 = arith.constant 0 : i32
    %c0_i32_0 = arith.constant 0 : i32
    %c0_i32_1 = arith.constant 0 : i32
    return %c0_i32, %c0_i32_0 : i32, i32
  }
  func.func @transform_5(%arg0: i32) -> (i32, i32) {
    %c0_i32 = arith.constant 0 : i32
    %c0_i32_0 = arith.constant 0 : i32
    %c0_i32_1 = arith.constant 0 : i32
    return %c0_i32, %c0_i32_0 : i32, i32
  }
  func.func @transform_6(%arg0: i32) -> (i32, i32) {
    %c0_i32 = arith.constant 0 : i32
    %c0_i32_0 = arith.constant 0 : i32
    %c0_i32_1 = arith.constant 0 : i32
    return %c0_i32, %c0_i32_0 : i32, i32
  }
  func.func @transform_7(%arg0: i32) -> (i32, i32, i32) {
    %c0_i32 = arith.constant 0 : i32
    %c0_i32_0 = arith.constant 0 : i32
    %c0_i32_1 = arith.constant 0 : i32
    %c0_i32_2 = arith.constant 0 : i32
    return %c0_i32, %c0_i32_0, %c0_i32_1 : i32, i32, i32
  }
  func.func @transform_8(%arg0: i32) -> (i32, i32) {
    %c0_i32 = arith.constant 0 : i32
    %c0_i32_0 = arith.constant 0 : i32
    %c0_i32_1 = arith.constant 0 : i32
    return %c0_i32, %c0_i32_0 : i32, i32
  }
  func.func @transform_9(%arg0: i32) -> (i32, i32) {
    %c0_i32 = arith.constant 0 : i32
    %c0_i32_0 = arith.constant 0 : i32
    %c0_i32_1 = arith.constant 0 : i32
    return %c0_i32, %c0_i32_0 : i32, i32
  }
  func.func @transform_10(%arg0: i32) -> (i32, i32) {
    %c0_i32 = arith.constant 0 : i32
    %c0_i32_0 = arith.constant 0 : i32
    %c0_i32_1 = arith.constant 0 : i32
    return %c0_i32, %c0_i32_0 : i32, i32
  }
  func.func @transform_11(%arg0: i32) -> (i32, i32, i32) {
    %c0_i32 = arith.constant 0 : i32
    %c0_i32_0 = arith.constant 0 : i32
    %c0_i32_1 = arith.constant 0 : i32
    %c0_i32_2 = arith.constant 0 : i32
    return %c0_i32, %c0_i32_0, %c0_i32_1 : i32, i32, i32
  }
  func.func @transform_12(%arg0: i32) -> (i32, i32, i32) {
    %c0_i32 = arith.constant 0 : i32
    %c0_i32_0 = arith.constant 0 : i32
    %c0_i32_1 = arith.constant 0 : i32
    %c0_i32_2 = arith.constant 0 : i32
    return %c0_i32, %c0_i32_0, %c0_i32_1 : i32, i32, i32
  }
  func.func @transform_13(%arg0: i32) -> (i32, i32, i32) {
    %c0_i32 = arith.constant 0 : i32
    %c0_i32_0 = arith.constant 0 : i32
    %c0_i32_1 = arith.constant 0 : i32
    %c0_i32_2 = arith.constant 0 : i32
    return %c0_i32, %c0_i32_0, %c0_i32_1 : i32, i32, i32
  }
  func.func @transform_14(%arg0: i32) -> (i32, i32, i32) {
    %c0_i32 = arith.constant 0 : i32
    %c0_i32_0 = arith.constant 0 : i32
    %c0_i32_1 = arith.constant 0 : i32
    %c0_i32_2 = arith.constant 0 : i32
    return %c0_i32, %c0_i32_0, %c0_i32_1 : i32, i32, i32
  }
  func.func @transform_15(%arg0: i32) -> (i32, i32, i32) {
    %c0_i32 = arith.constant 0 : i32
    %c0_i32_0 = arith.constant 0 : i32
    %c0_i32_1 = arith.constant 0 : i32
    %c0_i32_2 = arith.constant 0 : i32
    return %c0_i32, %c0_i32_0, %c0_i32_1 : i32, i32, i32
  }
  func.func @transform_16(%arg0: i32) -> (i32, i32, i32) {
    %c0_i32 = arith.constant 0 : i32
    %c0_i32_0 = arith.constant 0 : i32
    %c0_i32_1 = arith.constant 0 : i32
    %c0_i32_2 = arith.constant 0 : i32
    return %c0_i32, %c0_i32_0, %c0_i32_1 : i32, i32, i32
  }
  func.func @transform_17(%arg0: i32) -> (i32, i32, i32) {
    %c0_i32 = arith.constant 0 : i32
    %c0_i32_0 = arith.constant 0 : i32
    %c0_i32_1 = arith.constant 0 : i32
    %c0_i32_2 = arith.constant 0 : i32
    return %c0_i32, %c0_i32_0, %c0_i32_1 : i32, i32, i32
  }
  func.func @transform_18(%arg0: i32) -> (i32, i32, i32) {
    %c0_i32 = arith.constant 0 : i32
    %c0_i32_0 = arith.constant 0 : i32
    %c0_i32_1 = arith.constant 0 : i32
    %c0_i32_2 = arith.constant 0 : i32
    return %c0_i32, %c0_i32_0, %c0_i32_1 : i32, i32, i32
  }
  func.func @transform_19(%arg0: i32) -> (i32, i32, i32) {
    %c0_i32 = arith.constant 0 : i32
    %c0_i32_0 = arith.constant 0 : i32
    %c0_i32_1 = arith.constant 0 : i32
    %c0_i32_2 = arith.constant 0 : i32
    return %c0_i32, %c0_i32_0, %c0_i32_1 : i32, i32, i32
  }
  func.func @transform_20(%arg0: i32) -> (i32, i32, i32) {
    %c0_i32 = arith.constant 0 : i32
    %c0_i32_0 = arith.constant 0 : i32
    %c0_i32_1 = arith.constant 0 : i32
    %c0_i32_2 = arith.constant 0 : i32
    return %c0_i32, %c0_i32_0, %c0_i32_1 : i32, i32, i32
  }
  func.func @transform_21(%arg0: i32) -> (i32, i32, i32) {
    %c0_i32 = arith.constant 0 : i32
    %c0_i32_0 = arith.constant 0 : i32
    %c0_i32_1 = arith.constant 0 : i32
    %c0_i32_2 = arith.constant 0 : i32
    return %c0_i32, %c0_i32_0, %c0_i32_1 : i32, i32, i32
  }
  func.func @transform_22(%arg0: i32) -> (i32, i32, i32) {
    %c0_i32 = arith.constant 0 : i32
    %c0_i32_0 = arith.constant 0 : i32
    %c0_i32_1 = arith.constant 0 : i32
    %c0_i32_2 = arith.constant 0 : i32
    return %c0_i32, %c0_i32_0, %c0_i32_1 : i32, i32, i32
  }
  func.func @transform_23(%arg0: i32) -> (i32, i32, i32) {
    %c0_i32 = arith.constant 0 : i32
    %c0_i32_0 = arith.constant 0 : i32
    %c0_i32_1 = arith.constant 0 : i32
    return %arg0, %c0_i32, %c0_i32_0 : i32, i32, i32
  }
}

</mosaic_0001>

<llo_original>
// kernel: extract_features.3
$region0: #{extract_features.3}
  #allocation0 [shape = 'u32[]', space=smem, size = 0x4, offset = 0x4, fixed_abs, tag = 'smem constant byte address 0x4 - core index']
  #allocation1 [shape = 'u32[72,128]{1,0:T(1,128)}', space=vmem, size = 0x9000, scoped, tag = 'internal scratch']
  %s0 = inlined_call_operand.vmem [shape: f32[2,16,24], index: 0, kind: input, shape index: {}]
  %s1 = inlined_call_operand.vmem [shape: f32[2,16,1], index: 1, kind: input, shape index: {}]
  %s2 = inlined_call_operand.vmem [shape: f32[2,1,16], index: 2, kind: input, shape index: {}]
  %s3 = inlined_call_operand.vmem [shape: f32[1,24], index: 3, kind: input, shape index: {}]
  %s4 = inlined_call_operand.vmem [shape: f32[1,24], index: 4, kind: input, shape index: {}]
  %s5 = inlined_call_operand.vmem [shape: bf16[24,32], index: 5, kind: input, shape index: {}]
  %s6 = inlined_call_operand.vmem [shape: f32[1,32], index: 6, kind: input, shape index: {}]
  %s7 = inlined_call_operand.vmem [shape: bf16[8,32,32], index: 7, kind: input, shape index: {}]
  %s8 = inlined_call_operand.vmem [shape: f32[1,32], index: 8, kind: input, shape index: {}]
  %s9 = inlined_call_operand.vmem [shape: f32[1,32], index: 9, kind: input, shape index: {}]
  %s10 = inlined_call_operand.vmem [shape: f32[1,32], index: 10, kind: input, shape index: {}]
  %s11 = inlined_call_operand.vmem [shape: bf16[24,32,8], index: 11, kind: input, shape index: {}]
  %s12 = inlined_call_operand.vmem [shape: f32[24,1,8], index: 12, kind: input, shape index: {}]
  %s13 = inlined_call_operand.vmem [shape: bf16[2,32,32], index: 13, kind: input, shape index: {}]
  %s14 = inlined_call_operand.vmem [shape: f32[2,1,32], index: 14, kind: input, shape index: {}]
  %s15 = inlined_call_operand.vmem [shape: f32[2,1,32], index: 15, kind: input, shape index: {}]
  %s16 = inlined_call_operand.vmem [shape: f32[2,1,32], index: 16, kind: input, shape index: {}]
  %s17 = inlined_call_operand.vmem [shape: bf16[2,32,64], index: 17, kind: input, shape index: {}]
  %s18 = inlined_call_operand.vmem [shape: f32[2,1,64], index: 18, kind: input, shape index: {}]
  %s19 = inlined_call_operand.vmem [shape: bf16[2,64,32], index: 19, kind: input, shape index: {}]
  %s20 = inlined_call_operand.vmem [shape: f32[2,1,32], index: 20, kind: input, shape index: {}]
  %s21 = inlined_call_operand.vmem [shape: f32[2,1,32], index: 21, kind: input, shape index: {}]
  %s22 = inlined_call_operand.vmem [shape: f32[2,1,32], index: 22, kind: input, shape index: {}]
  %s23 = inlined_call_operand.hbm [shape: f32[2,16,32], index: 23, kind: output, shape index: {}]
  %s24 = sld [smem:[#allocation0]]
  $region125: #{extract_features.3} parent=0
    _
  %s26 = ssub.s32 1, %s24
  %s27 = scalar_select 0, %s26, %s24
  $region1: #{extract_features.3} parent=0
    #allocation2 [shape = 'u8[16384]{0}', space=vmem, size = 0x4000, scoped, tag = 'output window, operand 0']
    #allocation3 [shape = 's32[2]{0}', space=sflag, size = 0x8, scoped, tag = 'scoped memory for extract_features.3']
    %28 = vsyncpa [#allocation3], 0
    %s29 = scalar_lea.sflag [#allocation3], 1
    %30 = vsyncpa %s29, 0
    loop: start=0, step=1, limit=4
    $region2: #{extract_features.3} parent=1 // loop_pre_header
      _
    $region3: #{extract_features.3} parent=1 // loop_header
      %s32 = sphi 0, %s36
      %p33 = scmp.ge.s32.totalorder %s32, 4
      %s42 = sphi 0, %s44
      %s45 = sphi 0, %s42
      %s46 = sphi 0, %s45
      %s62 = sphi 0, %s46
      %s68 = sphi 0, %s70
      %s71 = sphi 0, %s68
      %s72 = sphi 0, %s71
      %s88 = sphi 0, %s72
      %s94 = sphi 0, %s96
      %s97 = sphi 0, %s94
      %s98 = sphi 0, %s97
      %s114 = sphi 0, %s98
      %s118 = sphi 0, %s118
      %s120 = sphi 0, %s118
      %s121 = sphi 0, %s120
      %s135 = sphi 0, %s121
      %s139 = sphi 0, %s139
      %s141 = sphi 0, %s139
      %s142 = sphi 0, %s141
      %s156 = sphi 0, %s142
      %s160 = sphi 0, %s160
      %s162 = sphi 0, %s160
      %s163 = sphi 0, %s162
      %s177 = sphi 0, %s163
      %s181 = sphi 0, %s181
      %s183 = sphi 0, %s181
      %s184 = sphi 0, %s183
      %s198 = sphi 0, %s184
      %s202 = sphi 0, %s202
      %s204 = sphi 0, %s202
      %s205 = sphi 0, %s204
      %s219 = sphi 0, %s205
      %s223 = sphi 0, %s223
      %s225 = sphi 0, %s223
      %s226 = sphi 0, %s225
      %s240 = sphi 0, %s226
      %s244 = sphi 0, %s244
      %s246 = sphi 0, %s244
      %s247 = sphi 0, %s246
      %s261 = sphi 0, %s247
      %s265 = sphi 0, %s265
      %s267 = sphi 0, %s265
      %s268 = sphi 0, %s267
      %s282 = sphi 0, %s268
      %s286 = sphi 0, %s286
      %s288 = sphi 0, %s286
      %s289 = sphi 0, %s288
      %s303 = sphi 0, %s289
      %s307 = sphi 0, %s307
      %s309 = sphi 0, %s307
      %s310 = sphi 0, %s309
      %s324 = sphi 0, %s310
      %s328 = sphi 0, %s328
      %s330 = sphi 0, %s328
      %s331 = sphi 0, %s330
      %s345 = sphi 0, %s331
      %s349 = sphi 0, %s349
      %s351 = sphi 0, %s349
      %s352 = sphi 0, %s351
      %s366 = sphi 0, %s352
      %s370 = sphi 0, %s370
      %s372 = sphi 0, %s370
      %s373 = sphi 0, %s372
      %s387 = sphi 0, %s373
      %s391 = sphi 0, %s391
      %s393 = sphi 0, %s391
      %s394 = sphi 0, %s393
      %s408 = sphi 0, %s394
      %s412 = sphi 0, %s412
      %s414 = sphi 0, %s412
      %s415 = sphi 0, %s414
      %s429 = sphi 0, %s415
      %s433 = sphi 0, %s433
      %s435 = sphi 0, %s433
      %s436 = sphi 0, %s435
      %s450 = sphi 0, %s436
      %s454 = sphi 0, %s454
      %s456 = sphi 0, %s454
      %s457 = sphi 0, %s456
      %s471 = sphi 0, %s457
      %s475 = sphi 0, %s475
      %s477 = sphi 0, %s475
      %s478 = sphi 0, %s477
      %s492 = sphi 0, %s478
      %s496 = sphi 0, %s496
      %s498 = sphi 0, %s496
      %s499 = sphi 0, %s498
      %s513 = sphi 0, %s499
      %s517 = sphi 0, %s517
      %s519 = sphi 0, %s517
      %s520 = sphi 0, %s519
      %s534 = sphi 0, %s520
      %s540 = sphi 0, %s542
      %s543 = sphi 0, %s540
      %s544 = sphi 0, %s543
      %s560 = sphi 0, %s544
    $region4: #{extract_features.3} parent=1 // loop_header_branch
      %35 = sbr.rel (%p33) target = $region8
    $region5: #{extract_features.3} parent=1 // loop_body
      %s37 = ssub.s32 %s32, 1
      %s38 = ssub.s32 %s32, 2
      %s39 = sadd.s32 %s32, 1
      %s40 = ssub.s32 %s32, %s39
      %p41 = scmp.eq.s32.totalorder %s40, 0
      %s43 = sadd.s32 %s42, 1
      %s44 = scalar_select %p41, %s42, %s43
      %p47 = pneg %p41
      %p48 = scmp.eq.s32.totalorder %s32, 1
      %p49 = por %p47, %p48
      %p50 = scmp.ne.s32.totalorder %s42, %s45
      %p51 = scmp.eq.s32.totalorder %s32, 0
      %p52 = por %p50, %p51
      %p53 = scmp.ne.s32.totalorder %s42, %s45
      %p54 = scmp.eq.s32.totalorder %s37, 1
      %p55 = por %p53, %p54
      %p56 = scmp.ne.s32.totalorder %s45, %s46
      %p57 = scmp.eq.s32.totalorder %s37, 0
      %p58 = por %p56, %p57
      %p59 = scmp.ne.s32.totalorder %s45, %s46
      %p60 = scmp.eq.s32.totalorder %s38, 1
      %p61 = por %p59, %p60
      %p63 = scmp.ne.s32.totalorder %s46, %s62
      %p64 = scmp.eq.s32.totalorder %s38, 0
      %p65 = por %p63, %p64
      %s66 = ssub.s32 %s32, %s39
      %p67 = scmp.eq.s32.totalorder %s66, 0
      %s69 = sadd.s32 %s68, 1
      %s70 = scalar_select %p67, %s68, %s69
      %p73 = pneg %p67
      %p74 = scmp.eq.s32.totalorder %s32, 1
      %p75 = por %p73, %p74
      %p76 = scmp.ne.s32.totalorder %s68, %s71
      %p77 = scmp.eq.s32.totalorder %s32, 0
      %p78 = por %p76, %p77
      %p79 = scmp.ne.s32.totalorder %s68, %s71
      %p80 = scmp.eq.s32.totalorder %s37, 1
      %p81 = por %p79, %p80
      %p82 = scmp.ne.s32.totalorder %s71, %s72
      %p83 = scmp.eq.s32.totalorder %s37, 0
      %p84 = por %p82, %p83
      %p85 = scmp.ne.s32.totalorder %s71, %s72
      %p86 = scmp.eq.s32.totalorder %s38, 1
      %p87 = por %p85, %p86
      %p89 = scmp.ne.s32.totalorder %s72, %s88
      %p90 = scmp.eq.s32.totalorder %s38, 0
      %p91 = por %p89, %p90
      %s92 = ssub.s32 %s32, %s39
      %p93 = scmp.eq.s32.totalorder %s92, 0
      %s95 = sadd.s32 %s94, 1
      %s96 = scalar_select %p93, %s94, %s95
      %p99 = pneg %p93
      %p100 = scmp.eq.s32.totalorder %s32, 1
      %p101 = por %p99, %p100
      %p102 = scmp.ne.s32.totalorder %s94, %s97
      %p103 = scmp.eq.s32.totalorder %s32, 0
      %p104 = por %p102, %p103
      %p105 = scmp.ne.s32.totalorder %s94, %s97
      %p106 = scmp.eq.s32.totalorder %s37, 1
      %p107 = por %p105, %p106
      %p108 = scmp.ne.s32.totalorder %s97, %s98
      %p109 = scmp.eq.s32.totalorder %s37, 0
      %p110 = por %p108, %p109
      %p111 = scmp.ne.s32.totalorder %s97, %s98
      %p112 = scmp.eq.s32.totalorder %s38, 1
      %p113 = por %p111, %p112
      %p115 = scmp.ne.s32.totalorder %s98, %s114
      %p116 = scmp.eq.s32.totalorder %s38, 0
      %p117 = por %p115, %p116
      %s119 = sadd.s32 %s118, 1
      %p122 = scmp.eq.s32.totalorder %s32, 1
      %p123 = scmp.ne.s32.totalorder %s118, %s120
      %p124 = scmp.eq.s32.totalorder %s32, 0
      %p125 = por %p123, %p124
      %p126 = scmp.ne.s32.totalorder %s118, %s120
      %p127 = scmp.eq.s32.totalorder %s37, 1
      %p128 = por %p126, %p127
      %p129 = scmp.ne.s32.totalorder %s120, %s121
      %p130 = scmp.eq.s32.totalorder %s37, 0
      %p131 = por %p129, %p130
      %p132 = scmp.ne.s32.totalorder %s120, %s121
      %p133 = scmp.eq.s32.totalorder %s38, 1
      %p134 = por %p132, %p133
      %p136 = scmp.ne.s32.totalorder %s121, %s135
      %p137 = scmp.eq.s32.totalorder %s38, 0
      %p138 = por %p136, %p137
      %s140 = sadd.s32 %s139, 1
      %p143 = scmp.eq.s32.totalorder %s32, 1
      %p144 = scmp.ne.s32.totalorder %s139, %s141
      %p145 = scmp.eq.s32.totalorder %s32, 0
      %p146 = por %p144, %p145
      %p147 = scmp.ne.s32.totalorder %s139, %s141
      %p148 = scmp.eq.s32.totalorder %s37, 1
      %p149 = por %p147, %p148
      %p150 = scmp.ne.s32.totalorder %s141, %s142
      %p151 = scmp.eq.s32.totalorder %s37, 0
      %p152 = por %p150, %p151
      %p153 = scmp.ne.s32.totalorder %s141, %s142
      %p154 = scmp.eq.s32.totalorder %s38, 1
      %p155 = por %p153, %p154
      %p157 = scmp.ne.s32.totalorder %s142, %s156
      %p158 = scmp.eq.s32.totalorder %s38, 0
      %p159 = por %p157, %p158
      %s161 = sadd.s32 %s160, 1
      %p164 = scmp.eq.s32.totalorder %s32, 1
      %p165 = scmp.ne.s32.totalorder %s160, %s162
      %p166 = scmp.eq.s32.totalorder %s32, 0
      %p167 = por %p165, %p166
      %p168 = scmp.ne.s32.totalorder %s160, %s162
      %p169 = scmp.eq.s32.totalorder %s37, 1
      %p170 = por %p168, %p169
      %p171 = scmp.ne.s32.totalorder %s162, %s163
      %p172 = scmp.eq.s32.totalorder %s37, 0
      %p173 = por %p171, %p172
      %p174 = scmp.ne.s32.totalorder %s162, %s163
      %p175 = scmp.eq.s32.totalorder %s38, 1
      %p176 = por %p174, %p175
      %p178 = scmp.ne.s32.totalorder %s163, %s177
      %p179 = scmp.eq.s32.totalorder %s38, 0
      %p180 = por %p178, %p179
      %s182 = sadd.s32 %s181, 1
      %p185 = scmp.eq.s32.totalorder %s32, 1
      %p186 = scmp.ne.s32.totalorder %s181, %s183
      %p187 = scmp.eq.s32.totalorder %s32, 0
      %p188 = por %p186, %p187
      %p189 = scmp.ne.s32.totalorder %s181, %s183
      %p190 = scmp.eq.s32.totalorder %s37, 1
      %p191 = por %p189, %p190
      %p192 = scmp.ne.s32.totalorder %s183, %s184
      %p193 = scmp.eq.s32.totalorder %s37, 0
      %p194 = por %p192, %p193
      %p195 = scmp.ne.s32.totalorder %s183, %s184
      %p196 = scmp.eq.s32.totalorder %s38, 1
      %p197 = por %p195, %p196
      %p199 = scmp.ne.s32.totalorder %s184, %s198
      %p200 = scmp.eq.s32.totalorder %s38, 0
      %p201 = por %p199, %p200
      %s203 = sadd.s32 %s202, 1
      %p206 = scmp.eq.s32.totalorder %s32, 1
      %p207 = scmp.ne.s32.totalorder %s202, %s204
      %p208 = scmp.eq.s32.totalorder %s32, 0
      %p209 = por %p207, %p208
      %p210 = scmp.ne.s32.totalorder %s202, %s204
      %p211 = scmp.eq.s32.totalorder %s37, 1
      %p212 = por %p210, %p211
      %p213 = scmp.ne.s32.totalorder %s204, %s205
      %p214 = scmp.eq.s32.totalorder %s37, 0
      %p215 = por %p213, %p214
      %p216 = scmp.ne.s32.totalorder %s204, %s205
      %p217 = scmp.eq.s32.totalorder %s38, 1
      %p218 = por %p216, %p217
      %p220 = scmp.ne.s32.totalorder %s205, %s219
      %p221 = scmp.eq.s32.totalorder %s38, 0
      %p222 = por %p220, %p221
      %s224 = sadd.s32 %s223, 1
      %p227 = scmp.eq.s32.totalorder %s32, 1
      %p228 = scmp.ne.s32.totalorder %s223, %s225
      %p229 = scmp.eq.s32.totalorder %s32, 0
      %p230 = por %p228, %p229
      %p231 = scmp.ne.s32.totalorder %s223, %s225
      %p232 = scmp.eq.s32.totalorder %s37, 1
      %p233 = por %p231, %p232
      %p234 = scmp.ne.s32.totalorder %s225, %s226
      %p235 = scmp.eq.s32.totalorder %s37, 0
      %p236 = por %p234, %p235
      %p237 = scmp.ne.s32.totalorder %s225, %s226
      %p238 = scmp.eq.s32.totalorder %s38, 1
      %p239 = por %p237, %p238
      %p241 = scmp.ne.s32.totalorder %s226, %s240
      %p242 = scmp.eq.s32.totalorder %s38, 0
      %p243 = por %p241, %p242
      %s245 = sadd.s32 %s244, 1
      %p248 = scmp.eq.s32.totalorder %s32, 1
      %p249 = scmp.ne.s32.totalorder %s244, %s246
      %p250 = scmp.eq.s32.totalorder %s32, 0
      %p251 = por %p249, %p250
      %p252 = scmp.ne.s32.totalorder %s244, %s246
      %p253 = scmp.eq.s32.totalorder %s37, 1
      %p254 = por %p252, %p253
      %p255 = scmp.ne.s32.totalorder %s246, %s247
      %p256 = scmp.eq.s32.totalorder %s37, 0
      %p257 = por %p255, %p256
      %p258 = scmp.ne.s32.totalorder %s246, %s247
      %p259 = scmp.eq.s32.totalorder %s38, 1
      %p260 = por %p258, %p259
      %p262 = scmp.ne.s32.totalorder %s247, %s261
      %p263 = scmp.eq.s32.totalorder %s38, 0
      %p264 = por %p262, %p263
      %s266 = sadd.s32 %s265, 1
      %p269 = scmp.eq.s32.totalorder %s32, 1
      %p270 = scmp.ne.s32.totalorder %s265, %s267
      %p271 = scmp.eq.s32.totalorder %s32, 0
      %p272 = por %p270, %p271
      %p273 = scmp.ne.s32.totalorder %s265, %s267
      %p274 = scmp.eq.s32.totalorder %s37, 1
      %p275 = por %p273, %p274
      %p276 = scmp.ne.s32.totalorder %s267, %s268
      %p277 = scmp.eq.s32.totalorder %s37, 0
      %p278 = por %p276, %p277
      %p279 = scmp.ne.s32.totalorder %s267, %s268
      %p280 = scmp.eq.s32.totalorder %s38, 1
      %p281 = por %p279, %p280
      %p283 = scmp.ne.s32.totalorder %s268, %s282
      %p284 = scmp.eq.s32.totalorder %s38, 0
      %p285 = por %p283, %p284
      %s287 = sadd.s32 %s286, 1
      %p290 = scmp.eq.s32.totalorder %s32, 1
      %p291 = scmp.ne.s32.totalorder %s286, %s288
      %p292 = scmp.eq.s32.totalorder %s32, 0
      %p293 = por %p291, %p292
      %p294 = scmp.ne.s32.totalorder %s286, %s288
      %p295 = scmp.eq.s32.totalorder %s37, 1
      %p296 = por %p294, %p295
      %p297 = scmp.ne.s32.totalorder %s288, %s289
      %p298 = scmp.eq.s32.totalorder %s37, 0
      %p299 = por %p297, %p298
      %p300 = scmp.ne.s32.totalorder %s288, %s289
      %p301 = scmp.eq.s32.totalorder %s38, 1
      %p302 = por %p300, %p301
      %p304 = scmp.ne.s32.totalorder %s289, %s303
      %p305 = scmp.eq.s32.totalorder %s38, 0
      %p306 = por %p304, %p305
      %s308 = sadd.s32 %s307, 1
      %p311 = scmp.eq.s32.totalorder %s32, 1
      %p312 = scmp.ne.s32.totalorder %s307, %s309
      %p313 = scmp.eq.s32.totalorder %s32, 0
      %p314 = por %p312, %p313
      %p315 = scmp.ne.s32.totalorder %s307, %s309
      %p316 = scmp.eq.s32.totalorder %s37, 1
      %p317 = por %p315, %p316
      %p318 = scmp.ne.s32.totalorder %s309, %s310
      %p319 = scmp.eq.s32.totalorder %s37, 0
      %p320 = por %p318, %p319
      %p321 = scmp.ne.s32.totalorder %s309, %s310
      %p322 = scmp.eq.s32.totalorder %s38, 1
      %p323 = por %p321, %p322
      %p325 = scmp.ne.s32.totalorder %s310, %s324
      %p326 = scmp.eq.s32.totalorder %s38, 0
      %p327 = por %p325, %p326
      %s329 = sadd.s32 %s328, 1
      %p332 = scmp.eq.s32.totalorder %s32, 1
      %p333 = scmp.ne.s32.totalorder %s328, %s330
      %p334 = scmp.eq.s32.totalorder %s32, 0
      %p335 = por %p333, %p334
      %p336 = scmp.ne.s32.totalorder %s328, %s330
      %p337 = scmp.eq.s32.totalorder %s37, 1
      %p338 = por %p336, %p337
      %p339 = scmp.ne.s32.totalorder %s330, %s331
      %p340 = scmp.eq.s32.totalorder %s37, 0
      %p341 = por %p339, %p340
      %p342 = scmp.ne.s32.totalorder %s330, %s331
      %p343 = scmp.eq.s32.totalorder %s38, 1
      %p344 = por %p342, %p343
      %p346 = scmp.ne.s32.totalorder %s331, %s345
      %p347 = scmp.eq.s32.totalorder %s38, 0
      %p348 = por %p346, %p347
      %s350 = sadd.s32 %s349, 1
      %p353 = scmp.eq.s32.totalorder %s32, 1
      %p354 = scmp.ne.s32.totalorder %s349, %s351
      %p355 = scmp.eq.s32.totalorder %s32, 0
      %p356 = por %p354, %p355
      %p357 = scmp.ne.s32.totalorder %s349, %s351
      %p358 = scmp.eq.s32.totalorder %s37, 1
      %p359 = por %p357, %p358
      %p360 = scmp.ne.s32.totalorder %s351, %s352
      %p361 = scmp.eq.s32.totalorder %s37, 0
      %p362 = por %p360, %p361
      %p363 = scmp.ne.s32.totalorder %s351, %s352
      %p364 = scmp.eq.s32.totalorder %s38, 1
      %p365 = por %p363, %p364
      %p367 = scmp.ne.s32.totalorder %s352, %s366
      %p368 = scmp.eq.s32.totalorder %s38, 0
      %p369 = por %p367, %p368
      %s371 = sadd.s32 %s370, 1
      %p374 = scmp.eq.s32.totalorder %s32, 1
      %p375 = scmp.ne.s32.totalorder %s370, %s372
      %p376 = scmp.eq.s32.totalorder %s32, 0
      %p377 = por %p375, %p376
      %p378 = scmp.ne.s32.totalorder %s370, %s372
      %p379 = scmp.eq.s32.totalorder %s37, 1
      %p380 = por %p378, %p379
      %p381 = scmp.ne.s32.totalorder %s372, %s373
      %p382 = scmp.eq.s32.totalorder %s37, 0
      %p383 = por %p381, %p382
      %p384 = scmp.ne.s32.totalorder %s372, %s373
      %p385 = scmp.eq.s32.totalorder %s38, 1
      %p386 = por %p384, %p385
      %p388 = scmp.ne.s32.totalorder %s373, %s387
      %p389 = scmp.eq.s32.totalorder %s38, 0
      %p390 = por %p388, %p389
      %s392 = sadd.s32 %s391, 1
      %p395 = scmp.eq.s32.totalorder %s32, 1
      %p396 = scmp.ne.s32.totalorder %s391, %s393
      %p397 = scmp.eq.s32.totalorder %s32, 0
      %p398 = por %p396, %p397
      %p399 = scmp.ne.s32.totalorder %s391, %s393
      %p400 = scmp.eq.s32.totalorder %s37, 1
      %p401 = por %p399, %p400
      %p402 = scmp.ne.s32.totalorder %s393, %s394
      %p403 = scmp.eq.s32.totalorder %s37, 0
      %p404 = por %p402, %p403
      %p405 = scmp.ne.s32.totalorder %s393, %s394
      %p406 = scmp.eq.s32.totalorder %s38, 1
      %p407 = por %p405, %p406
      %p409 = scmp.ne.s32.totalorder %s394, %s408
      %p410 = scmp.eq.s32.totalorder %s38, 0
      %p411 = por %p409, %p410
      %s413 = sadd.s32 %s412, 1
      %p416 = scmp.eq.s32.totalorder %s32, 1
      %p417 = scmp.ne.s32.totalorder %s412, %s414
      %p418 = scmp.eq.s32.totalorder %s32, 0
      %p419 = por %p417, %p418
      %p420 = scmp.ne.s32.totalorder %s412, %s414
      %p421 = scmp.eq.s32.totalorder %s37, 1
      %p422 = por %p420, %p421
      %p423 = scmp.ne.s32.totalorder %s414, %s415
      %p424 = scmp.eq.s32.totalorder %s37, 0
      %p425 = por %p423, %p424
      %p426 = scmp.ne.s32.totalorder %s414, %s415
      %p427 = scmp.eq.s32.totalorder %s38, 1
      %p428 = por %p426, %p427
      %p430 = scmp.ne.s32.totalorder %s415, %s429
      %p431 = scmp.eq.s32.totalorder %s38, 0
      %p432 = por %p430, %p431
      %s434 = sadd.s32 %s433, 1
      %p437 = scmp.eq.s32.totalorder %s32, 1
      %p438 = scmp.ne.s32.totalorder %s433, %s435
      %p439 = scmp.eq.s32.totalorder %s32, 0
      %p440 = por %p438, %p439
      %p441 = scmp.ne.s32.totalorder %s433, %s435
      %p442 = scmp.eq.s32.totalorder %s37, 1
      %p443 = por %p441, %p442
      %p444 = scmp.ne.s32.totalorder %s435, %s436
      %p445 = scmp.eq.s32.totalorder %s37, 0
      %p446 = por %p444, %p445
      %p447 = scmp.ne.s32.totalorder %s435, %s436
      %p448 = scmp.eq.s32.totalorder %s38, 1
      %p449 = por %p447, %p448
      %p451 = scmp.ne.s32.totalorder %s436, %s450
      %p452 = scmp.eq.s32.totalorder %s38, 0
      %p453 = por %p451, %p452
      %s455 = sadd.s32 %s454, 1
      %p458 = scmp.eq.s32.totalorder %s32, 1
      %p459 = scmp.ne.s32.totalorder %s454, %s456
      %p460 = scmp.eq.s32.totalorder %s32, 0
      %p461 = por %p459, %p460
      %p462 = scmp.ne.s32.totalorder %s454, %s456
      %p463 = scmp.eq.s32.totalorder %s37, 1
      %p464 = por %p462, %p463
      %p465 = scmp.ne.s32.totalorder %s456, %s457
      %p466 = scmp.eq.s32.totalorder %s37, 0
      %p467 = por %p465, %p466
      %p468 = scmp.ne.s32.totalorder %s456, %s457
      %p469 = scmp.eq.s32.totalorder %s38, 1
      %p470 = por %p468, %p469
      %p472 = scmp.ne.s32.totalorder %s457, %s471
      %p473 = scmp.eq.s32.totalorder %s38, 0
      %p474 = por %p472, %p473
      %s476 = sadd.s32 %s475, 1
      %p479 = scmp.eq.s32.totalorder %s32, 1
      %p480 = scmp.ne.s32.totalorder %s475, %s477
      %p481 = scmp.eq.s32.totalorder %s32, 0
      %p482 = por %p480, %p481
      %p483 = scmp.ne.s32.totalorder %s475, %s477
      %p484 = scmp.eq.s32.totalorder %s37, 1
      %p485 = por %p483, %p484
      %p486 = scmp.ne.s32.totalorder %s477, %s478
      %p487 = scmp.eq.s32.totalorder %s37, 0
      %p488 = por %p486, %p487
      %p489 = scmp.ne.s32.totalorder %s477, %s478
      %p490 = scmp.eq.s32.totalorder %s38, 1
      %p491 = por %p489, %p490
      %p493 = scmp.ne.s32.totalorder %s478, %s492
      %p494 = scmp.eq.s32.totalorder %s38, 0
      %p495 = por %p493, %p494
      %s497 = sadd.s32 %s496, 1
      %p500 = scmp.eq.s32.totalorder %s32, 1
      %p501 = scmp.ne.s32.totalorder %s496, %s498
      %p502 = scmp.eq.s32.totalorder %s32, 0
      %p503 = por %p501, %p502
      %p504 = scmp.ne.s32.totalorder %s496, %s498
      %p505 = scmp.eq.s32.totalorder %s37, 1
      %p506 = por %p504, %p505
      %p507 = scmp.ne.s32.totalorder %s498, %s499
      %p508 = scmp.eq.s32.totalorder %s37, 0
      %p509 = por %p507, %p508
      %p510 = scmp.ne.s32.totalorder %s498, %s499
      %p511 = scmp.eq.s32.totalorder %s38, 1
      %p512 = por %p510, %p511
      %p514 = scmp.ne.s32.totalorder %s499, %s513
      %p515 = scmp.eq.s32.totalorder %s38, 0
      %p516 = por %p514, %p515
      %s518 = sadd.s32 %s517, 1
      %p521 = scmp.eq.s32.totalorder %s32, 1
      %p522 = scmp.ne.s32.totalorder %s517, %s519
      %p523 = scmp.eq.s32.totalorder %s32, 0
      %p524 = por %p522, %p523
      %p525 = scmp.ne.s32.totalorder %s517, %s519
      %p526 = scmp.eq.s32.totalorder %s37, 1
      %p527 = por %p525, %p526
      %p528 = scmp.ne.s32.totalorder %s519, %s520
      %p529 = scmp.eq.s32.totalorder %s37, 0
      %p530 = por %p528, %p529
      %p531 = scmp.ne.s32.totalorder %s519, %s520
      %p532 = scmp.eq.s32.totalorder %s38, 1
      %p533 = por %p531, %p532
      %p535 = scmp.ne.s32.totalorder %s520, %s534
      %p536 = scmp.eq.s32.totalorder %s38, 0
      %p537 = por %p535, %p536
      %s538 = ssub.s32 %s32, %s39
      %p539 = scmp.eq.s32.totalorder %s538, 0
      %s541 = sadd.s32 %s540, 1
      %s542 = scalar_select %p539, %s540, %s541
      %p545 = pneg %p539
      %p546 = scmp.eq.s32.totalorder %s32, 1
      %p547 = por %p545, %p546
      %p548 = scmp.ne.s32.totalorder %s540, %s543
      %p549 = scmp.eq.s32.totalorder %s32, 0
      %p550 = por %p548, %p549
      %p551 = scmp.ne.s32.totalorder %s540, %s543
      %p552 = scmp.eq.s32.totalorder %s37, 1
      %p553 = por %p551, %p552
      %p554 = scmp.ne.s32.totalorder %s543, %s544
      %p555 = scmp.eq.s32.totalorder %s37, 0
      %p556 = por %p554, %p555
      %p557 = scmp.ne.s32.totalorder %s543, %s544
      %p558 = scmp.eq.s32.totalorder %s38, 1
      %p559 = por %p557, %p558
      %p561 = scmp.ne.s32.totalorder %s544, %s560
      %p562 = scmp.eq.s32.totalorder %s38, 0
      %p563 = por %p561, %p562
      %p564 = scmp.le.s32.totalorder 1, %s32
      %p565 = scmp.lt.s32.totalorder %s32, 3
      %p566 = pnand %p564, %p565
      %p567 = pneg %p566
      // Predicated region
      $region9: #{extract_features.3} parent=5 // pred_check
        _
      $region10: #{extract_features.3} parent=5 // pred_check_branch
        %569 = sbr.rel (%p566) target = $region12
      $region11: #{extract_features.3} parent=5 // pred_region
        %s570 = ssub.s32 %s32, 1
        // Predicated region
        $region13: #{extract_features.3} parent=11 // pred_check
          %p571 = pneg %p131
        $region14: #{extract_features.3} parent=11 // pred_check_branch
          %573 = sbr.rel (%p571) target = $region16
        $region15: #{extract_features.3} parent=11 // pred_region
          _
        $region16: #{extract_features.3} parent=11 // pred_fallthru
          _
        // Predicated region
        $region17: #{extract_features.3} parent=11 // pred_check
          %p574 = pneg %p152
        $region18: #{extract_features.3} parent=11 // pred_check_branch
          %576 = sbr.rel (%p574) target = $region20
        $region19: #{extract_features.3} parent=11 // pred_region
          _
        $region20: #{extract_features.3} parent=11 // pred_fallthru
          _
        // Predicated region
        $region21: #{extract_features.3} parent=11 // pred_check
          %p577 = pneg %p173
        $region22: #{extract_features.3} parent=11 // pred_check_branch
          %579 = sbr.rel (%p577) target = $region24
        $region23: #{extract_features.3} parent=11 // pred_region
          _
        $region24: #{extract_features.3} parent=11 // pred_fallthru
          _
        // Predicated region
        $region25: #{extract_features.3} parent=11 // pred_check
          %p580 = pneg %p194
        $region26: #{extract_features.3} parent=11 // pred_check_branch
          %582 = sbr.rel (%p580) target = $region28
        $region27: #{extract_features.3} parent=11 // pred_region
          _
        $region28: #{extract_features.3} parent=11 // pred_fallthru
          _
        // Predicated region
        $region29: #{extract_features.3} parent=11 // pred_check
          %p583 = pneg %p215
        $region30: #{extract_features.3} parent=11 // pred_check_branch
          %585 = sbr.rel (%p583) target = $region32
        $region31: #{extract_features.3} parent=11 // pred_region
          _
        $region32: #{extract_features.3} parent=11 // pred_fallthru
          _
        // Predicated region
        $region33: #{extract_features.3} parent=11 // pred_check
          %p586 = pneg %p236
        $region34: #{extract_features.3} parent=11 // pred_check_branch
          %588 = sbr.rel (%p586) target = $region36
        $region35: #{extract_features.3} parent=11 // pred_region
          _
        $region36: #{extract_features.3} parent=11 // pred_fallthru
          _
        // Predicated region
        $region37: #{extract_features.3} parent=11 // pred_check
          %p589 = pneg %p257
        $region38: #{extract_features.3} parent=11 // pred_check_branch
          %591 = sbr.rel (%p589) target = $region40
        $region39: #{extract_features.3} parent=11 // pred_region
          _
        $region40: #{extract_features.3} parent=11 // pred_fallthru
          _
        // Predicated region
        $region41: #{extract_features.3} parent=11 // pred_check
          %p592 = pneg %p278
        $region42: #{extract_features.3} parent=11 // pred_check_branch
          %594 = sbr.rel (%p592) target = $region44
        $region43: #{extract_features.3} parent=11 // pred_region
          _
        $region44: #{extract_features.3} parent=11 // pred_fallthru
          _
        // Predicated region
        $region45: #{extract_features.3} parent=11 // pred_check
          %p595 = pneg %p299
        $region46: #{extract_features.3} parent=11 // pred_check_branch
          %597 = sbr.rel (%p595) target = $region48
        $region47: #{extract_features.3} parent=11 // pred_region
          _
        $region48: #{extract_features.3} parent=11 // pred_fallthru
          _
        // Predicated region
        $region49: #{extract_features.3} parent=11 // pred_check
          %p598 = pneg %p320
        $region50: #{extract_features.3} parent=11 // pred_check_branch
          %600 = sbr.rel (%p598) target = $region52
        $region51: #{extract_features.3} parent=11 // pred_region
          _
        $region52: #{extract_features.3} parent=11 // pred_fallthru
          _
        // Predicated region
        $region53: #{extract_features.3} parent=11 // pred_check
          %p601 = pneg %p341
        $region54: #{extract_features.3} parent=11 // pred_check_branch
          %603 = sbr.rel (%p601) target = $region56
        $region55: #{extract_features.3} parent=11 // pred_region
          _
        $region56: #{extract_features.3} parent=11 // pred_fallthru
          _
        // Predicated region
        $region57: #{extract_features.3} parent=11 // pred_check
          %p604 = pneg %p362
        $region58: #{extract_features.3} parent=11 // pred_check_branch
          %606 = sbr.rel (%p604) target = $region60
        $region59: #{extract_features.3} parent=11 // pred_region
          _
        $region60: #{extract_features.3} parent=11 // pred_fallthru
          _
        // Predicated region
        $region61: #{extract_features.3} parent=11 // pred_check
          %p607 = pneg %p383
        $region62: #{extract_features.3} parent=11 // pred_check_branch
          %609 = sbr.rel (%p607) target = $region64
        $region63: #{extract_features.3} parent=11 // pred_region
          _
        $region64: #{extract_features.3} parent=11 // pred_fallthru
          _
        // Predicated region
        $region65: #{extract_features.3} parent=11 // pred_check
          %p610 = pneg %p404
        $region66: #{extract_features.3} parent=11 // pred_check_branch
          %612 = sbr.rel (%p610) target = $region68
        $region67: #{extract_features.3} parent=11 // pred_region
          _
        $region68: #{extract_features.3} parent=11 // pred_fallthru
          _
        // Predicated region
        $region69: #{extract_features.3} parent=11 // pred_check
          %p613 = pneg %p425
        $region70: #{extract_features.3} parent=11 // pred_check_branch
          %615 = sbr.rel (%p613) target = $region72
        $region71: #{extract_features.3} parent=11 // pred_region
          _
        $region72: #{extract_features.3} parent=11 // pred_fallthru
          _
        // Predicated region
        $region73: #{extract_features.3} parent=11 // pred_check
          %p616 = pneg %p446
        $region74: #{extract_features.3} parent=11 // pred_check_branch
          %618 = sbr.rel (%p616) target = $region76
        $region75: #{extract_features.3} parent=11 // pred_region
          _
        $region76: #{extract_features.3} parent=11 // pred_fallthru
          _
        // Predicated region
        $region77: #{extract_features.3} parent=11 // pred_check
          %p619 = pneg %p467
        $region78: #{extract_features.3} parent=11 // pred_check_branch
          %621 = sbr.rel (%p619) target = $region80
        $region79: #{extract_features.3} parent=11 // pred_region
          _
        $region80: #{extract_features.3} parent=11 // pred_fallthru
          _
        // Predicated region
        $region81: #{extract_features.3} parent=11 // pred_check
          %p622 = pneg %p488
        $region82: #{extract_features.3} parent=11 // pred_check_branch
          %624 = sbr.rel (%p622) target = $region84
        $region83: #{extract_features.3} parent=11 // pred_region
          _
        $region84: #{extract_features.3} parent=11 // pred_fallthru
          _
        // Predicated region
        $region85: #{extract_features.3} parent=11 // pred_check
          %p625 = pneg %p509
        $region86: #{extract_features.3} parent=11 // pred_check_branch
          %627 = sbr.rel (%p625) target = $region88
        $region87: #{extract_features.3} parent=11 // pred_region
          _
        $region88: #{extract_features.3} parent=11 // pred_fallthru
          _
        // Predicated region
        $region89: #{extract_features.3} parent=11 // pred_check
          %p628 = pneg %p530
        $region90: #{extract_features.3} parent=11 // pred_check_branch
          %630 = sbr.rel (%p628) target = $region92
        $region91: #{extract_features.3} parent=11 // pred_region
          _
        $region92: #{extract_features.3} parent=11 // pred_fallthru
          _
      $region12: #{extract_features.3} parent=5 // pred_fallthru
        _
      %p631 = scmp.lt.s32.totalorder %s32, 2
      // Predicated region
      $region93: #{extract_features.3} parent=5 // pred_check
        %p632 = pneg %p631
      $region94: #{extract_features.3} parent=5 // pred_check_branch
        %634 = sbr.rel (%p632) target = $region96
      $region95: #{extract_features.3} parent=5 // pred_region
        // Predicated region
        $region97: #{extract_features.3} parent=95 // pred_check
          %p635 = pneg %p52
        $region98: #{extract_features.3} parent=95 // pred_check_branch
          %637 = sbr.rel (%p635) target = $region100
        $region99: #{extract_features.3} parent=95 // pred_region
          %p638 = scmp.lt.s32.totalorder %s32, 1
          %s639 = scalar_select %p638, %s32, 1
          %s640 = smul.addr %s639, 2
          %s641 = smul.addr %s640, 8
          %s642 = scalar_lea.vmem %s0, %s641
        $region100: #{extract_features.3} parent=95 // pred_fallthru
          _
        // Predicated region
        $region101: #{extract_features.3} parent=95 // pred_check
          %p643 = pneg %p78
        $region102: #{extract_features.3} parent=95 // pred_check_branch
          %645 = sbr.rel (%p643) target = $region104
        $region103: #{extract_features.3} parent=95 // pred_region
          %p646 = scmp.lt.s32.totalorder %s32, 1
          %s647 = scalar_select %p646, %s32, 1
          %s648 = smul.addr %s647, 2
          %s649 = smul.addr %s648, 8
          %s650 = scalar_lea.vmem %s1, %s649
        $region104: #{extract_features.3} parent=95 // pred_fallthru
          _
        // Predicated region
        $region105: #{extract_features.3} parent=95 // pred_check
          %p651 = pneg %p104
        $region106: #{extract_features.3} parent=95 // pred_check_branch
          %653 = sbr.rel (%p651) target = $region108
        $region107: #{extract_features.3} parent=95 // pred_region
          %p654 = scmp.lt.s32.totalorder %s32, 1
          %s655 = scalar_select %p654, %s32, 1
          %s656 = scalar_lea.vmem %s2, %s655
        $region108: #{extract_features.3} parent=95 // pred_fallthru
          _
      $region96: #{extract_features.3} parent=5 // pred_fallthru
        _
      %p657 = scmp.le.s32.totalorder 1, %s32
      %p658 = scmp.lt.s32.totalorder %s32, 3
      %p659 = pnand %p657, %p658
      %p660 = pneg %p659
      // Predicated region
      $region109: #{extract_features.3} parent=5 // pred_check
        _
      $region110: #{extract_features.3} parent=5 // pred_check_branch
        %662 = sbr.rel (%p659) target = $region112
      $region111: #{extract_features.3} parent=5 // pred_region
        %s663 = ssub.s32 %s32, 1
        %p664 = scmp.lt.s32.totalorder %s37, 1
        %s665 = scalar_select %p664, %s37, 1
        %s666 = smul.addr %s665, 2
        %s667 = smul.addr %s666, 8
        %s668 = scalar_lea.vmem %s0, %s667
        %p669 = pneg %p58
        %p670 = pneg %p55
        %p671 = scmp.lt.s32.totalorder %s37, 1
        %s672 = scalar_select %p671, %s37, 1
        %s673 = smul.addr %s672, 2
        %s674 = smul.addr %s673, 8
        %s675 = scalar_lea.vmem %s1, %s674
        %p676 = pneg %p84
        %p677 = pneg %p81
        %p678 = scmp.lt.s32.totalorder %s37, 1
        %s679 = scalar_select %p678, %s37, 1
        %s680 = scalar_lea.vmem %s2, %s679
        %p681 = pneg %p110
        %p682 = pneg %p107
        %p683 = pneg %p131
        %p684 = pneg %p128
        %p685 = pneg %p152
        %p686 = pneg %p149
        %p687 = pneg %p173
        %p688 = pneg %p170
        %p689 = pneg %p194
        %p690 = pneg %p191
        %p691 = pneg %p215
        %p692 = pneg %p212
        %p693 = pneg %p236
        %p694 = pneg %p233
        %p695 = pneg %p257
        %p696 = pneg %p254
        %p697 = pneg %p278
        %p698 = pneg %p275
        %p699 = pneg %p299
        %p700 = pneg %p296
        %p701 = pneg %p320
        %p702 = pneg %p317
        %p703 = pneg %p341
        %p704 = pneg %p338
        %p705 = pneg %p362
        %p706 = pneg %p359
        %p707 = pneg %p383
        %p708 = pneg %p380
        %p709 = pneg %p404
        %p710 = pneg %p401
        %p711 = pneg %p425
        %p712 = pneg %p422
        %p713 = pneg %p446
        %p714 = pneg %p443
        %p715 = pneg %p467
        %p716 = pneg %p464
        %p717 = pneg %p488
        %p718 = pneg %p485
        %p719 = pneg %p509
        %p720 = pneg %p506
        %p721 = pneg %p530
        %p722 = pneg %p527
        %p723 = pneg %p556
        %p724 = pneg %p553
        %s725 = sand.u32 %s543, 1
        %s726 = scalar_lea.sflag [#allocation3], %s725
        %s727 = sand.u32 %s543, 1
        %s728 = smul.addr %s727, 16
        %s729 = scalar_lea.vmem [#allocation2], %s728
        %p730 = scmp.lt.s32.totalorder %s37, 1
        %s731 = scalar_select %p730, %s37, 1
        %s732 = smul.addr %s731, 2
        %s733 = smul.addr %s732, 8
        %s734 = scalar_lea.vmem %s0, %s733
        %p735 = scmp.lt.s32.totalorder %s37, 1
        %s736 = scalar_select %p735, %s37, 1
        %s737 = smul.addr %s736, 2
        %s738 = smul.addr %s737, 8
        %s739 = scalar_lea.vmem %s1, %s738
        %p740 = scmp.lt.s32.totalorder %s37, 1
        %s741 = scalar_select %p740, %s37, 1
        %s742 = scalar_lea.vmem %s2, %s741
        %v744 = vld [vmem:[%s734] sm:$0xff]
        %v745 = vld [vmem:[%s734 + $0x8] sm:$0xff]
        %v746 = vld [vmem:[%s3] sm:$0x1]
        %v747 = vld [vmem:[%s4] sm:$0x1]
        %vm748 = vcmask 195584
        %v749 = vsel %vm748, %v744, 0.0
        %750 = vadd.xlane.f32.xlu0 %v749
        %v751 = vpop.xlane.xlu0 %750
        %v752 = vsel %vm748, %v745, 0.0
        %753 = vadd.xlane.f32.xlu0 %v752
        %v754 = vpop.xlane.xlu0 %753
        %v755 = vrcp.pop 24.0
        %v756 = vmul.f32 24.0, %v755
        %v757 = vsub.f32 1.0, %v756
        %v758 = vmul.f32 %v755, %v757
        %v759 = vadd.f32 %v755, %v758
        %vm760 = vweird.f32 %v755
        %v761 = vsel %vm760, %v755, %v759
        %v762 = vmul.f32 %v751, %v761
        %v763 = vmul.f32 %v754, %v761
        %v764 = vsub.f32 %v744, %v762
        %v765 = vsub.f32 %v745, %v763
        %v766 = vmul.f32 %v764, %v764
        %v767 = vmul.f32 %v765, %v765
        %v768 = vsel %vm748, %v766, 0.0
        %769 = vadd.xlane.f32.xlu0 %v768
        %v770 = vpop.xlane.xlu0 %769
        %v771 = vsel %vm748, %v767, 0.0
        %772 = vadd.xlane.f32.xlu0 %v771
        %v773 = vpop.xlane.xlu0 %772
        %v774 = vmul.f32 %v770, %v761
        %v775 = vmul.f32 %v773, %v761
        %v776 = vadd.f32 %v774, 1e-05
        %v777 = vadd.f32 %v775, 1e-05
        %v778 = vrsqrt.pop %v776
        %v779 = vmul.f32 %v778, %v776
        %v780 = vmul.f32 %v779, %v778
        %v781 = vmul.f32 0.5, %v780
        %v782 = vsub.f32 1.5, %v781
        %v783 = vmul.f32 %v778, %v782
        %vm784 = vweird.f32 %v776
        %vm785 = vweird.f32 %v778
        %vm786 = vmor %vm784, %vm785
        %v787 = vsel %vm786, %v778, %v783
        %v788 = vrsqrt.pop %v777
        %v789 = vmul.f32 %v788, %v777
        %v790 = vmul.f32 %v789, %v788
        %v791 = vmul.f32 0.5, %v790
        %v792 = vsub.f32 1.5, %v791
        %v793 = vmul.f32 %v788, %v792
        %vm794 = vweird.f32 %v777
        %vm795 = vweird.f32 %v788
        %vm796 = vmor %vm794, %vm795
        %v797 = vsel %vm796, %v788, %v793
        %v798 = vmul.f32 %v764, %v787
        %v799 = vmul.f32 %v765, %v797
        %v801 = vperm.slane %v746, 0
        %v803 = vmul.f32 %v798, %v801
        %v804 = vmul.f32 %v799, %v801
        %v806 = vperm.slane %v747, 0
        %v808 = vadd.f32 %v803, %v806
        %v809 = vadd.f32 %v804, %v806
        %v810 = vpack.c.bf16 %v809, %v808
        %v811 = vld [vmem:[%s5] sm:$0xf]
        %v812 = vld [vmem:[%s5 + $0x4] sm:$0xf]
        %v813 = vld [vmem:[%s5 + $0x8] sm:$0xf]
        %v814 = vld [vmem:[%s6] sm:$0x1]
        %v816 = vperm.slane %v814, 0
        %v821 = vunpack.c.l.b16 %v811
        %v822 = vunpack.c.l.b16 %v812
        %v823 = vunpack.c.l.b16 %v813
        %v824 = vpack.c.b16 %v822, %v821
        %v825 = vpack.c.b16 %v823, %v823
        %v828 = vsel %vm748, %v810, 0
        %vm830 = vcmask 1043456
        %v832 = vsel %vm830, %v825, 0
        %834 = vmatpush.bf16.msra.mxu0 0
        %835 = vmatpush.bf16.msra.mxu0 0
        %836 = vmatpush.bf16.msra.mxu0 0
        %837 = vmatpush.bf16.msra.mxu0 0
        %838 = vmatpush.bf16.msra.mxu0 0
        %839 = vmatpush.bf16.msra.mxu0 0
        %840 = vmatpush.bf16.msra.mxu0 %v832
        %841 = vmatpush.bf16.msra.mxu0 %v824
        %842 = vmatmul.bf16.gmra.mxu0 %v828
        %v843 = vpop.f32.mrf.mxu0
        %v844 = vadd.f32 %v816, %v843
        %v845 = vpop.f32.mrf.mxu0
        %v846 = vadd.f32 %v816, %v845
        %847 = vdwg.mxu0
        %v848 = vld [vmem:[%s739] sm:$0xff]
        %v849 = vld [vmem:[%s739 + $0x8] sm:$0xff]
        %851 = vset.pattern.permute.xlu0 0
        %852 = vperm.xlu0 %851, %v848
        %v853 = vpop.permute.xlu0 %852
        %856 = vset.pattern.permute.xlu0 0
        %857 = vperm.xlu0 %856, %v849
        %v858 = vpop.permute.xlu0 %857
        %v860 = vmul.f32 %v844, %v853
        %v861 = vmul.f32 %v846, %v858
        %v862 = vlaneseq
        %v863 = vshrl.u32 %v862, 7
        %v864 = vadd.s32 %v863, 8
        %v865 = vrot.slane %v860, 4
        %v866 = vrot.slane %v861, 4
        %vm867 = vcmp.lt.s32.totalorder %v863, 4
        %v868 = vsel %vm867, %v865, %v866
        %v869 = vsel %vm867, %v866, %v865
        %v870 = vadd.s32 %v863, 4294967292
        %v871 = vadd.s32 %v864, 4294967292
        %vm872 = vcmp.ge.s32.totalorder %v870, 0
        %vm873 = vcmp.ge.s32.totalorder %v871, 0
        %vm874 = vcmp.lt.s32.totalorder %v870, 16
        %vm875 = vcmp.lt.s32.totalorder %v871, 16
        %vm876 = vmand %vm872, %vm874
        %vm877 = vmand %vm873, %vm875
        %v878 = vsel %vm876, 1, 0
        %v879 = vsel %vm877, 1, 0
        %vm880 = vcmp.eq.s32.totalorder %v878, 1
        %vm881 = vcmp.eq.s32.totalorder %v879, 1
        %v882 = vsel %vm880, %v869, 0.0
        %v883 = vsel %vm881, %v868, 0.0
        %v884 = vpack.c.bf16 %v883, %v882
        %v885 = vld [vmem:[%s7] sm:$0xf]
        %v886 = vld [vmem:[%s7 + $0x4] sm:$0xf]
        %v887 = vld [vmem:[%s7 + $0x8] sm:$0xf]
        %v888 = vld [vmem:[%s7 + $0xc] sm:$0xf]
        %v889 = vrot.slane %v860, 5
        %v890 = vrot.slane %v861, 5
        %vm891 = vcmp.lt.s32.totalorder %v863, 3
        %v892 = vsel %vm891, %v889, %v890
        %v893 = vsel %vm891, %v890, %v889
        %v894 = vadd.s32 %v863, 4294967293
        %v895 = vadd.s32 %v864, 4294967293
        %vm896 = vcmp.ge.s32.totalorder %v894, 0
        %vm897 = vcmp.ge.s32.totalorder %v895, 0
        %vm898 = vcmp.lt.s32.totalorder %v894, 16
        %vm899 = vcmp.lt.s32.totalorder %v895, 16
        %vm900 = vmand %vm896, %vm898
        %vm901 = vmand %vm897, %vm899
        %v902 = vsel %vm900, 1, 0
        %v903 = vsel %vm901, 1, 0
        %vm904 = vcmp.eq.s32.totalorder %v902, 1
        %vm905 = vcmp.eq.s32.totalorder %v903, 1
        %v906 = vsel %vm904, %v893, 0.0
        %v907 = vsel %vm905, %v892, 0.0
        %v908 = vpack.c.bf16 %v907, %v906
        %s909 = scalar_lea.vmem %s7, 16
        %v910 = vld [vmem:[%s909] sm:$0xf]
        %v911 = vld [vmem:[%s909 + $0x4] sm:$0xf]
        %v912 = vld [vmem:[%s909 + $0x8] sm:$0xf]
        %v913 = vld [vmem:[%s909 + $0xc] sm:$0xf]
        %v918 = vunpack.c.l.b16 %v910
        %v919 = vunpack.c.l.b16 %v911
        %v920 = vunpack.c.l.b16 %v912
        %v921 = vunpack.c.l.b16 %v913
        %v922 = vpack.c.b16 %v919, %v918
        %v923 = vpack.c.b16 %v921, %v920
        %vm926 = vcmask 261120
        %v928 = vsel %vm926, %v908, 0
        %930 = vmatpush.bf16.msra.mxu0 0
        %931 = vmatpush.bf16.msra.mxu0 0
        %932 = vmatpush.bf16.msra.mxu0 0
        %933 = vmatpush.bf16.msra.mxu0 0
        %934 = vmatpush.bf16.msra.mxu0 0
        %935 = vmatpush.bf16.msra.mxu0 0
        %936 = vmatpush.bf16.msra.mxu0 %v923
        %937 = vmatpush.bf16.msra.mxu0 %v922
        %938 = vmatmul.bf16.gmra.mxu0 %v928
        %v939 = vpop.f32.mrf.mxu0
        %v940 = vadd.f32 0.0, %v939
        %v941 = vpop.f32.mrf.mxu0
        %v942 = vadd.f32 0.0, %v941
        %943 = vdwg.mxu0
        %v948 = vunpack.c.l.b16 %v885
        %v949 = vunpack.c.l.b16 %v886
        %v950 = vunpack.c.l.b16 %v887
        %v951 = vunpack.c.l.b16 %v888
        %v952 = vpack.c.b16 %v949, %v948
        %v953 = vpack.c.b16 %v951, %v950
        %v957 = vsel %vm926, %v884, 0
        %959 = vmatpush.bf16.msra.mxu0 0
        %960 = vmatpush.bf16.msra.mxu0 0
        %961 = vmatpush.bf16.msra.mxu0 0
        %962 = vmatpush.bf16.msra.mxu0 0
        %963 = vmatpush.bf16.msra.mxu0 0
        %964 = vmatpush.bf16.msra.mxu0 0
        %965 = vmatpush.bf16.msra.mxu0 %v953
        %966 = vmatpush.bf16.msra.mxu0 %v952
        %967 = vmatmul.bf16.gmra.mxu0 %v957
        %v968 = vpop.f32.mrf.mxu0
        %v969 = vadd.f32 %v940, %v968
        %v970 = vpop.f32.mrf.mxu0
        %v971 = vadd.f32 %v942, %v970
        %972 = vdwg.mxu0
        %v973 = vrot.slane %v860, 6
        %v974 = vrot.slane %v861, 6
        %vm975 = vcmp.lt.s32.totalorder %v863, 2
        %v976 = vsel %vm975, %v973, %v974
        %v977 = vsel %vm975, %v974, %v973
        %v978 = vadd.s32 %v863, 4294967294
        %v979 = vadd.s32 %v864, 4294967294
        %vm980 = vcmp.ge.s32.totalorder %v978, 0
        %vm981 = vcmp.ge.s32.totalorder %v979, 0
        %vm982 = vcmp.lt.s32.totalorder %v978, 16
        %vm983 = vcmp.lt.s32.totalorder %v979, 16
        %vm984 = vmand %vm980, %vm982
        %vm985 = vmand %vm981, %vm983
        %v986 = vsel %vm984, 1, 0
        %v987 = vsel %vm985, 1, 0
        %vm988 = vcmp.eq.s32.totalorder %v986, 1
        %vm989 = vcmp.eq.s32.totalorder %v987, 1
        %v990 = vsel %vm988, %v977, 0.0
        %v991 = vsel %vm989, %v976, 0.0
        %v992 = vpack.c.bf16 %v991, %v990
        %s993 = scalar_lea.vmem %s7, 32
        %v994 = vld [vmem:[%s993] sm:$0xf]
        %v995 = vld [vmem:[%s993 + $0x4] sm:$0xf]
        %v996 = vld [vmem:[%s993 + $0x8] sm:$0xf]
        %v997 = vld [vmem:[%s993 + $0xc] sm:$0xf]
        %v1002 = vunpack.c.l.b16 %v994
        %v1003 = vunpack.c.l.b16 %v995
        %v1004 = vunpack.c.l.b16 %v996
        %v1005 = vunpack.c.l.b16 %v997
        %v1006 = vpack.c.b16 %v1003, %v1002
        %v1007 = vpack.c.b16 %v1005, %v1004
        %v1011 = vsel %vm926, %v992, 0
        %1013 = vmatpush.bf16.msra.mxu0 0
        %1014 = vmatpush.bf16.msra.mxu0 0
        %1015 = vmatpush.bf16.msra.mxu0 0
        %1016 = vmatpush.bf16.msra.mxu0 0
        %1017 = vmatpush.bf16.msra.mxu0 0
        %1018 = vmatpush.bf16.msra.mxu0 0
        %1019 = vmatpush.bf16.msra.mxu0 %v1007
        %1020 = vmatpush.bf16.msra.mxu0 %v1006
        %1021 = vmatmul.bf16.gmra.mxu0 %v1011
        %v1022 = vpop.f32.mrf.mxu0
        %v1023 = vadd.f32 0.0, %v1022
        %v1024 = vpop.f32.mrf.mxu0
        %v1025 = vadd.f32 0.0, %v1024
        %1026 = vdwg.mxu0
        %v1027 = vadd.f32 %v969, %v1023
        %v1028 = vadd.f32 %v971, %v1025
        %v1029 = vrot.slane %v860, 7
        %v1030 = vrot.slane %v861, 7
        %vm1031 = vcmp.lt.s32.totalorder %v863, 1
        %v1032 = vsel %vm1031, %v1029, %v1030
        %v1033 = vsel %vm1031, %v1030, %v1029
        %v1034 = vadd.s32 %v863, 4294967295
        %v1035 = vadd.s32 %v864, 4294967295
        %vm1036 = vcmp.ge.s32.totalorder %v1034, 0
        %vm1037 = vcmp.ge.s32.totalorder %v1035, 0
        %vm1038 = vcmp.lt.s32.totalorder %v1034, 16
        %vm1039 = vcmp.lt.s32.totalorder %v1035, 16
        %vm1040 = vmand %vm1036, %vm1038
        %vm1041 = vmand %vm1037, %vm1039
        %v1042 = vsel %vm1040, 1, 0
        %v1043 = vsel %vm1041, 1, 0
        %vm1044 = vcmp.eq.s32.totalorder %v1042, 1
        %vm1045 = vcmp.eq.s32.totalorder %v1043, 1
        %v1046 = vsel %vm1044, %v1033, 0.0
        %v1047 = vsel %vm1045, %v1032, 0.0
        %v1048 = vpack.c.bf16 %v1047, %v1046
        %s1049 = scalar_lea.vmem %s7, 48
        %v1050 = vld [vmem:[%s1049] sm:$0xf]
        %v1051 = vld [vmem:[%s1049 + $0x4] sm:$0xf]
        %v1052 = vld [vmem:[%s1049 + $0x8] sm:$0xf]
        %v1053 = vld [vmem:[%s1049 + $0xc] sm:$0xf]
        %v1058 = vunpack.c.l.b16 %v1050
        %v1059 = vunpack.c.l.b16 %v1051
        %v1060 = vunpack.c.l.b16 %v1052
        %v1061 = vunpack.c.l.b16 %v1053
        %v1062 = vpack.c.b16 %v1059, %v1058
        %v1063 = vpack.c.b16 %v1061, %v1060
        %v1067 = vsel %vm926, %v1048, 0
        %1069 = vmatpush.bf16.msra.mxu0 0
        %1070 = vmatpush.bf16.msra.mxu0 0
        %1071 = vmatpush.bf16.msra.mxu0 0
        %1072 = vmatpush.bf16.msra.mxu0 0
        %1073 = vmatpush.bf16.msra.mxu0 0
        %1074 = vmatpush.bf16.msra.mxu0 0
        %1075 = vmatpush.bf16.msra.mxu0 %v1063
        %1076 = vmatpush.bf16.msra.mxu0 %v1062
        %1077 = vmatmul.bf16.gmra.mxu0 %v1067
        %v1078 = vpop.f32.mrf.mxu0
        %v1079 = vadd.f32 0.0, %v1078
        %v1080 = vpop.f32.mrf.mxu0
        %v1081 = vadd.f32 0.0, %v1080
        %1082 = vdwg.mxu0
        %v1083 = vadd.f32 %v1027, %v1079
        %v1084 = vadd.f32 %v1028, %v1081
        %vm1085 = vcmp.ge.s32.totalorder %v863, 0
        %vm1086 = vcmp.ge.s32.totalorder %v864, 0
        %vm1087 = vcmp.lt.s32.totalorder %v863, 16
        %vm1088 = vcmp.lt.s32.totalorder %v864, 16
        %vm1089 = vmand %vm1085, %vm1087
        %vm1090 = vmand %vm1086, %vm1088
        %v1091 = vsel %vm1089, 1, 0
        %v1092 = vsel %vm1090, 1, 0
        %vm1093 = vcmp.eq.s32.totalorder %v1091, 1
        %vm1094 = vcmp.eq.s32.totalorder %v1092, 1
        %v1095 = vsel %vm1093, %v860, 0.0
        %v1096 = vsel %vm1094, %v861, 0.0
        %v1097 = vpack.c.bf16 %v1096, %v1095
        %s1098 = scalar_lea.vmem %s7, 64
        %v1099 = vld [vmem:[%s1098] sm:$0xf]
        %v1100 = vld [vmem:[%s1098 + $0x4] sm:$0xf]
        %v1101 = vld [vmem:[%s1098 + $0x8] sm:$0xf]
        %v1102 = vld [vmem:[%s1098 + $0xc] sm:$0xf]
        %v1107 = vunpack.c.l.b16 %v1099
        %v1108 = vunpack.c.l.b16 %v1100
        %v1109 = vunpack.c.l.b16 %v1101
        %v1110 = vunpack.c.l.b16 %v1102
        %v1111 = vpack.c.b16 %v1108, %v1107
        %v1112 = vpack.c.b16 %v1110, %v1109
        %v1116 = vsel %vm926, %v1097, 0
        %1118 = vmatpush.bf16.msra.mxu0 0
        %1119 = vmatpush.bf16.msra.mxu0 0
        %1120 = vmatpush.bf16.msra.mxu0 0
        %1121 = vmatpush.bf16.msra.mxu0 0
        %1122 = vmatpush.bf16.msra.mxu0 0
        %1123 = vmatpush.bf16.msra.mxu0 0
        %1124 = vmatpush.bf16.msra.mxu0 %v1112
        %1125 = vmatpush.bf16.msra.mxu0 %v1111
        %1126 = vmatmul.bf16.gmra.mxu0 %v1116
        %v1127 = vpop.f32.mrf.mxu0
        %v1128 = vadd.f32 0.0, %v1127
        %v1129 = vpop.f32.mrf.mxu0
        %v1130 = vadd.f32 0.0, %v1129
        %1131 = vdwg.mxu0
        %v1132 = vadd.f32 %v1083, %v1128
        %v1133 = vadd.f32 %v1084, %v1130
        %v1134 = vrot.slane %v860, 1
        %v1135 = vrot.slane %v861, 1
        %vm1136 = vcmp.lt.s32.totalorder %v863, 7
        %v1137 = vsel %vm1136, %v1134, %v1135
        %v1138 = vsel %vm1136, %v1135, %v1134
        %v1139 = vadd.s32 %v863, 1
        %v1140 = vadd.s32 %v864, 1
        %vm1141 = vcmp.ge.s32.totalorder %v1139, 0
        %vm1142 = vcmp.ge.s32.totalorder %v1140, 0
        %vm1143 = vcmp.lt.s32.totalorder %v1139, 16
        %vm1144 = vcmp.lt.s32.totalorder %v1140, 16
        %vm1145 = vmand %vm1141, %vm1143
        %vm1146 = vmand %vm1142, %vm1144
        %v1147 = vsel %vm1145, 1, 0
        %v1148 = vsel %vm1146, 1, 0
        %vm1149 = vcmp.eq.s32.totalorder %v1147, 1
        %vm1150 = vcmp.eq.s32.totalorder %v1148, 1
        %v1151 = vsel %vm1149, %v1137, 0.0
        %v1152 = vsel %vm1150, %v1138, 0.0
        %v1153 = vpack.c.bf16 %v1152, %v1151
        %s1154 = scalar_lea.vmem %s7, 80
        %v1155 = vld [vmem:[%s1154] sm:$0xf]
        %v1156 = vld [vmem:[%s1154 + $0x4] sm:$0xf]
        %v1157 = vld [vmem:[%s1154 + $0x8] sm:$0xf]
        %v1158 = vld [vmem:[%s1154 + $0xc] sm:$0xf]
        %v1163 = vunpack.c.l.b16 %v1155
        %v1164 = vunpack.c.l.b16 %v1156
        %v1165 = vunpack.c.l.b16 %v1157
        %v1166 = vunpack.c.l.b16 %v1158
        %v1167 = vpack.c.b16 %v1164, %v1163
        %v1168 = vpack.c.b16 %v1166, %v1165
        %v1172 = vsel %vm926, %v1153, 0
        %1174 = vmatpush.bf16.msra.mxu0 0
        %1175 = vmatpush.bf16.msra.mxu0 0
        %1176 = vmatpush.bf16.msra.mxu0 0
        %1177 = vmatpush.bf16.msra.mxu0 0
        %1178 = vmatpush.bf16.msra.mxu0 0
        %1179 = vmatpush.bf16.msra.mxu0 0
        %1180 = vmatpush.bf16.msra.mxu0 %v1168
        %1181 = vmatpush.bf16.msra.mxu0 %v1167
        %1182 = vmatmul.bf16.gmra.mxu0 %v1172
        %v1183 = vpop.f32.mrf.mxu0
        %v1184 = vadd.f32 0.0, %v1183
        %v1185 = vpop.f32.mrf.mxu0
        %v1186 = vadd.f32 0.0, %v1185
        %1187 = vdwg.mxu0
        %v1188 = vadd.f32 %v1132, %v1184
        %v1189 = vadd.f32 %v1133, %v1186
        %v1190 = vrot.slane %v860, 2
        %v1191 = vrot.slane %v861, 2
        %vm1192 = vcmp.lt.s32.totalorder %v863, 6
        %v1193 = vsel %vm1192, %v1190, %v1191
        %v1194 = vsel %vm1192, %v1191, %v1190
        %v1195 = vadd.s32 %v863, 2
        %v1196 = vadd.s32 %v864, 2
        %vm1197 = vcmp.ge.s32.totalorder %v1195, 0
        %vm1198 = vcmp.ge.s32.totalorder %v1196, 0
        %vm1199 = vcmp.lt.s32.totalorder %v1195, 16
        %vm1200 = vcmp.lt.s32.totalorder %v1196, 16
        %vm1201 = vmand %vm1197, %vm1199
        %vm1202 = vmand %vm1198, %vm1200
        %v1203 = vsel %vm1201, 1, 0
        %v1204 = vsel %vm1202, 1, 0
        %vm1205 = vcmp.eq.s32.totalorder %v1203, 1
        %vm1206 = vcmp.eq.s32.totalorder %v1204, 1
        %v1207 = vsel %vm1205, %v1193, 0.0
        %v1208 = vsel %vm1206, %v1194, 0.0
        %v1209 = vpack.c.bf16 %v1208, %v1207
        %s1210 = scalar_lea.vmem %s7, 96
        %v1211 = vld [vmem:[%s1210] sm:$0xf]
        %v1212 = vld [vmem:[%s1210 + $0x4] sm:$0xf]
        %v1213 = vld [vmem:[%s1210 + $0x8] sm:$0xf]
        %v1214 = vld [vmem:[%s1210 + $0xc] sm:$0xf]
        %v1219 = vunpack.c.l.b16 %v1211
        %v1220 = vunpack.c.l.b16 %v1212
        %v1221 = vunpack.c.l.b16 %v1213
        %v1222 = vunpack.c.l.b16 %v1214
        %v1223 = vpack.c.b16 %v1220, %v1219
        %v1224 = vpack.c.b16 %v1222, %v1221
        %v1228 = vsel %vm926, %v1209, 0
        %1230 = vmatpush.bf16.msra.mxu0 0
        %1231 = vmatpush.bf16.msra.mxu0 0
        %1232 = vmatpush.bf16.msra.mxu0 0
        %1233 = vmatpush.bf16.msra.mxu0 0
        %1234 = vmatpush.bf16.msra.mxu0 0
        %1235 = vmatpush.bf16.msra.mxu0 0
        %1236 = vmatpush.bf16.msra.mxu0 %v1224
        %1237 = vmatpush.bf16.msra.mxu0 %v1223
        %1238 = vmatmul.bf16.gmra.mxu0 %v1228
        %v1239 = vpop.f32.mrf.mxu0
        %v1240 = vadd.f32 0.0, %v1239
        %v1241 = vpop.f32.mrf.mxu0
        %v1242 = vadd.f32 0.0, %v1241
        %1243 = vdwg.mxu0
        %v1244 = vadd.f32 %v1188, %v1240
        %v1245 = vadd.f32 %v1189, %v1242
        %v1246 = vrot.slane %v860, 3
        %v1247 = vrot.slane %v861, 3
        %vm1248 = vcmp.lt.s32.totalorder %v863, 5
        %v1249 = vsel %vm1248, %v1246, %v1247
        %v1250 = vsel %vm1248, %v1247, %v1246
        %v1251 = vadd.s32 %v863, 3
        %v1252 = vadd.s32 %v864, 3
        %vm1253 = vcmp.ge.s32.totalorder %v1251, 0
        %vm1254 = vcmp.ge.s32.totalorder %v1252, 0
        %vm1255 = vcmp.lt.s32.totalorder %v1251, 16
        %vm1256 = vcmp.lt.s32.totalorder %v1252, 16
        %vm1257 = vmand %vm1253, %vm1255
        %vm1258 = vmand %vm1254, %vm1256
        %v1259 = vsel %vm1257, 1, 0
        %v1260 = vsel %vm1258, 1, 0
        %vm1261 = vcmp.eq.s32.totalorder %v1259, 1
        %vm1262 = vcmp.eq.s32.totalorder %v1260, 1
        %v1263 = vsel %vm1261, %v1249, 0.0
        %v1264 = vsel %vm1262, %v1250, 0.0
        %v1265 = vpack.c.bf16 %v1264, %v1263
        %s1266 = scalar_lea.vmem %s7, 112
        %v1267 = vld [vmem:[%s1266] sm:$0xf]
        %v1268 = vld [vmem:[%s1266 + $0x4] sm:$0xf]
        %v1269 = vld [vmem:[%s1266 + $0x8] sm:$0xf]
        %v1270 = vld [vmem:[%s1266 + $0xc] sm:$0xf]
        %v1275 = vunpack.c.l.b16 %v1267
        %v1276 = vunpack.c.l.b16 %v1268
        %v1277 = vunpack.c.l.b16 %v1269
        %v1278 = vunpack.c.l.b16 %v1270
        %v1279 = vpack.c.b16 %v1276, %v1275
        %v1280 = vpack.c.b16 %v1278, %v1277
        %v1284 = vsel %vm926, %v1265, 0
        %1286 = vmatpush.bf16.msra.mxu0 0
        %1287 = vmatpush.bf16.msra.mxu0 0
        %1288 = vmatpush.bf16.msra.mxu0 0
        %1289 = vmatpush.bf16.msra.mxu0 0
        %1290 = vmatpush.bf16.msra.mxu0 0
        %1291 = vmatpush.bf16.msra.mxu0 0
        %1292 = vmatpush.bf16.msra.mxu0 %v1280
        %1293 = vmatpush.bf16.msra.mxu0 %v1279
        %1294 = vmatmul.bf16.gmra.mxu0 %v1284
        %v1295 = vpop.f32.mrf.mxu0
        %v1296 = vadd.f32 0.0, %v1295
        %v1297 = vpop.f32.mrf.mxu0
        %v1298 = vadd.f32 0.0, %v1297
        %1299 = vdwg.mxu0
        %v1300 = vadd.f32 %v1244, %v1296
        %v1301 = vadd.f32 %v1245, %v1298
        %v1302 = vld [vmem:[%s8] sm:$0x1]
        %v1304 = vperm.slane %v1302, 0
        %v1306 = vadd.f32 %v1300, %v1304
        %v1307 = vadd.f32 %v1301, %v1304
        %v1308 = vmul.f32 %v1306, 0.5
        %v1309 = vmul.f32 %v1307, 0.5
        %v1310 = vmul.f32 %v1306, 0.044715
        %v1311 = vmul.f32 %v1307, 0.044715
        %v1312 = vmul.f32 %v1310, %v1306
        %v1313 = vmul.f32 %v1311, %v1307
        %v1314 = vmul.f32 %v1312, %v1306
        %v1315 = vmul.f32 %v1313, %v1307
        %v1316 = vadd.f32 %v1306, %v1314
        %v1317 = vadd.f32 %v1307, %v1315
        %v1318 = vmul.f32 %v1316, 0.7978846
        %v1319 = vmul.f32 %v1317, 0.7978846
        %v1320 = vtanh.pop %v1318
        %v1321 = vtanh.pop %v1319
        %v1322 = vadd.f32 %v1320, 1.0
        %v1323 = vadd.f32 %v1321, 1.0
        %v1324 = vmul.f32 %v1308, %v1322
        %v1325 = vmul.f32 %v1309, %v1323
        %v1326 = vadd.f32 %v860, %v1324
        %v1327 = vadd.f32 %v861, %v1325
        %v1328 = vld [vmem:[%s9] sm:$0x1]
        %v1329 = vld [vmem:[%s10] sm:$0x1]
        %v1330 = vsel %vm926, %v1326, 0.0
        %1331 = vadd.xlane.f32.xlu0 %v1330
        %v1332 = vpop.xlane.xlu0 %1331
        %v1333 = vsel %vm926, %v1327, 0.0
        %1334 = vadd.xlane.f32.xlu0 %v1333
        %v1335 = vpop.xlane.xlu0 %1334
        %v1336 = vrcp.pop 32.0
        %v1337 = vmul.f32 32.0, %v1336
        %v1338 = vsub.f32 1.0, %v1337
        %v1339 = vmul.f32 %v1336, %v1338
        %v1340 = vadd.f32 %v1336, %v1339
        %vm1341 = vweird.f32 %v1336
        %v1342 = vsel %vm1341, %v1336, %v1340
        %v1343 = vmul.f32 %v1332, %v1342
        %v1344 = vmul.f32 %v1335, %v1342
        %v1345 = vsub.f32 %v1326, %v1343
        %v1346 = vsub.f32 %v1327, %v1344
        %v1347 = vmul.f32 %v1345, %v1345
        %v1348 = vmul.f32 %v1346, %v1346
        %v1349 = vsel %vm926, %v1347, 0.0
        %1350 = vadd.xlane.f32.xlu0 %v1349
        %v1351 = vpop.xlane.xlu0 %1350
        %v1352 = vsel %vm926, %v1348, 0.0
        %1353 = vadd.xlane.f32.xlu0 %v1352
        %v1354 = vpop.xlane.xlu0 %1353
        %v1355 = vmul.f32 %v1351, %v1342
        %v1356 = vmul.f32 %v1354, %v1342
        %v1357 = vadd.f32 %v1355, 1e-05
        %v1358 = vadd.f32 %v1356, 1e-05
        %v1359 = vrsqrt.pop %v1357
        %v1360 = vmul.f32 %v1359, %v1357
        %v1361 = vmul.f32 %v1360, %v1359
        %v1362 = vmul.f32 0.5, %v1361
        %v1363 = vsub.f32 1.5, %v1362
        %v1364 = vmul.f32 %v1359, %v1363
        %vm1365 = vweird.f32 %v1357
        %vm1366 = vweird.f32 %v1359
        %vm1367 = vmor %vm1365, %vm1366
        %v1368 = vsel %vm1367, %v1359, %v1364
        %v1369 = vrsqrt.pop %v1358
        %v1370 = vmul.f32 %v1369, %v1358
        %v1371 = vmul.f32 %v1370, %v1369
        %v1372 = vmul.f32 0.5, %v1371
        %v1373 = vsub.f32 1.5, %v1372
        %v1374 = vmul.f32 %v1369, %v1373
        %vm1375 = vweird.f32 %v1358
        %vm1376 = vweird.f32 %v1369
        %vm1377 = vmor %vm1375, %vm1376
        %v1378 = vsel %vm1377, %v1369, %v1374
        %v1379 = vmul.f32 %v1345, %v1368
        %v1380 = vmul.f32 %v1346, %v1378
        %v1382 = vperm.slane %v1328, 0
        %v1384 = vmul.f32 %v1379, %v1382
        %v1385 = vmul.f32 %v1380, %v1382
        %v1387 = vperm.slane %v1329, 0
        %v1389 = vadd.f32 %v1384, %v1387
        %v1390 = vadd.f32 %v1385, %v1387
        %v1391 = vld [vmem:[%s742] sm:$0x1]
        %v1392 = vpack.c.bf16 %v1390, %v1389
        %v1393 = vld [vmem:[%s11] sm:$0xf]
        %v1394 = vld [vmem:[%s11 + $0x4] sm:$0xf]
        %v1395 = vld [vmem:[%s11 + $0x8] sm:$0xf]
        %v1396 = vld [vmem:[%s11 + $0xc] sm:$0xf]
        %v1397 = vld [vmem:[%s12] sm:$0x1]
        %v1399 = vperm.slane %v1397, 0
        %v1405 = vunpack.c.l.b16 %v1393
        %v1406 = vunpack.c.l.b16 %v1394
        %v1407 = vunpack.c.l.b16 %v1395
        %v1408 = vunpack.c.l.b16 %v1396
        %v1409 = vpack.c.b16 %v1406, %v1405
        %v1410 = vpack.c.b16 %v1408, %v1407
        %v1414 = vsel %vm926, %v1392, 0
        %1416 = vmatpush.bf16.msra.mxu0 0
        %1417 = vmatpush.bf16.msra.mxu0 0
        %1418 = vmatpush.bf16.msra.mxu0 0
        %1419 = vmatpush.bf16.msra.mxu0 0
        %1420 = vmatpush.bf16.msra.mxu0 0
        %1421 = vmatpush.bf16.msra.mxu0 0
        %1422 = vmatpush.bf16.msra.mxu0 %v1410
        %1423 = vmatpush.bf16.msra.mxu0 %v1409
        %1424 = vmatmul.bf16.gmra.mxu0 %v1414
        %v1425 = vpop.f32.mrf.mxu0
        %v1426 = vadd.f32 %v1399, %v1425
        %v1427 = vpop.f32.mrf.mxu0
        %v1428 = vadd.f32 %v1399, %v1427
        %1429 = vdwg.mxu0
        %v1430 = vmul.f32 %v1426, 0.35355338
        %v1431 = vmul.f32 %v1428, 0.35355338
        %s1432 = scalar_lea.vmem %s11, 64
        %v1433 = vld [vmem:[%s1432] sm:$0xf]
        %v1434 = vld [vmem:[%s1432 + $0x4] sm:$0xf]
        %v1435 = vld [vmem:[%s1432 + $0x8] sm:$0xf]
        %v1436 = vld [vmem:[%s1432 + $0xc] sm:$0xf]
        %s1437 = scalar_lea.vmem %s12, 4
        %v1438 = vld [vmem:[%s1437] sm:$0x1]
        %v1440 = vperm.slane %v1438, 0
        %v1446 = vunpack.c.l.b16 %v1433
        %v1447 = vunpack.c.l.b16 %v1434
        %v1448 = vunpack.c.l.b16 %v1435
        %v1449 = vunpack.c.l.b16 %v1436
        %v1450 = vpack.c.b16 %v1447, %v1446
        %v1451 = vpack.c.b16 %v1449, %v1448
        %1454 = vmatpush.bf16.msra.mxu0 0
        %1455 = vmatpush.bf16.msra.mxu0 0
        %1456 = vmatpush.bf16.msra.mxu0 0
        %1457 = vmatpush.bf16.msra.mxu0 0
        %1458 = vmatpush.bf16.msra.mxu0 0
        %1459 = vmatpush.bf16.msra.mxu0 0
        %1460 = vmatpush.bf16.msra.mxu0 %v1451
        %1461 = vmatpush.bf16.msra.mxu0 %v1450
        %1462 = vmatmul.bf16.gmra.mxu0 %v1414
        %v1463 = vpop.f32.mrf.mxu0
        %v1464 = vadd.f32 %v1440, %v1463
        %v1465 = vpop.f32.mrf.mxu0
        %v1466 = vadd.f32 %v1440, %v1465
        %1467 = vdwg.mxu0
        %s1468 = scalar_lea.vmem %s11, 128
        %v1469 = vld [vmem:[%s1468] sm:$0xf]
        %v1470 = vld [vmem:[%s1468 + $0x4] sm:$0xf]
        %v1471 = vld [vmem:[%s1468 + $0x8] sm:$0xf]
        %v1472 = vld [vmem:[%s1468 + $0xc] sm:$0xf]
        %s1473 = scalar_lea.vmem %s12, 8
        %v1474 = vld [vmem:[%s1473] sm:$0x1]
        %v1476 = vperm.slane %v1474, 0
        %v1482 = vunpack.c.l.b16 %v1469
        %v1483 = vunpack.c.l.b16 %v1470
        %v1484 = vunpack.c.l.b16 %v1471
        %v1485 = vunpack.c.l.b16 %v1472
        %v1486 = vpack.c.b16 %v1483, %v1482
        %v1487 = vpack.c.b16 %v1485, %v1484
        %1490 = vmatpush.bf16.msra.mxu0 0
        %1491 = vmatpush.bf16.msra.mxu0 0
        %1492 = vmatpush.bf16.msra.mxu0 0
        %1493 = vmatpush.bf16.msra.mxu0 0
        %1494 = vmatpush.bf16.msra.mxu0 0
        %1495 = vmatpush.bf16.msra.mxu0 0
        %1496 = vmatpush.bf16.msra.mxu0 %v1487
        %1497 = vmatpush.bf16.msra.mxu0 %v1486
        %1498 = vmatmul.bf16.gmra.mxu0 %v1414
        %v1499 = vpop.f32.mrf.mxu0
        %v1500 = vadd.f32 %v1476, %v1499
        %v1501 = vpop.f32.mrf.mxu0
        %v1502 = vadd.f32 %v1476, %v1501
        %1503 = vdwg.mxu0
        %v1504 = vpack.c.bf16 %v1431, %v1430
        %v1505 = vpack.c.bf16 %v1466, %v1464
        %v1507 = vperm.slane %v1391, 0
        %vm1509 = vcmask 64512
        %v1511 = vsel %vm1509, %v1504, 0
        %v1514 = vsel %vm1509, %v1505, 0
        %1516 = vmatpush.bf16.xpose.msra.mxu0 0
        %1517 = vmatpush.bf16.xpose.msra.mxu0 0
        %1518 = vmatpush.bf16.xpose.msra.mxu0 0
        %1519 = vmatpush.bf16.xpose.msra.mxu0 0
        %1520 = vmatpush.bf16.xpose.msra.mxu0 0
        %1521 = vmatpush.bf16.xpose.msra.mxu0 0
        %1522 = vmatpush.bf16.xpose.msra.mxu0 0
        %1523 = vmatpush.bf16.xpose.msra.mxu0 %v1514
        %1524 = vmatmul.bf16.gmra.mxu0 %v1511
        %v1525 = vpop.f32.mrf.mxu0
        %v1526 = vadd.f32 %v1507, %v1525
        %v1527 = vpop.f32.mrf.mxu0
        %v1528 = vadd.f32 %v1507, %v1527
        %1529 = vdwg.mxu0
        %vm1530 = vcmask 130048
        %v1531 = vsel %vm1530, %v1526, -inf
        %1532 = vmax.xlane.f32.xlu0 %v1531
        %v1533 = vpop.xlane.xlu0 %1532
        %v1534 = vsel %vm1530, %v1528, -inf
        %1535 = vmax.xlane.f32.xlu0 %v1534
        %v1536 = vpop.xlane.xlu0 %1535
        %v1537 = vsub.f32 %v1526, %v1533
        %v1538 = vsub.f32 %v1528, %v1536
        %v1539 = vmul.f32 %v1537, 1.442695
        %v1540 = vpow.pop %v1539
        %v1541 = vmul.f32 %v1538, 1.442695
        %v1542 = vpow.pop %v1541
        %v1543 = vsel %vm1530, %v1540, 0.0
        %1544 = vadd.xlane.f32.xlu0 %v1543
        %v1545 = vpop.xlane.xlu0 %1544
        %v1546 = vsel %vm1530, %v1542, 0.0
        %1547 = vadd.xlane.f32.xlu0 %v1546
        %v1548 = vpop.xlane.xlu0 %1547
        %v1549 = vrcp.pop %v1545
        %v1550 = vrcp.pop %v1548
        %v1551 = vmul.f32 %v1540, %v1549
        %v1552 = vmul.f32 %v1542, %v1550
        %v1553 = vpack.c.bf16 %v1552, %v1551
        %v1554 = vpack.c.bf16 %v1502, %v1500
        %v1556 = vsel %vm1530, %v1553, 0
        %1558 = vmatpush.bf16.msra.mxu0 0
        %1559 = vmatpush.bf16.msra.mxu0 0
        %1560 = vmatpush.bf16.msra.mxu0 0
        %1561 = vmatpush.bf16.msra.mxu0 0
        %1562 = vmatpush.bf16.msra.mxu0 0
        %1563 = vmatpush.bf16.msra.mxu0 0
        %1564 = vmatpush.bf16.msra.mxu0 0
        %1565 = vmatpush.bf16.msra.mxu0 %v1554
        %1566 = vmatmul.bf16.gmra.mxu0 %v1556
        %v1567 = vpop.f32.mrf.mxu0
        %v1568 = vadd.f32 0.0, %v1567
        %v1569 = vpop.f32.mrf.mxu0
        %v1570 = vadd.f32 0.0, %v1569
        %1571 = vdwg.mxu0
        %s1572 = scalar_lea.vmem %s11, 16
        %v1573 = vld [vmem:[%s1572] sm:$0xf]
        %v1574 = vld [vmem:[%s1572 + $0x4] sm:$0xf]
        %v1575 = vld [vmem:[%s1572 + $0x8] sm:$0xf]
        %v1576 = vld [vmem:[%s1572 + $0xc] sm:$0xf]
        %s1577 = scalar_lea.vmem %s12, 1
        %v1578 = vld [vmem:[%s1577] sm:$0x1]
        %v1580 = vperm.slane %v1578, 0
        %v1586 = vunpack.c.l.b16 %v1573
        %v1587 = vunpack.c.l.b16 %v1574
        %v1588 = vunpack.c.l.b16 %v1575
        %v1589 = vunpack.c.l.b16 %v1576
        %v1590 = vpack.c.b16 %v1587, %v1586
        %v1591 = vpack.c.b16 %v1589, %v1588
        %1594 = vmatpush.bf16.msra.mxu0 0
        %1595 = vmatpush.bf16.msra.mxu0 0
        %1596 = vmatpush.bf16.msra.mxu0 0
        %1597 = vmatpush.bf16.msra.mxu0 0
        %1598 = vmatpush.bf16.msra.mxu0 0
        %1599 = vmatpush.bf16.msra.mxu0 0
        %1600 = vmatpush.bf16.msra.mxu0 %v1591
        %1601 = vmatpush.bf16.msra.mxu0 %v1590
        %1602 = vmatmul.bf16.gmra.mxu0 %v1414
        %v1603 = vpop.f32.mrf.mxu0
        %v1604 = vadd.f32 %v1580, %v1603
        %v1605 = vpop.f32.mrf.mxu0
        %v1606 = vadd.f32 %v1580, %v1605
        %1607 = vdwg.mxu0
        %v1608 = vmul.f32 %v1604, 0.35355338
        %v1609 = vmul.f32 %v1606, 0.35355338
        %s1610 = scalar_lea.vmem %s11, 80
        %v1611 = vld [vmem:[%s1610] sm:$0xf]
        %v1612 = vld [vmem:[%s1610 + $0x4] sm:$0xf]
        %v1613 = vld [vmem:[%s1610 + $0x8] sm:$0xf]
        %v1614 = vld [vmem:[%s1610 + $0xc] sm:$0xf]
        %s1615 = scalar_lea.vmem %s12, 5
        %v1616 = vld [vmem:[%s1615] sm:$0x1]
        %v1618 = vperm.slane %v1616, 0
        %v1624 = vunpack.c.l.b16 %v1611
        %v1625 = vunpack.c.l.b16 %v1612
        %v1626 = vunpack.c.l.b16 %v1613
        %v1627 = vunpack.c.l.b16 %v1614
        %v1628 = vpack.c.b16 %v1625, %v1624
        %v1629 = vpack.c.b16 %v1627, %v1626
        %1632 = vmatpush.bf16.msra.mxu0 0
        %1633 = vmatpush.bf16.msra.mxu0 0
        %1634 = vmatpush.bf16.msra.mxu0 0
        %1635 = vmatpush.bf16.msra.mxu0 0
        %1636 = vmatpush.bf16.msra.mxu0 0
        %1637 = vmatpush.bf16.msra.mxu0 0
        %1638 = vmatpush.bf16.msra.mxu0 %v1629
        %1639 = vmatpush.bf16.msra.mxu0 %v1628
        %1640 = vmatmul.bf16.gmra.mxu0 %v1414
        %v1641 = vpop.f32.mrf.mxu0
        %v1642 = vadd.f32 %v1618, %v1641
        %v1643 = vpop.f32.mrf.mxu0
        %v1644 = vadd.f32 %v1618, %v1643
        %1645 = vdwg.mxu0
        %s1646 = scalar_lea.vmem %s11, 144
        %v1647 = vld [vmem:[%s1646] sm:$0xf]
        %v1648 = vld [vmem:[%s1646 + $0x4] sm:$0xf]
        %v1649 = vld [vmem:[%s1646 + $0x8] sm:$0xf]
        %v1650 = vld [vmem:[%s1646 + $0xc] sm:$0xf]
        %s1651 = scalar_lea.vmem %s12, 9
        %v1652 = vld [vmem:[%s1651] sm:$0x1]
        %v1654 = vperm.slane %v1652, 0
        %v1660 = vunpack.c.l.b16 %v1647
        %v1661 = vunpack.c.l.b16 %v1648
        %v1662 = vunpack.c.l.b16 %v1649
        %v1663 = vunpack.c.l.b16 %v1650
        %v1664 = vpack.c.b16 %v1661, %v1660
        %v1665 = vpack.c.b16 %v1663, %v1662
        %1668 = vmatpush.bf16.msra.mxu0 0
        %1669 = vmatpush.bf16.msra.mxu0 0
        %1670 = vmatpush.bf16.msra.mxu0 0
        %1671 = vmatpush.bf16.msra.mxu0 0
        %1672 = vmatpush.bf16.msra.mxu0 0
        %1673 = vmatpush.bf16.msra.mxu0 0
        %1674 = vmatpush.bf16.msra.mxu0 %v1665
        %1675 = vmatpush.bf16.msra.mxu0 %v1664
        %1676 = vmatmul.bf16.gmra.mxu0 %v1414
        %v1677 = vpop.f32.mrf.mxu0
        %v1678 = vadd.f32 %v1654, %v1677
        %v1679 = vpop.f32.mrf.mxu0
        %v1680 = vadd.f32 %v1654, %v1679
        %1681 = vdwg.mxu0
        %v1682 = vpack.c.bf16 %v1609, %v1608
        %v1683 = vpack.c.bf16 %v1644, %v1642
        %v1685 = vsel %vm1509, %v1682, 0
        %v1688 = vsel %vm1509, %v1683, 0
        %1690 = vmatpush.bf16.xpose.msra.mxu0 0
        %1691 = vmatpush.bf16.xpose.msra.mxu0 0
        %1692 = vmatpush.bf16.xpose.msra.mxu0 0
        %1693 = vmatpush.bf16.xpose.msra.mxu0 0
        %1694 = vmatpush.bf16.xpose.msra.mxu0 0
        %1695 = vmatpush.bf16.xpose.msra.mxu0 0
        %1696 = vmatpush.bf16.xpose.msra.mxu0 0
        %1697 = vmatpush.bf16.xpose.msra.mxu0 %v1688
        %1698 = vmatmul.bf16.gmra.mxu0 %v1685
        %v1699 = vpop.f32.mrf.mxu0
        %v1700 = vadd.f32 %v1507, %v1699
        %v1701 = vpop.f32.mrf.mxu0
        %v1702 = vadd.f32 %v1507, %v1701
        %1703 = vdwg.mxu0
        %v1704 = vsel %vm1530, %v1700, -inf
        %1705 = vmax.xlane.f32.xlu0 %v1704
        %v1706 = vpop.xlane.xlu0 %1705
        %v1707 = vsel %vm1530, %v1702, -inf
        %1708 = vmax.xlane.f32.xlu0 %v1707
        %v1709 = vpop.xlane.xlu0 %1708
        %v1710 = vsub.f32 %v1700, %v1706
        %v1711 = vsub.f32 %v1702, %v1709
        %v1712 = vmul.f32 %v1710, 1.442695
        %v1713 = vpow.pop %v1712
        %v1714 = vmul.f32 %v1711, 1.442695
        %v1715 = vpow.pop %v1714
        %v1716 = vsel %vm1530, %v1713, 0.0
        %1717 = vadd.xlane.f32.xlu0 %v1716
        %v1718 = vpop.xlane.xlu0 %1717
        %v1719 = vsel %vm1530, %v1715, 0.0
        %1720 = vadd.xlane.f32.xlu0 %v1719
        %v1721 = vpop.xlane.xlu0 %1720
        %v1722 = vrcp.pop %v1718
        %v1723 = vrcp.pop %v1721
        %v1724 = vmul.f32 %v1713, %v1722
        %v1725 = vmul.f32 %v1715, %v1723
        %v1726 = vpack.c.bf16 %v1725, %v1724
        %v1727 = vpack.c.bf16 %v1680, %v1678
        %v1729 = vsel %vm1530, %v1726, 0
        %1731 = vmatpush.bf16.msra.mxu0 0
        %1732 = vmatpush.bf16.msra.mxu0 0
        %1733 = vmatpush.bf16.msra.mxu0 0
        %1734 = vmatpush.bf16.msra.mxu0 0
        %1735 = vmatpush.bf16.msra.mxu0 0
        %1736 = vmatpush.bf16.msra.mxu0 0
        %1737 = vmatpush.bf16.msra.mxu0 0
        %1738 = vmatpush.bf16.msra.mxu0 %v1727
        %1739 = vmatmul.bf16.gmra.mxu0 %v1729
        %v1740 = vpop.f32.mrf.mxu0
        %v1741 = vadd.f32 0.0, %v1740
        %v1742 = vpop.f32.mrf.mxu0
        %v1743 = vadd.f32 0.0, %v1742
        %1744 = vdwg.mxu0
        %s1745 = scalar_lea.vmem %s11, 32
        %v1746 = vld [vmem:[%s1745] sm:$0xf]
        %v1747 = vld [vmem:[%s1745 + $0x4] sm:$0xf]
        %v1748 = vld [vmem:[%s1745 + $0x8] sm:$0xf]
        %v1749 = vld [vmem:[%s1745 + $0xc] sm:$0xf]
        %s1750 = scalar_lea.vmem %s12, 2
        %v1751 = vld [vmem:[%s1750] sm:$0x1]
        %v1753 = vperm.slane %v1751, 0
        %v1759 = vunpack.c.l.b16 %v1746
        %v1760 = vunpack.c.l.b16 %v1747
        %v1761 = vunpack.c.l.b16 %v1748
        %v1762 = vunpack.c.l.b16 %v1749
        %v1763 = vpack.c.b16 %v1760, %v1759
        %v1764 = vpack.c.b16 %v1762, %v1761
        %1767 = vmatpush.bf16.msra.mxu0 0
        %1768 = vmatpush.bf16.msra.mxu0 0
        %1769 = vmatpush.bf16.msra.mxu0 0
        %1770 = vmatpush.bf16.msra.mxu0 0
        %1771 = vmatpush.bf16.msra.mxu0 0
        %1772 = vmatpush.bf16.msra.mxu0 0
        %1773 = vmatpush.bf16.msra.mxu0 %v1764
        %1774 = vmatpush.bf16.msra.mxu0 %v1763
        %1775 = vmatmul.bf16.gmra.mxu0 %v1414
        %v1776 = vpop.f32.mrf.mxu0
        %v1777 = vadd.f32 %v1753, %v1776
        %v1778 = vpop.f32.mrf.mxu0
        %v1779 = vadd.f32 %v1753, %v1778
        %1780 = vdwg.mxu0
        %v1781 = vmul.f32 %v1777, 0.35355338
        %v1782 = vmul.f32 %v1779, 0.35355338
        %s1783 = scalar_lea.vmem %s11, 96
        %v1784 = vld [vmem:[%s1783] sm:$0xf]
        %v1785 = vld [vmem:[%s1783 + $0x4] sm:$0xf]
        %v1786 = vld [vmem:[%s1783 + $0x8] sm:$0xf]
        %v1787 = vld [vmem:[%s1783 + $0xc] sm:$0xf]
        %s1788 = scalar_lea.vmem %s12, 6
        %v1789 = vld [vmem:[%s1788] sm:$0x1]
        %v1791 = vperm.slane %v1789, 0
        %v1797 = vunpack.c.l.b16 %v1784
        %v1798 = vunpack.c.l.b16 %v1785
        %v1799 = vunpack.c.l.b16 %v1786
        %v1800 = vunpack.c.l.b16 %v1787
        %v1801 = vpack.c.b16 %v1798, %v1797
        %v1802 = vpack.c.b16 %v1800, %v1799
        %1805 = vmatpush.bf16.msra.mxu0 0
        %1806 = vmatpush.bf16.msra.mxu0 0
        %1807 = vmatpush.bf16.msra.mxu0 0
        %1808 = vmatpush.bf16.msra.mxu0 0
        %1809 = vmatpush.bf16.msra.mxu0 0
        %1810 = vmatpush.bf16.msra.mxu0 0
        %1811 = vmatpush.bf16.msra.mxu0 %v1802
        %1812 = vmatpush.bf16.msra.mxu0 %v1801
        %1813 = vmatmul.bf16.gmra.mxu0 %v1414
        %v1814 = vpop.f32.mrf.mxu0
        %v1815 = vadd.f32 %v1791, %v1814
        %v1816 = vpop.f32.mrf.mxu0
        %v1817 = vadd.f32 %v1791, %v1816
        %1818 = vdwg.mxu0
        %s1819 = scalar_lea.vmem %s11, 160
        %v1820 = vld [vmem:[%s1819] sm:$0xf]
        %v1821 = vld [vmem:[%s1819 + $0x4] sm:$0xf]
        %v1822 = vld [vmem:[%s1819 + $0x8] sm:$0xf]
        %v1823 = vld [vmem:[%s1819 + $0xc] sm:$0xf]
        %s1824 = scalar_lea.vmem %s12, 10
        %v1825 = vld [vmem:[%s1824] sm:$0x1]
        %v1827 = vperm.slane %v1825, 0
        %v1833 = vunpack.c.l.b16 %v1820
        %v1834 = vunpack.c.l.b16 %v1821
        %v1835 = vunpack.c.l.b16 %v1822
        %v1836 = vunpack.c.l.b16 %v1823
        %v1837 = vpack.c.b16 %v1834, %v1833
        %v1838 = vpack.c.b16 %v1836, %v1835
        %1841 = vmatpush.bf16.msra.mxu0 0
        %1842 = vmatpush.bf16.msra.mxu0 0
        %1843 = vmatpush.bf16.msra.mxu0 0
        %1844 = vmatpush.bf16.msra.mxu0 0
        %1845 = vmatpush.bf16.msra.mxu0 0
        %1846 = vmatpush.bf16.msra.mxu0 0
        %1847 = vmatpush.bf16.msra.mxu0 %v1838
        %1848 = vmatpush.bf16.msra.mxu0 %v1837
        %1849 = vmatmul.bf16.gmra.mxu0 %v1414
        %v1850 = vpop.f32.mrf.mxu0
        %v1851 = vadd.f32 %v1827, %v1850
        %v1852 = vpop.f32.mrf.mxu0
        %v1853 = vadd.f32 %v1827, %v1852
        %1854 = vdwg.mxu0
        %v1855 = vpack.c.bf16 %v1782, %v1781
        %v1856 = vpack.c.bf16 %v1817, %v1815
        %v1858 = vsel %vm1509, %v1855, 0
        %v1861 = vsel %vm1509, %v1856, 0
        %1863 = vmatpush.bf16.xpose.msra.mxu0 0
        %1864 = vmatpush.bf16.xpose.msra.mxu0 0
        %1865 = vmatpush.bf16.xpose.msra.mxu0 0
        %1866 = vmatpush.bf16.xpose.msra.mxu0 0
        %1867 = vmatpush.bf16.xpose.msra.mxu0 0
        %1868 = vmatpush.bf16.xpose.msra.mxu0 0
        %1869 = vmatpush.bf16.xpose.msra.mxu0 0
        %1870 = vmatpush.bf16.xpose.msra.mxu0 %v1861
        %1871 = vmatmul.bf16.gmra.mxu0 %v1858
        %v1872 = vpop.f32.mrf.mxu0
        %v1873 = vadd.f32 %v1507, %v1872
        %v1874 = vpop.f32.mrf.mxu0
        %v1875 = vadd.f32 %v1507, %v1874
        %1876 = vdwg.mxu0
        %v1877 = vsel %vm1530, %v1873, -inf
        %1878 = vmax.xlane.f32.xlu0 %v1877
        %v1879 = vpop.xlane.xlu0 %1878
        %v1880 = vsel %vm1530, %v1875, -inf
        %1881 = vmax.xlane.f32.xlu0 %v1880
        %v1882 = vpop.xlane.xlu0 %1881
        %v1883 = vsub.f32 %v1873, %v1879
        %v1884 = vsub.f32 %v1875, %v1882
        %v1885 = vmul.f32 %v1883, 1.442695
        %v1886 = vpow.pop %v1885
        %v1887 = vmul.f32 %v1884, 1.442695
        %v1888 = vpow.pop %v1887
        %v1889 = vsel %vm1530, %v1886, 0.0
        %1890 = vadd.xlane.f32.xlu0 %v1889
        %v1891 = vpop.xlane.xlu0 %1890
        %v1892 = vsel %vm1530, %v1888, 0.0
        %1893 = vadd.xlane.f32.xlu0 %v1892
        %v1894 = vpop.xlane.xlu0 %1893
        %v1895 = vrcp.pop %v1891
        %v1896 = vrcp.pop %v1894
        %v1897 = vmul.f32 %v1886, %v1895
        %v1898 = vmul.f32 %v1888, %v1896
        %v1899 = vpack.c.bf16 %v1898, %v1897
        %v1900 = vpack.c.bf16 %v1853, %v1851
        %v1902 = vsel %vm1530, %v1899, 0
        %1904 = vmatpush.bf16.msra.mxu0 0
        %1905 = vmatpush.bf16.msra.mxu0 0
        %1906 = vmatpush.bf16.msra.mxu0 0
        %1907 = vmatpush.bf16.msra.mxu0 0
        %1908 = vmatpush.bf16.msra.mxu0 0
        %1909 = vmatpush.bf16.msra.mxu0 0
        %1910 = vmatpush.bf16.msra.mxu0 0
        %1911 = vmatpush.bf16.msra.mxu0 %v1900
        %1912 = vmatmul.bf16.gmra.mxu0 %v1902
        %v1913 = vpop.f32.mrf.mxu0
        %v1914 = vadd.f32 0.0, %v1913
        %v1915 = vpop.f32.mrf.mxu0
        %v1916 = vadd.f32 0.0, %v1915
        %1917 = vdwg.mxu0
        %s1918 = scalar_lea.vmem %s11, 48
        %v1919 = vld [vmem:[%s1918] sm:$0xf]
        %v1920 = vld [vmem:[%s1918 + $0x4] sm:$0xf]
        %v1921 = vld [vmem:[%s1918 + $0x8] sm:$0xf]
        %v1922 = vld [vmem:[%s1918 + $0xc] sm:$0xf]
        %s1923 = scalar_lea.vmem %s12, 3
        %v1924 = vld [vmem:[%s1923] sm:$0x1]
        %v1926 = vperm.slane %v1924, 0
        %v1932 = vunpack.c.l.b16 %v1919
        %v1933 = vunpack.c.l.b16 %v1920
        %v1934 = vunpack.c.l.b16 %v1921
        %v1935 = vunpack.c.l.b16 %v1922
        %v1936 = vpack.c.b16 %v1933, %v1932
        %v1937 = vpack.c.b16 %v1935, %v1934
        %1940 = vmatpush.bf16.msra.mxu0 0
        %1941 = vmatpush.bf16.msra.mxu0 0
        %1942 = vmatpush.bf16.msra.mxu0 0
        %1943 = vmatpush.bf16.msra.mxu0 0
        %1944 = vmatpush.bf16.msra.mxu0 0
        %1945 = vmatpush.bf16.msra.mxu0 0
        %1946 = vmatpush.bf16.msra.mxu0 %v1937
        %1947 = vmatpush.bf16.msra.mxu0 %v1936
        %1948 = vmatmul.bf16.gmra.mxu0 %v1414
        %v1949 = vpop.f32.mrf.mxu0
        %v1950 = vadd.f32 %v1926, %v1949
        %v1951 = vpop.f32.mrf.mxu0
        %v1952 = vadd.f32 %v1926, %v1951
        %1953 = vdwg.mxu0
        %v1954 = vmul.f32 %v1950, 0.35355338
        %v1955 = vmul.f32 %v1952, 0.35355338
        %s1956 = scalar_lea.vmem %s11, 112
        %v1957 = vld [vmem:[%s1956] sm:$0xf]
        %v1958 = vld [vmem:[%s1956 + $0x4] sm:$0xf]
        %v1959 = vld [vmem:[%s1956 + $0x8] sm:$0xf]
        %v1960 = vld [vmem:[%s1956 + $0xc] sm:$0xf]
        %s1961 = scalar_lea.vmem %s12, 7
        %v1962 = vld [vmem:[%s1961] sm:$0x1]
        %v1964 = vperm.slane %v1962, 0
        %v1970 = vunpack.c.l.b16 %v1957
        %v1971 = vunpack.c.l.b16 %v1958
        %v1972 = vunpack.c.l.b16 %v1959
        %v1973 = vunpack.c.l.b16 %v1960
        %v1974 = vpack.c.b16 %v1971, %v1970
        %v1975 = vpack.c.b16 %v1973, %v1972
        %1978 = vmatpush.bf16.msra.mxu0 0
        %1979 = vmatpush.bf16.msra.mxu0 0
        %1980 = vmatpush.bf16.msra.mxu0 0
        %1981 = vmatpush.bf16.msra.mxu0 0
        %1982 = vmatpush.bf16.msra.mxu0 0
        %1983 = vmatpush.bf16.msra.mxu0 0
        %1984 = vmatpush.bf16.msra.mxu0 %v1975
        %1985 = vmatpush.bf16.msra.mxu0 %v1974
        %1986 = vmatmul.bf16.gmra.mxu0 %v1414
        %v1987 = vpop.f32.mrf.mxu0
        %v1988 = vadd.f32 %v1964, %v1987
        %v1989 = vpop.f32.mrf.mxu0
        %v1990 = vadd.f32 %v1964, %v1989
        %1991 = vdwg.mxu0
        %s1992 = scalar_lea.vmem %s11, 176
        %v1993 = vld [vmem:[%s1992] sm:$0xf]
        %v1994 = vld [vmem:[%s1992 + $0x4] sm:$0xf]
        %v1995 = vld [vmem:[%s1992 + $0x8] sm:$0xf]
        %v1996 = vld [vmem:[%s1992 + $0xc] sm:$0xf]
        %s1997 = scalar_lea.vmem %s12, 11
        %v1998 = vld [vmem:[%s1997] sm:$0x1]
        %v2000 = vperm.slane %v1998, 0
        %v2006 = vunpack.c.l.b16 %v1993
        %v2007 = vunpack.c.l.b16 %v1994
        %v2008 = vunpack.c.l.b16 %v1995
        %v2009 = vunpack.c.l.b16 %v1996
        %v2010 = vpack.c.b16 %v2007, %v2006
        %v2011 = vpack.c.b16 %v2009, %v2008
        %2014 = vmatpush.bf16.msra.mxu0 0
        %2015 = vmatpush.bf16.msra.mxu0 0
        %2016 = vmatpush.bf16.msra.mxu0 0
        %2017 = vmatpush.bf16.msra.mxu0 0
        %2018 = vmatpush.bf16.msra.mxu0 0
        %2019 = vmatpush.bf16.msra.mxu0 0
        %2020 = vmatpush.bf16.msra.mxu0 %v2011
        %2021 = vmatpush.bf16.msra.mxu0 %v2010
        %2022 = vmatmul.bf16.gmra.mxu0 %v1414
        %v2023 = vpop.f32.mrf.mxu0
        %v2024 = vadd.f32 %v2000, %v2023
        %v2025 = vpop.f32.mrf.mxu0
        %v2026 = vadd.f32 %v2000, %v2025
        %2027 = vdwg.mxu0
        %v2028 = vpack.c.bf16 %v1955, %v1954
        %v2029 = vpack.c.bf16 %v1990, %v1988
        %v2031 = vsel %vm1509, %v2028, 0
        %v2034 = vsel %vm1509, %v2029, 0
        %2036 = vmatpush.bf16.xpose.msra.mxu0 0
        %2037 = vmatpush.bf16.xpose.msra.mxu0 0
        %2038 = vmatpush.bf16.xpose.msra.mxu0 0
        %2039 = vmatpush.bf16.xpose.msra.mxu0 0
        %2040 = vmatpush.bf16.xpose.msra.mxu0 0
        %2041 = vmatpush.bf16.xpose.msra.mxu0 0
        %2042 = vmatpush.bf16.xpose.msra.mxu0 0
        %2043 = vmatpush.bf16.xpose.msra.mxu0 %v2034
        %2044 = vmatmul.bf16.gmra.mxu0 %v2031
        %v2045 = vpop.f32.mrf.mxu0
        %v2046 = vadd.f32 %v1507, %v2045
        %v2047 = vpop.f32.mrf.mxu0
        %v2048 = vadd.f32 %v1507, %v2047
        %2049 = vdwg.mxu0
        %v2050 = vsel %vm1530, %v2046, -inf
        %2051 = vmax.xlane.f32.xlu0 %v2050
        %v2052 = vpop.xlane.xlu0 %2051
        %v2053 = vsel %vm1530, %v2048, -inf
        %2054 = vmax.xlane.f32.xlu0 %v2053
        %v2055 = vpop.xlane.xlu0 %2054
        %v2056 = vsub.f32 %v2046, %v2052
        %v2057 = vsub.f32 %v2048, %v2055
        %v2058 = vmul.f32 %v2056, 1.442695
        %v2059 = vpow.pop %v2058
        %v2060 = vmul.f32 %v2057, 1.442695
        %v2061 = vpow.pop %v2060
        %v2062 = vsel %vm1530, %v2059, 0.0
        %2063 = vadd.xlane.f32.xlu0 %v2062
        %v2064 = vpop.xlane.xlu0 %2063
        %v2065 = vsel %vm1530, %v2061, 0.0
        %2066 = vadd.xlane.f32.xlu0 %v2065
        %v2067 = vpop.xlane.xlu0 %2066
        %v2068 = vrcp.pop %v2064
        %v2069 = vrcp.pop %v2067
        %v2070 = vmul.f32 %v2059, %v2068
        %v2071 = vmul.f32 %v2061, %v2069
        %v2072 = vpack.c.bf16 %v2071, %v2070
        %v2073 = vpack.c.bf16 %v2026, %v2024
        %v2075 = vsel %vm1530, %v2072, 0
        %2077 = vmatpush.bf16.msra.mxu0 0
        %2078 = vmatpush.bf16.msra.mxu0 0
        %2079 = vmatpush.bf16.msra.mxu0 0
        %2080 = vmatpush.bf16.msra.mxu0 0
        %2081 = vmatpush.bf16.msra.mxu0 0
        %2082 = vmatpush.bf16.msra.mxu0 0
        %2083 = vmatpush.bf16.msra.mxu0 0
        %2084 = vmatpush.bf16.msra.mxu0 %v2073
        %2085 = vmatmul.bf16.gmra.mxu0 %v2075
        %v2086 = vpop.f32.mrf.mxu0
        %v2087 = vadd.f32 0.0, %v2086
        %v2088 = vpop.f32.mrf.mxu0
        %v2089 = vadd.f32 0.0, %v2088
        %2090 = vdwg.mxu0
        %2093 = vrot.lane.b32.xlu0 %v1741, 8
        %v2094 = vpop.permute.xlu0 %2093
        %2095 = vrot.lane.b32.xlu0 %v1743, 8
        %v2096 = vpop.permute.xlu0 %2095
        %2101 = vrot.lane.b32.xlu0 %v1914, 16
        %v2102 = vpop.permute.xlu0 %2101
        %2103 = vrot.lane.b32.xlu0 %v1916, 16
        %v2104 = vpop.permute.xlu0 %2103
        %2109 = vrot.lane.b32.xlu0 %v2087, 24
        %v2110 = vpop.permute.xlu0 %2109
        %2111 = vrot.lane.b32.xlu0 %v2089, 24
        %v2112 = vpop.permute.xlu0 %2111
        %v2115 = vsel %vm1509, %v1568, %v2094
        %v2116 = vsel %vm1509, %v1570, %v2096
        %v2117 = vsel %vm1530, %v2115, %v2102
        %v2118 = vsel %vm1530, %v2116, %v2104
        %v2119 = vsel %vm748, %v2117, %v2110
        %v2120 = vsel %vm748, %v2118, %v2112
        %v2121 = vpack.c.bf16 %v2120, %v2119
        %v2122 = vld [vmem:[%s13] sm:$0xf]
        %v2123 = vld [vmem:[%s13 + $0x4] sm:$0xf]
        %v2124 = vld [vmem:[%s13 + $0x8] sm:$0xf]
        %v2125 = vld [vmem:[%s13 + $0xc] sm:$0xf]
        %v2126 = vld [vmem:[%s14] sm:$0x1]
        %v2128 = vperm.slane %v2126, 0
        %v2134 = vunpack.c.l.b16 %v2122
        %v2135 = vunpack.c.l.b16 %v2123
        %v2136 = vunpack.c.l.b16 %v2124
        %v2137 = vunpack.c.l.b16 %v2125
        %v2138 = vpack.c.b16 %v2135, %v2134
        %v2139 = vpack.c.b16 %v2137, %v2136
        %v2143 = vsel %vm926, %v2121, 0
        %2145 = vmatpush.bf16.msra.mxu0 0
        %2146 = vmatpush.bf16.msra.mxu0 0
        %2147 = vmatpush.bf16.msra.mxu0 0
        %2148 = vmatpush.bf16.msra.mxu0 0
        %2149 = vmatpush.bf16.msra.mxu0 0
        %2150 = vmatpush.bf16.msra.mxu0 0
        %2151 = vmatpush.bf16.msra.mxu0 %v2139
        %2152 = vmatpush.bf16.msra.mxu0 %v2138
        %2153 = vmatmul.bf16.gmra.mxu0 %v2143
        %v2154 = vpop.f32.mrf.mxu0
        %v2155 = vadd.f32 %v2128, %v2154
        %v2156 = vpop.f32.mrf.mxu0
        %v2157 = vadd.f32 %v2128, %v2156
        %2158 = vdwg.mxu0
        %v2159 = vadd.f32 %v1389, %v2155
        %v2160 = vadd.f32 %v1390, %v2157
        %v2161 = vld [vmem:[%s15] sm:$0x1]
        %v2162 = vld [vmem:[%s16] sm:$0x1]
        %v2163 = vsel %vm926, %v2159, 0.0
        %2164 = vadd.xlane.f32.xlu0 %v2163
        %v2165 = vpop.xlane.xlu0 %2164
        %v2166 = vsel %vm926, %v2160, 0.0
        %2167 = vadd.xlane.f32.xlu0 %v2166
        %v2168 = vpop.xlane.xlu0 %2167
        %v2169 = vmul.f32 %v2165, %v1342
        %v2170 = vmul.f32 %v2168, %v1342
        %v2171 = vsub.f32 %v2159, %v2169
        %v2172 = vsub.f32 %v2160, %v2170
        %v2173 = vmul.f32 %v2171, %v2171
        %v2174 = vmul.f32 %v2172, %v2172
        %v2175 = vsel %vm926, %v2173, 0.0
        %2176 = vadd.xlane.f32.xlu0 %v2175
        %v2177 = vpop.xlane.xlu0 %2176
        %v2178 = vsel %vm926, %v2174, 0.0
        %2179 = vadd.xlane.f32.xlu0 %v2178
        %v2180 = vpop.xlane.xlu0 %2179
        %v2181 = vmul.f32 %v2177, %v1342
        %v2182 = vmul.f32 %v2180, %v1342
        %v2183 = vadd.f32 %v2181, 1e-05
        %v2184 = vadd.f32 %v2182, 1e-05
        %v2185 = vrsqrt.pop %v2183
        %v2186 = vmul.f32 %v2185, %v2183
        %v2187 = vmul.f32 %v2186, %v2185
        %v2188 = vmul.f32 0.5, %v2187
        %v2189 = vsub.f32 1.5, %v2188
        %v2190 = vmul.f32 %v2185, %v2189
        %vm2191 = vweird.f32 %v2183
        %vm2192 = vweird.f32 %v2185
        %vm2193 = vmor %vm2191, %vm2192
        %v2194 = vsel %vm2193, %v2185, %v2190
        %v2195 = vrsqrt.pop %v2184
        %v2196 = vmul.f32 %v2195, %v2184
        %v2197 = vmul.f32 %v2196, %v2195
        %v2198 = vmul.f32 0.5, %v2197
        %v2199 = vsub.f32 1.5, %v2198
        %v2200 = vmul.f32 %v2195, %v2199
        %vm2201 = vweird.f32 %v2184
        %vm2202 = vweird.f32 %v2195
        %vm2203 = vmor %vm2201, %vm2202
        %v2204 = vsel %vm2203, %v2195, %v2200
        %v2205 = vmul.f32 %v2171, %v2194
        %v2206 = vmul.f32 %v2172, %v2204
        %v2208 = vperm.slane %v2161, 0
        %v2210 = vmul.f32 %v2205, %v2208
        %v2211 = vmul.f32 %v2206, %v2208
        %v2213 = vperm.slane %v2162, 0
        %v2215 = vadd.f32 %v2210, %v2213
        %v2216 = vadd.f32 %v2211, %v2213
        %v2217 = vpack.c.bf16 %v2216, %v2215
        %v2218 = vld [vmem:[%s17] sm:$0xf]
        %v2219 = vld [vmem:[%s17 + $0x4] sm:$0xf]
        %v2220 = vld [vmem:[%s17 + $0x8] sm:$0xf]
        %v2221 = vld [vmem:[%s17 + $0xc] sm:$0xf]
        %v2222 = vld [vmem:[%s18] sm:$0x1]
        %v2224 = vperm.slane %v2222, 0
        %v2230 = vunpack.c.l.b16 %v2218
        %v2231 = vunpack.c.l.b16 %v2219
        %v2232 = vunpack.c.l.b16 %v2220
        %v2233 = vunpack.c.l.b16 %v2221
        %v2234 = vpack.c.b16 %v2231, %v2230
        %v2235 = vpack.c.b16 %v2233, %v2232
        %v2239 = vsel %vm926, %v2217, 0
        %2241 = vmatpush.bf16.msra.mxu0 0
        %2242 = vmatpush.bf16.msra.mxu0 0
        %2243 = vmatpush.bf16.msra.mxu0 0
        %2244 = vmatpush.bf16.msra.mxu0 0
        %2245 = vmatpush.bf16.msra.mxu0 0
        %2246 = vmatpush.bf16.msra.mxu0 0
        %2247 = vmatpush.bf16.msra.mxu0 %v2235
        %2248 = vmatpush.bf16.msra.mxu0 %v2234
        %2249 = vmatmul.bf16.gmra.mxu0 %v2239
        %v2250 = vpop.f32.mrf.mxu0
        %v2251 = vadd.f32 %v2224, %v2250
        %v2252 = vpop.f32.mrf.mxu0
        %v2253 = vadd.f32 %v2224, %v2252
        %2254 = vdwg.mxu0
        %v2255 = vmul.f32 %v2251, 0.5
        %v2256 = vmul.f32 %v2253, 0.5
        %v2257 = vmul.f32 %v2251, 0.044715
        %v2258 = vmul.f32 %v2253, 0.044715
        %v2259 = vmul.f32 %v2257, %v2251
        %v2260 = vmul.f32 %v2258, %v2253
        %v2261 = vmul.f32 %v2259, %v2251
        %v2262 = vmul.f32 %v2260, %v2253
        %v2263 = vadd.f32 %v2251, %v2261
        %v2264 = vadd.f32 %v2253, %v2262
        %v2265 = vmul.f32 %v2263, 0.7978846
        %v2266 = vmul.f32 %v2264, 0.7978846
        %v2267 = vtanh.pop %v2265
        %v2268 = vtanh.pop %v2266
        %v2269 = vadd.f32 %v2267, 1.0
        %v2270 = vadd.f32 %v2268, 1.0
        %v2271 = vmul.f32 %v2255, %v2269
        %v2272 = vmul.f32 %v2256, %v2270
        %v2273 = vpack.c.bf16 %v2272, %v2271
        %v2274 = vld [vmem:[%s19] sm:$0xf]
        %v2275 = vld [vmem:[%s19 + $0x4] sm:$0xf]
        %v2276 = vld [vmem:[%s19 + $0x8] sm:$0xf]
        %v2277 = vld [vmem:[%s19 + $0xc] sm:$0xf]
        %v2278 = vld [vmem:[%s19 + $0x10] sm:$0xf]
        %v2279 = vld [vmem:[%s19 + $0x14] sm:$0xf]
        %v2280 = vld [vmem:[%s19 + $0x18] sm:$0xf]
        %v2281 = vld [vmem:[%s19 + $0x1c] sm:$0xf]
        %v2282 = vld [vmem:[%s20] sm:$0x1]
        %v2284 = vperm.slane %v2282, 0
        %v2294 = vunpack.c.l.b16 %v2274
        %v2295 = vunpack.c.l.b16 %v2275
        %v2296 = vunpack.c.l.b16 %v2276
        %v2297 = vunpack.c.l.b16 %v2277
        %v2298 = vunpack.c.l.b16 %v2278
        %v2299 = vunpack.c.l.b16 %v2279
        %v2300 = vunpack.c.l.b16 %v2280
        %v2301 = vunpack.c.l.b16 %v2281
        %v2302 = vpack.c.b16 %v2295, %v2294
        %v2303 = vpack.c.b16 %v2297, %v2296
        %v2304 = vpack.c.b16 %v2299, %v2298
        %v2305 = vpack.c.b16 %v2301, %v2300
        %vm2310 = vcmask 523264
        %v2312 = vsel %vm2310, %v2273, 0
        %2314 = vmatpush.bf16.msra.mxu0 0
        %2315 = vmatpush.bf16.msra.mxu0 0
        %2316 = vmatpush.bf16.msra.mxu0 0
        %2317 = vmatpush.bf16.msra.mxu0 0
        %2318 = vmatpush.bf16.msra.mxu0 %v2305
        %2319 = vmatpush.bf16.msra.mxu0 %v2304
        %2320 = vmatpush.bf16.msra.mxu0 %v2303
        %2321 = vmatpush.bf16.msra.mxu0 %v2302
        %2322 = vmatmul.bf16.gmra.mxu0 %v2312
        %v2323 = vpop.f32.mrf.mxu0
        %v2324 = vadd.f32 %v2284, %v2323
        %v2325 = vpop.f32.mrf.mxu0
        %v2326 = vadd.f32 %v2284, %v2325
        %2327 = vdwg.mxu0
        %v2328 = vadd.f32 %v2215, %v2324
        %v2329 = vadd.f32 %v2216, %v2326
        %v2330 = vld [vmem:[%s21] sm:$0x1]
        %v2331 = vld [vmem:[%s22] sm:$0x1]
        %v2332 = vsel %vm926, %v2328, 0.0
        %2333 = vadd.xlane.f32.xlu0 %v2332
        %v2334 = vpop.xlane.xlu0 %2333
        %v2335 = vsel %vm926, %v2329, 0.0
        %2336 = vadd.xlane.f32.xlu0 %v2335
        %v2337 = vpop.xlane.xlu0 %2336
        %v2338 = vmul.f32 %v2334, %v1342
        %v2339 = vmul.f32 %v2337, %v1342
        %v2340 = vsub.f32 %v2328, %v2338
        %v2341 = vsub.f32 %v2329, %v2339
        %v2342 = vmul.f32 %v2340, %v2340
        %v2343 = vmul.f32 %v2341, %v2341
        %v2344 = vsel %vm926, %v2342, 0.0
        %2345 = vadd.xlane.f32.xlu0 %v2344
        %v2346 = vpop.xlane.xlu0 %2345
        %v2347 = vsel %vm926, %v2343, 0.0
        %2348 = vadd.xlane.f32.xlu0 %v2347
        %v2349 = vpop.xlane.xlu0 %2348
        %v2350 = vmul.f32 %v2346, %v1342
        %v2351 = vmul.f32 %v2349, %v1342
        %v2352 = vadd.f32 %v2350, 1e-05
        %v2353 = vadd.f32 %v2351, 1e-05
        %v2354 = vrsqrt.pop %v2352
        %v2355 = vmul.f32 %v2354, %v2352
        %v2356 = vmul.f32 %v2355, %v2354
        %v2357 = vmul.f32 0.5, %v2356
        %v2358 = vsub.f32 1.5, %v2357
        %v2359 = vmul.f32 %v2354, %v2358
        %vm2360 = vweird.f32 %v2352
        %vm2361 = vweird.f32 %v2354
        %vm2362 = vmor %vm2360, %vm2361
        %v2363 = vsel %vm2362, %v2354, %v2359
        %v2364 = vrsqrt.pop %v2353
        %v2365 = vmul.f32 %v2364, %v2353
        %v2366 = vmul.f32 %v2365, %v2364
        %v2367 = vmul.f32 0.5, %v2366
        %v2368 = vsub.f32 1.5, %v2367
        %v2369 = vmul.f32 %v2364, %v2368
        %vm2370 = vweird.f32 %v2353
        %vm2371 = vweird.f32 %v2364
        %vm2372 = vmor %vm2370, %vm2371
        %v2373 = vsel %vm2372, %v2364, %v2369
        %v2374 = vmul.f32 %v2340, %v2363
        %v2375 = vmul.f32 %v2341, %v2373
        %v2377 = vperm.slane %v2330, 0
        %v2379 = vmul.f32 %v2374, %v2377
        %v2380 = vmul.f32 %v2375, %v2377
        %v2382 = vperm.slane %v2331, 0
        %v2384 = vadd.f32 %v2379, %v2382
        %v2385 = vadd.f32 %v2380, %v2382
        %v2386 = vpack.c.bf16 %v2385, %v2384
        %s2387 = scalar_lea.vmem %s11, 192
        %v2388 = vld [vmem:[%s2387] sm:$0xf]
        %v2389 = vld [vmem:[%s2387 + $0x4] sm:$0xf]
        %v2390 = vld [vmem:[%s2387 + $0x8] sm:$0xf]
        %v2391 = vld [vmem:[%s2387 + $0xc] sm:$0xf]
        %s2392 = scalar_lea.vmem %s12, 12
        %v2393 = vld [vmem:[%s2392] sm:$0x1]
        %v2395 = vperm.slane %v2393, 0
        %v2401 = vunpack.c.l.b16 %v2388
        %v2402 = vunpack.c.l.b16 %v2389
        %v2403 = vunpack.c.l.b16 %v2390
        %v2404 = vunpack.c.l.b16 %v2391
        %v2405 = vpack.c.b16 %v2402, %v2401
        %v2406 = vpack.c.b16 %v2404, %v2403
        %v2410 = vsel %vm926, %v2386, 0
        %2412 = vmatpush.bf16.msra.mxu0 0
        %2413 = vmatpush.bf16.msra.mxu0 0
        %2414 = vmatpush.bf16.msra.mxu0 0
        %2415 = vmatpush.bf16.msra.mxu0 0
        %2416 = vmatpush.bf16.msra.mxu0 0
        %2417 = vmatpush.bf16.msra.mxu0 0
        %2418 = vmatpush.bf16.msra.mxu0 %v2406
        %2419 = vmatpush.bf16.msra.mxu0 %v2405
        %2420 = vmatmul.bf16.gmra.mxu0 %v2410
        %v2421 = vpop.f32.mrf.mxu0
        %v2422 = vadd.f32 %v2395, %v2421
        %v2423 = vpop.f32.mrf.mxu0
        %v2424 = vadd.f32 %v2395, %v2423
        %2425 = vdwg.mxu0
        %v2426 = vmul.f32 %v2422, 0.35355338
        %v2427 = vmul.f32 %v2424, 0.35355338
        %s2428 = scalar_lea.vmem %s11, 256
        %v2429 = vld [vmem:[%s2428] sm:$0xf]
        %v2430 = vld [vmem:[%s2428 + $0x4] sm:$0xf]
        %v2431 = vld [vmem:[%s2428 + $0x8] sm:$0xf]
        %v2432 = vld [vmem:[%s2428 + $0xc] sm:$0xf]
        %s2433 = scalar_lea.vmem %s12, 16
        %v2434 = vld [vmem:[%s2433] sm:$0x1]
        %v2436 = vperm.slane %v2434, 0
        %v2442 = vunpack.c.l.b16 %v2429
        %v2443 = vunpack.c.l.b16 %v2430
        %v2444 = vunpack.c.l.b16 %v2431
        %v2445 = vunpack.c.l.b16 %v2432
        %v2446 = vpack.c.b16 %v2443, %v2442
        %v2447 = vpack.c.b16 %v2445, %v2444
        %2450 = vmatpush.bf16.msra.mxu0 0
        %2451 = vmatpush.bf16.msra.mxu0 0
        %2452 = vmatpush.bf16.msra.mxu0 0
        %2453 = vmatpush.bf16.msra.mxu0 0
        %2454 = vmatpush.bf16.msra.mxu0 0
        %2455 = vmatpush.bf16.msra.mxu0 0
        %2456 = vmatpush.bf16.msra.mxu0 %v2447
        %2457 = vmatpush.bf16.msra.mxu0 %v2446
        %2458 = vmatmul.bf16.gmra.mxu0 %v2410
        %v2459 = vpop.f32.mrf.mxu0
        %v2460 = vadd.f32 %v2436, %v2459
        %v2461 = vpop.f32.mrf.mxu0
        %v2462 = vadd.f32 %v2436, %v2461
        %2463 = vdwg.mxu0
        %s2464 = scalar_lea.vmem %s11, 320
        %v2465 = vld [vmem:[%s2464] sm:$0xf]
        %v2466 = vld [vmem:[%s2464 + $0x4] sm:$0xf]
        %v2467 = vld [vmem:[%s2464 + $0x8] sm:$0xf]
        %v2468 = vld [vmem:[%s2464 + $0xc] sm:$0xf]
        %s2469 = scalar_lea.vmem %s12, 20
        %v2470 = vld [vmem:[%s2469] sm:$0x1]
        %v2472 = vperm.slane %v2470, 0
        %v2478 = vunpack.c.l.b16 %v2465
        %v2479 = vunpack.c.l.b16 %v2466
        %v2480 = vunpack.c.l.b16 %v2467
        %v2481 = vunpack.c.l.b16 %v2468
        %v2482 = vpack.c.b16 %v2479, %v2478
        %v2483 = vpack.c.b16 %v2481, %v2480
        %2486 = vmatpush.bf16.msra.mxu0 0
        %2487 = vmatpush.bf16.msra.mxu0 0
        %2488 = vmatpush.bf16.msra.mxu0 0
        %2489 = vmatpush.bf16.msra.mxu0 0
        %2490 = vmatpush.bf16.msra.mxu0 0
        %2491 = vmatpush.bf16.msra.mxu0 0
        %2492 = vmatpush.bf16.msra.mxu0 %v2483
        %2493 = vmatpush.bf16.msra.mxu0 %v2482
        %2494 = vmatmul.bf16.gmra.mxu0 %v2410
        %v2495 = vpop.f32.mrf.mxu0
        %v2496 = vadd.f32 %v2472, %v2495
        %v2497 = vpop.f32.mrf.mxu0
        %v2498 = vadd.f32 %v2472, %v2497
        %2499 = vdwg.mxu0
        %v2500 = vpack.c.bf16 %v2427, %v2426
        %v2501 = vpack.c.bf16 %v2462, %v2460
        %v2503 = vsel %vm1509, %v2500, 0
        %v2506 = vsel %vm1509, %v2501, 0
        %2508 = vmatpush.bf16.xpose.msra.mxu0 0
        %2509 = vmatpush.bf16.xpose.msra.mxu0 0
        %2510 = vmatpush.bf16.xpose.msra.mxu0 0
        %2511 = vmatpush.bf16.xpose.msra.mxu0 0
        %2512 = vmatpush.bf16.xpose.msra.mxu0 0
        %2513 = vmatpush.bf16.xpose.msra.mxu0 0
        %2514 = vmatpush.bf16.xpose.msra.mxu0 0
        %2515 = vmatpush.bf16.xpose.msra.mxu0 %v2506
        %2516 = vmatmul.bf16.gmra.mxu0 %v2503
        %v2517 = vpop.f32.mrf.mxu0
        %v2518 = vadd.f32 %v1507, %v2517
        %v2519 = vpop.f32.mrf.mxu0
        %v2520 = vadd.f32 %v1507, %v2519
        %2521 = vdwg.mxu0
        %v2522 = vsel %vm1530, %v2518, -inf
        %2523 = vmax.xlane.f32.xlu0 %v2522
        %v2524 = vpop.xlane.xlu0 %2523
        %v2525 = vsel %vm1530, %v2520, -inf
        %2526 = vmax.xlane.f32.xlu0 %v2525
        %v2527 = vpop.xlane.xlu0 %2526
        %v2528 = vsub.f32 %v2518, %v2524
        %v2529 = vsub.f32 %v2520, %v2527
        %v2530 = vmul.f32 %v2528, 1.442695
        %v2531 = vpow.pop %v2530
        %v2532 = vmul.f32 %v2529, 1.442695
        %v2533 = vpow.pop %v2532
        %v2534 = vsel %vm1530, %v2531, 0.0
        %2535 = vadd.xlane.f32.xlu0 %v2534
        %v2536 = vpop.xlane.xlu0 %2535
        %v2537 = vsel %vm1530, %v2533, 0.0
        %2538 = vadd.xlane.f32.xlu0 %v2537
        %v2539 = vpop.xlane.xlu0 %2538
        %v2540 = vrcp.pop %v2536
        %v2541 = vrcp.pop %v2539
        %v2542 = vmul.f32 %v2531, %v2540
        %v2543 = vmul.f32 %v2533, %v2541
        %v2544 = vpack.c.bf16 %v2543, %v2542
        %v2545 = vpack.c.bf16 %v2498, %v2496
        %v2547 = vsel %vm1530, %v2544, 0
        %2549 = vmatpush.bf16.msra.mxu0 0
        %2550 = vmatpush.bf16.msra.mxu0 0
        %2551 = vmatpush.bf16.msra.mxu0 0
        %2552 = vmatpush.bf16.msra.mxu0 0
        %2553 = vmatpush.bf16.msra.mxu0 0
        %2554 = vmatpush.bf16.msra.mxu0 0
        %2555 = vmatpush.bf16.msra.mxu0 0
        %2556 = vmatpush.bf16.msra.mxu0 %v2545
        %2557 = vmatmul.bf16.gmra.mxu0 %v2547
        %v2558 = vpop.f32.mrf.mxu0
        %v2559 = vadd.f32 0.0, %v2558
        %v2560 = vpop.f32.mrf.mxu0
        %v2561 = vadd.f32 0.0, %v2560
        %2562 = vdwg.mxu0
        %s2563 = scalar_lea.vmem %s11, 208
        %v2564 = vld [vmem:[%s2563] sm:$0xf]
        %v2565 = vld [vmem:[%s2563 + $0x4] sm:$0xf]
        %v2566 = vld [vmem:[%s2563 + $0x8] sm:$0xf]
        %v2567 = vld [vmem:[%s2563 + $0xc] sm:$0xf]
        %s2568 = scalar_lea.vmem %s12, 13
        %v2569 = vld [vmem:[%s2568] sm:$0x1]
        %v2571 = vperm.slane %v2569, 0
        %v2577 = vunpack.c.l.b16 %v2564
        %v2578 = vunpack.c.l.b16 %v2565
        %v2579 = vunpack.c.l.b16 %v2566
        %v2580 = vunpack.c.l.b16 %v2567
        %v2581 = vpack.c.b16 %v2578, %v2577
        %v2582 = vpack.c.b16 %v2580, %v2579
        %2585 = vmatpush.bf16.msra.mxu0 0
        %2586 = vmatpush.bf16.msra.mxu0 0
        %2587 = vmatpush.bf16.msra.mxu0 0
        %2588 = vmatpush.bf16.msra.mxu0 0
        %2589 = vmatpush.bf16.msra.mxu0 0
        %2590 = vmatpush.bf16.msra.mxu0 0
        %2591 = vmatpush.bf16.msra.mxu0 %v2582
        %2592 = vmatpush.bf16.msra.mxu0 %v2581
        %2593 = vmatmul.bf16.gmra.mxu0 %v2410
        %v2594 = vpop.f32.mrf.mxu0
        %v2595 = vadd.f32 %v2571, %v2594
        %v2596 = vpop.f32.mrf.mxu0
        %v2597 = vadd.f32 %v2571, %v2596
        %2598 = vdwg.mxu0
        %v2599 = vmul.f32 %v2595, 0.35355338
        %v2600 = vmul.f32 %v2597, 0.35355338
        %s2601 = scalar_lea.vmem %s11, 272
        %v2602 = vld [vmem:[%s2601] sm:$0xf]
        %v2603 = vld [vmem:[%s2601 + $0x4] sm:$0xf]
        %v2604 = vld [vmem:[%s2601 + $0x8] sm:$0xf]
        %v2605 = vld [vmem:[%s2601 + $0xc] sm:$0xf]
        %s2606 = scalar_lea.vmem %s12, 17
        %v2607 = vld [vmem:[%s2606] sm:$0x1]
        %v2609 = vperm.slane %v2607, 0
        %v2615 = vunpack.c.l.b16 %v2602
        %v2616 = vunpack.c.l.b16 %v2603
        %v2617 = vunpack.c.l.b16 %v2604
        %v2618 = vunpack.c.l.b16 %v2605
        %v2619 = vpack.c.b16 %v2616, %v2615
        %v2620 = vpack.c.b16 %v2618, %v2617
        %2623 = vmatpush.bf16.msra.mxu0 0
        %2624 = vmatpush.bf16.msra.mxu0 0
        %2625 = vmatpush.bf16.msra.mxu0 0
        %2626 = vmatpush.bf16.msra.mxu0 0
        %2627 = vmatpush.bf16.msra.mxu0 0
        %2628 = vmatpush.bf16.msra.mxu0 0
        %2629 = vmatpush.bf16.msra.mxu0 %v2620
        %2630 = vmatpush.bf16.msra.mxu0 %v2619
        %2631 = vmatmul.bf16.gmra.mxu0 %v2410
        %v2632 = vpop.f32.mrf.mxu0
        %v2633 = vadd.f32 %v2609, %v2632
        %v2634 = vpop.f32.mrf.mxu0
        %v2635 = vadd.f32 %v2609, %v2634
        %2636 = vdwg.mxu0
        %s2637 = scalar_lea.vmem %s11, 336
        %v2638 = vld [vmem:[%s2637] sm:$0xf]
        %v2639 = vld [vmem:[%s2637 + $0x4] sm:$0xf]
        %v2640 = vld [vmem:[%s2637 + $0x8] sm:$0xf]
        %v2641 = vld [vmem:[%s2637 + $0xc] sm:$0xf]
        %s2642 = scalar_lea.vmem %s12, 21
        %v2643 = vld [vmem:[%s2642] sm:$0x1]
        %v2645 = vperm.slane %v2643, 0
        %v2651 = vunpack.c.l.b16 %v2638
        %v2652 = vunpack.c.l.b16 %v2639
        %v2653 = vunpack.c.l.b16 %v2640
        %v2654 = vunpack.c.l.b16 %v2641
        %v2655 = vpack.c.b16 %v2652, %v2651
        %v2656 = vpack.c.b16 %v2654, %v2653
        %2659 = vmatpush.bf16.msra.mxu0 0
        %2660 = vmatpush.bf16.msra.mxu0 0
        %2661 = vmatpush.bf16.msra.mxu0 0
        %2662 = vmatpush.bf16.msra.mxu0 0
        %2663 = vmatpush.bf16.msra.mxu0 0
        %2664 = vmatpush.bf16.msra.mxu0 0
        %2665 = vmatpush.bf16.msra.mxu0 %v2656
        %2666 = vmatpush.bf16.msra.mxu0 %v2655
        %2667 = vmatmul.bf16.gmra.mxu0 %v2410
        %v2668 = vpop.f32.mrf.mxu0
        %v2669 = vadd.f32 %v2645, %v2668
        %v2670 = vpop.f32.mrf.mxu0
        %v2671 = vadd.f32 %v2645, %v2670
        %2672 = vdwg.mxu0
        %v2673 = vpack.c.bf16 %v2600, %v2599
        %v2674 = vpack.c.bf16 %v2635, %v2633
        %v2676 = vsel %vm1509, %v2673, 0
        %v2679 = vsel %vm1509, %v2674, 0
        %2681 = vmatpush.bf16.xpose.msra.mxu0 0
        %2682 = vmatpush.bf16.xpose.msra.mxu0 0
        %2683 = vmatpush.bf16.xpose.msra.mxu0 0
        %2684 = vmatpush.bf16.xpose.msra.mxu0 0
        %2685 = vmatpush.bf16.xpose.msra.mxu0 0
        %2686 = vmatpush.bf16.xpose.msra.mxu0 0
        %2687 = vmatpush.bf16.xpose.msra.mxu0 0
        %2688 = vmatpush.bf16.xpose.msra.mxu0 %v2679
        %2689 = vmatmul.bf16.gmra.mxu0 %v2676
        %v2690 = vpop.f32.mrf.mxu0
        %v2691 = vadd.f32 %v1507, %v2690
        %v2692 = vpop.f32.mrf.mxu0
        %v2693 = vadd.f32 %v1507, %v2692
        %2694 = vdwg.mxu0
        %v2695 = vsel %vm1530, %v2691, -inf
        %2696 = vmax.xlane.f32.xlu0 %v2695
        %v2697 = vpop.xlane.xlu0 %2696
        %v2698 = vsel %vm1530, %v2693, -inf
        %2699 = vmax.xlane.f32.xlu0 %v2698
        %v2700 = vpop.xlane.xlu0 %2699
        %v2701 = vsub.f32 %v2691, %v2697
        %v2702 = vsub.f32 %v2693, %v2700
        %v2703 = vmul.f32 %v2701, 1.442695
        %v2704 = vpow.pop %v2703
        %v2705 = vmul.f32 %v2702, 1.442695
        %v2706 = vpow.pop %v2705
        %v2707 = vsel %vm1530, %v2704, 0.0
        %2708 = vadd.xlane.f32.xlu0 %v2707
        %v2709 = vpop.xlane.xlu0 %2708
        %v2710 = vsel %vm1530, %v2706, 0.0
        %2711 = vadd.xlane.f32.xlu0 %v2710
        %v2712 = vpop.xlane.xlu0 %2711
        %v2713 = vrcp.pop %v2709
        %v2714 = vrcp.pop %v2712
        %v2715 = vmul.f32 %v2704, %v2713
        %v2716 = vmul.f32 %v2706, %v2714
        %v2717 = vpack.c.bf16 %v2716, %v2715
        %v2718 = vpack.c.bf16 %v2671, %v2669
        %v2720 = vsel %vm1530, %v2717, 0
        %2722 = vmatpush.bf16.msra.mxu0 0
        %2723 = vmatpush.bf16.msra.mxu0 0
        %2724 = vmatpush.bf16.msra.mxu0 0
        %2725 = vmatpush.bf16.msra.mxu0 0
        %2726 = vmatpush.bf16.msra.mxu0 0
        %2727 = vmatpush.bf16.msra.mxu0 0
        %2728 = vmatpush.bf16.msra.mxu0 0
        %2729 = vmatpush.bf16.msra.mxu0 %v2718
        %2730 = vmatmul.bf16.gmra.mxu0 %v2720
        %v2731 = vpop.f32.mrf.mxu0
        %v2732 = vadd.f32 0.0, %v2731
        %v2733 = vpop.f32.mrf.mxu0
        %v2734 = vadd.f32 0.0, %v2733
        %2735 = vdwg.mxu0
        %s2736 = scalar_lea.vmem %s11, 224
        %v2737 = vld [vmem:[%s2736] sm:$0xf]
        %v2738 = vld [vmem:[%s2736 + $0x4] sm:$0xf]
        %v2739 = vld [vmem:[%s2736 + $0x8] sm:$0xf]
        %v2740 = vld [vmem:[%s2736 + $0xc] sm:$0xf]
        %s2741 = scalar_lea.vmem %s12, 14
        %v2742 = vld [vmem:[%s2741] sm:$0x1]
        %v2744 = vperm.slane %v2742, 0
        %v2750 = vunpack.c.l.b16 %v2737
        %v2751 = vunpack.c.l.b16 %v2738
        %v2752 = vunpack.c.l.b16 %v2739
        %v2753 = vunpack.c.l.b16 %v2740
        %v2754 = vpack.c.b16 %v2751, %v2750
        %v2755 = vpack.c.b16 %v2753, %v2752
        %2758 = vmatpush.bf16.msra.mxu0 0
        %2759 = vmatpush.bf16.msra.mxu0 0
        %2760 = vmatpush.bf16.msra.mxu0 0
        %2761 = vmatpush.bf16.msra.mxu0 0
        %2762 = vmatpush.bf16.msra.mxu0 0
        %2763 = vmatpush.bf16.msra.mxu0 0
        %2764 = vmatpush.bf16.msra.mxu0 %v2755
        %2765 = vmatpush.bf16.msra.mxu0 %v2754
        %2766 = vmatmul.bf16.gmra.mxu0 %v2410
        %v2767 = vpop.f32.mrf.mxu0
        %v2768 = vadd.f32 %v2744, %v2767
        %v2769 = vpop.f32.mrf.mxu0
        %v2770 = vadd.f32 %v2744, %v2769
        %2771 = vdwg.mxu0
        %v2772 = vmul.f32 %v2768, 0.35355338
        %v2773 = vmul.f32 %v2770, 0.35355338
        %s2774 = scalar_lea.vmem %s11, 288
        %v2775 = vld [vmem:[%s2774] sm:$0xf]
        %v2776 = vld [vmem:[%s2774 + $0x4] sm:$0xf]
        %v2777 = vld [vmem:[%s2774 + $0x8] sm:$0xf]
        %v2778 = vld [vmem:[%s2774 + $0xc] sm:$0xf]
        %s2779 = scalar_lea.vmem %s12, 18
        %v2780 = vld [vmem:[%s2779] sm:$0x1]
        %v2782 = vperm.slane %v2780, 0
        %v2788 = vunpack.c.l.b16 %v2775
        %v2789 = vunpack.c.l.b16 %v2776
        %v2790 = vunpack.c.l.b16 %v2777
        %v2791 = vunpack.c.l.b16 %v2778
        %v2792 = vpack.c.b16 %v2789, %v2788
        %v2793 = vpack.c.b16 %v2791, %v2790
        %2796 = vmatpush.bf16.msra.mxu0 0
        %2797 = vmatpush.bf16.msra.mxu0 0
        %2798 = vmatpush.bf16.msra.mxu0 0
        %2799 = vmatpush.bf16.msra.mxu0 0
        %2800 = vmatpush.bf16.msra.mxu0 0
        %2801 = vmatpush.bf16.msra.mxu0 0
        %2802 = vmatpush.bf16.msra.mxu0 %v2793
        %2803 = vmatpush.bf16.msra.mxu0 %v2792
        %2804 = vmatmul.bf16.gmra.mxu0 %v2410
        %v2805 = vpop.f32.mrf.mxu0
        %v2806 = vadd.f32 %v2782, %v2805
        %v2807 = vpop.f32.mrf.mxu0
        %v2808 = vadd.f32 %v2782, %v2807
        %2809 = vdwg.mxu0
        %s2810 = scalar_lea.vmem %s11, 352
        %v2811 = vld [vmem:[%s2810] sm:$0xf]
        %v2812 = vld [vmem:[%s2810 + $0x4] sm:$0xf]
        %v2813 = vld [vmem:[%s2810 + $0x8] sm:$0xf]
        %v2814 = vld [vmem:[%s2810 + $0xc] sm:$0xf]
        %s2815 = scalar_lea.vmem %s12, 22
        %v2816 = vld [vmem:[%s2815] sm:$0x1]
        %v2818 = vperm.slane %v2816, 0
        %v2824 = vunpack.c.l.b16 %v2811
        %v2825 = vunpack.c.l.b16 %v2812
        %v2826 = vunpack.c.l.b16 %v2813
        %v2827 = vunpack.c.l.b16 %v2814
        %v2828 = vpack.c.b16 %v2825, %v2824
        %v2829 = vpack.c.b16 %v2827, %v2826
        %2832 = vmatpush.bf16.msra.mxu0 0
        %2833 = vmatpush.bf16.msra.mxu0 0
        %2834 = vmatpush.bf16.msra.mxu0 0
        %2835 = vmatpush.bf16.msra.mxu0 0
        %2836 = vmatpush.bf16.msra.mxu0 0
        %2837 = vmatpush.bf16.msra.mxu0 0
        %2838 = vmatpush.bf16.msra.mxu0 %v2829
        %2839 = vmatpush.bf16.msra.mxu0 %v2828
        %2840 = vmatmul.bf16.gmra.mxu0 %v2410
        %v2841 = vpop.f32.mrf.mxu0
        %v2842 = vadd.f32 %v2818, %v2841
        %v2843 = vpop.f32.mrf.mxu0
        %v2844 = vadd.f32 %v2818, %v2843
        %2845 = vdwg.mxu0
        %v2846 = vpack.c.bf16 %v2773, %v2772
        %v2847 = vpack.c.bf16 %v2808, %v2806
        %v2849 = vsel %vm1509, %v2846, 0
        %v2852 = vsel %vm1509, %v2847, 0
        %2854 = vmatpush.bf16.xpose.msra.mxu0 0
        %2855 = vmatpush.bf16.xpose.msra.mxu0 0
        %2856 = vmatpush.bf16.xpose.msra.mxu0 0
        %2857 = vmatpush.bf16.xpose.msra.mxu0 0
        %2858 = vmatpush.bf16.xpose.msra.mxu0 0
        %2859 = vmatpush.bf16.xpose.msra.mxu0 0
        %2860 = vmatpush.bf16.xpose.msra.mxu0 0
        %2861 = vmatpush.bf16.xpose.msra.mxu0 %v2852
        %2862 = vmatmul.bf16.gmra.mxu0 %v2849
        %v2863 = vpop.f32.mrf.mxu0
        %v2864 = vadd.f32 %v1507, %v2863
        %v2865 = vpop.f32.mrf.mxu0
        %v2866 = vadd.f32 %v1507, %v2865
        %2867 = vdwg.mxu0
        %v2868 = vsel %vm1530, %v2864, -inf
        %2869 = vmax.xlane.f32.xlu0 %v2868
        %v2870 = vpop.xlane.xlu0 %2869
        %v2871 = vsel %vm1530, %v2866, -inf
        %2872 = vmax.xlane.f32.xlu0 %v2871
        %v2873 = vpop.xlane.xlu0 %2872
        %v2874 = vsub.f32 %v2864, %v2870
        %v2875 = vsub.f32 %v2866, %v2873
        %v2876 = vmul.f32 %v2874, 1.442695
        %v2877 = vpow.pop %v2876
        %v2878 = vmul.f32 %v2875, 1.442695
        %v2879 = vpow.pop %v2878
        %v2880 = vsel %vm1530, %v2877, 0.0
        %2881 = vadd.xlane.f32.xlu0 %v2880
        %v2882 = vpop.xlane.xlu0 %2881
        %v2883 = vsel %vm1530, %v2879, 0.0
        %2884 = vadd.xlane.f32.xlu0 %v2883
        %v2885 = vpop.xlane.xlu0 %2884
        %v2886 = vrcp.pop %v2882
        %v2887 = vrcp.pop %v2885
        %v2888 = vmul.f32 %v2877, %v2886
        %v2889 = vmul.f32 %v2879, %v2887
        %v2890 = vpack.c.bf16 %v2889, %v2888
        %v2891 = vpack.c.bf16 %v2844, %v2842
        %v2893 = vsel %vm1530, %v2890, 0
        %2895 = vmatpush.bf16.msra.mxu0 0
        %2896 = vmatpush.bf16.msra.mxu0 0
        %2897 = vmatpush.bf16.msra.mxu0 0
        %2898 = vmatpush.bf16.msra.mxu0 0
        %2899 = vmatpush.bf16.msra.mxu0 0
        %2900 = vmatpush.bf16.msra.mxu0 0
        %2901 = vmatpush.bf16.msra.mxu0 0
        %2902 = vmatpush.bf16.msra.mxu0 %v2891
        %2903 = vmatmul.bf16.gmra.mxu0 %v2893
        %v2904 = vpop.f32.mrf.mxu0
        %v2905 = vadd.f32 0.0, %v2904
        %v2906 = vpop.f32.mrf.mxu0
        %v2907 = vadd.f32 0.0, %v2906
        %2908 = vdwg.mxu0
        %s2909 = scalar_lea.vmem %s11, 240
        %v2910 = vld [vmem:[%s2909] sm:$0xf]
        %v2911 = vld [vmem:[%s2909 + $0x4] sm:$0xf]
        %v2912 = vld [vmem:[%s2909 + $0x8] sm:$0xf]
        %v2913 = vld [vmem:[%s2909 + $0xc] sm:$0xf]
        %s2914 = scalar_lea.vmem %s12, 15
        %v2915 = vld [vmem:[%s2914] sm:$0x1]
        %v2917 = vperm.slane %v2915, 0
        %v2923 = vunpack.c.l.b16 %v2910
        %v2924 = vunpack.c.l.b16 %v2911
        %v2925 = vunpack.c.l.b16 %v2912
        %v2926 = vunpack.c.l.b16 %v2913
        %v2927 = vpack.c.b16 %v2924, %v2923
        %v2928 = vpack.c.b16 %v2926, %v2925
        %2931 = vmatpush.bf16.msra.mxu0 0
        %2932 = vmatpush.bf16.msra.mxu0 0
        %2933 = vmatpush.bf16.msra.mxu0 0
        %2934 = vmatpush.bf16.msra.mxu0 0
        %2935 = vmatpush.bf16.msra.mxu0 0
        %2936 = vmatpush.bf16.msra.mxu0 0
        %2937 = vmatpush.bf16.msra.mxu0 %v2928
        %2938 = vmatpush.bf16.msra.mxu0 %v2927
        %2939 = vmatmul.bf16.gmra.mxu0 %v2410
        %v2940 = vpop.f32.mrf.mxu0
        %v2941 = vadd.f32 %v2917, %v2940
        %v2942 = vpop.f32.mrf.mxu0
        %v2943 = vadd.f32 %v2917, %v2942
        %2944 = vdwg.mxu0
        %v2945 = vmul.f32 %v2941, 0.35355338
        %v2946 = vmul.f32 %v2943, 0.35355338
        %s2947 = scalar_lea.vmem %s11, 304
        %v2948 = vld [vmem:[%s2947] sm:$0xf]
        %v2949 = vld [vmem:[%s2947 + $0x4] sm:$0xf]
        %v2950 = vld [vmem:[%s2947 + $0x8] sm:$0xf]
        %v2951 = vld [vmem:[%s2947 + $0xc] sm:$0xf]
        %s2952 = scalar_lea.vmem %s12, 19
        %v2953 = vld [vmem:[%s2952] sm:$0x1]
        %v2955 = vperm.slane %v2953, 0
        %v2961 = vunpack.c.l.b16 %v2948
        %v2962 = vunpack.c.l.b16 %v2949
        %v2963 = vunpack.c.l.b16 %v2950
        %v2964 = vunpack.c.l.b16 %v2951
        %v2965 = vpack.c.b16 %v2962, %v2961
        %v2966 = vpack.c.b16 %v2964, %v2963
        %2969 = vmatpush.bf16.msra.mxu0 0
        %2970 = vmatpush.bf16.msra.mxu0 0
        %2971 = vmatpush.bf16.msra.mxu0 0
        %2972 = vmatpush.bf16.msra.mxu0 0
        %2973 = vmatpush.bf16.msra.mxu0 0
        %2974 = vmatpush.bf16.msra.mxu0 0
        %2975 = vmatpush.bf16.msra.mxu0 %v2966
        %2976 = vmatpush.bf16.msra.mxu0 %v2965
        %2977 = vmatmul.bf16.gmra.mxu0 %v2410
        %v2978 = vpop.f32.mrf.mxu0
        %v2979 = vadd.f32 %v2955, %v2978
        %v2980 = vpop.f32.mrf.mxu0
        %v2981 = vadd.f32 %v2955, %v2980
        %2982 = vdwg.mxu0
        %s2983 = scalar_lea.vmem %s11, 368
        %v2984 = vld [vmem:[%s2983] sm:$0xf]
        %v2985 = vld [vmem:[%s2983 + $0x4] sm:$0xf]
        %v2986 = vld [vmem:[%s2983 + $0x8] sm:$0xf]
        %v2987 = vld [vmem:[%s2983 + $0xc] sm:$0xf]
        %s2988 = scalar_lea.vmem %s12, 23
        %v2989 = vld [vmem:[%s2988] sm:$0x1]
        %v2991 = vperm.slane %v2989, 0
        %v2997 = vunpack.c.l.b16 %v2984
        %v2998 = vunpack.c.l.b16 %v2985
        %v2999 = vunpack.c.l.b16 %v2986
        %v3000 = vunpack.c.l.b16 %v2987
        %v3001 = vpack.c.b16 %v2998, %v2997
        %v3002 = vpack.c.b16 %v3000, %v2999
        %3005 = vmatpush.bf16.msra.mxu0 0
        %3006 = vmatpush.bf16.msra.mxu0 0
        %3007 = vmatpush.bf16.msra.mxu0 0
        %3008 = vmatpush.bf16.msra.mxu0 0
        %3009 = vmatpush.bf16.msra.mxu0 0
        %3010 = vmatpush.bf16.msra.mxu0 0
        %3011 = vmatpush.bf16.msra.mxu0 %v3002
        %3012 = vmatpush.bf16.msra.mxu0 %v3001
        %3013 = vmatmul.bf16.gmra.mxu0 %v2410
        %v3014 = vpop.f32.mrf.mxu0
        %v3015 = vadd.f32 %v2991, %v3014
        %v3016 = vpop.f32.mrf.mxu0
        %v3017 = vadd.f32 %v2991, %v3016
        %3018 = vdwg.mxu0
        %v3019 = vpack.c.bf16 %v2946, %v2945
        %v3020 = vpack.c.bf16 %v2981, %v2979
        %v3022 = vsel %vm1509, %v3019, 0
        %v3025 = vsel %vm1509, %v3020, 0
        %3027 = vmatpush.bf16.xpose.msra.mxu0 0
        %3028 = vmatpush.bf16.xpose.msra.mxu0 0
        %3029 = vmatpush.bf16.xpose.msra.mxu0 0
        %3030 = vmatpush.bf16.xpose.msra.mxu0 0
        %3031 = vmatpush.bf16.xpose.msra.mxu0 0
        %3032 = vmatpush.bf16.xpose.msra.mxu0 0
        %3033 = vmatpush.bf16.xpose.msra.mxu0 0
        %3034 = vmatpush.bf16.xpose.msra.mxu0 %v3025
        %3035 = vmatmul.bf16.gmra.mxu0 %v3022
        %v3036 = vpop.f32.mrf.mxu0
        %v3037 = vadd.f32 %v1507, %v3036
        %v3038 = vpop.f32.mrf.mxu0
        %v3039 = vadd.f32 %v1507, %v3038
        %3040 = vdwg.mxu0
        %v3041 = vsel %vm1530, %v3037, -inf
        %3042 = vmax.xlane.f32.xlu0 %v3041
        %v3043 = vpop.xlane.xlu0 %3042
        %v3044 = vsel %vm1530, %v3039, -inf
        %3045 = vmax.xlane.f32.xlu0 %v3044
        %v3046 = vpop.xlane.xlu0 %3045
        %v3047 = vsub.f32 %v3037, %v3043
        %v3048 = vsub.f32 %v3039, %v3046
        %v3049 = vmul.f32 %v3047, 1.442695
        %v3050 = vpow.pop %v3049
        %v3051 = vmul.f32 %v3048, 1.442695
        %v3052 = vpow.pop %v3051
        %v3053 = vsel %vm1530, %v3050, 0.0
        %3054 = vadd.xlane.f32.xlu0 %v3053
        %v3055 = vpop.xlane.xlu0 %3054
        %v3056 = vsel %vm1530, %v3052, 0.0
        %3057 = vadd.xlane.f32.xlu0 %v3056
        %v3058 = vpop.xlane.xlu0 %3057
        %v3059 = vrcp.pop %v3055
        %v3060 = vrcp.pop %v3058
        %v3061 = vmul.f32 %v3050, %v3059
        %v3062 = vmul.f32 %v3052, %v3060
        %v3063 = vpack.c.bf16 %v3062, %v3061
        %v3064 = vpack.c.bf16 %v3017, %v3015
        %v3066 = vsel %vm1530, %v3063, 0
        %3068 = vmatpush.bf16.msra.mxu0 0
        %3069 = vmatpush.bf16.msra.mxu0 0
        %3070 = vmatpush.bf16.msra.mxu0 0
        %3071 = vmatpush.bf16.msra.mxu0 0
        %3072 = vmatpush.bf16.msra.mxu0 0
        %3073 = vmatpush.bf16.msra.mxu0 0
        %3074 = vmatpush.bf16.msra.mxu0 0
        %3075 = vmatpush.bf16.msra.mxu0 %v3064
        %3076 = vmatmul.bf16.gmra.mxu0 %v3066
        %v3077 = vpop.f32.mrf.mxu0
        %v3078 = vadd.f32 0.0, %v3077
        %v3079 = vpop.f32.mrf.mxu0
        %v3080 = vadd.f32 0.0, %v3079
        %3081 = vdwg.mxu0
        %3084 = vrot.lane.b32.xlu0 %v2732, 8
        %v3085 = vpop.permute.xlu0 %3084
        %3086 = vrot.lane.b32.xlu0 %v2734, 8
        %v3087 = vpop.permute.xlu0 %3086
        %3092 = vrot.lane.b32.xlu0 %v2905, 16
        %v3093 = vpop.permute.xlu0 %3092
        %3094 = vrot.lane.b32.xlu0 %v2907, 16
        %v3095 = vpop.permute.xlu0 %3094
        %3100 = vrot.lane.b32.xlu0 %v3078, 24
        %v3101 = vpop.permute.xlu0 %3100
        %3102 = vrot.lane.b32.xlu0 %v3080, 24
        %v3103 = vpop.permute.xlu0 %3102
        %v3106 = vsel %vm1509, %v2559, %v3085
        %v3107 = vsel %vm1509, %v2561, %v3087
        %v3108 = vsel %vm1530, %v3106, %v3093
        %v3109 = vsel %vm1530, %v3107, %v3095
        %v3110 = vsel %vm748, %v3108, %v3101
        %v3111 = vsel %vm748, %v3109, %v3103
        %v3112 = vpack.c.bf16 %v3111, %v3110
        %s3113 = scalar_lea.vmem %s13, 16
        %v3114 = vld [vmem:[%s3113] sm:$0xf]
        %v3115 = vld [vmem:[%s3113 + $0x4] sm:$0xf]
        %v3116 = vld [vmem:[%s3113 + $0x8] sm:$0xf]
        %v3117 = vld [vmem:[%s3113 + $0xc] sm:$0xf]
        %s3118 = scalar_lea.vmem %s14, 1
        %v3119 = vld [vmem:[%s3118] sm:$0x1]
        %v3121 = vperm.slane %v3119, 0
        %v3127 = vunpack.c.l.b16 %v3114
        %v3128 = vunpack.c.l.b16 %v3115
        %v3129 = vunpack.c.l.b16 %v3116
        %v3130 = vunpack.c.l.b16 %v3117
        %v3131 = vpack.c.b16 %v3128, %v3127
        %v3132 = vpack.c.b16 %v3130, %v3129
        %v3136 = vsel %vm926, %v3112, 0
        %3138 = vmatpush.bf16.msra.mxu0 0
        %3139 = vmatpush.bf16.msra.mxu0 0
        %3140 = vmatpush.bf16.msra.mxu0 0
        %3141 = vmatpush.bf16.msra.mxu0 0
        %3142 = vmatpush.bf16.msra.mxu0 0
        %3143 = vmatpush.bf16.msra.mxu0 0
        %3144 = vmatpush.bf16.msra.mxu0 %v3132
        %3145 = vmatpush.bf16.msra.mxu0 %v3131
        %3146 = vmatmul.bf16.gmra.mxu0 %v3136
        %v3147 = vpop.f32.mrf.mxu0
        %v3148 = vadd.f32 %v3121, %v3147
        %v3149 = vpop.f32.mrf.mxu0
        %v3150 = vadd.f32 %v3121, %v3149
        %3151 = vdwg.mxu0
        %v3152 = vadd.f32 %v2384, %v3148
        %v3153 = vadd.f32 %v2385, %v3150
        %s3154 = scalar_lea.vmem %s15, 1
        %v3155 = vld [vmem:[%s3154] sm:$0x1]
        %s3156 = scalar_lea.vmem %s16, 1
        %v3157 = vld [vmem:[%s3156] sm:$0x1]
        %v3158 = vsel %vm926, %v3152, 0.0
        %3159 = vadd.xlane.f32.xlu0 %v3158
        %v3160 = vpop.xlane.xlu0 %3159
        %v3161 = vsel %vm926, %v3153, 0.0
        %3162 = vadd.xlane.f32.xlu0 %v3161
        %v3163 = vpop.xlane.xlu0 %3162
        %v3164 = vmul.f32 %v3160, %v1342
        %v3165 = vmul.f32 %v3163, %v1342
        %v3166 = vsub.f32 %v3152, %v3164
        %v3167 = vsub.f32 %v3153, %v3165
        %v3168 = vmul.f32 %v3166, %v3166
        %v3169 = vmul.f32 %v3167, %v3167
        %v3170 = vsel %vm926, %v3168, 0.0
        %3171 = vadd.xlane.f32.xlu0 %v3170
        %v3172 = vpop.xlane.xlu0 %3171
        %v3173 = vsel %vm926, %v3169, 0.0
        %3174 = vadd.xlane.f32.xlu0 %v3173
        %v3175 = vpop.xlane.xlu0 %3174
        %v3176 = vmul.f32 %v3172, %v1342
        %v3177 = vmul.f32 %v3175, %v1342
        %v3178 = vadd.f32 %v3176, 1e-05
        %v3179 = vadd.f32 %v3177, 1e-05
        %v3180 = vrsqrt.pop %v3178
        %v3181 = vmul.f32 %v3180, %v3178
        %v3182 = vmul.f32 %v3181, %v3180
        %v3183 = vmul.f32 0.5, %v3182
        %v3184 = vsub.f32 1.5, %v3183
        %v3185 = vmul.f32 %v3180, %v3184
        %vm3186 = vweird.f32 %v3178
        %vm3187 = vweird.f32 %v3180
        %vm3188 = vmor %vm3186, %vm3187
        %v3189 = vsel %vm3188, %v3180, %v3185
        %v3190 = vrsqrt.pop %v3179
        %v3191 = vmul.f32 %v3190, %v3179
        %v3192 = vmul.f32 %v3191, %v3190
        %v3193 = vmul.f32 0.5, %v3192
        %v3194 = vsub.f32 1.5, %v3193
        %v3195 = vmul.f32 %v3190, %v3194
        %vm3196 = vweird.f32 %v3179
        %vm3197 = vweird.f32 %v3190
        %vm3198 = vmor %vm3196, %vm3197
        %v3199 = vsel %vm3198, %v3190, %v3195
        %v3200 = vmul.f32 %v3166, %v3189
        %v3201 = vmul.f32 %v3167, %v3199
        %v3203 = vperm.slane %v3155, 0
        %v3205 = vmul.f32 %v3200, %v3203
        %v3206 = vmul.f32 %v3201, %v3203
        %v3208 = vperm.slane %v3157, 0
        %v3210 = vadd.f32 %v3205, %v3208
        %v3211 = vadd.f32 %v3206, %v3208
        %v3212 = vpack.c.bf16 %v3211, %v3210
        %s3213 = scalar_lea.vmem %s17, 16
        %v3214 = vld [vmem:[%s3213] sm:$0xf]
        %v3215 = vld [vmem:[%s3213 + $0x4] sm:$0xf]
        %v3216 = vld [vmem:[%s3213 + $0x8] sm:$0xf]
        %v3217 = vld [vmem:[%s3213 + $0xc] sm:$0xf]
        %s3218 = scalar_lea.vmem %s18, 1
        %v3219 = vld [vmem:[%s3218] sm:$0x1]
        %v3221 = vperm.slane %v3219, 0
        %v3227 = vunpack.c.l.b16 %v3214
        %v3228 = vunpack.c.l.b16 %v3215
        %v3229 = vunpack.c.l.b16 %v3216
        %v3230 = vunpack.c.l.b16 %v3217
        %v3231 = vpack.c.b16 %v3228, %v3227
        %v3232 = vpack.c.b16 %v3230, %v3229
        %v3236 = vsel %vm926, %v3212, 0
        %3238 = vmatpush.bf16.msra.mxu0 0
        %3239 = vmatpush.bf16.msra.mxu0 0
        %3240 = vmatpush.bf16.msra.mxu0 0
        %3241 = vmatpush.bf16.msra.mxu0 0
        %3242 = vmatpush.bf16.msra.mxu0 0
        %3243 = vmatpush.bf16.msra.mxu0 0
        %3244 = vmatpush.bf16.msra.mxu0 %v3232
        %3245 = vmatpush.bf16.msra.mxu0 %v3231
        %3246 = vmatmul.bf16.gmra.mxu0 %v3236
        %v3247 = vpop.f32.mrf.mxu0
        %v3248 = vadd.f32 %v3221, %v3247
        %v3249 = vpop.f32.mrf.mxu0
        %v3250 = vadd.f32 %v3221, %v3249
        %3251 = vdwg.mxu0
        %v3252 = vmul.f32 %v3248, 0.5
        %v3253 = vmul.f32 %v3250, 0.5
        %v3254 = vmul.f32 %v3248, 0.044715
        %v3255 = vmul.f32 %v3250, 0.044715
        %v3256 = vmul.f32 %v3254, %v3248
        %v3257 = vmul.f32 %v3255, %v3250
        %v3258 = vmul.f32 %v3256, %v3248
        %v3259 = vmul.f32 %v3257, %v3250
        %v3260 = vadd.f32 %v3248, %v3258
        %v3261 = vadd.f32 %v3250, %v3259
        %v3262 = vmul.f32 %v3260, 0.7978846
        %v3263 = vmul.f32 %v3261, 0.7978846
        %v3264 = vtanh.pop %v3262
        %v3265 = vtanh.pop %v3263
        %v3266 = vadd.f32 %v3264, 1.0
        %v3267 = vadd.f32 %v3265, 1.0
        %v3268 = vmul.f32 %v3252, %v3266
        %v3269 = vmul.f32 %v3253, %v3267
        %v3270 = vpack.c.bf16 %v3269, %v3268
        %s3271 = scalar_lea.vmem %s19, 32
        %v3272 = vld [vmem:[%s3271] sm:$0xf]
        %v3273 = vld [vmem:[%s3271 + $0x4] sm:$0xf]
        %v3274 = vld [vmem:[%s3271 + $0x8] sm:$0xf]
        %v3275 = vld [vmem:[%s3271 + $0xc] sm:$0xf]
        %v3276 = vld [vmem:[%s3271 + $0x10] sm:$0xf]
        %v3277 = vld [vmem:[%s3271 + $0x14] sm:$0xf]
        %v3278 = vld [vmem:[%s3271 + $0x18] sm:$0xf]
        %v3279 = vld [vmem:[%s3271 + $0x1c] sm:$0xf]
        %s3280 = scalar_lea.vmem %s20, 1
        %v3281 = vld [vmem:[%s3280] sm:$0x1]
        %v3283 = vperm.slane %v3281, 0
        %v3293 = vunpack.c.l.b16 %v3272
        %v3294 = vunpack.c.l.b16 %v3273
        %v3295 = vunpack.c.l.b16 %v3274
        %v3296 = vunpack.c.l.b16 %v3275
        %v3297 = vunpack.c.l.b16 %v3276
        %v3298 = vunpack.c.l.b16 %v3277
        %v3299 = vunpack.c.l.b16 %v3278
        %v3300 = vunpack.c.l.b16 %v3279
        %v3301 = vpack.c.b16 %v3294, %v3293
        %v3302 = vpack.c.b16 %v3296, %v3295
        %v3303 = vpack.c.b16 %v3298, %v3297
        %v3304 = vpack.c.b16 %v3300, %v3299
        %v3310 = vsel %vm2310, %v3270, 0
        %3312 = vmatpush.bf16.msra.mxu0 0
        %3313 = vmatpush.bf16.msra.mxu0 0
        %3314 = vmatpush.bf16.msra.mxu0 0
        %3315 = vmatpush.bf16.msra.mxu0 0
        %3316 = vmatpush.bf16.msra.mxu0 %v3304
        %3317 = vmatpush.bf16.msra.mxu0 %v3303
        %3318 = vmatpush.bf16.msra.mxu0 %v3302
        %3319 = vmatpush.bf16.msra.mxu0 %v3301
        %3320 = vmatmul.bf16.gmra.mxu0 %v3310
        %v3321 = vpop.f32.mrf.mxu0
        %v3322 = vadd.f32 %v3283, %v3321
        %v3323 = vpop.f32.mrf.mxu0
        %v3324 = vadd.f32 %v3283, %v3323
        %3325 = vdwg.mxu0
        %v3326 = vadd.f32 %v3210, %v3322
        %v3327 = vadd.f32 %v3211, %v3324
        %s3328 = scalar_lea.vmem %s21, 1
        %v3329 = vld [vmem:[%s3328] sm:$0x1]
        %s3330 = scalar_lea.vmem %s22, 1
        %v3331 = vld [vmem:[%s3330] sm:$0x1]
        %v3332 = vsel %vm926, %v3326, 0.0
        %3333 = vadd.xlane.f32.xlu0 %v3332
        %v3334 = vpop.xlane.xlu0 %3333
        %v3335 = vsel %vm926, %v3327, 0.0
        %3336 = vadd.xlane.f32.xlu0 %v3335
        %v3337 = vpop.xlane.xlu0 %3336
        %v3338 = vmul.f32 %v3334, %v1342
        %v3339 = vmul.f32 %v3337, %v1342
        %v3340 = vsub.f32 %v3326, %v3338
        %v3341 = vsub.f32 %v3327, %v3339
        %v3342 = vmul.f32 %v3340, %v3340
        %v3343 = vmul.f32 %v3341, %v3341
        %v3344 = vsel %vm926, %v3342, 0.0
        %3345 = vadd.xlane.f32.xlu0 %v3344
        %v3346 = vpop.xlane.xlu0 %3345
        %v3347 = vsel %vm926, %v3343, 0.0
        %3348 = vadd.xlane.f32.xlu0 %v3347
        %v3349 = vpop.xlane.xlu0 %3348
        %v3350 = vmul.f32 %v3346, %v1342
        %v3351 = vmul.f32 %v3349, %v1342
        %v3352 = vadd.f32 %v3350, 1e-05
        %v3353 = vadd.f32 %v3351, 1e-05
        %v3354 = vrsqrt.pop %v3352
        %v3355 = vmul.f32 %v3354, %v3352
        %v3356 = vmul.f32 %v3355, %v3354
        %v3357 = vmul.f32 0.5, %v3356
        %v3358 = vsub.f32 1.5, %v3357
        %v3359 = vmul.f32 %v3354, %v3358
        %vm3360 = vweird.f32 %v3352
        %vm3361 = vweird.f32 %v3354
        %vm3362 = vmor %vm3360, %vm3361
        %v3363 = vsel %vm3362, %v3354, %v3359
        %v3364 = vrsqrt.pop %v3353
        %v3365 = vmul.f32 %v3364, %v3353
        %v3366 = vmul.f32 %v3365, %v3364
        %v3367 = vmul.f32 0.5, %v3366
        %v3368 = vsub.f32 1.5, %v3367
        %v3369 = vmul.f32 %v3364, %v3368
        %vm3370 = vweird.f32 %v3353
        %vm3371 = vweird.f32 %v3364
        %vm3372 = vmor %vm3370, %vm3371
        %v3373 = vsel %vm3372, %v3364, %v3369
        %v3374 = vmul.f32 %v3340, %v3363
        %v3375 = vmul.f32 %v3341, %v3373
        %v3377 = vperm.slane %v3329, 0
        %v3379 = vmul.f32 %v3374, %v3377
        %v3380 = vmul.f32 %v3375, %v3377
        %v3382 = vperm.slane %v3331, 0
        %v3384 = vadd.f32 %v3379, %v3382
        %v3385 = vadd.f32 %v3380, %v3382
        %3386 = vst.msk [vmem:[%s729] sm:$0xff] %vm926, %v3384
        %3387 = vst.msk [vmem:[%s729 + $0x8] sm:$0xff] %vm926, %v3385
        %s3388 = sand.u32 %s543, 1
        %s3389 = scalar_lea.sflag [#allocation3], %s3388
        %s3390 = sand.u32 %s543, 1
        %s3391 = smul.addr %s3390, 16
        %s3392 = scalar_lea.vmem [#allocation2], %s3391
        // Predicated region
        $region113: #{extract_features.3} parent=111 // pred_check
          %p3393 = pneg %p553
        $region114: #{extract_features.3} parent=111 // pred_check_branch
          %3395 = sbr.rel (%p3393) target = $region116
        $region115: #{extract_features.3} parent=111 // pred_region
          %3397 = vsyncadd %s3389, 0
          %s3398 = smul.addr %s37, 2
          %s3399 = smul.addr %s3398, 8
          %s3400 = scalar_lea.hbm %s23, %s3399
          %s3401 = sshll.u32 %s3392, 4
          %s3402 = int_to_ptr.vmem [resolvable:$true] %s3401
          %s3403 = sshll.u32 %s3400, 4
          %s3404 = int_to_ptr.hbm [resolvable:$true] %s3403
          %3409 = dma.vmem_to_hbm [thread:$0]  %s3402, 256, %s3404, %s3389, 128, 128, 8
        $region116: #{extract_features.3} parent=111 // pred_fallthru
          _
      $region112: #{extract_features.3} parent=5 // pred_fallthru
        _
      %p3410 = scmp.le.s32.totalorder 2, %s32
      // Predicated region
      $region117: #{extract_features.3} parent=5 // pred_check
        %p3411 = pneg %p3410
      $region118: #{extract_features.3} parent=5 // pred_check_branch
        %3413 = sbr.rel (%p3411) target = $region120
      $region119: #{extract_features.3} parent=5 // pred_region
        %s3414 = ssub.s32 %s32, 2
        // Predicated region
        $region121: #{extract_features.3} parent=119 // pred_check
          %p3415 = pneg %p559
        $region122: #{extract_features.3} parent=119 // pred_check_branch
          %3417 = sbr.rel (%p3415) target = $region124
        $region123: #{extract_features.3} parent=119 // pred_region
          %s3418 = sand.u32 %s544, 1
          %s3419 = scalar_lea.sflag [#allocation3], %s3418
          %s3420 = sand.u32 %s544, 1
          %s3421 = smul.addr %s3420, 16
          %s3422 = scalar_lea.vmem [#allocation2], %s3421
          %3424 = dma.done %s3419, 256
        $region124: #{extract_features.3} parent=119 // pred_fallthru
          _
      $region120: #{extract_features.3} parent=5 // pred_fallthru
        _
    $region6: #{extract_features.3} parent=1 // loop_footer
      %s36 = sadd.s32 1, %s32
    $region7: #{extract_features.3} parent=1 // loop_footer_branch
      %31 = sbr.rel target = $region3
    $region8: #{extract_features.3} parent=1 // loop_exit
      _
    %3425 = vsyncpa [#allocation3], 1
    %s3426 = scalar_lea.sflag [#allocation3], 1
    %3427 = vsyncpa %s3426, 1

// kernel: extract_features.2
$region0: #{extract_features.2}
  #allocation0 [shape = 'u32[]', space=smem, size = 0x4, offset = 0x4, fixed_abs, tag = 'smem constant byte address 0x4 - core index']
  #allocation1 [shape = 'u32[72,128]{1,0:T(1,128)}', space=vmem, size = 0x9000, scoped, tag = 'internal scratch']
  #allocation2 [shape = 'f32[640,24]{1,0:T(8,128)}', space=vmem, size = 0x50000, scoped, tag = 'scratch operand']
  #allocation3 [shape = 'f32[640,24]{1,0:T(8,128)}', space=vmem, size = 0x50000, scoped, tag = 'scratch operand']
  %s0 = inlined_call_operand.vmem [shape: f32[2,640,5], index: 0, kind: input, shape index: {}]
  %s1 = inlined_call_operand.vmem [shape: bf16[2,5,24], index: 1, kind: input, shape index: {}]
  %s2 = inlined_call_operand.vmem [shape: bf16[3,24,24], index: 2, kind: input, shape index: {}]
  %s3 = inlined_call_operand.vmem [shape: bf16[3,24,24], index: 3, kind: input, shape index: {}]
  %s4 = inlined_call_operand.vmem [shape: bf16[3,24,24], index: 4, kind: input, shape index: {}]
  %s5 = inlined_call_operand.vmem [shape: bf16[3,24,24], index: 5, kind: input, shape index: {}]
  %s6 = inlined_call_operand.vmem [shape: bf16[2,24,24], index: 6, kind: input, shape index: {}]
  %s7 = inlined_call_operand.vmem [shape: bf16[2,24,24], index: 7, kind: input, shape index: {}]
  %s8 = inlined_call_operand.vmem [shape: f32[1,24], index: 8, kind: input, shape index: {}]
  %s9 = inlined_call_operand.vmem [shape: f32[1,24], index: 9, kind: input, shape index: {}]
  %s10 = inlined_call_operand.vmem [shape: f32[2,9,24], index: 10, kind: output, shape index: {}]
  %s11 = sld [smem:[#allocation0]]
  $region73: #{extract_features.2} parent=0
    _
  %s13 = ssub.s32 1, %s11
  %s14 = scalar_select 0, %s13, %s11
  loop: start=0, step=1, limit=4
  $region2: #{extract_features.2} parent=0 // loop_pre_header
    _
  $region3: #{extract_features.2} parent=0 // loop_header
    %s16 = sphi 0, %s20
    %p17 = scmp.ge.s32.totalorder %s16, 4
    %s26 = sphi 0, %s28
    %s29 = sphi 0, %s26
    %s30 = sphi 0, %s29
    %s46 = sphi 0, %s30
    %s50 = sphi 0, %s50
    %s52 = sphi 0, %s50
    %s53 = sphi 0, %s52
    %s67 = sphi 0, %s53
    %s71 = sphi 0, %s71
    %s73 = sphi 0, %s71
    %s74 = sphi 0, %s73
    %s88 = sphi 0, %s74
    %s92 = sphi 0, %s92
    %s94 = sphi 0, %s92
    %s95 = sphi 0, %s94
    %s109 = sphi 0, %s95
    %s113 = sphi 0, %s113
    %s115 = sphi 0, %s113
    %s116 = sphi 0, %s115
    %s130 = sphi 0, %s116
    %s134 = sphi 0, %s134
    %s136 = sphi 0, %s134
    %s137 = sphi 0, %s136
    %s151 = sphi 0, %s137
    %s155 = sphi 0, %s155
    %s157 = sphi 0, %s155
    %s158 = sphi 0, %s157
    %s172 = sphi 0, %s158
    %s176 = sphi 0, %s176
    %s178 = sphi 0, %s176
    %s179 = sphi 0, %s178
    %s193 = sphi 0, %s179
    %s197 = sphi 0, %s197
    %s199 = sphi 0, %s197
    %s200 = sphi 0, %s199
    %s214 = sphi 0, %s200
    %s218 = sphi 0, %s218
    %s220 = sphi 0, %s218
    %s221 = sphi 0, %s220
    %s235 = sphi 0, %s221
    %s241 = sphi 0, %s243
    %s244 = sphi 0, %s241
    %s245 = sphi 0, %s244
    %s261 = sphi 0, %s245
  $region4: #{extract_features.2} parent=0 // loop_header_branch
    %19 = sbr.rel (%p17) target = $region8
  $region5: #{extract_features.2} parent=0 // loop_body
    %s21 = ssub.s32 %s16, 1
    %s22 = ssub.s32 %s16, 2
    %s23 = sadd.s32 %s16, 1
    %s24 = ssub.s32 %s16, %s23
    %p25 = scmp.eq.s32.totalorder %s24, 0
    %s27 = sadd.s32 %s26, 1
    %s28 = scalar_select %p25, %s26, %s27
    %p31 = pneg %p25
    %p32 = scmp.eq.s32.totalorder %s16, 1
    %p33 = por %p31, %p32
    %p34 = scmp.ne.s32.totalorder %s26, %s29
    %p35 = scmp.eq.s32.totalorder %s16, 0
    %p36 = por %p34, %p35
    %p37 = scmp.ne.s32.totalorder %s26, %s29
    %p38 = scmp.eq.s32.totalorder %s21, 1
    %p39 = por %p37, %p38
    %p40 = scmp.ne.s32.totalorder %s29, %s30
    %p41 = scmp.eq.s32.totalorder %s21, 0
    %p42 = por %p40, %p41
    %p43 = scmp.ne.s32.totalorder %s29, %s30
    %p44 = scmp.eq.s32.totalorder %s22, 1
    %p45 = por %p43, %p44
    %p47 = scmp.ne.s32.totalorder %s30, %s46
    %p48 = scmp.eq.s32.totalorder %s22, 0
    %p49 = por %p47, %p48
    %s51 = sadd.s32 %s50, 1
    %p54 = scmp.eq.s32.totalorder %s16, 1
    %p55 = scmp.ne.s32.totalorder %s50, %s52
    %p56 = scmp.eq.s32.totalorder %s16, 0
    %p57 = por %p55, %p56
    %p58 = scmp.ne.s32.totalorder %s50, %s52
    %p59 = scmp.eq.s32.totalorder %s21, 1
    %p60 = por %p58, %p59
    %p61 = scmp.ne.s32.totalorder %s52, %s53
    %p62 = scmp.eq.s32.totalorder %s21, 0
    %p63 = por %p61, %p62
    %p64 = scmp.ne.s32.totalorder %s52, %s53
    %p65 = scmp.eq.s32.totalorder %s22, 1
    %p66 = por %p64, %p65
    %p68 = scmp.ne.s32.totalorder %s53, %s67
    %p69 = scmp.eq.s32.totalorder %s22, 0
    %p70 = por %p68, %p69
    %s72 = sadd.s32 %s71, 1
    %p75 = scmp.eq.s32.totalorder %s16, 1
    %p76 = scmp.ne.s32.totalorder %s71, %s73
    %p77 = scmp.eq.s32.totalorder %s16, 0
    %p78 = por %p76, %p77
    %p79 = scmp.ne.s32.totalorder %s71, %s73
    %p80 = scmp.eq.s32.totalorder %s21, 1
    %p81 = por %p79, %p80
    %p82 = scmp.ne.s32.totalorder %s73, %s74
    %p83 = scmp.eq.s32.totalorder %s21, 0
    %p84 = por %p82, %p83
    %p85 = scmp.ne.s32.totalorder %s73, %s74
    %p86 = scmp.eq.s32.totalorder %s22, 1
    %p87 = por %p85, %p86
    %p89 = scmp.ne.s32.totalorder %s74, %s88
    %p90 = scmp.eq.s32.totalorder %s22, 0
    %p91 = por %p89, %p90
    %s93 = sadd.s32 %s92, 1
    %p96 = scmp.eq.s32.totalorder %s16, 1
    %p97 = scmp.ne.s32.totalorder %s92, %s94
    %p98 = scmp.eq.s32.totalorder %s16, 0
    %p99 = por %p97, %p98
    %p100 = scmp.ne.s32.totalorder %s92, %s94
    %p101 = scmp.eq.s32.totalorder %s21, 1
    %p102 = por %p100, %p101
    %p103 = scmp.ne.s32.totalorder %s94, %s95
    %p104 = scmp.eq.s32.totalorder %s21, 0
    %p105 = por %p103, %p104
    %p106 = scmp.ne.s32.totalorder %s94, %s95
    %p107 = scmp.eq.s32.totalorder %s22, 1
    %p108 = por %p106, %p107
    %p110 = scmp.ne.s32.totalorder %s95, %s109
    %p111 = scmp.eq.s32.totalorder %s22, 0
    %p112 = por %p110, %p111
    %s114 = sadd.s32 %s113, 1
    %p117 = scmp.eq.s32.totalorder %s16, 1
    %p118 = scmp.ne.s32.totalorder %s113, %s115
    %p119 = scmp.eq.s32.totalorder %s16, 0
    %p120 = por %p118, %p119
    %p121 = scmp.ne.s32.totalorder %s113, %s115
    %p122 = scmp.eq.s32.totalorder %s21, 1
    %p123 = por %p121, %p122
    %p124 = scmp.ne.s32.totalorder %s115, %s116
    %p125 = scmp.eq.s32.totalorder %s21, 0
    %p126 = por %p124, %p125
    %p127 = scmp.ne.s32.totalorder %s115, %s116
    %p128 = scmp.eq.s32.totalorder %s22, 1
    %p129 = por %p127, %p128
    %p131 = scmp.ne.s32.totalorder %s116, %s130
    %p132 = scmp.eq.s32.totalorder %s22, 0
    %p133 = por %p131, %p132
    %s135 = sadd.s32 %s134, 1
    %p138 = scmp.eq.s32.totalorder %s16, 1
    %p139 = scmp.ne.s32.totalorder %s134, %s136
    %p140 = scmp.eq.s32.totalorder %s16, 0
    %p141 = por %p139, %p140
    %p142 = scmp.ne.s32.totalorder %s134, %s136
    %p143 = scmp.eq.s32.totalorder %s21, 1
    %p144 = por %p142, %p143
    %p145 = scmp.ne.s32.totalorder %s136, %s137
    %p146 = scmp.eq.s32.totalorder %s21, 0
    %p147 = por %p145, %p146
    %p148 = scmp.ne.s32.totalorder %s136, %s137
    %p149 = scmp.eq.s32.totalorder %s22, 1
    %p150 = por %p148, %p149
    %p152 = scmp.ne.s32.totalorder %s137, %s151
    %p153 = scmp.eq.s32.totalorder %s22, 0
    %p154 = por %p152, %p153
    %s156 = sadd.s32 %s155, 1
    %p159 = scmp.eq.s32.totalorder %s16, 1
    %p160 = scmp.ne.s32.totalorder %s155, %s157
    %p161 = scmp.eq.s32.totalorder %s16, 0
    %p162 = por %p160, %p161
    %p163 = scmp.ne.s32.totalorder %s155, %s157
    %p164 = scmp.eq.s32.totalorder %s21, 1
    %p165 = por %p163, %p164
    %p166 = scmp.ne.s32.totalorder %s157, %s158
    %p167 = scmp.eq.s32.totalorder %s21, 0
    %p168 = por %p166, %p167
    %p169 = scmp.ne.s32.totalorder %s157, %s158
    %p170 = scmp.eq.s32.totalorder %s22, 1
    %p171 = por %p169, %p170
    %p173 = scmp.ne.s32.totalorder %s158, %s172
    %p174 = scmp.eq.s32.totalorder %s22, 0
    %p175 = por %p173, %p174
    %s177 = sadd.s32 %s176, 1
    %p180 = scmp.eq.s32.totalorder %s16, 1
    %p181 = scmp.ne.s32.totalorder %s176, %s178
    %p182 = scmp.eq.s32.totalorder %s16, 0
    %p183 = por %p181, %p182
    %p184 = scmp.ne.s32.totalorder %s176, %s178
    %p185 = scmp.eq.s32.totalorder %s21, 1
    %p186 = por %p184, %p185
    %p187 = scmp.ne.s32.totalorder %s178, %s179
    %p188 = scmp.eq.s32.totalorder %s21, 0
    %p189 = por %p187, %p188
    %p190 = scmp.ne.s32.totalorder %s178, %s179
    %p191 = scmp.eq.s32.totalorder %s22, 1
    %p192 = por %p190, %p191
    %p194 = scmp.ne.s32.totalorder %s179, %s193
    %p195 = scmp.eq.s32.totalorder %s22, 0
    %p196 = por %p194, %p195
    %s198 = sadd.s32 %s197, 1
    %p201 = scmp.eq.s32.totalorder %s16, 1
    %p202 = scmp.ne.s32.totalorder %s197, %s199
    %p203 = scmp.eq.s32.totalorder %s16, 0
    %p204 = por %p202, %p203
    %p205 = scmp.ne.s32.totalorder %s197, %s199
    %p206 = scmp.eq.s32.totalorder %s21, 1
    %p207 = por %p205, %p206
    %p208 = scmp.ne.s32.totalorder %s199, %s200
    %p209 = scmp.eq.s32.totalorder %s21, 0
    %p210 = por %p208, %p209
    %p211 = scmp.ne.s32.totalorder %s199, %s200
    %p212 = scmp.eq.s32.totalorder %s22, 1
    %p213 = por %p211, %p212
    %p215 = scmp.ne.s32.totalorder %s200, %s214
    %p216 = scmp.eq.s32.totalorder %s22, 0
    %p217 = por %p215, %p216
    %s219 = sadd.s32 %s218, 1
    %p222 = scmp.eq.s32.totalorder %s16, 1
    %p223 = scmp.ne.s32.totalorder %s218, %s220
    %p224 = scmp.eq.s32.totalorder %s16, 0
    %p225 = por %p223, %p224
    %p226 = scmp.ne.s32.totalorder %s218, %s220
    %p227 = scmp.eq.s32.totalorder %s21, 1
    %p228 = por %p226, %p227
    %p229 = scmp.ne.s32.totalorder %s220, %s221
    %p230 = scmp.eq.s32.totalorder %s21, 0
    %p231 = por %p229, %p230
    %p232 = scmp.ne.s32.totalorder %s220, %s221
    %p233 = scmp.eq.s32.totalorder %s22, 1
    %p234 = por %p232, %p233
    %p236 = scmp.ne.s32.totalorder %s221, %s235
    %p237 = scmp.eq.s32.totalorder %s22, 0
    %p238 = por %p236, %p237
    %s239 = ssub.s32 %s16, %s23
    %p240 = scmp.eq.s32.totalorder %s239, 0
    %s242 = sadd.s32 %s241, 1
    %s243 = scalar_select %p240, %s241, %s242
    %p246 = pneg %p240
    %p247 = scmp.eq.s32.totalorder %s16, 1
    %p248 = por %p246, %p247
    %p249 = scmp.ne.s32.totalorder %s241, %s244
    %p250 = scmp.eq.s32.totalorder %s16, 0
    %p251 = por %p249, %p250
    %p252 = scmp.ne.s32.totalorder %s241, %s244
    %p253 = scmp.eq.s32.totalorder %s21, 1
    %p254 = por %p252, %p253
    %p255 = scmp.ne.s32.totalorder %s244, %s245
    %p256 = scmp.eq.s32.totalorder %s21, 0
    %p257 = por %p255, %p256
    %p258 = scmp.ne.s32.totalorder %s244, %s245
    %p259 = scmp.eq.s32.totalorder %s22, 1
    %p260 = por %p258, %p259
    %p262 = scmp.ne.s32.totalorder %s245, %s261
    %p263 = scmp.eq.s32.totalorder %s22, 0
    %p264 = por %p262, %p263
    %p265 = scmp.le.s32.totalorder 1, %s16
    %p266 = scmp.lt.s32.totalorder %s16, 3
    %p267 = pnand %p265, %p266
    %p268 = pneg %p267
    // Predicated region
    $region9: #{extract_features.2} parent=5 // pred_check
      _
    $region10: #{extract_features.2} parent=5 // pred_check_branch
      %270 = sbr.rel (%p267) target = $region12
    $region11: #{extract_features.2} parent=5 // pred_region
      %s271 = ssub.s32 %s16, 1
      // Predicated region
      $region13: #{extract_features.2} parent=11 // pred_check
        %p272 = pneg %p63
      $region14: #{extract_features.2} parent=11 // pred_check_branch
        %274 = sbr.rel (%p272) target = $region16
      $region15: #{extract_features.2} parent=11 // pred_region
        _
      $region16: #{extract_features.2} parent=11 // pred_fallthru
        _
      // Predicated region
      $region17: #{extract_features.2} parent=11 // pred_check
        %p275 = pneg %p84
      $region18: #{extract_features.2} parent=11 // pred_check_branch
        %277 = sbr.rel (%p275) target = $region20
      $region19: #{extract_features.2} parent=11 // pred_region
        _
      $region20: #{extract_features.2} parent=11 // pred_fallthru
        _
      // Predicated region
      $region21: #{extract_features.2} parent=11 // pred_check
        %p278 = pneg %p105
      $region22: #{extract_features.2} parent=11 // pred_check_branch
        %280 = sbr.rel (%p278) target = $region24
      $region23: #{extract_features.2} parent=11 // pred_region
        _
      $region24: #{extract_features.2} parent=11 // pred_fallthru
        _
      // Predicated region
      $region25: #{extract_features.2} parent=11 // pred_check
        %p281 = pneg %p126
      $region26: #{extract_features.2} parent=11 // pred_check_branch
        %283 = sbr.rel (%p281) target = $region28
      $region27: #{extract_features.2} parent=11 // pred_region
        _
      $region28: #{extract_features.2} parent=11 // pred_fallthru
        _
      // Predicated region
      $region29: #{extract_features.2} parent=11 // pred_check
        %p284 = pneg %p147
      $region30: #{extract_features.2} parent=11 // pred_check_branch
        %286 = sbr.rel (%p284) target = $region32
      $region31: #{extract_features.2} parent=11 // pred_region
        _
      $region32: #{extract_features.2} parent=11 // pred_fallthru
        _
      // Predicated region
      $region33: #{extract_features.2} parent=11 // pred_check
        %p287 = pneg %p168
      $region34: #{extract_features.2} parent=11 // pred_check_branch
        %289 = sbr.rel (%p287) target = $region36
      $region35: #{extract_features.2} parent=11 // pred_region
        _
      $region36: #{extract_features.2} parent=11 // pred_fallthru
        _
      // Predicated region
      $region37: #{extract_features.2} parent=11 // pred_check
        %p290 = pneg %p189
      $region38: #{extract_features.2} parent=11 // pred_check_branch
        %292 = sbr.rel (%p290) target = $region40
      $region39: #{extract_features.2} parent=11 // pred_region
        _
      $region40: #{extract_features.2} parent=11 // pred_fallthru
        _
      // Predicated region
      $region41: #{extract_features.2} parent=11 // pred_check
        %p293 = pneg %p210
      $region42: #{extract_features.2} parent=11 // pred_check_branch
        %295 = sbr.rel (%p293) target = $region44
      $region43: #{extract_features.2} parent=11 // pred_region
        _
      $region44: #{extract_features.2} parent=11 // pred_fallthru
        _
      // Predicated region
      $region45: #{extract_features.2} parent=11 // pred_check
        %p296 = pneg %p231
      $region46: #{extract_features.2} parent=11 // pred_check_branch
        %298 = sbr.rel (%p296) target = $region48
      $region47: #{extract_features.2} parent=11 // pred_region
        _
      $region48: #{extract_features.2} parent=11 // pred_fallthru
        _
    $region12: #{extract_features.2} parent=5 // pred_fallthru
      _
    %p299 = scmp.lt.s32.totalorder %s16, 2
    // Predicated region
    $region49: #{extract_features.2} parent=5 // pred_check
      %p300 = pneg %p299
    $region50: #{extract_features.2} parent=5 // pred_check_branch
      %302 = sbr.rel (%p300) target = $region52
    $region51: #{extract_features.2} parent=5 // pred_region
      // Predicated region
      $region53: #{extract_features.2} parent=51 // pred_check
        %p303 = pneg %p36
      $region54: #{extract_features.2} parent=51 // pred_check_branch
        %305 = sbr.rel (%p303) target = $region56
      $region55: #{extract_features.2} parent=51 // pred_region
        %p306 = scmp.lt.s32.totalorder %s16, 1
        %s307 = scalar_select %p306, %s16, 1
        %s308 = smul.addr %s307, 80
        %s309 = smul.addr %s308, 8
        %s310 = scalar_lea.vmem %s0, %s309
      $region56: #{extract_features.2} parent=51 // pred_fallthru
        _
    $region52: #{extract_features.2} parent=5 // pred_fallthru
      _
    %p311 = scmp.le.s32.totalorder 1, %s16
    %p312 = scmp.lt.s32.totalorder %s16, 3
    %p313 = pnand %p311, %p312
    %p314 = pneg %p313
    // Predicated region
    $region57: #{extract_features.2} parent=5 // pred_check
      _
    $region58: #{extract_features.2} parent=5 // pred_check_branch
      %316 = sbr.rel (%p313) target = $region60
    $region59: #{extract_features.2} parent=5 // pred_region
      %s317 = ssub.s32 %s16, 1
      %p318 = scmp.lt.s32.totalorder %s21, 1
      %s319 = scalar_select %p318, %s21, 1
      %s320 = smul.addr %s319, 80
      %s321 = smul.addr %s320, 8
      %s322 = scalar_lea.vmem %s0, %s321
      %p323 = pneg %p42
      %p324 = pneg %p39
      %p325 = pneg %p63
      %p326 = pneg %p60
      %p327 = pneg %p84
      %p328 = pneg %p81
      %p329 = pneg %p105
      %p330 = pneg %p102
      %p331 = pneg %p126
      %p332 = pneg %p123
      %p333 = pneg %p147
      %p334 = pneg %p144
      %p335 = pneg %p168
      %p336 = pneg %p165
      %p337 = pneg %p189
      %p338 = pneg %p186
      %p339 = pneg %p210
      %p340 = pneg %p207
      %p341 = pneg %p231
      %p342 = pneg %p228
      %p343 = pneg %p257
      %p344 = pneg %p254
      %p345 = scmp.lt.s32.totalorder %s21, 1
      %s346 = scalar_select %p345, %s21, 1
      %s347 = smul.addr %s346, 2
      %s348 = smul.addr %s347, 8
      %s349 = scalar_lea.vmem %s10, %s348
      %p350 = scmp.lt.s32.totalorder %s21, 1
      %s351 = scalar_select %p350, %s21, 1
      %s352 = smul.addr %s351, 80
      %s353 = smul.addr %s352, 8
      %s354 = scalar_lea.vmem %s0, %s353
      %p355 = scmp.lt.s32.totalorder %s21, 1
      %s356 = scalar_select %p355, %s21, 1
      %s357 = smul.addr %s356, 2
      %s358 = smul.addr %s357, 8
      %s359 = scalar_lea.vmem %s10, %s358
      %v361 = vld [vmem:[%s354] sm:$0xff]
      %v362 = vld [vmem:[%s354 + $0x8] sm:$0xff]
      %v363 = vld [vmem:[%s354 + $0x10] sm:$0xff]
      %v364 = vld [vmem:[%s354 + $0x18] sm:$0xff]
      %v365 = vld [vmem:[%s354 + $0x20] sm:$0xff]
      %v366 = vld [vmem:[%s354 + $0x28] sm:$0xff]
      %v367 = vld [vmem:[%s354 + $0x30] sm:$0xff]
      %v368 = vld [vmem:[%s354 + $0x38] sm:$0xff]
      %v369 = vld [vmem:[%s354 + $0x40] sm:$0xff]
      %v370 = vld [vmem:[%s354 + $0x48] sm:$0xff]
      %v371 = vld [vmem:[%s354 + $0x50] sm:$0xff]
      %v372 = vld [vmem:[%s354 + $0x58] sm:$0xff]
      %v373 = vld [vmem:[%s354 + $0x60] sm:$0xff]
      %v374 = vld [vmem:[%s354 + $0x68] sm:$0xff]
      %v375 = vld [vmem:[%s354 + $0x70] sm:$0xff]
      %v376 = vld [vmem:[%s354 + $0x78] sm:$0xff]
      %v377 = vld [vmem:[%s354 + $0x80] sm:$0xff]
      %v378 = vld [vmem:[%s354 + $0x88] sm:$0xff]
      %v379 = vld [vmem:[%s354 + $0x90] sm:$0xff]
      %v380 = vld [vmem:[%s354 + $0x98] sm:$0xff]
      %v381 = vld [vmem:[%s354 + $0xa0] sm:$0xff]
      %v382 = vld [vmem:[%s354 + $0xa8] sm:$0xff]
      %v383 = vld [vmem:[%s354 + $0xb0] sm:$0xff]
      %v384 = vld [vmem:[%s354 + $0xb8] sm:$0xff]
      %v385 = vld [vmem:[%s354 + $0xc0] sm:$0xff]
      %v386 = vld [vmem:[%s354 + $0xc8] sm:$0xff]
      %v387 = vld [vmem:[%s354 + $0xd0] sm:$0xff]
      %v388 = vld [vmem:[%s354 + $0xd8] sm:$0xff]
      %v389 = vld [vmem:[%s354 + $0xe0] sm:$0xff]
      %v390 = vld [vmem:[%s354 + $0xe8] sm:$0xff]
      %v391 = vld [vmem:[%s354 + $0xf0] sm:$0xff]
      %v392 = vld [vmem:[%s354 + $0xf8] sm:$0xff]
      %v393 = vld [vmem:[%s354 + $0x100] sm:$0xff]
      %v394 = vld [vmem:[%s354 + $0x108] sm:$0xff]
      %v395 = vld [vmem:[%s354 + $0x110] sm:$0xff]
      %v396 = vld [vmem:[%s354 + $0x118] sm:$0xff]
      %v397 = vld [vmem:[%s354 + $0x120] sm:$0xff]
      %v398 = vld [vmem:[%s354 + $0x128] sm:$0xff]
      %v399 = vld [vmem:[%s354 + $0x130] sm:$0xff]
      %v400 = vld [vmem:[%s354 + $0x138] sm:$0xff]
      %v401 = vld [vmem:[%s354 + $0x140] sm:$0xff]
      %v402 = vld [vmem:[%s354 + $0x148] sm:$0xff]
      %v403 = vld [vmem:[%s354 + $0x150] sm:$0xff]
      %v404 = vld [vmem:[%s354 + $0x158] sm:$0xff]
      %v405 = vld [vmem:[%s354 + $0x160] sm:$0xff]
      %v406 = vld [vmem:[%s354 + $0x168] sm:$0xff]
      %v407 = vld [vmem:[%s354 + $0x170] sm:$0xff]
      %v408 = vld [vmem:[%s354 + $0x178] sm:$0xff]
      %v409 = vld [vmem:[%s354 + $0x180] sm:$0xff]
      %v410 = vld [vmem:[%s354 + $0x188] sm:$0xff]
      %v411 = vld [vmem:[%s354 + $0x190] sm:$0xff]
      %v412 = vld [vmem:[%s354 + $0x198] sm:$0xff]
      %v413 = vld [vmem:[%s354 + $0x1a0] sm:$0xff]
      %v414 = vld [vmem:[%s354 + $0x1a8] sm:$0xff]
      %v415 = vld [vmem:[%s354 + $0x1b0] sm:$0xff]
      %v416 = vld [vmem:[%s354 + $0x1b8] sm:$0xff]
      %v417 = vld [vmem:[%s354 + $0x1c0] sm:$0xff]
      %v418 = vld [vmem:[%s354 + $0x1c8] sm:$0xff]
      %v419 = vld [vmem:[%s354 + $0x1d0] sm:$0xff]
      %v420 = vld [vmem:[%s354 + $0x1d8] sm:$0xff]
      %v421 = vld [vmem:[%s354 + $0x1e0] sm:$0xff]
      %v422 = vld [vmem:[%s354 + $0x1e8] sm:$0xff]
      %v423 = vld [vmem:[%s354 + $0x1f0] sm:$0xff]
      %v424 = vld [vmem:[%s354 + $0x1f8] sm:$0xff]
      %v425 = vld [vmem:[%s354 + $0x200] sm:$0xff]
      %v426 = vld [vmem:[%s354 + $0x208] sm:$0xff]
      %v427 = vld [vmem:[%s354 + $0x210] sm:$0xff]
      %v428 = vld [vmem:[%s354 + $0x218] sm:$0xff]
      %v429 = vld [vmem:[%s354 + $0x220] sm:$0xff]
      %v430 = vld [vmem:[%s354 + $0x228] sm:$0xff]
      %v431 = vld [vmem:[%s354 + $0x230] sm:$0xff]
      %v432 = vld [vmem:[%s354 + $0x238] sm:$0xff]
      %v433 = vld [vmem:[%s354 + $0x240] sm:$0xff]
      %v434 = vld [vmem:[%s354 + $0x248] sm:$0xff]
      %v435 = vld [vmem:[%s354 + $0x250] sm:$0xff]
      %v436 = vld [vmem:[%s354 + $0x258] sm:$0xff]
      %v437 = vld [vmem:[%s354 + $0x260] sm:$0xff]
      %v438 = vld [vmem:[%s354 + $0x268] sm:$0xff]
      %v439 = vld [vmem:[%s354 + $0x270] sm:$0xff]
      %v440 = vld [vmem:[%s354 + $0x278] sm:$0x7f]
      %v441 = vpack.c.bf16 %v362, %v361
      %v442 = vpack.c.bf16 %v364, %v363
      %v443 = vpack.c.bf16 %v366, %v365
      %v444 = vpack.c.bf16 %v368, %v367
      %v445 = vpack.c.bf16 %v370, %v369
      %v446 = vpack.c.bf16 %v372, %v371
      %v447 = vpack.c.bf16 %v374, %v373
      %v448 = vpack.c.bf16 %v376, %v375
      %v449 = vpack.c.bf16 %v378, %v377
      %v450 = vpack.c.bf16 %v380, %v379
      %v451 = vpack.c.bf16 %v382, %v381
      %v452 = vpack.c.bf16 %v384, %v383
      %v453 = vpack.c.bf16 %v386, %v385
      %v454 = vpack.c.bf16 %v388, %v387
      %v455 = vpack.c.bf16 %v390, %v389
      %v456 = vpack.c.bf16 %v392, %v391
      %v457 = vpack.c.bf16 %v394, %v393
      %v458 = vpack.c.bf16 %v396, %v395
      %v459 = vpack.c.bf16 %v398, %v397
      %v460 = vpack.c.bf16 %v400, %v399
      %v461 = vpack.c.bf16 %v402, %v401
      %v462 = vpack.c.bf16 %v404, %v403
      %v463 = vpack.c.bf16 %v406, %v405
      %v464 = vpack.c.bf16 %v408, %v407
      %v465 = vpack.c.bf16 %v410, %v409
      %v466 = vpack.c.bf16 %v412, %v411
      %v467 = vpack.c.bf16 %v414, %v413
      %v468 = vpack.c.bf16 %v416, %v415
      %v469 = vpack.c.bf16 %v418, %v417
      %v470 = vpack.c.bf16 %v420, %v419
      %v471 = vpack.c.bf16 %v422, %v421
      %v472 = vpack.c.bf16 %v424, %v423
      %v473 = vpack.c.bf16 %v426, %v425
      %v474 = vpack.c.bf16 %v428, %v427
      %v475 = vpack.c.bf16 %v430, %v429
      %v476 = vpack.c.bf16 %v432, %v431
      %v477 = vpack.c.bf16 %v434, %v433
      %v478 = vpack.c.bf16 %v436, %v435
      %v479 = vpack.c.bf16 %v438, %v437
      %v480 = vpack.c.bf16 %v440, %v439
      %v481 = vld [vmem:[%s1] sm:$0x7]
      %v482 = vld [vmem:[%s354 + $0x1] sm:$0xff]
      %v483 = vld [vmem:[%s354 + $0x9] sm:$0xff]
      %v484 = vld [vmem:[%s354 + $0x11] sm:$0xff]
      %v485 = vld [vmem:[%s354 + $0x19] sm:$0xff]
      %v486 = vld [vmem:[%s354 + $0x21] sm:$0xff]
      %v487 = vld [vmem:[%s354 + $0x29] sm:$0xff]
      %v488 = vld [vmem:[%s354 + $0x31] sm:$0xff]
      %v489 = vld [vmem:[%s354 + $0x39] sm:$0xff]
      %v490 = vld [vmem:[%s354 + $0x41] sm:$0xff]
      %v491 = vld [vmem:[%s354 + $0x49] sm:$0xff]
      %v492 = vld [vmem:[%s354 + $0x51] sm:$0xff]
      %v493 = vld [vmem:[%s354 + $0x59] sm:$0xff]
      %v494 = vld [vmem:[%s354 + $0x61] sm:$0xff]
      %v495 = vld [vmem:[%s354 + $0x69] sm:$0xff]
      %v496 = vld [vmem:[%s354 + $0x71] sm:$0xff]
      %v497 = vld [vmem:[%s354 + $0x79] sm:$0xff]
      %v498 = vld [vmem:[%s354 + $0x81] sm:$0xff]
      %v499 = vld [vmem:[%s354 + $0x89] sm:$0xff]
      %v500 = vld [vmem:[%s354 + $0x91] sm:$0xff]
      %v501 = vld [vmem:[%s354 + $0x99] sm:$0xff]
      %v502 = vld [vmem:[%s354 + $0xa1] sm:$0xff]
      %v503 = vld [vmem:[%s354 + $0xa9] sm:$0xff]
      %v504 = vld [vmem:[%s354 + $0xb1] sm:$0xff]
      %v505 = vld [vmem:[%s354 + $0xb9] sm:$0xff]
      %v506 = vld [vmem:[%s354 + $0xc1] sm:$0xff]
      %v507 = vld [vmem:[%s354 + $0xc9] sm:$0xff]
      %v508 = vld [vmem:[%s354 + $0xd1] sm:$0xff]
      %v509 = vld [vmem:[%s354 + $0xd9] sm:$0xff]
      %v510 = vld [vmem:[%s354 + $0xe1] sm:$0xff]
      %v511 = vld [vmem:[%s354 + $0xe9] sm:$0xff]
      %v512 = vld [vmem:[%s354 + $0xf1] sm:$0xff]
      %v513 = vld [vmem:[%s354 + $0xf9] sm:$0xff]
      %v514 = vld [vmem:[%s354 + $0x101] sm:$0xff]
      %v515 = vld [vmem:[%s354 + $0x109] sm:$0xff]
      %v516 = vld [vmem:[%s354 + $0x111] sm:$0xff]
      %v517 = vld [vmem:[%s354 + $0x119] sm:$0xff]
      %v518 = vld [vmem:[%s354 + $0x121] sm:$0xff]
      %v519 = vld [vmem:[%s354 + $0x129] sm:$0xff]
      %v520 = vld [vmem:[%s354 + $0x131] sm:$0xff]
      %v521 = vld [vmem:[%s354 + $0x139] sm:$0xff]
      %v522 = vld [vmem:[%s354 + $0x141] sm:$0xff]
      %v523 = vld [vmem:[%s354 + $0x149] sm:$0xff]
      %v524 = vld [vmem:[%s354 + $0x151] sm:$0xff]
      %v525 = vld [vmem:[%s354 + $0x159] sm:$0xff]
      %v526 = vld [vmem:[%s354 + $0x161] sm:$0xff]
      %v527 = vld [vmem:[%s354 + $0x169] sm:$0xff]
      %v528 = vld [vmem:[%s354 + $0x171] sm:$0xff]
      %v529 = vld [vmem:[%s354 + $0x179] sm:$0xff]
      %v530 = vld [vmem:[%s354 + $0x181] sm:$0xff]
      %v531 = vld [vmem:[%s354 + $0x189] sm:$0xff]
      %v532 = vld [vmem:[%s354 + $0x191] sm:$0xff]
      %v533 = vld [vmem:[%s354 + $0x199] sm:$0xff]
      %v534 = vld [vmem:[%s354 + $0x1a1] sm:$0xff]
      %v535 = vld [vmem:[%s354 + $0x1a9] sm:$0xff]
      %v536 = vld [vmem:[%s354 + $0x1b1] sm:$0xff]
      %v537 = vld [vmem:[%s354 + $0x1b9] sm:$0xff]
      %v538 = vld [vmem:[%s354 + $0x1c1] sm:$0xff]
      %v539 = vld [vmem:[%s354 + $0x1c9] sm:$0xff]
      %v540 = vld [vmem:[%s354 + $0x1d1] sm:$0xff]
      %v541 = vld [vmem:[%s354 + $0x1d9] sm:$0xff]
      %v542 = vld [vmem:[%s354 + $0x1e1] sm:$0xff]
      %v543 = vld [vmem:[%s354 + $0x1e9] sm:$0xff]
      %v544 = vld [vmem:[%s354 + $0x1f1] sm:$0xff]
      %v545 = vld [vmem:[%s354 + $0x1f9] sm:$0xff]
      %v546 = vld [vmem:[%s354 + $0x201] sm:$0xff]
      %v547 = vld [vmem:[%s354 + $0x209] sm:$0xff]
      %v548 = vld [vmem:[%s354 + $0x211] sm:$0xff]
      %v549 = vld [vmem:[%s354 + $0x219] sm:$0xff]
      %v550 = vld [vmem:[%s354 + $0x221] sm:$0xff]
      %v551 = vld [vmem:[%s354 + $0x229] sm:$0xff]
      %v552 = vld [vmem:[%s354 + $0x231] sm:$0xff]
      %v553 = vld [vmem:[%s354 + $0x239] sm:$0xff]
      %v554 = vld [vmem:[%s354 + $0x241] sm:$0xff]
      %v555 = vld [vmem:[%s354 + $0x249] sm:$0xff]
      %v556 = vld [vmem:[%s354 + $0x251] sm:$0xff]
      %v557 = vld [vmem:[%s354 + $0x259] sm:$0xff]
      %v558 = vld [vmem:[%s354 + $0x261] sm:$0xff]
      %v559 = vld [vmem:[%s354 + $0x269] sm:$0xff]
      %v560 = vld [vmem:[%s354 + $0x271] sm:$0xff]
      %v561 = vld [vmem:[%s354 + $0x279] sm:$0x7f]
      %v562 = vpack.c.bf16 %v483, %v482
      %v563 = vpack.c.bf16 %v485, %v484
      %v564 = vpack.c.bf16 %v487, %v486
      %v565 = vpack.c.bf16 %v489, %v488
      %v566 = vpack.c.bf16 %v491, %v490
      %v567 = vpack.c.bf16 %v493, %v492
      %v568 = vpack.c.bf16 %v495, %v494
      %v569 = vpack.c.bf16 %v497, %v496
      %v570 = vpack.c.bf16 %v499, %v498
      %v571 = vpack.c.bf16 %v501, %v500
      %v572 = vpack.c.bf16 %v503, %v502
      %v573 = vpack.c.bf16 %v505, %v504
      %v574 = vpack.c.bf16 %v507, %v506
      %v575 = vpack.c.bf16 %v509, %v508
      %v576 = vpack.c.bf16 %v511, %v510
      %v577 = vpack.c.bf16 %v513, %v512
      %v578 = vpack.c.bf16 %v515, %v514
      %v579 = vpack.c.bf16 %v517, %v516
      %v580 = vpack.c.bf16 %v519, %v518
      %v581 = vpack.c.bf16 %v521, %v520
      %v582 = vpack.c.bf16 %v523, %v522
      %v583 = vpack.c.bf16 %v525, %v524
      %v584 = vpack.c.bf16 %v527, %v526
      %v585 = vpack.c.bf16 %v529, %v528
      %v586 = vpack.c.bf16 %v531, %v530
      %v587 = vpack.c.bf16 %v533, %v532
      %v588 = vpack.c.bf16 %v535, %v534
      %v589 = vpack.c.bf16 %v537, %v536
      %v590 = vpack.c.bf16 %v539, %v538
      %v591 = vpack.c.bf16 %v541, %v540
      %v592 = vpack.c.bf16 %v543, %v542
      %v593 = vpack.c.bf16 %v545, %v544
      %v594 = vpack.c.bf16 %v547, %v546
      %v595 = vpack.c.bf16 %v549, %v548
      %v596 = vpack.c.bf16 %v551, %v550
      %v597 = vpack.c.bf16 %v553, %v552
      %v598 = vpack.c.bf16 %v555, %v554
      %v599 = vpack.c.bf16 %v557, %v556
      %v600 = vpack.c.bf16 %v559, %v558
      %v601 = vpack.c.bf16 %v561, %v560
      %s602 = scalar_lea.vmem %s1, 4
      %v603 = vld [vmem:[%s602] sm:$0x7]
      %vm604 = vcmask 39936
      %v606 = vsel %vm604, %v562, 0
      %v609 = vsel %vm604, %v563, 0
      %v612 = vsel %vm604, %v564, 0
      %v615 = vsel %vm604, %v565, 0
      %v618 = vsel %vm604, %v566, 0
      %v621 = vsel %vm604, %v567, 0
      %v624 = vsel %vm604, %v568, 0
      %v627 = vsel %vm604, %v569, 0
      %v630 = vsel %vm604, %v570, 0
      %v633 = vsel %vm604, %v571, 0
      %v636 = vsel %vm604, %v572, 0
      %v639 = vsel %vm604, %v573, 0
      %v642 = vsel %vm604, %v574, 0
      %v645 = vsel %vm604, %v575, 0
      %v648 = vsel %vm604, %v576, 0
      %v651 = vsel %vm604, %v577, 0
      %v654 = vsel %vm604, %v578, 0
      %v657 = vsel %vm604, %v579, 0
      %v660 = vsel %vm604, %v580, 0
      %v663 = vsel %vm604, %v581, 0
      %v666 = vsel %vm604, %v582, 0
      %v669 = vsel %vm604, %v583, 0
      %v672 = vsel %vm604, %v584, 0
      %v675 = vsel %vm604, %v585, 0
      %v678 = vsel %vm604, %v586, 0
      %v681 = vsel %vm604, %v587, 0
      %v684 = vsel %vm604, %v588, 0
      %v687 = vsel %vm604, %v589, 0
      %v690 = vsel %vm604, %v590, 0
      %v693 = vsel %vm604, %v591, 0
      %v696 = vsel %vm604, %v592, 0
      %v699 = vsel %vm604, %v593, 0
      %v702 = vsel %vm604, %v594, 0
      %v705 = vsel %vm604, %v595, 0
      %v708 = vsel %vm604, %v596, 0
      %v711 = vsel %vm604, %v597, 0
      %v714 = vsel %vm604, %v598, 0
      %v717 = vsel %vm604, %v599, 0
      %v720 = vsel %vm604, %v600, 0
      %v723 = vsel %vm604, %v601, 0
      %vm725 = vcmask 1041408
      %vm726 = vcmask 1042432
      %v727 = vsel %vm725, 4294967295, 65535
      %v728 = vsel %vm726, %v727, 0
      %v730 = vand.u32 %v603, %v728
      %732 = vmatpush.bf16.msra.mxu0 0
      %733 = vmatpush.bf16.msra.mxu0 0
      %734 = vmatpush.bf16.msra.mxu0 0
      %735 = vmatpush.bf16.msra.mxu0 0
      %736 = vmatpush.bf16.msra.mxu0 0
      %737 = vmatpush.bf16.msra.mxu0 0
      %738 = vmatpush.bf16.msra.mxu0 0
      %739 = vmatpush.bf16.msra.mxu0 %v730
      %740 = vmatmul.bf16.gmra.mxu0 %v606
      %v741 = vpop.f32.mrf.mxu0
      %v742 = vadd.f32 0.0, %v741
      %v743 = vpop.f32.mrf.mxu0
      %v744 = vadd.f32 0.0, %v743
      %745 = vmatmul.bf16.gmra.mxu0 %v609
      %v746 = vpop.f32.mrf.mxu0
      %v747 = vadd.f32 0.0, %v746
      %v748 = vpop.f32.mrf.mxu0
      %v749 = vadd.f32 0.0, %v748
      %750 = vmatmul.bf16.gmra.mxu0 %v612
      %v751 = vpop.f32.mrf.mxu0
      %v752 = vadd.f32 0.0, %v751
      %v753 = vpop.f32.mrf.mxu0
      %v754 = vadd.f32 0.0, %v753
      %755 = vmatmul.bf16.gmra.mxu0 %v615
      %v756 = vpop.f32.mrf.mxu0
      %v757 = vadd.f32 0.0, %v756
      %v758 = vpop.f32.mrf.mxu0
      %v759 = vadd.f32 0.0, %v758
      %760 = vmatmul.bf16.gmra.mxu0 %v618
      %v761 = vpop.f32.mrf.mxu0
      %v762 = vadd.f32 0.0, %v761
      %v763 = vpop.f32.mrf.mxu0
      %v764 = vadd.f32 0.0, %v763
      %765 = vmatmul.bf16.gmra.mxu0 %v621
      %v766 = vpop.f32.mrf.mxu0
      %v767 = vadd.f32 0.0, %v766
      %v768 = vpop.f32.mrf.mxu0
      %v769 = vadd.f32 0.0, %v768
      %770 = vmatmul.bf16.gmra.mxu0 %v624
      %v771 = vpop.f32.mrf.mxu0
      %v772 = vadd.f32 0.0, %v771
      %v773 = vpop.f32.mrf.mxu0
      %v774 = vadd.f32 0.0, %v773
      %775 = vmatmul.bf16.gmra.mxu0 %v627
      %v776 = vpop.f32.mrf.mxu0
      %v777 = vadd.f32 0.0, %v776
      %v778 = vpop.f32.mrf.mxu0
      %v779 = vadd.f32 0.0, %v778
      %780 = vmatmul.bf16.gmra.mxu0 %v630
      %v781 = vpop.f32.mrf.mxu0
      %v782 = vadd.f32 0.0, %v781
      %v783 = vpop.f32.mrf.mxu0
      %v784 = vadd.f32 0.0, %v783
      %785 = vmatmul.bf16.gmra.mxu0 %v633
      %v786 = vpop.f32.mrf.mxu0
      %v787 = vadd.f32 0.0, %v786
      %v788 = vpop.f32.mrf.mxu0
      %v789 = vadd.f32 0.0, %v788
      %790 = vmatmul.bf16.gmra.mxu0 %v636
      %v791 = vpop.f32.mrf.mxu0
      %v792 = vadd.f32 0.0, %v791
      %v793 = vpop.f32.mrf.mxu0
      %v794 = vadd.f32 0.0, %v793
      %795 = vmatmul.bf16.gmra.mxu0 %v639
      %v796 = vpop.f32.mrf.mxu0
      %v797 = vadd.f32 0.0, %v796
      %v798 = vpop.f32.mrf.mxu0
      %v799 = vadd.f32 0.0, %v798
      %800 = vmatmul.bf16.gmra.mxu0 %v642
      %v801 = vpop.f32.mrf.mxu0
      %v802 = vadd.f32 0.0, %v801
      %v803 = vpop.f32.mrf.mxu0
      %v804 = vadd.f32 0.0, %v803
      %805 = vmatmul.bf16.gmra.mxu0 %v645
      %v806 = vpop.f32.mrf.mxu0
      %v807 = vadd.f32 0.0, %v806
      %v808 = vpop.f32.mrf.mxu0
      %v809 = vadd.f32 0.0, %v808
      %810 = vmatmul.bf16.gmra.mxu0 %v648
      %v811 = vpop.f32.mrf.mxu0
      %v812 = vadd.f32 0.0, %v811
      %v813 = vpop.f32.mrf.mxu0
      %v814 = vadd.f32 0.0, %v813
      %815 = vmatmul.bf16.gmra.mxu0 %v651
      %v816 = vpop.f32.mrf.mxu0
      %v817 = vadd.f32 0.0, %v816
      %v818 = vpop.f32.mrf.mxu0
      %v819 = vadd.f32 0.0, %v818
      %820 = vmatmul.bf16.gmra.mxu0 %v654
      %v821 = vpop.f32.mrf.mxu0
      %v822 = vadd.f32 0.0, %v821
      %v823 = vpop.f32.mrf.mxu0
      %v824 = vadd.f32 0.0, %v823
      %825 = vmatmul.bf16.gmra.mxu0 %v657
      %v826 = vpop.f32.mrf.mxu0
      %v827 = vadd.f32 0.0, %v826
      %v828 = vpop.f32.mrf.mxu0
      %v829 = vadd.f32 0.0, %v828
      %830 = vmatmul.bf16.gmra.mxu0 %v660
      %v831 = vpop.f32.mrf.mxu0
      %v832 = vadd.f32 0.0, %v831
      %v833 = vpop.f32.mrf.mxu0
      %v834 = vadd.f32 0.0, %v833
      %835 = vmatmul.bf16.gmra.mxu0 %v663
      %v836 = vpop.f32.mrf.mxu0
      %v837 = vadd.f32 0.0, %v836
      %v838 = vpop.f32.mrf.mxu0
      %v839 = vadd.f32 0.0, %v838
      %840 = vmatmul.bf16.gmra.mxu0 %v666
      %v841 = vpop.f32.mrf.mxu0
      %v842 = vadd.f32 0.0, %v841
      %v843 = vpop.f32.mrf.mxu0
      %v844 = vadd.f32 0.0, %v843
      %845 = vmatmul.bf16.gmra.mxu0 %v669
      %v846 = vpop.f32.mrf.mxu0
      %v847 = vadd.f32 0.0, %v846
      %v848 = vpop.f32.mrf.mxu0
      %v849 = vadd.f32 0.0, %v848
      %850 = vmatmul.bf16.gmra.mxu0 %v672
      %v851 = vpop.f32.mrf.mxu0
      %v852 = vadd.f32 0.0, %v851
      %v853 = vpop.f32.mrf.mxu0
      %v854 = vadd.f32 0.0, %v853
      %855 = vmatmul.bf16.gmra.mxu0 %v675
      %v856 = vpop.f32.mrf.mxu0
      %v857 = vadd.f32 0.0, %v856
      %v858 = vpop.f32.mrf.mxu0
      %v859 = vadd.f32 0.0, %v858
      %860 = vmatmul.bf16.gmra.mxu0 %v678
      %v861 = vpop.f32.mrf.mxu0
      %v862 = vadd.f32 0.0, %v861
      %v863 = vpop.f32.mrf.mxu0
      %v864 = vadd.f32 0.0, %v863
      %865 = vmatmul.bf16.gmra.mxu0 %v681
      %v866 = vpop.f32.mrf.mxu0
      %v867 = vadd.f32 0.0, %v866
      %v868 = vpop.f32.mrf.mxu0
      %v869 = vadd.f32 0.0, %v868
      %870 = vmatmul.bf16.gmra.mxu0 %v684
      %v871 = vpop.f32.mrf.mxu0
      %v872 = vadd.f32 0.0, %v871
      %v873 = vpop.f32.mrf.mxu0
      %v874 = vadd.f32 0.0, %v873
      %875 = vmatmul.bf16.gmra.mxu0 %v687
      %v876 = vpop.f32.mrf.mxu0
      %v877 = vadd.f32 0.0, %v876
      %v878 = vpop.f32.mrf.mxu0
      %v879 = vadd.f32 0.0, %v878
      %880 = vmatmul.bf16.gmra.mxu0 %v690
      %v881 = vpop.f32.mrf.mxu0
      %v882 = vadd.f32 0.0, %v881
      %v883 = vpop.f32.mrf.mxu0
      %v884 = vadd.f32 0.0, %v883
      %885 = vmatmul.bf16.gmra.mxu0 %v693
      %v886 = vpop.f32.mrf.mxu0
      %v887 = vadd.f32 0.0, %v886
      %v888 = vpop.f32.mrf.mxu0
      %v889 = vadd.f32 0.0, %v888
      %890 = vmatmul.bf16.gmra.mxu0 %v696
      %v891 = vpop.f32.mrf.mxu0
      %v892 = vadd.f32 0.0, %v891
      %v893 = vpop.f32.mrf.mxu0
      %v894 = vadd.f32 0.0, %v893
      %895 = vmatmul.bf16.gmra.mxu0 %v699
      %v896 = vpop.f32.mrf.mxu0
      %v897 = vadd.f32 0.0, %v896
      %v898 = vpop.f32.mrf.mxu0
      %v899 = vadd.f32 0.0, %v898
      %900 = vmatmul.bf16.gmra.mxu0 %v702
      %v901 = vpop.f32.mrf.mxu0
      %v902 = vadd.f32 0.0, %v901
      %v903 = vpop.f32.mrf.mxu0
      %v904 = vadd.f32 0.0, %v903
      %905 = vmatmul.bf16.gmra.mxu0 %v705
      %v906 = vpop.f32.mrf.mxu0
      %v907 = vadd.f32 0.0, %v906
      %v908 = vpop.f32.mrf.mxu0
      %v909 = vadd.f32 0.0, %v908
      %910 = vmatmul.bf16.gmra.mxu0 %v708
      %v911 = vpop.f32.mrf.mxu0
      %v912 = vadd.f32 0.0, %v911
      %v913 = vpop.f32.mrf.mxu0
      %v914 = vadd.f32 0.0, %v913
      %915 = vmatmul.bf16.gmra.mxu0 %v711
      %v916 = vpop.f32.mrf.mxu0
      %v917 = vadd.f32 0.0, %v916
      %v918 = vpop.f32.mrf.mxu0
      %v919 = vadd.f32 0.0, %v918
      %920 = vmatmul.bf16.gmra.mxu0 %v714
      %v921 = vpop.f32.mrf.mxu0
      %v922 = vadd.f32 0.0, %v921
      %v923 = vpop.f32.mrf.mxu0
      %v924 = vadd.f32 0.0, %v923
      %925 = vmatmul.bf16.gmra.mxu0 %v717
      %v926 = vpop.f32.mrf.mxu0
      %v927 = vadd.f32 0.0, %v926
      %v928 = vpop.f32.mrf.mxu0
      %v929 = vadd.f32 0.0, %v928
      %930 = vmatmul.bf16.gmra.mxu0 %v720
      %v931 = vpop.f32.mrf.mxu0
      %v932 = vadd.f32 0.0, %v931
      %v933 = vpop.f32.mrf.mxu0
      %v934 = vadd.f32 0.0, %v933
      %935 = vmatmul.bf16.gmra.mxu0 %v723
      %v936 = vpop.f32.mrf.mxu0
      %v937 = vadd.f32 0.0, %v936
      %v938 = vpop.f32.mrf.mxu0
      %v939 = vadd.f32 0.0, %v938
      %940 = vdwg.mxu0
      %v942 = vsel %vm604, %v441, 0
      %v945 = vsel %vm604, %v442, 0
      %v948 = vsel %vm604, %v443, 0
      %v951 = vsel %vm604, %v444, 0
      %v954 = vsel %vm604, %v445, 0
      %v957 = vsel %vm604, %v446, 0
      %v960 = vsel %vm604, %v447, 0
      %v963 = vsel %vm604, %v448, 0
      %v966 = vsel %vm604, %v449, 0
      %v969 = vsel %vm604, %v450, 0
      %v972 = vsel %vm604, %v451, 0
      %v975 = vsel %vm604, %v452, 0
      %v978 = vsel %vm604, %v453, 0
      %v981 = vsel %vm604, %v454, 0
      %v984 = vsel %vm604, %v455, 0
      %v987 = vsel %vm604, %v456, 0
      %v990 = vsel %vm604, %v457, 0
      %v993 = vsel %vm604, %v458, 0
      %v996 = vsel %vm604, %v459, 0
      %v999 = vsel %vm604, %v460, 0
      %v1002 = vsel %vm604, %v461, 0
      %v1005 = vsel %vm604, %v462, 0
      %v1008 = vsel %vm604, %v463, 0
      %v1011 = vsel %vm604, %v464, 0
      %v1014 = vsel %vm604, %v465, 0
      %v1017 = vsel %vm604, %v466, 0
      %v1020 = vsel %vm604, %v467, 0
      %v1023 = vsel %vm604, %v468, 0
      %v1026 = vsel %vm604, %v469, 0
      %v1029 = vsel %vm604, %v470, 0
      %v1032 = vsel %vm604, %v471, 0
      %v1035 = vsel %vm604, %v472, 0
      %v1038 = vsel %vm604, %v473, 0
      %v1041 = vsel %vm604, %v474, 0
      %v1044 = vsel %vm604, %v475, 0
      %v1047 = vsel %vm604, %v476, 0
      %v1050 = vsel %vm604, %v477, 0
      %v1053 = vsel %vm604, %v478, 0
      %v1056 = vsel %vm604, %v479, 0
      %v1059 = vsel %vm604, %v480, 0
      %v1062 = vand.u32 %v481, %v728
      %1064 = vmatpush.bf16.msra.mxu0 0
      %1065 = vmatpush.bf16.msra.mxu0 0
      %1066 = vmatpush.bf16.msra.mxu0 0
      %1067 = vmatpush.bf16.msra.mxu0 0
      %1068 = vmatpush.bf16.msra.mxu0 0
      %1069 = vmatpush.bf16.msra.mxu0 0
      %1070 = vmatpush.bf16.msra.mxu0 0
      %1071 = vmatpush.bf16.msra.mxu0 %v1062
      %1072 = vmatmul.bf16.gmra.mxu0 %v942
      %v1073 = vpop.f32.mrf.mxu0
      %v1074 = vadd.f32 %v742, %v1073
      %v1075 = vpop.f32.mrf.mxu0
      %v1076 = vadd.f32 %v744, %v1075
      %1077 = vmatmul.bf16.gmra.mxu0 %v945
      %v1078 = vpop.f32.mrf.mxu0
      %v1079 = vadd.f32 %v747, %v1078
      %v1080 = vpop.f32.mrf.mxu0
      %v1081 = vadd.f32 %v749, %v1080
      %1082 = vmatmul.bf16.gmra.mxu0 %v948
      %v1083 = vpop.f32.mrf.mxu0
      %v1084 = vadd.f32 %v752, %v1083
      %v1085 = vpop.f32.mrf.mxu0
      %v1086 = vadd.f32 %v754, %v1085
      %1087 = vmatmul.bf16.gmra.mxu0 %v951
      %v1088 = vpop.f32.mrf.mxu0
      %v1089 = vadd.f32 %v757, %v1088
      %v1090 = vpop.f32.mrf.mxu0
      %v1091 = vadd.f32 %v759, %v1090
      %1092 = vmatmul.bf16.gmra.mxu0 %v954
      %v1093 = vpop.f32.mrf.mxu0
      %v1094 = vadd.f32 %v762, %v1093
      %v1095 = vpop.f32.mrf.mxu0
      %v1096 = vadd.f32 %v764, %v1095
      %1097 = vmatmul.bf16.gmra.mxu0 %v957
      %v1098 = vpop.f32.mrf.mxu0
      %v1099 = vadd.f32 %v767, %v1098
      %v1100 = vpop.f32.mrf.mxu0
      %v1101 = vadd.f32 %v769, %v1100
      %1102 = vmatmul.bf16.gmra.mxu0 %v960
      %v1103 = vpop.f32.mrf.mxu0
      %v1104 = vadd.f32 %v772, %v1103
      %v1105 = vpop.f32.mrf.mxu0
      %v1106 = vadd.f32 %v774, %v1105
      %1107 = vmatmul.bf16.gmra.mxu0 %v963
      %v1108 = vpop.f32.mrf.mxu0
      %v1109 = vadd.f32 %v777, %v1108
      %v1110 = vpop.f32.mrf.mxu0
      %v1111 = vadd.f32 %v779, %v1110
      %1112 = vmatmul.bf16.gmra.mxu0 %v966
      %v1113 = vpop.f32.mrf.mxu0
      %v1114 = vadd.f32 %v782, %v1113
      %v1115 = vpop.f32.mrf.mxu0
      %v1116 = vadd.f32 %v784, %v1115
      %1117 = vmatmul.bf16.gmra.mxu0 %v969
      %v1118 = vpop.f32.mrf.mxu0
      %v1119 = vadd.f32 %v787, %v1118
      %v1120 = vpop.f32.mrf.mxu0
      %v1121 = vadd.f32 %v789, %v1120
      %1122 = vmatmul.bf16.gmra.mxu0 %v972
      %v1123 = vpop.f32.mrf.mxu0
      %v1124 = vadd.f32 %v792, %v1123
      %v1125 = vpop.f32.mrf.mxu0
      %v1126 = vadd.f32 %v794, %v1125
      %1127 = vmatmul.bf16.gmra.mxu0 %v975
      %v1128 = vpop.f32.mrf.mxu0
      %v1129 = vadd.f32 %v797, %v1128
      %v1130 = vpop.f32.mrf.mxu0
      %v1131 = vadd.f32 %v799, %v1130
      %1132 = vmatmul.bf16.gmra.mxu0 %v978
      %v1133 = vpop.f32.mrf.mxu0
      %v1134 = vadd.f32 %v802, %v1133
      %v1135 = vpop.f32.mrf.mxu0
      %v1136 = vadd.f32 %v804, %v1135
      %1137 = vmatmul.bf16.gmra.mxu0 %v981
      %v1138 = vpop.f32.mrf.mxu0
      %v1139 = vadd.f32 %v807, %v1138
      %v1140 = vpop.f32.mrf.mxu0
      %v1141 = vadd.f32 %v809, %v1140
      %1142 = vmatmul.bf16.gmra.mxu0 %v984
      %v1143 = vpop.f32.mrf.mxu0
      %v1144 = vadd.f32 %v812, %v1143
      %v1145 = vpop.f32.mrf.mxu0
      %v1146 = vadd.f32 %v814, %v1145
      %1147 = vmatmul.bf16.gmra.mxu0 %v987
      %v1148 = vpop.f32.mrf.mxu0
      %v1149 = vadd.f32 %v817, %v1148
      %v1150 = vpop.f32.mrf.mxu0
      %v1151 = vadd.f32 %v819, %v1150
      %1152 = vmatmul.bf16.gmra.mxu0 %v990
      %v1153 = vpop.f32.mrf.mxu0
      %v1154 = vadd.f32 %v822, %v1153
      %v1155 = vpop.f32.mrf.mxu0
      %v1156 = vadd.f32 %v824, %v1155
      %1157 = vmatmul.bf16.gmra.mxu0 %v993
      %v1158 = vpop.f32.mrf.mxu0
      %v1159 = vadd.f32 %v827, %v1158
      %v1160 = vpop.f32.mrf.mxu0
      %v1161 = vadd.f32 %v829, %v1160
      %1162 = vmatmul.bf16.gmra.mxu0 %v996
      %v1163 = vpop.f32.mrf.mxu0
      %v1164 = vadd.f32 %v832, %v1163
      %v1165 = vpop.f32.mrf.mxu0
      %v1166 = vadd.f32 %v834, %v1165
      %1167 = vmatmul.bf16.gmra.mxu0 %v999
      %v1168 = vpop.f32.mrf.mxu0
      %v1169 = vadd.f32 %v837, %v1168
      %v1170 = vpop.f32.mrf.mxu0
      %v1171 = vadd.f32 %v839, %v1170
      %1172 = vmatmul.bf16.gmra.mxu0 %v1002
      %v1173 = vpop.f32.mrf.mxu0
      %v1174 = vadd.f32 %v842, %v1173
      %v1175 = vpop.f32.mrf.mxu0
      %v1176 = vadd.f32 %v844, %v1175
      %1177 = vmatmul.bf16.gmra.mxu0 %v1005
      %v1178 = vpop.f32.mrf.mxu0
      %v1179 = vadd.f32 %v847, %v1178
      %v1180 = vpop.f32.mrf.mxu0
      %v1181 = vadd.f32 %v849, %v1180
      %1182 = vmatmul.bf16.gmra.mxu0 %v1008
      %v1183 = vpop.f32.mrf.mxu0
      %v1184 = vadd.f32 %v852, %v1183
      %v1185 = vpop.f32.mrf.mxu0
      %v1186 = vadd.f32 %v854, %v1185
      %1187 = vmatmul.bf16.gmra.mxu0 %v1011
      %v1188 = vpop.f32.mrf.mxu0
      %v1189 = vadd.f32 %v857, %v1188
      %v1190 = vpop.f32.mrf.mxu0
      %v1191 = vadd.f32 %v859, %v1190
      %1192 = vmatmul.bf16.gmra.mxu0 %v1014
      %v1193 = vpop.f32.mrf.mxu0
      %v1194 = vadd.f32 %v862, %v1193
      %v1195 = vpop.f32.mrf.mxu0
      %v1196 = vadd.f32 %v864, %v1195
      %1197 = vmatmul.bf16.gmra.mxu0 %v1017
      %v1198 = vpop.f32.mrf.mxu0
      %v1199 = vadd.f32 %v867, %v1198
      %v1200 = vpop.f32.mrf.mxu0
      %v1201 = vadd.f32 %v869, %v1200
      %1202 = vmatmul.bf16.gmra.mxu0 %v1020
      %v1203 = vpop.f32.mrf.mxu0
      %v1204 = vadd.f32 %v872, %v1203
      %v1205 = vpop.f32.mrf.mxu0
      %v1206 = vadd.f32 %v874, %v1205
      %1207 = vmatmul.bf16.gmra.mxu0 %v1023
      %v1208 = vpop.f32.mrf.mxu0
      %v1209 = vadd.f32 %v877, %v1208
      %v1210 = vpop.f32.mrf.mxu0
      %v1211 = vadd.f32 %v879, %v1210
      %1212 = vmatmul.bf16.gmra.mxu0 %v1026
      %v1213 = vpop.f32.mrf.mxu0
      %v1214 = vadd.f32 %v882, %v1213
      %v1215 = vpop.f32.mrf.mxu0
      %v1216 = vadd.f32 %v884, %v1215
      %1217 = vmatmul.bf16.gmra.mxu0 %v1029
      %v1218 = vpop.f32.mrf.mxu0
      %v1219 = vadd.f32 %v887, %v1218
      %v1220 = vpop.f32.mrf.mxu0
      %v1221 = vadd.f32 %v889, %v1220
      %1222 = vmatmul.bf16.gmra.mxu0 %v1032
      %v1223 = vpop.f32.mrf.mxu0
      %v1224 = vadd.f32 %v892, %v1223
      %v1225 = vpop.f32.mrf.mxu0
      %v1226 = vadd.f32 %v894, %v1225
      %1227 = vmatmul.bf16.gmra.mxu0 %v1035
      %v1228 = vpop.f32.mrf.mxu0
      %v1229 = vadd.f32 %v897, %v1228
      %v1230 = vpop.f32.mrf.mxu0
      %v1231 = vadd.f32 %v899, %v1230
      %1232 = vmatmul.bf16.gmra.mxu0 %v1038
      %v1233 = vpop.f32.mrf.mxu0
      %v1234 = vadd.f32 %v902, %v1233
      %v1235 = vpop.f32.mrf.mxu0
      %v1236 = vadd.f32 %v904, %v1235
      %1237 = vmatmul.bf16.gmra.mxu0 %v1041
      %v1238 = vpop.f32.mrf.mxu0
      %v1239 = vadd.f32 %v907, %v1238
      %v1240 = vpop.f32.mrf.mxu0
      %v1241 = vadd.f32 %v909, %v1240
      %1242 = vmatmul.bf16.gmra.mxu0 %v1044
      %v1243 = vpop.f32.mrf.mxu0
      %v1244 = vadd.f32 %v912, %v1243
      %v1245 = vpop.f32.mrf.mxu0
      %v1246 = vadd.f32 %v914, %v1245
      %1247 = vmatmul.bf16.gmra.mxu0 %v1047
      %v1248 = vpop.f32.mrf.mxu0
      %v1249 = vadd.f32 %v917, %v1248
      %v1250 = vpop.f32.mrf.mxu0
      %v1251 = vadd.f32 %v919, %v1250
      %1252 = vmatmul.bf16.gmra.mxu0 %v1050
      %v1253 = vpop.f32.mrf.mxu0
      %v1254 = vadd.f32 %v922, %v1253
      %v1255 = vpop.f32.mrf.mxu0
      %v1256 = vadd.f32 %v924, %v1255
      %1257 = vmatmul.bf16.gmra.mxu0 %v1053
      %v1258 = vpop.f32.mrf.mxu0
      %v1259 = vadd.f32 %v927, %v1258
      %v1260 = vpop.f32.mrf.mxu0
      %v1261 = vadd.f32 %v929, %v1260
      %1262 = vmatmul.bf16.gmra.mxu0 %v1056
      %v1263 = vpop.f32.mrf.mxu0
      %v1264 = vadd.f32 %v932, %v1263
      %v1265 = vpop.f32.mrf.mxu0
      %v1266 = vadd.f32 %v934, %v1265
      %1267 = vmatmul.bf16.gmra.mxu0 %v1059
      %v1268 = vpop.f32.mrf.mxu0
      %v1269 = vadd.f32 %v937, %v1268
      %v1270 = vpop.f32.mrf.mxu0
      %v1271 = vadd.f32 %v939, %v1270
      %1272 = vdwg.mxu0
      %vm1273 = vcmask 195584
      %v1274 = vsel %vm1273, %v1074, 0.0
      %v1275 = vsel %vm1273, %v1076, 0.0
      %v1276 = vadd.f32 %v1274, %v1275
      %v1277 = vsel %vm1273, %v1079, 0.0
      %v1278 = vadd.f32 %v1276, %v1277
      %v1279 = vsel %vm1273, %v1081, 0.0
      %v1280 = vadd.f32 %v1278, %v1279
      %v1281 = vsel %vm1273, %v1084, 0.0
      %v1282 = vadd.f32 %v1280, %v1281
      %v1283 = vsel %vm1273, %v1086, 0.0
      %v1284 = vadd.f32 %v1282, %v1283
      %v1285 = vsel %vm1273, %v1089, 0.0
      %v1286 = vadd.f32 %v1284, %v1285
      %v1287 = vsel %vm1273, %v1091, 0.0
      %v1288 = vadd.f32 %v1286, %v1287
      %v1289 = vsel %vm1273, %v1094, 0.0
      %v1290 = vadd.f32 %v1288, %v1289
      %v1291 = vsel %vm1273, %v1096, 0.0
      %v1292 = vadd.f32 %v1290, %v1291
      %v1293 = vsel %vm1273, %v1099, 0.0
      %v1294 = vadd.f32 %v1292, %v1293
      %v1295 = vsel %vm1273, %v1101, 0.0
      %v1296 = vadd.f32 %v1294, %v1295
      %v1297 = vsel %vm1273, %v1104, 0.0
      %v1298 = vadd.f32 %v1296, %v1297
      %v1299 = vsel %vm1273, %v1106, 0.0
      %v1300 = vadd.f32 %v1298, %v1299
      %v1301 = vsel %vm1273, %v1109, 0.0
      %v1302 = vadd.f32 %v1300, %v1301
      %v1303 = vsel %vm1273, %v1111, 0.0
      %v1304 = vadd.f32 %v1302, %v1303
      %v1305 = vsel %vm1273, %v1114, 0.0
      %v1306 = vadd.f32 %v1304, %v1305
      %v1307 = vsel %vm1273, %v1116, 0.0
      %v1308 = vadd.f32 %v1306, %v1307
      %v1309 = vsel %vm1273, %v1119, 0.0
      %v1310 = vadd.f32 %v1308, %v1309
      %v1311 = vsel %vm1273, %v1121, 0.0
      %v1312 = vadd.f32 %v1310, %v1311
      %v1313 = vsel %vm1273, %v1124, 0.0
      %v1314 = vadd.f32 %v1312, %v1313
      %v1315 = vsel %vm1273, %v1126, 0.0
      %v1316 = vadd.f32 %v1314, %v1315
      %v1317 = vsel %vm1273, %v1129, 0.0
      %v1318 = vadd.f32 %v1316, %v1317
      %v1319 = vsel %vm1273, %v1131, 0.0
      %v1320 = vadd.f32 %v1318, %v1319
      %v1321 = vsel %vm1273, %v1134, 0.0
      %v1322 = vadd.f32 %v1320, %v1321
      %v1323 = vsel %vm1273, %v1136, 0.0
      %v1324 = vadd.f32 %v1322, %v1323
      %v1325 = vsel %vm1273, %v1139, 0.0
      %v1326 = vadd.f32 %v1324, %v1325
      %v1327 = vsel %vm1273, %v1141, 0.0
      %v1328 = vadd.f32 %v1326, %v1327
      %v1329 = vsel %vm1273, %v1144, 0.0
      %v1330 = vadd.f32 %v1328, %v1329
      %v1331 = vsel %vm1273, %v1146, 0.0
      %v1332 = vadd.f32 %v1330, %v1331
      %v1333 = vsel %vm1273, %v1149, 0.0
      %v1334 = vadd.f32 %v1332, %v1333
      %v1335 = vsel %vm1273, %v1151, 0.0
      %v1336 = vadd.f32 %v1334, %v1335
      %v1337 = vsel %vm1273, %v1154, 0.0
      %v1338 = vadd.f32 %v1336, %v1337
      %v1339 = vsel %vm1273, %v1156, 0.0
      %v1340 = vadd.f32 %v1338, %v1339
      %v1341 = vsel %vm1273, %v1159, 0.0
      %v1342 = vadd.f32 %v1340, %v1341
      %v1343 = vsel %vm1273, %v1161, 0.0
      %v1344 = vadd.f32 %v1342, %v1343
      %v1345 = vsel %vm1273, %v1164, 0.0
      %v1346 = vadd.f32 %v1344, %v1345
      %v1347 = vsel %vm1273, %v1166, 0.0
      %v1348 = vadd.f32 %v1346, %v1347
      %v1349 = vsel %vm1273, %v1169, 0.0
      %v1350 = vadd.f32 %v1348, %v1349
      %v1351 = vsel %vm1273, %v1171, 0.0
      %v1352 = vadd.f32 %v1350, %v1351
      %v1353 = vsel %vm1273, %v1174, 0.0
      %v1354 = vadd.f32 %v1352, %v1353
      %v1355 = vsel %vm1273, %v1176, 0.0
      %v1356 = vadd.f32 %v1354, %v1355
      %v1357 = vsel %vm1273, %v1179, 0.0
      %v1358 = vadd.f32 %v1356, %v1357
      %v1359 = vsel %vm1273, %v1181, 0.0
      %v1360 = vadd.f32 %v1358, %v1359
      %v1361 = vsel %vm1273, %v1184, 0.0
      %v1362 = vadd.f32 %v1360, %v1361
      %v1363 = vsel %vm1273, %v1186, 0.0
      %v1364 = vadd.f32 %v1362, %v1363
      %v1365 = vsel %vm1273, %v1189, 0.0
      %v1366 = vadd.f32 %v1364, %v1365
      %v1367 = vsel %vm1273, %v1191, 0.0
      %v1368 = vadd.f32 %v1366, %v1367
      %v1369 = vsel %vm1273, %v1194, 0.0
      %v1370 = vadd.f32 %v1368, %v1369
      %v1371 = vsel %vm1273, %v1196, 0.0
      %v1372 = vadd.f32 %v1370, %v1371
      %v1373 = vsel %vm1273, %v1199, 0.0
      %v1374 = vadd.f32 %v1372, %v1373
      %v1375 = vsel %vm1273, %v1201, 0.0
      %v1376 = vadd.f32 %v1374, %v1375
      %v1377 = vsel %vm1273, %v1204, 0.0
      %v1378 = vadd.f32 %v1376, %v1377
      %v1379 = vsel %vm1273, %v1206, 0.0
      %v1380 = vadd.f32 %v1378, %v1379
      %v1381 = vsel %vm1273, %v1209, 0.0
      %v1382 = vadd.f32 %v1380, %v1381
      %v1383 = vsel %vm1273, %v1211, 0.0
      %v1384 = vadd.f32 %v1382, %v1383
      %v1385 = vsel %vm1273, %v1214, 0.0
      %v1386 = vadd.f32 %v1384, %v1385
      %v1387 = vsel %vm1273, %v1216, 0.0
      %v1388 = vadd.f32 %v1386, %v1387
      %v1389 = vsel %vm1273, %v1219, 0.0
      %v1390 = vadd.f32 %v1388, %v1389
      %v1391 = vsel %vm1273, %v1221, 0.0
      %v1392 = vadd.f32 %v1390, %v1391
      %v1393 = vsel %vm1273, %v1224, 0.0
      %v1394 = vadd.f32 %v1392, %v1393
      %v1395 = vsel %vm1273, %v1226, 0.0
      %v1396 = vadd.f32 %v1394, %v1395
      %v1397 = vsel %vm1273, %v1229, 0.0
      %v1398 = vadd.f32 %v1396, %v1397
      %v1399 = vsel %vm1273, %v1231, 0.0
      %v1400 = vadd.f32 %v1398, %v1399
      %v1401 = vsel %vm1273, %v1234, 0.0
      %v1402 = vadd.f32 %v1400, %v1401
      %v1403 = vsel %vm1273, %v1236, 0.0
      %v1404 = vadd.f32 %v1402, %v1403
      %v1405 = vsel %vm1273, %v1239, 0.0
      %v1406 = vadd.f32 %v1404, %v1405
      %v1407 = vsel %vm1273, %v1241, 0.0
      %v1408 = vadd.f32 %v1406, %v1407
      %v1409 = vsel %vm1273, %v1244, 0.0
      %v1410 = vadd.f32 %v1408, %v1409
      %v1411 = vsel %vm1273, %v1246, 0.0
      %v1412 = vadd.f32 %v1410, %v1411
      %v1413 = vsel %vm1273, %v1249, 0.0
      %v1414 = vadd.f32 %v1412, %v1413
      %v1415 = vsel %vm1273, %v1251, 0.0
      %v1416 = vadd.f32 %v1414, %v1415
      %v1417 = vsel %vm1273, %v1254, 0.0
      %v1418 = vadd.f32 %v1416, %v1417
      %v1419 = vsel %vm1273, %v1256, 0.0
      %v1420 = vadd.f32 %v1418, %v1419
      %v1421 = vsel %vm1273, %v1259, 0.0
      %v1422 = vadd.f32 %v1420, %v1421
      %v1423 = vsel %vm1273, %v1261, 0.0
      %v1424 = vadd.f32 %v1422, %v1423
      %v1425 = vsel %vm1273, %v1264, 0.0
      %v1426 = vadd.f32 %v1424, %v1425
      %v1427 = vsel %vm1273, %v1266, 0.0
      %v1428 = vadd.f32 %v1426, %v1427
      %v1429 = vsel %vm1273, %v1269, 0.0
      %v1430 = vadd.f32 %v1428, %v1429
      %vm1431 = vcmask 194560
      %v1432 = vsel %vm1431, %v1271, 0.0
      %v1433 = vadd.f32 %v1430, %v1432
      %v1434 = vrot.slane %v1433, 4
      %v1435 = vadd.f32 %v1433, %v1434
      %v1436 = vrot.slane %v1435, 2
      %v1437 = vadd.f32 %v1435, %v1436
      %v1438 = vrot.slane %v1437, 1
      %v1439 = vadd.f32 %v1437, %v1438
      %v1440 = vrcp.pop 639.0
      %v1441 = vmul.f32 639.0, %v1440
      %v1442 = vsub.f32 1.0, %v1441
      %v1443 = vmul.f32 %v1440, %v1442
      %v1444 = vadd.f32 %v1440, %v1443
      %vm1445 = vweird.f32 %v1440
      %v1446 = vsel %vm1445, %v1440, %v1444
      %v1447 = vmul.f32 %v1439, %v1446
      %v1448 = vsub.f32 %v1074, %v1447
      %v1449 = vsub.f32 %v1076, %v1447
      %v1450 = vsub.f32 %v1079, %v1447
      %v1451 = vsub.f32 %v1081, %v1447
      %v1452 = vsub.f32 %v1084, %v1447
      %v1453 = vsub.f32 %v1086, %v1447
      %v1454 = vsub.f32 %v1089, %v1447
      %v1455 = vsub.f32 %v1091, %v1447
      %v1456 = vsub.f32 %v1094, %v1447
      %v1457 = vsub.f32 %v1096, %v1447
      %v1458 = vsub.f32 %v1099, %v1447
      %v1459 = vsub.f32 %v1101, %v1447
      %v1460 = vsub.f32 %v1104, %v1447
      %v1461 = vsub.f32 %v1106, %v1447
      %v1462 = vsub.f32 %v1109, %v1447
      %v1463 = vsub.f32 %v1111, %v1447
      %v1464 = vsub.f32 %v1114, %v1447
      %v1465 = vsub.f32 %v1116, %v1447
      %v1466 = vsub.f32 %v1119, %v1447
      %v1467 = vsub.f32 %v1121, %v1447
      %v1468 = vsub.f32 %v1124, %v1447
      %v1469 = vsub.f32 %v1126, %v1447
      %v1470 = vsub.f32 %v1129, %v1447
      %v1471 = vsub.f32 %v1131, %v1447
      %v1472 = vsub.f32 %v1134, %v1447
      %v1473 = vsub.f32 %v1136, %v1447
      %v1474 = vsub.f32 %v1139, %v1447
      %v1475 = vsub.f32 %v1141, %v1447
      %v1476 = vsub.f32 %v1144, %v1447
      %v1477 = vsub.f32 %v1146, %v1447
      %v1478 = vsub.f32 %v1149, %v1447
      %v1479 = vsub.f32 %v1151, %v1447
      %v1480 = vsub.f32 %v1154, %v1447
      %v1481 = vsub.f32 %v1156, %v1447
      %v1482 = vsub.f32 %v1159, %v1447
      %v1483 = vsub.f32 %v1161, %v1447
      %v1484 = vsub.f32 %v1164, %v1447
      %v1485 = vsub.f32 %v1166, %v1447
      %v1486 = vsub.f32 %v1169, %v1447
      %v1487 = vsub.f32 %v1171, %v1447
      %v1488 = vsub.f32 %v1174, %v1447
      %v1489 = vsub.f32 %v1176, %v1447
      %v1490 = vsub.f32 %v1179, %v1447
      %v1491 = vsub.f32 %v1181, %v1447
      %v1492 = vsub.f32 %v1184, %v1447
      %v1493 = vsub.f32 %v1186, %v1447
      %v1494 = vsub.f32 %v1189, %v1447
      %v1495 = vsub.f32 %v1191, %v1447
      %v1496 = vsub.f32 %v1194, %v1447
      %v1497 = vsub.f32 %v1196, %v1447
      %v1498 = vsub.f32 %v1199, %v1447
      %v1499 = vsub.f32 %v1201, %v1447
      %v1500 = vsub.f32 %v1204, %v1447
      %v1501 = vsub.f32 %v1206, %v1447
      %v1502 = vsub.f32 %v1209, %v1447
      %v1503 = vsub.f32 %v1211, %v1447
      %v1504 = vsub.f32 %v1214, %v1447
      %v1505 = vsub.f32 %v1216, %v1447
      %v1506 = vsub.f32 %v1219, %v1447
      %v1507 = vsub.f32 %v1221, %v1447
      %v1508 = vsub.f32 %v1224, %v1447
      %v1509 = vsub.f32 %v1226, %v1447
      %v1510 = vsub.f32 %v1229, %v1447
      %v1511 = vsub.f32 %v1231, %v1447
      %v1512 = vsub.f32 %v1234, %v1447
      %v1513 = vsub.f32 %v1236, %v1447
      %v1514 = vsub.f32 %v1239, %v1447
      %v1515 = vsub.f32 %v1241, %v1447
      %v1516 = vsub.f32 %v1244, %v1447
      %v1517 = vsub.f32 %v1246, %v1447
      %v1518 = vsub.f32 %v1249, %v1447
      %v1519 = vsub.f32 %v1251, %v1447
      %v1520 = vsub.f32 %v1254, %v1447
      %v1521 = vsub.f32 %v1256, %v1447
      %v1522 = vsub.f32 %v1259, %v1447
      %v1523 = vsub.f32 %v1261, %v1447
      %v1524 = vsub.f32 %v1264, %v1447
      %v1525 = vsub.f32 %v1266, %v1447
      %v1526 = vsub.f32 %v1269, %v1447
      %v1527 = vsub.f32 %v1271, %v1447
      %v1528 = vmul.f32 %v1448, %v1448
      %v1529 = vmul.f32 %v1449, %v1449
      %v1530 = vmul.f32 %v1450, %v1450
      %v1531 = vmul.f32 %v1451, %v1451
      %v1532 = vmul.f32 %v1452, %v1452
      %v1533 = vmul.f32 %v1453, %v1453
      %v1534 = vmul.f32 %v1454, %v1454
      %v1535 = vmul.f32 %v1455, %v1455
      %v1536 = vmul.f32 %v1456, %v1456
      %v1537 = vmul.f32 %v1457, %v1457
      %v1538 = vmul.f32 %v1458, %v1458
      %v1539 = vmul.f32 %v1459, %v1459
      %v1540 = vmul.f32 %v1460, %v1460
      %v1541 = vmul.f32 %v1461, %v1461
      %v1542 = vmul.f32 %v1462, %v1462
      %v1543 = vmul.f32 %v1463, %v1463
      %v1544 = vmul.f32 %v1464, %v1464
      %v1545 = vmul.f32 %v1465, %v1465
      %v1546 = vmul.f32 %v1466, %v1466
      %v1547 = vmul.f32 %v1467, %v1467
      %v1548 = vmul.f32 %v1468, %v1468
      %v1549 = vmul.f32 %v1469, %v1469
      %v1550 = vmul.f32 %v1470, %v1470
      %v1551 = vmul.f32 %v1471, %v1471
      %v1552 = vmul.f32 %v1472, %v1472
      %v1553 = vmul.f32 %v1473, %v1473
      %v1554 = vmul.f32 %v1474, %v1474
      %v1555 = vmul.f32 %v1475, %v1475
      %v1556 = vmul.f32 %v1476, %v1476
      %v1557 = vmul.f32 %v1477, %v1477
      %v1558 = vmul.f32 %v1478, %v1478
      %v1559 = vmul.f32 %v1479, %v1479
      %v1560 = vmul.f32 %v1480, %v1480
      %v1561 = vmul.f32 %v1481, %v1481
      %v1562 = vmul.f32 %v1482, %v1482
      %v1563 = vmul.f32 %v1483, %v1483
      %v1564 = vmul.f32 %v1484, %v1484
      %v1565 = vmul.f32 %v1485, %v1485
      %v1566 = vmul.f32 %v1486, %v1486
      %v1567 = vmul.f32 %v1487, %v1487
      %v1568 = vmul.f32 %v1488, %v1488
      %v1569 = vmul.f32 %v1489, %v1489
      %v1570 = vmul.f32 %v1490, %v1490
      %v1571 = vmul.f32 %v1491, %v1491
      %v1572 = vmul.f32 %v1492, %v1492
      %v1573 = vmul.f32 %v1493, %v1493
      %v1574 = vmul.f32 %v1494, %v1494
      %v1575 = vmul.f32 %v1495, %v1495
      %v1576 = vmul.f32 %v1496, %v1496
      %v1577 = vmul.f32 %v1497, %v1497
      %v1578 = vmul.f32 %v1498, %v1498
      %v1579 = vmul.f32 %v1499, %v1499
      %v1580 = vmul.f32 %v1500, %v1500
      %v1581 = vmul.f32 %v1501, %v1501
      %v1582 = vmul.f32 %v1502, %v1502
      %v1583 = vmul.f32 %v1503, %v1503
      %v1584 = vmul.f32 %v1504, %v1504
      %v1585 = vmul.f32 %v1505, %v1505
      %v1586 = vmul.f32 %v1506, %v1506
      %v1587 = vmul.f32 %v1507, %v1507
      %v1588 = vmul.f32 %v1508, %v1508
      %v1589 = vmul.f32 %v1509, %v1509
      %v1590 = vmul.f32 %v1510, %v1510
      %v1591 = vmul.f32 %v1511, %v1511
      %v1592 = vmul.f32 %v1512, %v1512
      %v1593 = vmul.f32 %v1513, %v1513
      %v1594 = vmul.f32 %v1514, %v1514
      %v1595 = vmul.f32 %v1515, %v1515
      %v1596 = vmul.f32 %v1516, %v1516
      %v1597 = vmul.f32 %v1517, %v1517
      %v1598 = vmul.f32 %v1518, %v1518
      %v1599 = vmul.f32 %v1519, %v1519
      %v1600 = vmul.f32 %v1520, %v1520
      %v1601 = vmul.f32 %v1521, %v1521
      %v1602 = vmul.f32 %v1522, %v1522
      %v1603 = vmul.f32 %v1523, %v1523
      %v1604 = vmul.f32 %v1524, %v1524
      %v1605 = vmul.f32 %v1525, %v1525
      %v1606 = vmul.f32 %v1526, %v1526
      %v1607 = vmul.f32 %v1527, %v1527
      %v1608 = vsel %vm1273, %v1528, 0.0
      %v1609 = vsel %vm1273, %v1529, 0.0
      %v1610 = vadd.f32 %v1608, %v1609
      %v1611 = vsel %vm1273, %v1530, 0.0
      %v1612 = vadd.f32 %v1610, %v1611
      %v1613 = vsel %vm1273, %v1531, 0.0
      %v1614 = vadd.f32 %v1612, %v1613
      %v1615 = vsel %vm1273, %v1532, 0.0
      %v1616 = vadd.f32 %v1614, %v1615
      %v1617 = vsel %vm1273, %v1533, 0.0
      %v1618 = vadd.f32 %v1616, %v1617
      %v1619 = vsel %vm1273, %v1534, 0.0
      %v1620 = vadd.f32 %v1618, %v1619
      %v1621 = vsel %vm1273, %v1535, 0.0
      %v1622 = vadd.f32 %v1620, %v1621
      %v1623 = vsel %vm1273, %v1536, 0.0
      %v1624 = vadd.f32 %v1622, %v1623
      %v1625 = vsel %vm1273, %v1537, 0.0
      %v1626 = vadd.f32 %v1624, %v1625
      %v1627 = vsel %vm1273, %v1538, 0.0
      %v1628 = vadd.f32 %v1626, %v1627
      %v1629 = vsel %vm1273, %v1539, 0.0
      %v1630 = vadd.f32 %v1628, %v1629
      %v1631 = vsel %vm1273, %v1540, 0.0
      %v1632 = vadd.f32 %v1630, %v1631
      %v1633 = vsel %vm1273, %v1541, 0.0
      %v1634 = vadd.f32 %v1632, %v1633
      %v1635 = vsel %vm1273, %v1542, 0.0
      %v1636 = vadd.f32 %v1634, %v1635
      %v1637 = vsel %vm1273, %v1543, 0.0
      %v1638 = vadd.f32 %v1636, %v1637
      %v1639 = vsel %vm1273, %v1544, 0.0
      %v1640 = vadd.f32 %v1638, %v1639
      %v1641 = vsel %vm1273, %v1545, 0.0
      %v1642 = vadd.f32 %v1640, %v1641
      %v1643 = vsel %vm1273, %v1546, 0.0
      %v1644 = vadd.f32 %v1642, %v1643
      %v1645 = vsel %vm1273, %v1547, 0.0
      %v1646 = vadd.f32 %v1644, %v1645
      %v1647 = vsel %vm1273, %v1548, 0.0
      %v1648 = vadd.f32 %v1646, %v1647
      %v1649 = vsel %vm1273, %v1549, 0.0
      %v1650 = vadd.f32 %v1648, %v1649
      %v1651 = vsel %vm1273, %v1550, 0.0
      %v1652 = vadd.f32 %v1650, %v1651
      %v1653 = vsel %vm1273, %v1551, 0.0
      %v1654 = vadd.f32 %v1652, %v1653
      %v1655 = vsel %vm1273, %v1552, 0.0
      %v1656 = vadd.f32 %v1654, %v1655
      %v1657 = vsel %vm1273, %v1553, 0.0
      %v1658 = vadd.f32 %v1656, %v1657
      %v1659 = vsel %vm1273, %v1554, 0.0
      %v1660 = vadd.f32 %v1658, %v1659
      %v1661 = vsel %vm1273, %v1555, 0.0
      %v1662 = vadd.f32 %v1660, %v1661
      %v1663 = vsel %vm1273, %v1556, 0.0
      %v1664 = vadd.f32 %v1662, %v1663
      %v1665 = vsel %vm1273, %v1557, 0.0
      %v1666 = vadd.f32 %v1664, %v1665
      %v1667 = vsel %vm1273, %v1558, 0.0
      %v1668 = vadd.f32 %v1666, %v1667
      %v1669 = vsel %vm1273, %v1559, 0.0
      %v1670 = vadd.f32 %v1668, %v1669
      %v1671 = vsel %vm1273, %v1560, 0.0
      %v1672 = vadd.f32 %v1670, %v1671
      %v1673 = vsel %vm1273, %v1561, 0.0
      %v1674 = vadd.f32 %v1672, %v1673
      %v1675 = vsel %vm1273, %v1562, 0.0
      %v1676 = vadd.f32 %v1674, %v1675
      %v1677 = vsel %vm1273, %v1563, 0.0
      %v1678 = vadd.f32 %v1676, %v1677
      %v1679 = vsel %vm1273, %v1564, 0.0
      %v1680 = vadd.f32 %v1678, %v1679
      %v1681 = vsel %vm1273, %v1565, 0.0
      %v1682 = vadd.f32 %v1680, %v1681
      %v1683 = vsel %vm1273, %v1566, 0.0
      %v1684 = vadd.f32 %v1682, %v1683
      %v1685 = vsel %vm1273, %v1567, 0.0
      %v1686 = vadd.f32 %v1684, %v1685
      %v1687 = vsel %vm1273, %v1568, 0.0
      %v1688 = vadd.f32 %v1686, %v1687
      %v1689 = vsel %vm1273, %v1569, 0.0
      %v1690 = vadd.f32 %v1688, %v1689
      %v1691 = vsel %vm1273, %v1570, 0.0
      %v1692 = vadd.f32 %v1690, %v1691
      %v1693 = vsel %vm1273, %v1571, 0.0
      %v1694 = vadd.f32 %v1692, %v1693
      %v1695 = vsel %vm1273, %v1572, 0.0
      %v1696 = vadd.f32 %v1694, %v1695
      %v1697 = vsel %vm1273, %v1573, 0.0
      %v1698 = vadd.f32 %v1696, %v1697
      %v1699 = vsel %vm1273, %v1574, 0.0
      %v1700 = vadd.f32 %v1698, %v1699
      %v1701 = vsel %vm1273, %v1575, 0.0
      %v1702 = vadd.f32 %v1700, %v1701
      %v1703 = vsel %vm1273, %v1576, 0.0
      %v1704 = vadd.f32 %v1702, %v1703
      %v1705 = vsel %vm1273, %v1577, 0.0
      %v1706 = vadd.f32 %v1704, %v1705
      %v1707 = vsel %vm1273, %v1578, 0.0
      %v1708 = vadd.f32 %v1706, %v1707
      %v1709 = vsel %vm1273, %v1579, 0.0
      %v1710 = vadd.f32 %v1708, %v1709
      %v1711 = vsel %vm1273, %v1580, 0.0
      %v1712 = vadd.f32 %v1710, %v1711
      %v1713 = vsel %vm1273, %v1581, 0.0
      %v1714 = vadd.f32 %v1712, %v1713
      %v1715 = vsel %vm1273, %v1582, 0.0
      %v1716 = vadd.f32 %v1714, %v1715
      %v1717 = vsel %vm1273, %v1583, 0.0
      %v1718 = vadd.f32 %v1716, %v1717
      %v1719 = vsel %vm1273, %v1584, 0.0
      %v1720 = vadd.f32 %v1718, %v1719
      %v1721 = vsel %vm1273, %v1585, 0.0
      %v1722 = vadd.f32 %v1720, %v1721
      %v1723 = vsel %vm1273, %v1586, 0.0
      %v1724 = vadd.f32 %v1722, %v1723
      %v1725 = vsel %vm1273, %v1587, 0.0
      %v1726 = vadd.f32 %v1724, %v1725
      %v1727 = vsel %vm1273, %v1588, 0.0
      %v1728 = vadd.f32 %v1726, %v1727
      %v1729 = vsel %vm1273, %v1589, 0.0
      %v1730 = vadd.f32 %v1728, %v1729
      %v1731 = vsel %vm1273, %v1590, 0.0
      %v1732 = vadd.f32 %v1730, %v1731
      %v1733 = vsel %vm1273, %v1591, 0.0
      %v1734 = vadd.f32 %v1732, %v1733
      %v1735 = vsel %vm1273, %v1592, 0.0
      %v1736 = vadd.f32 %v1734, %v1735
      %v1737 = vsel %vm1273, %v1593, 0.0
      %v1738 = vadd.f32 %v1736, %v1737
      %v1739 = vsel %vm1273, %v1594, 0.0
      %v1740 = vadd.f32 %v1738, %v1739
      %v1741 = vsel %vm1273, %v1595, 0.0
      %v1742 = vadd.f32 %v1740, %v1741
      %v1743 = vsel %vm1273, %v1596, 0.0
      %v1744 = vadd.f32 %v1742, %v1743
      %v1745 = vsel %vm1273, %v1597, 0.0
      %v1746 = vadd.f32 %v1744, %v1745
      %v1747 = vsel %vm1273, %v1598, 0.0
      %v1748 = vadd.f32 %v1746, %v1747
      %v1749 = vsel %vm1273, %v1599, 0.0
      %v1750 = vadd.f32 %v1748, %v1749
      %v1751 = vsel %vm1273, %v1600, 0.0
      %v1752 = vadd.f32 %v1750, %v1751
      %v1753 = vsel %vm1273, %v1601, 0.0
      %v1754 = vadd.f32 %v1752, %v1753
      %v1755 = vsel %vm1273, %v1602, 0.0
      %v1756 = vadd.f32 %v1754, %v1755
      %v1757 = vsel %vm1273, %v1603, 0.0
      %v1758 = vadd.f32 %v1756, %v1757
      %v1759 = vsel %vm1273, %v1604, 0.0
      %v1760 = vadd.f32 %v1758, %v1759
      %v1761 = vsel %vm1273, %v1605, 0.0
      %v1762 = vadd.f32 %v1760, %v1761
      %v1763 = vsel %vm1273, %v1606, 0.0
      %v1764 = vadd.f32 %v1762, %v1763
      %v1765 = vsel %vm1431, %v1607, 0.0
      %v1766 = vadd.f32 %v1764, %v1765
      %v1767 = vrot.slane %v1766, 4
      %v1768 = vadd.f32 %v1766, %v1767
      %v1769 = vrot.slane %v1768, 2
      %v1770 = vadd.f32 %v1768, %v1769
      %v1771 = vrot.slane %v1770, 1
      %v1772 = vadd.f32 %v1770, %v1771
      %v1773 = vmul.f32 %v1772, %v1446
      %v1774 = vadd.f32 %v1773, 1e-05
      %v1775 = vrsqrt.pop %v1774
      %v1776 = vmul.f32 %v1775, %v1774
      %v1777 = vmul.f32 %v1776, %v1775
      %v1778 = vmul.f32 0.5, %v1777
      %v1779 = vsub.f32 1.5, %v1778
      %v1780 = vmul.f32 %v1775, %v1779
      %vm1781 = vweird.f32 %v1774
      %vm1782 = vweird.f32 %v1775
      %vm1783 = vmor %vm1781, %vm1782
      %v1784 = vsel %vm1783, %v1775, %v1780
      %v1785 = vmul.f32 %v1448, %v1784
      %v1786 = vmul.f32 %v1449, %v1784
      %v1787 = vmul.f32 %v1450, %v1784
      %v1788 = vmul.f32 %v1451, %v1784
      %v1789 = vmul.f32 %v1452, %v1784
      %v1790 = vmul.f32 %v1453, %v1784
      %v1791 = vmul.f32 %v1454, %v1784
      %v1792 = vmul.f32 %v1455, %v1784
      %v1793 = vmul.f32 %v1456, %v1784
      %v1794 = vmul.f32 %v1457, %v1784
      %v1795 = vmul.f32 %v1458, %v1784
      %v1796 = vmul.f32 %v1459, %v1784
      %v1797 = vmul.f32 %v1460, %v1784
      %v1798 = vmul.f32 %v1461, %v1784
      %v1799 = vmul.f32 %v1462, %v1784
      %v1800 = vmul.f32 %v1463, %v1784
      %v1801 = vmul.f32 %v1464, %v1784
      %v1802 = vmul.f32 %v1465, %v1784
      %v1803 = vmul.f32 %v1466, %v1784
      %v1804 = vmul.f32 %v1467, %v1784
      %v1805 = vmul.f32 %v1468, %v1784
      %v1806 = vmul.f32 %v1469, %v1784
      %v1807 = vmul.f32 %v1470, %v1784
      %v1808 = vmul.f32 %v1471, %v1784
      %v1809 = vmul.f32 %v1472, %v1784
      %v1810 = vmul.f32 %v1473, %v1784
      %v1811 = vmul.f32 %v1474, %v1784
      %v1812 = vmul.f32 %v1475, %v1784
      %v1813 = vmul.f32 %v1476, %v1784
      %v1814 = vmul.f32 %v1477, %v1784
      %v1815 = vmul.f32 %v1478, %v1784
      %v1816 = vmul.f32 %v1479, %v1784
      %v1817 = vmul.f32 %v1480, %v1784
      %v1818 = vmul.f32 %v1481, %v1784
      %v1819 = vmul.f32 %v1482, %v1784
      %v1820 = vmul.f32 %v1483, %v1784
      %v1821 = vmul.f32 %v1484, %v1784
      %v1822 = vmul.f32 %v1485, %v1784
      %v1823 = vmul.f32 %v1486, %v1784
      %v1824 = vmul.f32 %v1487, %v1784
      %v1825 = vmul.f32 %v1488, %v1784
      %v1826 = vmul.f32 %v1489, %v1784
      %v1827 = vmul.f32 %v1490, %v1784
      %v1828 = vmul.f32 %v1491, %v1784
      %v1829 = vmul.f32 %v1492, %v1784
      %v1830 = vmul.f32 %v1493, %v1784
      %v1831 = vmul.f32 %v1494, %v1784
      %v1832 = vmul.f32 %v1495, %v1784
      %v1833 = vmul.f32 %v1496, %v1784
      %v1834 = vmul.f32 %v1497, %v1784
      %v1835 = vmul.f32 %v1498, %v1784
      %v1836 = vmul.f32 %v1499, %v1784
      %v1837 = vmul.f32 %v1500, %v1784
      %v1838 = vmul.f32 %v1501, %v1784
      %v1839 = vmul.f32 %v1502, %v1784
      %v1840 = vmul.f32 %v1503, %v1784
      %v1841 = vmul.f32 %v1504, %v1784
      %v1842 = vmul.f32 %v1505, %v1784
      %v1843 = vmul.f32 %v1506, %v1784
      %v1844 = vmul.f32 %v1507, %v1784
      %v1845 = vmul.f32 %v1508, %v1784
      %v1846 = vmul.f32 %v1509, %v1784
      %v1847 = vmul.f32 %v1510, %v1784
      %v1848 = vmul.f32 %v1511, %v1784
      %v1849 = vmul.f32 %v1512, %v1784
      %v1850 = vmul.f32 %v1513, %v1784
      %v1851 = vmul.f32 %v1514, %v1784
      %v1852 = vmul.f32 %v1515, %v1784
      %v1853 = vmul.f32 %v1516, %v1784
      %v1854 = vmul.f32 %v1517, %v1784
      %v1855 = vmul.f32 %v1518, %v1784
      %v1856 = vmul.f32 %v1519, %v1784
      %v1857 = vmul.f32 %v1520, %v1784
      %v1858 = vmul.f32 %v1521, %v1784
      %v1859 = vmul.f32 %v1522, %v1784
      %v1860 = vmul.f32 %v1523, %v1784
      %v1861 = vmul.f32 %v1524, %v1784
      %v1862 = vmul.f32 %v1525, %v1784
      %v1863 = vmul.f32 %v1526, %v1784
      %v1864 = vmul.f32 %v1527, %v1784
      %v1865 = vld [vmem:[%s8] sm:$0x1]
      %v1867 = vperm.slane %v1865, 0
      %v1869 = vmul.f32 %v1785, %v1867
      %v1870 = vmul.f32 %v1786, %v1867
      %v1871 = vmul.f32 %v1787, %v1867
      %v1872 = vmul.f32 %v1788, %v1867
      %v1873 = vmul.f32 %v1789, %v1867
      %v1874 = vmul.f32 %v1790, %v1867
      %v1875 = vmul.f32 %v1791, %v1867
      %v1876 = vmul.f32 %v1792, %v1867
      %v1877 = vmul.f32 %v1793, %v1867
      %v1878 = vmul.f32 %v1794, %v1867
      %v1879 = vmul.f32 %v1795, %v1867
      %v1880 = vmul.f32 %v1796, %v1867
      %v1881 = vmul.f32 %v1797, %v1867
      %v1882 = vmul.f32 %v1798, %v1867
      %v1883 = vmul.f32 %v1799, %v1867
      %v1884 = vmul.f32 %v1800, %v1867
      %v1885 = vmul.f32 %v1801, %v1867
      %v1886 = vmul.f32 %v1802, %v1867
      %v1887 = vmul.f32 %v1803, %v1867
      %v1888 = vmul.f32 %v1804, %v1867
      %v1889 = vmul.f32 %v1805, %v1867
      %v1890 = vmul.f32 %v1806, %v1867
      %v1891 = vmul.f32 %v1807, %v1867
      %v1892 = vmul.f32 %v1808, %v1867
      %v1893 = vmul.f32 %v1809, %v1867
      %v1894 = vmul.f32 %v1810, %v1867
      %v1895 = vmul.f32 %v1811, %v1867
      %v1896 = vmul.f32 %v1812, %v1867
      %v1897 = vmul.f32 %v1813, %v1867
      %v1898 = vmul.f32 %v1814, %v1867
      %v1899 = vmul.f32 %v1815, %v1867
      %v1900 = vmul.f32 %v1816, %v1867
      %v1901 = vmul.f32 %v1817, %v1867
      %v1902 = vmul.f32 %v1818, %v1867
      %v1903 = vmul.f32 %v1819, %v1867
      %v1904 = vmul.f32 %v1820, %v1867
      %v1905 = vmul.f32 %v1821, %v1867
      %v1906 = vmul.f32 %v1822, %v1867
      %v1907 = vmul.f32 %v1823, %v1867
      %v1908 = vmul.f32 %v1824, %v1867
      %v1909 = vmul.f32 %v1825, %v1867
      %v1910 = vmul.f32 %v1826, %v1867
      %v1911 = vmul.f32 %v1827, %v1867
      %v1912 = vmul.f32 %v1828, %v1867
      %v1913 = vmul.f32 %v1829, %v1867
      %v1914 = vmul.f32 %v1830, %v1867
      %v1915 = vmul.f32 %v1831, %v1867
      %v1916 = vmul.f32 %v1832, %v1867
      %v1917 = vmul.f32 %v1833, %v1867
      %v1918 = vmul.f32 %v1834, %v1867
      %v1919 = vmul.f32 %v1835, %v1867
      %v1920 = vmul.f32 %v1836, %v1867
      %v1921 = vmul.f32 %v1837, %v1867
      %v1922 = vmul.f32 %v1838, %v1867
      %v1923 = vmul.f32 %v1839, %v1867
      %v1924 = vmul.f32 %v1840, %v1867
      %v1925 = vmul.f32 %v1841, %v1867
      %v1926 = vmul.f32 %v1842, %v1867
      %v1927 = vmul.f32 %v1843, %v1867
      %v1928 = vmul.f32 %v1844, %v1867
      %v1929 = vmul.f32 %v1845, %v1867
      %v1930 = vmul.f32 %v1846, %v1867
      %v1931 = vmul.f32 %v1847, %v1867
      %v1932 = vmul.f32 %v1848, %v1867
      %v1933 = vmul.f32 %v1849, %v1867
      %v1934 = vmul.f32 %v1850, %v1867
      %v1935 = vmul.f32 %v1851, %v1867
      %v1936 = vmul.f32 %v1852, %v1867
      %v1937 = vmul.f32 %v1853, %v1867
      %v1938 = vmul.f32 %v1854, %v1867
      %v1939 = vmul.f32 %v1855, %v1867
      %v1940 = vmul.f32 %v1856, %v1867
      %v1941 = vmul.f32 %v1857, %v1867
      %v1942 = vmul.f32 %v1858, %v1867
      %v1943 = vmul.f32 %v1859, %v1867
      %v1944 = vmul.f32 %v1860, %v1867
      %v1945 = vmul.f32 %v1861, %v1867
      %v1946 = vmul.f32 %v1862, %v1867
      %v1947 = vmul.f32 %v1863, %v1867
      %v1948 = vmul.f32 %v1864, %v1867
      %v1949 = vld [vmem:[%s9] sm:$0x1]
      %v1951 = vperm.slane %v1949, 0
      %v1953 = vadd.f32 %v1869, %v1951
      %v1954 = vadd.f32 %v1870, %v1951
      %v1955 = vadd.f32 %v1871, %v1951
      %v1956 = vadd.f32 %v1872, %v1951
      %v1957 = vadd.f32 %v1873, %v1951
      %v1958 = vadd.f32 %v1874, %v1951
      %v1959 = vadd.f32 %v1875, %v1951
      %v1960 = vadd.f32 %v1876, %v1951
      %v1961 = vadd.f32 %v1877, %v1951
      %v1962 = vadd.f32 %v1878, %v1951
      %v1963 = vadd.f32 %v1879, %v1951
      %v1964 = vadd.f32 %v1880, %v1951
      %v1965 = vadd.f32 %v1881, %v1951
      %v1966 = vadd.f32 %v1882, %v1951
      %v1967 = vadd.f32 %v1883, %v1951
      %v1968 = vadd.f32 %v1884, %v1951
      %v1969 = vadd.f32 %v1885, %v1951
      %v1970 = vadd.f32 %v1886, %v1951
      %v1971 = vadd.f32 %v1887, %v1951
      %v1972 = vadd.f32 %v1888, %v1951
      %v1973 = vadd.f32 %v1889, %v1951
      %v1974 = vadd.f32 %v1890, %v1951
      %v1975 = vadd.f32 %v1891, %v1951
      %v1976 = vadd.f32 %v1892, %v1951
      %v1977 = vadd.f32 %v1893, %v1951
      %v1978 = vadd.f32 %v1894, %v1951
      %v1979 = vadd.f32 %v1895, %v1951
      %v1980 = vadd.f32 %v1896, %v1951
      %v1981 = vadd.f32 %v1897, %v1951
      %v1982 = vadd.f32 %v1898, %v1951
      %v1983 = vadd.f32 %v1899, %v1951
      %v1984 = vadd.f32 %v1900, %v1951
      %v1985 = vadd.f32 %v1901, %v1951
      %v1986 = vadd.f32 %v1902, %v1951
      %v1987 = vadd.f32 %v1903, %v1951
      %v1988 = vadd.f32 %v1904, %v1951
      %v1989 = vadd.f32 %v1905, %v1951
      %v1990 = vadd.f32 %v1906, %v1951
      %v1991 = vadd.f32 %v1907, %v1951
      %v1992 = vadd.f32 %v1908, %v1951
      %v1993 = vadd.f32 %v1909, %v1951
      %v1994 = vadd.f32 %v1910, %v1951
      %v1995 = vadd.f32 %v1911, %v1951
      %v1996 = vadd.f32 %v1912, %v1951
      %v1997 = vadd.f32 %v1913, %v1951
      %v1998 = vadd.f32 %v1914, %v1951
      %v1999 = vadd.f32 %v1915, %v1951
      %v2000 = vadd.f32 %v1916, %v1951
      %v2001 = vadd.f32 %v1917, %v1951
      %v2002 = vadd.f32 %v1918, %v1951
      %v2003 = vadd.f32 %v1919, %v1951
      %v2004 = vadd.f32 %v1920, %v1951
      %v2005 = vadd.f32 %v1921, %v1951
      %v2006 = vadd.f32 %v1922, %v1951
      %v2007 = vadd.f32 %v1923, %v1951
      %v2008 = vadd.f32 %v1924, %v1951
      %v2009 = vadd.f32 %v1925, %v1951
      %v2010 = vadd.f32 %v1926, %v1951
      %v2011 = vadd.f32 %v1927, %v1951
      %v2012 = vadd.f32 %v1928, %v1951
      %v2013 = vadd.f32 %v1929, %v1951
      %v2014 = vadd.f32 %v1930, %v1951
      %v2015 = vadd.f32 %v1931, %v1951
      %v2016 = vadd.f32 %v1932, %v1951
      %v2017 = vadd.f32 %v1933, %v1951
      %v2018 = vadd.f32 %v1934, %v1951
      %v2019 = vadd.f32 %v1935, %v1951
      %v2020 = vadd.f32 %v1936, %v1951
      %v2021 = vadd.f32 %v1937, %v1951
      %v2022 = vadd.f32 %v1938, %v1951
      %v2023 = vadd.f32 %v1939, %v1951
      %v2024 = vadd.f32 %v1940, %v1951
      %v2025 = vadd.f32 %v1941, %v1951
      %v2026 = vadd.f32 %v1942, %v1951
      %v2027 = vadd.f32 %v1943, %v1951
      %v2028 = vadd.f32 %v1944, %v1951
      %v2029 = vadd.f32 %v1945, %v1951
      %v2030 = vadd.f32 %v1946, %v1951
      %v2031 = vadd.f32 %v1947, %v1951
      %v2032 = vadd.f32 %v1948, %v1951
      %v2033 = vmul.f32 %v1953, 0.5
      %v2034 = vmul.f32 %v1954, 0.5
      %v2035 = vmul.f32 %v1955, 0.5
      %v2036 = vmul.f32 %v1956, 0.5
      %v2037 = vmul.f32 %v1957, 0.5
      %v2038 = vmul.f32 %v1958, 0.5
      %v2039 = vmul.f32 %v1959, 0.5
      %v2040 = vmul.f32 %v1960, 0.5
      %v2041 = vmul.f32 %v1961, 0.5
      %v2042 = vmul.f32 %v1962, 0.5
      %v2043 = vmul.f32 %v1963, 0.5
      %v2044 = vmul.f32 %v1964, 0.5
      %v2045 = vmul.f32 %v1965, 0.5
      %v2046 = vmul.f32 %v1966, 0.5
      %v2047 = vmul.f32 %v1967, 0.5
      %v2048 = vmul.f32 %v1968, 0.5
      %v2049 = vmul.f32 %v1969, 0.5
      %v2050 = vmul.f32 %v1970, 0.5
      %v2051 = vmul.f32 %v1971, 0.5
      %v2052 = vmul.f32 %v1972, 0.5
      %v2053 = vmul.f32 %v1973, 0.5
      %v2054 = vmul.f32 %v1974, 0.5
      %v2055 = vmul.f32 %v1975, 0.5
      %v2056 = vmul.f32 %v1976, 0.5
      %v2057 = vmul.f32 %v1977, 0.5
      %v2058 = vmul.f32 %v1978, 0.5
      %v2059 = vmul.f32 %v1979, 0.5
      %v2060 = vmul.f32 %v1980, 0.5
      %v2061 = vmul.f32 %v1981, 0.5
      %v2062 = vmul.f32 %v1982, 0.5
      %v2063 = vmul.f32 %v1983, 0.5
      %v2064 = vmul.f32 %v1984, 0.5
      %v2065 = vmul.f32 %v1985, 0.5
      %v2066 = vmul.f32 %v1986, 0.5
      %v2067 = vmul.f32 %v1987, 0.5
      %v2068 = vmul.f32 %v1988, 0.5
      %v2069 = vmul.f32 %v1989, 0.5
      %v2070 = vmul.f32 %v1990, 0.5
      %v2071 = vmul.f32 %v1991, 0.5
      %v2072 = vmul.f32 %v1992, 0.5
      %v2073 = vmul.f32 %v1993, 0.5
      %v2074 = vmul.f32 %v1994, 0.5
      %v2075 = vmul.f32 %v1995, 0.5
      %v2076 = vmul.f32 %v1996, 0.5
      %v2077 = vmul.f32 %v1997, 0.5
      %v2078 = vmul.f32 %v1998, 0.5
      %v2079 = vmul.f32 %v1999, 0.5
      %v2080 = vmul.f32 %v2000, 0.5
      %v2081 = vmul.f32 %v2001, 0.5
      %v2082 = vmul.f32 %v2002, 0.5
      %v2083 = vmul.f32 %v2003, 0.5
      %v2084 = vmul.f32 %v2004, 0.5
      %v2085 = vmul.f32 %v2005, 0.5
      %v2086 = vmul.f32 %v2006, 0.5
      %v2087 = vmul.f32 %v2007, 0.5
      %v2088 = vmul.f32 %v2008, 0.5
      %v2089 = vmul.f32 %v2009, 0.5
      %v2090 = vmul.f32 %v2010, 0.5
      %v2091 = vmul.f32 %v2011, 0.5
      %v2092 = vmul.f32 %v2012, 0.5
      %v2093 = vmul.f32 %v2013, 0.5
      %v2094 = vmul.f32 %v2014, 0.5
      %v2095 = vmul.f32 %v2015, 0.5
      %v2096 = vmul.f32 %v2016, 0.5
      %v2097 = vmul.f32 %v2017, 0.5
      %v2098 = vmul.f32 %v2018, 0.5
      %v2099 = vmul.f32 %v2019, 0.5
      %v2100 = vmul.f32 %v2020, 0.5
      %v2101 = vmul.f32 %v2021, 0.5
      %v2102 = vmul.f32 %v2022, 0.5
      %v2103 = vmul.f32 %v2023, 0.5
      %v2104 = vmul.f32 %v2024, 0.5
      %v2105 = vmul.f32 %v2025, 0.5
      %v2106 = vmul.f32 %v2026, 0.5
      %v2107 = vmul.f32 %v2027, 0.5
      %v2108 = vmul.f32 %v2028, 0.5
      %v2109 = vmul.f32 %v2029, 0.5
      %v2110 = vmul.f32 %v2030, 0.5
      %v2111 = vmul.f32 %v2031, 0.5
      %v2112 = vmul.f32 %v2032, 0.5
      %v2113 = vmul.f32 %v1953, 0.044715
      %v2114 = vmul.f32 %v1954, 0.044715
      %v2115 = vmul.f32 %v1955, 0.044715
      %v2116 = vmul.f32 %v1956, 0.044715
      %v2117 = vmul.f32 %v1957, 0.044715
      %v2118 = vmul.f32 %v1958, 0.044715
      %v2119 = vmul.f32 %v1959, 0.044715
      %v2120 = vmul.f32 %v1960, 0.044715
      %v2121 = vmul.f32 %v1961, 0.044715
      %v2122 = vmul.f32 %v1962, 0.044715
      %v2123 = vmul.f32 %v1963, 0.044715
      %v2124 = vmul.f32 %v1964, 0.044715
      %v2125 = vmul.f32 %v1965, 0.044715
      %v2126 = vmul.f32 %v1966, 0.044715
      %v2127 = vmul.f32 %v1967, 0.044715
      %v2128 = vmul.f32 %v1968, 0.044715
      %v2129 = vmul.f32 %v1969, 0.044715
      %v2130 = vmul.f32 %v1970, 0.044715
      %v2131 = vmul.f32 %v1971, 0.044715
      %v2132 = vmul.f32 %v1972, 0.044715
      %v2133 = vmul.f32 %v1973, 0.044715
      %v2134 = vmul.f32 %v1974, 0.044715
      %v2135 = vmul.f32 %v1975, 0.044715
      %v2136 = vmul.f32 %v1976, 0.044715
      %v2137 = vmul.f32 %v1977, 0.044715
      %v2138 = vmul.f32 %v1978, 0.044715
      %v2139 = vmul.f32 %v1979, 0.044715
      %v2140 = vmul.f32 %v1980, 0.044715
      %v2141 = vmul.f32 %v1981, 0.044715
      %v2142 = vmul.f32 %v1982, 0.044715
      %v2143 = vmul.f32 %v1983, 0.044715
      %v2144 = vmul.f32 %v1984, 0.044715
      %v2145 = vmul.f32 %v1985, 0.044715
      %v2146 = vmul.f32 %v1986, 0.044715
      %v2147 = vmul.f32 %v1987, 0.044715
      %v2148 = vmul.f32 %v1988, 0.044715
      %v2149 = vmul.f32 %v1989, 0.044715
      %v2150 = vmul.f32 %v1990, 0.044715
      %v2151 = vmul.f32 %v1991, 0.044715
      %v2152 = vmul.f32 %v1992, 0.044715
      %v2153 = vmul.f32 %v1993, 0.044715
      %v2154 = vmul.f32 %v1994, 0.044715
      %v2155 = vmul.f32 %v1995, 0.044715
      %v2156 = vmul.f32 %v1996, 0.044715
      %v2157 = vmul.f32 %v1997, 0.044715
      %v2158 = vmul.f32 %v1998, 0.044715
      %v2159 = vmul.f32 %v1999, 0.044715
      %v2160 = vmul.f32 %v2000, 0.044715
      %v2161 = vmul.f32 %v2001, 0.044715
      %v2162 = vmul.f32 %v2002, 0.044715
      %v2163 = vmul.f32 %v2003, 0.044715
      %v2164 = vmul.f32 %v2004, 0.044715
      %v2165 = vmul.f32 %v2005, 0.044715
      %v2166 = vmul.f32 %v2006, 0.044715
      %v2167 = vmul.f32 %v2007, 0.044715
      %v2168 = vmul.f32 %v2008, 0.044715
      %v2169 = vmul.f32 %v2009, 0.044715
      %v2170 = vmul.f32 %v2010, 0.044715
      %v2171 = vmul.f32 %v2011, 0.044715
      %v2172 = vmul.f32 %v2012, 0.044715
      %v2173 = vmul.f32 %v2013, 0.044715
      %v2174 = vmul.f32 %v2014, 0.044715
      %v2175 = vmul.f32 %v2015, 0.044715
      %v2176 = vmul.f32 %v2016, 0.044715
      %v2177 = vmul.f32 %v2017, 0.044715
      %v2178 = vmul.f32 %v2018, 0.044715
      %v2179 = vmul.f32 %v2019, 0.044715
      %v2180 = vmul.f32 %v2020, 0.044715
      %v2181 = vmul.f32 %v2021, 0.044715
      %v2182 = vmul.f32 %v2022, 0.044715
      %v2183 = vmul.f32 %v2023, 0.044715
      %v2184 = vmul.f32 %v2024, 0.044715
      %v2185 = vmul.f32 %v2025, 0.044715
      %v2186 = vmul.f32 %v2026, 0.044715
      %v2187 = vmul.f32 %v2027, 0.044715
      %v2188 = vmul.f32 %v2028, 0.044715
      %v2189 = vmul.f32 %v2029, 0.044715
      %v2190 = vmul.f32 %v2030, 0.044715
      %v2191 = vmul.f32 %v2031, 0.044715
      %v2192 = vmul.f32 %v2032, 0.044715
      %v2193 = vmul.f32 %v2113, %v1953
      %v2194 = vmul.f32 %v2114, %v1954
      %v2195 = vmul.f32 %v2115, %v1955
      %v2196 = vmul.f32 %v2116, %v1956
      %v2197 = vmul.f32 %v2117, %v1957
      %v2198 = vmul.f32 %v2118, %v1958
      %v2199 = vmul.f32 %v2119, %v1959
      %v2200 = vmul.f32 %v2120, %v1960
      %v2201 = vmul.f32 %v2121, %v1961
      %v2202 = vmul.f32 %v2122, %v1962
      %v2203 = vmul.f32 %v2123, %v1963
      %v2204 = vmul.f32 %v2124, %v1964
      %v2205 = vmul.f32 %v2125, %v1965
      %v2206 = vmul.f32 %v2126, %v1966
      %v2207 = vmul.f32 %v2127, %v1967
      %v2208 = vmul.f32 %v2128, %v1968
      %v2209 = vmul.f32 %v2129, %v1969
      %v2210 = vmul.f32 %v2130, %v1970
      %v2211 = vmul.f32 %v2131, %v1971
      %v2212 = vmul.f32 %v2132, %v1972
      %v2213 = vmul.f32 %v2133, %v1973
      %v2214 = vmul.f32 %v2134, %v1974
      %v2215 = vmul.f32 %v2135, %v1975
      %v2216 = vmul.f32 %v2136, %v1976
      %v2217 = vmul.f32 %v2137, %v1977
      %v2218 = vmul.f32 %v2138, %v1978
      %v2219 = vmul.f32 %v2139, %v1979
      %v2220 = vmul.f32 %v2140, %v1980
      %v2221 = vmul.f32 %v2141, %v1981
      %v2222 = vmul.f32 %v2142, %v1982
      %v2223 = vmul.f32 %v2143, %v1983
      %v2224 = vmul.f32 %v2144, %v1984
      %v2225 = vmul.f32 %v2145, %v1985
      %v2226 = vmul.f32 %v2146, %v1986
      %v2227 = vmul.f32 %v2147, %v1987
      %v2228 = vmul.f32 %v2148, %v1988
      %v2229 = vmul.f32 %v2149, %v1989
      %v2230 = vmul.f32 %v2150, %v1990
      %v2231 = vmul.f32 %v2151, %v1991
      %v2232 = vmul.f32 %v2152, %v1992
      %v2233 = vmul.f32 %v2153, %v1993
      %v2234 = vmul.f32 %v2154, %v1994
      %v2235 = vmul.f32 %v2155, %v1995
      %v2236 = vmul.f32 %v2156, %v1996
      %v2237 = vmul.f32 %v2157, %v1997
      %v2238 = vmul.f32 %v2158, %v1998
      %v2239 = vmul.f32 %v2159, %v1999
      %v2240 = vmul.f32 %v2160, %v2000
      %v2241 = vmul.f32 %v2161, %v2001
      %v2242 = vmul.f32 %v2162, %v2002
      %v2243 = vmul.f32 %v2163, %v2003
      %v2244 = vmul.f32 %v2164, %v2004
      %v2245 = vmul.f32 %v2165, %v2005
      %v2246 = vmul.f32 %v2166, %v2006
      %v2247 = vmul.f32 %v2167, %v2007
      %v2248 = vmul.f32 %v2168, %v2008
      %v2249 = vmul.f32 %v2169, %v2009
      %v2250 = vmul.f32 %v2170, %v2010
      %v2251 = vmul.f32 %v2171, %v2011
      %v2252 = vmul.f32 %v2172, %v2012
      %v2253 = vmul.f32 %v2173, %v2013
      %v2254 = vmul.f32 %v2174, %v2014
      %v2255 = vmul.f32 %v2175, %v2015
      %v2256 = vmul.f32 %v2176, %v2016
      %v2257 = vmul.f32 %v2177, %v2017
      %v2258 = vmul.f32 %v2178, %v2018
      %v2259 = vmul.f32 %v2179, %v2019
      %v2260 = vmul.f32 %v2180, %v2020
      %v2261 = vmul.f32 %v2181, %v2021
      %v2262 = vmul.f32 %v2182, %v2022
      %v2263 = vmul.f32 %v2183, %v2023
      %v2264 = vmul.f32 %v2184, %v2024
      %v2265 = vmul.f32 %v2185, %v2025
      %v2266 = vmul.f32 %v2186, %v2026
      %v2267 = vmul.f32 %v2187, %v2027
      %v2268 = vmul.f32 %v2188, %v2028
      %v2269 = vmul.f32 %v2189, %v2029
      %v2270 = vmul.f32 %v2190, %v2030
      %v2271 = vmul.f32 %v2191, %v2031
      %v2272 = vmul.f32 %v2192, %v2032
      %v2273 = vmul.f32 %v2193, %v1953
      %v2274 = vmul.f32 %v2194, %v1954
      %v2275 = vmul.f32 %v2195, %v1955
      %v2276 = vmul.f32 %v2196, %v1956
      %v2277 = vmul.f32 %v2197, %v1957
      %v2278 = vmul.f32 %v2198, %v1958
      %v2279 = vmul.f32 %v2199, %v1959
      %v2280 = vmul.f32 %v2200, %v1960
      %v2281 = vmul.f32 %v2201, %v1961
      %v2282 = vmul.f32 %v2202, %v1962
      %v2283 = vmul.f32 %v2203, %v1963
      %v2284 = vmul.f32 %v2204, %v1964
      %v2285 = vmul.f32 %v2205, %v1965
      %v2286 = vmul.f32 %v2206, %v1966
      %v2287 = vmul.f32 %v2207, %v1967
      %v2288 = vmul.f32 %v2208, %v1968
      %v2289 = vmul.f32 %v2209, %v1969
      %v2290 = vmul.f32 %v2210, %v1970
      %v2291 = vmul.f32 %v2211, %v1971
      %v2292 = vmul.f32 %v2212, %v1972
      %v2293 = vmul.f32 %v2213, %v1973
      %v2294 = vmul.f32 %v2214, %v1974
      %v2295 = vmul.f32 %v2215, %v1975
      %v2296 = vmul.f32 %v2216, %v1976
      %v2297 = vmul.f32 %v2217, %v1977
      %v2298 = vmul.f32 %v2218, %v1978
      %v2299 = vmul.f32 %v2219, %v1979
      %v2300 = vmul.f32 %v2220, %v1980
      %v2301 = vmul.f32 %v2221, %v1981
      %v2302 = vmul.f32 %v2222, %v1982
      %v2303 = vmul.f32 %v2223, %v1983
      %v2304 = vmul.f32 %v2224, %v1984
      %v2305 = vmul.f32 %v2225, %v1985
      %v2306 = vmul.f32 %v2226, %v1986
      %v2307 = vmul.f32 %v2227, %v1987
      %v2308 = vmul.f32 %v2228, %v1988
      %v2309 = vmul.f32 %v2229, %v1989
      %v2310 = vmul.f32 %v2230, %v1990
      %v2311 = vmul.f32 %v2231, %v1991
      %v2312 = vmul.f32 %v2232, %v1992
      %v2313 = vmul.f32 %v2233, %v1993
      %v2314 = vmul.f32 %v2234, %v1994
      %v2315 = vmul.f32 %v2235, %v1995
      %v2316 = vmul.f32 %v2236, %v1996
      %v2317 = vmul.f32 %v2237, %v1997
      %v2318 = vmul.f32 %v2238, %v1998
      %v2319 = vmul.f32 %v2239, %v1999
      %v2320 = vmul.f32 %v2240, %v2000
      %v2321 = vmul.f32 %v2241, %v2001
      %v2322 = vmul.f32 %v2242, %v2002
      %v2323 = vmul.f32 %v2243, %v2003
      %v2324 = vmul.f32 %v2244, %v2004
      %v2325 = vmul.f32 %v2245, %v2005
      %v2326 = vmul.f32 %v2246, %v2006
      %v2327 = vmul.f32 %v2247, %v2007
      %v2328 = vmul.f32 %v2248, %v2008
      %v2329 = vmul.f32 %v2249, %v2009
      %v2330 = vmul.f32 %v2250, %v2010
      %v2331 = vmul.f32 %v2251, %v2011
      %v2332 = vmul.f32 %v2252, %v2012
      %v2333 = vmul.f32 %v2253, %v2013
      %v2334 = vmul.f32 %v2254, %v2014
      %v2335 = vmul.f32 %v2255, %v2015
      %v2336 = vmul.f32 %v2256, %v2016
      %v2337 = vmul.f32 %v2257, %v2017
      %v2338 = vmul.f32 %v2258, %v2018
      %v2339 = vmul.f32 %v2259, %v2019
      %v2340 = vmul.f32 %v2260, %v2020
      %v2341 = vmul.f32 %v2261, %v2021
      %v2342 = vmul.f32 %v2262, %v2022
      %v2343 = vmul.f32 %v2263, %v2023
      %v2344 = vmul.f32 %v2264, %v2024
      %v2345 = vmul.f32 %v2265, %v2025
      %v2346 = vmul.f32 %v2266, %v2026
      %v2347 = vmul.f32 %v2267, %v2027
      %v2348 = vmul.f32 %v2268, %v2028
      %v2349 = vmul.f32 %v2269, %v2029
      %v2350 = vmul.f32 %v2270, %v2030
      %v2351 = vmul.f32 %v2271, %v2031
      %v2352 = vmul.f32 %v2272, %v2032
      %v2353 = vadd.f32 %v1953, %v2273
      %v2354 = vadd.f32 %v1954, %v2274
      %v2355 = vadd.f32 %v1955, %v2275
      %v2356 = vadd.f32 %v1956, %v2276
      %v2357 = vadd.f32 %v1957, %v2277
      %v2358 = vadd.f32 %v1958, %v2278
      %v2359 = vadd.f32 %v1959, %v2279
      %v2360 = vadd.f32 %v1960, %v2280
      %v2361 = vadd.f32 %v1961, %v2281
      %v2362 = vadd.f32 %v1962, %v2282
      %v2363 = vadd.f32 %v1963, %v2283
      %v2364 = vadd.f32 %v1964, %v2284
      %v2365 = vadd.f32 %v1965, %v2285
      %v2366 = vadd.f32 %v1966, %v2286
      %v2367 = vadd.f32 %v1967, %v2287
      %v2368 = vadd.f32 %v1968, %v2288
      %v2369 = vadd.f32 %v1969, %v2289
      %v2370 = vadd.f32 %v1970, %v2290
      %v2371 = vadd.f32 %v1971, %v2291
      %v2372 = vadd.f32 %v1972, %v2292
      %v2373 = vadd.f32 %v1973, %v2293
      %v2374 = vadd.f32 %v1974, %v2294
      %v2375 = vadd.f32 %v1975, %v2295
      %v2376 = vadd.f32 %v1976, %v2296
      %v2377 = vadd.f32 %v1977, %v2297
      %v2378 = vadd.f32 %v1978, %v2298
      %v2379 = vadd.f32 %v1979, %v2299
      %v2380 = vadd.f32 %v1980, %v2300
      %v2381 = vadd.f32 %v1981, %v2301
      %v2382 = vadd.f32 %v1982, %v2302
      %v2383 = vadd.f32 %v1983, %v2303
      %v2384 = vadd.f32 %v1984, %v2304
      %v2385 = vadd.f32 %v1985, %v2305
      %v2386 = vadd.f32 %v1986, %v2306
      %v2387 = vadd.f32 %v1987, %v2307
      %v2388 = vadd.f32 %v1988, %v2308
      %v2389 = vadd.f32 %v1989, %v2309
      %v2390 = vadd.f32 %v1990, %v2310
      %v2391 = vadd.f32 %v1991, %v2311
      %v2392 = vadd.f32 %v1992, %v2312
      %v2393 = vadd.f32 %v1993, %v2313
      %v2394 = vadd.f32 %v1994, %v2314
      %v2395 = vadd.f32 %v1995, %v2315
      %v2396 = vadd.f32 %v1996, %v2316
      %v2397 = vadd.f32 %v1997, %v2317
      %v2398 = vadd.f32 %v1998, %v2318
      %v2399 = vadd.f32 %v1999, %v2319
      %v2400 = vadd.f32 %v2000, %v2320
      %v2401 = vadd.f32 %v2001, %v2321
      %v2402 = vadd.f32 %v2002, %v2322
      %v2403 = vadd.f32 %v2003, %v2323
      %v2404 = vadd.f32 %v2004, %v2324
      %v2405 = vadd.f32 %v2005, %v2325
      %v2406 = vadd.f32 %v2006, %v2326
      %v2407 = vadd.f32 %v2007, %v2327
      %v2408 = vadd.f32 %v2008, %v2328
      %v2409 = vadd.f32 %v2009, %v2329
      %v2410 = vadd.f32 %v2010, %v2330
      %v2411 = vadd.f32 %v2011, %v2331
      %v2412 = vadd.f32 %v2012, %v2332
      %v2413 = vadd.f32 %v2013, %v2333
      %v2414 = vadd.f32 %v2014, %v2334
      %v2415 = vadd.f32 %v2015, %v2335
      %v2416 = vadd.f32 %v2016, %v2336
      %v2417 = vadd.f32 %v2017, %v2337
      %v2418 = vadd.f32 %v2018, %v2338
      %v2419 = vadd.f32 %v2019, %v2339
      %v2420 = vadd.f32 %v2020, %v2340
      %v2421 = vadd.f32 %v2021, %v2341
      %v2422 = vadd.f32 %v2022, %v2342
      %v2423 = vadd.f32 %v2023, %v2343
      %v2424 = vadd.f32 %v2024, %v2344
      %v2425 = vadd.f32 %v2025, %v2345
      %v2426 = vadd.f32 %v2026, %v2346
      %v2427 = vadd.f32 %v2027, %v2347
      %v2428 = vadd.f32 %v2028, %v2348
      %v2429 = vadd.f32 %v2029, %v2349
      %v2430 = vadd.f32 %v2030, %v2350
      %v2431 = vadd.f32 %v2031, %v2351
      %v2432 = vadd.f32 %v2032, %v2352
      %v2433 = vmul.f32 %v2353, 0.7978846
      %v2434 = vmul.f32 %v2354, 0.7978846
      %v2435 = vmul.f32 %v2355, 0.7978846
      %v2436 = vmul.f32 %v2356, 0.7978846
      %v2437 = vmul.f32 %v2357, 0.7978846
      %v2438 = vmul.f32 %v2358, 0.7978846
      %v2439 = vmul.f32 %v2359, 0.7978846
      %v2440 = vmul.f32 %v2360, 0.7978846
      %v2441 = vmul.f32 %v2361, 0.7978846
      %v2442 = vmul.f32 %v2362, 0.7978846
      %v2443 = vmul.f32 %v2363, 0.7978846
      %v2444 = vmul.f32 %v2364, 0.7978846
      %v2445 = vmul.f32 %v2365, 0.7978846
      %v2446 = vmul.f32 %v2366, 0.7978846
      %v2447 = vmul.f32 %v2367, 0.7978846
      %v2448 = vmul.f32 %v2368, 0.7978846
      %v2449 = vmul.f32 %v2369, 0.7978846
      %v2450 = vmul.f32 %v2370, 0.7978846
      %v2451 = vmul.f32 %v2371, 0.7978846
      %v2452 = vmul.f32 %v2372, 0.7978846
      %v2453 = vmul.f32 %v2373, 0.7978846
      %v2454 = vmul.f32 %v2374, 0.7978846
      %v2455 = vmul.f32 %v2375, 0.7978846
      %v2456 = vmul.f32 %v2376, 0.7978846
      %v2457 = vmul.f32 %v2377, 0.7978846
      %v2458 = vmul.f32 %v2378, 0.7978846
      %v2459 = vmul.f32 %v2379, 0.7978846
      %v2460 = vmul.f32 %v2380, 0.7978846
      %v2461 = vmul.f32 %v2381, 0.7978846
      %v2462 = vmul.f32 %v2382, 0.7978846
      %v2463 = vmul.f32 %v2383, 0.7978846
      %v2464 = vmul.f32 %v2384, 0.7978846
      %v2465 = vmul.f32 %v2385, 0.7978846
      %v2466 = vmul.f32 %v2386, 0.7978846
      %v2467 = vmul.f32 %v2387, 0.7978846
      %v2468 = vmul.f32 %v2388, 0.7978846
      %v2469 = vmul.f32 %v2389, 0.7978846
      %v2470 = vmul.f32 %v2390, 0.7978846
      %v2471 = vmul.f32 %v2391, 0.7978846
      %v2472 = vmul.f32 %v2392, 0.7978846
      %v2473 = vmul.f32 %v2393, 0.7978846
      %v2474 = vmul.f32 %v2394, 0.7978846
      %v2475 = vmul.f32 %v2395, 0.7978846
      %v2476 = vmul.f32 %v2396, 0.7978846
      %v2477 = vmul.f32 %v2397, 0.7978846
      %v2478 = vmul.f32 %v2398, 0.7978846
      %v2479 = vmul.f32 %v2399, 0.7978846
      %v2480 = vmul.f32 %v2400, 0.7978846
      %v2481 = vmul.f32 %v2401, 0.7978846
      %v2482 = vmul.f32 %v2402, 0.7978846
      %v2483 = vmul.f32 %v2403, 0.7978846
      %v2484 = vmul.f32 %v2404, 0.7978846
      %v2485 = vmul.f32 %v2405, 0.7978846
      %v2486 = vmul.f32 %v2406, 0.7978846
      %v2487 = vmul.f32 %v2407, 0.7978846
      %v2488 = vmul.f32 %v2408, 0.7978846
      %v2489 = vmul.f32 %v2409, 0.7978846
      %v2490 = vmul.f32 %v2410, 0.7978846
      %v2491 = vmul.f32 %v2411, 0.7978846
      %v2492 = vmul.f32 %v2412, 0.7978846
      %v2493 = vmul.f32 %v2413, 0.7978846
      %v2494 = vmul.f32 %v2414, 0.7978846
      %v2495 = vmul.f32 %v2415, 0.7978846
      %v2496 = vmul.f32 %v2416, 0.7978846
      %v2497 = vmul.f32 %v2417, 0.7978846
      %v2498 = vmul.f32 %v2418, 0.7978846
      %v2499 = vmul.f32 %v2419, 0.7978846
      %v2500 = vmul.f32 %v2420, 0.7978846
      %v2501 = vmul.f32 %v2421, 0.7978846
      %v2502 = vmul.f32 %v2422, 0.7978846
      %v2503 = vmul.f32 %v2423, 0.7978846
      %v2504 = vmul.f32 %v2424, 0.7978846
      %v2505 = vmul.f32 %v2425, 0.7978846
      %v2506 = vmul.f32 %v2426, 0.7978846
      %v2507 = vmul.f32 %v2427, 0.7978846
      %v2508 = vmul.f32 %v2428, 0.7978846
      %v2509 = vmul.f32 %v2429, 0.7978846
      %v2510 = vmul.f32 %v2430, 0.7978846
      %v2511 = vmul.f32 %v2431, 0.7978846
      %v2512 = vmul.f32 %v2432, 0.7978846
      %v2513 = vtanh.pop %v2433
      %v2514 = vtanh.pop %v2434
      %v2515 = vtanh.pop %v2435
      %v2516 = vtanh.pop %v2436
      %v2517 = vtanh.pop %v2437
      %v2518 = vtanh.pop %v2438
      %v2519 = vtanh.pop %v2439
      %v2520 = vtanh.pop %v2440
      %v2521 = vtanh.pop %v2441
      %v2522 = vtanh.pop %v2442
      %v2523 = vtanh.pop %v2443
      %v2524 = vtanh.pop %v2444
      %v2525 = vtanh.pop %v2445
      %v2526 = vtanh.pop %v2446
      %v2527 = vtanh.pop %v2447
      %v2528 = vtanh.pop %v2448
      %v2529 = vtanh.pop %v2449
      %v2530 = vtanh.pop %v2450
      %v2531 = vtanh.pop %v2451
      %v2532 = vtanh.pop %v2452
      %v2533 = vtanh.pop %v2453
      %v2534 = vtanh.pop %v2454
      %v2535 = vtanh.pop %v2455
      %v2536 = vtanh.pop %v2456
      %v2537 = vtanh.pop %v2457
      %v2538 = vtanh.pop %v2458
      %v2539 = vtanh.pop %v2459
      %v2540 = vtanh.pop %v2460
      %v2541 = vtanh.pop %v2461
      %v2542 = vtanh.pop %v2462
      %v2543 = vtanh.pop %v2463
      %v2544 = vtanh.pop %v2464
      %v2545 = vtanh.pop %v2465
      %v2546 = vtanh.pop %v2466
      %v2547 = vtanh.pop %v2467
      %v2548 = vtanh.pop %v2468
      %v2549 = vtanh.pop %v2469
      %v2550 = vtanh.pop %v2470
      %v2551 = vtanh.pop %v2471
      %v2552 = vtanh.pop %v2472
      %v2553 = vtanh.pop %v2473
      %v2554 = vtanh.pop %v2474
      %v2555 = vtanh.pop %v2475
      %v2556 = vtanh.pop %v2476
      %v2557 = vtanh.pop %v2477
      %v2558 = vtanh.pop %v2478
      %v2559 = vtanh.pop %v2479
      %v2560 = vtanh.pop %v2480
      %v2561 = vtanh.pop %v2481
      %v2562 = vtanh.pop %v2482
      %v2563 = vtanh.pop %v2483
      %v2564 = vtanh.pop %v2484
      %v2565 = vtanh.pop %v2485
      %v2566 = vtanh.pop %v2486
      %v2567 = vtanh.pop %v2487
      %v2568 = vtanh.pop %v2488
      %v2569 = vtanh.pop %v2489
      %v2570 = vtanh.pop %v2490
      %v2571 = vtanh.pop %v2491
      %v2572 = vtanh.pop %v2492
      %v2573 = vtanh.pop %v2493
      %v2574 = vtanh.pop %v2494
      %v2575 = vtanh.pop %v2495
      %v2576 = vtanh.pop %v2496
      %v2577 = vtanh.pop %v2497
      %v2578 = vtanh.pop %v2498
      %v2579 = vtanh.pop %v2499
      %v2580 = vtanh.pop %v2500
      %v2581 = vtanh.pop %v2501
      %v2582 = vtanh.pop %v2502
      %v2583 = vtanh.pop %v2503
      %v2584 = vtanh.pop %v2504
      %v2585 = vtanh.pop %v2505
      %v2586 = vtanh.pop %v2506
      %v2587 = vtanh.pop %v2507
      %v2588 = vtanh.pop %v2508
      %v2589 = vtanh.pop %v2509
      %v2590 = vtanh.pop %v2510
      %v2591 = vtanh.pop %v2511
      %v2592 = vtanh.pop %v2512
      %v2593 = vadd.f32 %v2513, 1.0
      %v2594 = vadd.f32 %v2514, 1.0
      %v2595 = vadd.f32 %v2515, 1.0
      %v2596 = vadd.f32 %v2516, 1.0
      %v2597 = vadd.f32 %v2517, 1.0
      %v2598 = vadd.f32 %v2518, 1.0
      %v2599 = vadd.f32 %v2519, 1.0
      %v2600 = vadd.f32 %v2520, 1.0
      %v2601 = vadd.f32 %v2521, 1.0
      %v2602 = vadd.f32 %v2522, 1.0
      %v2603 = vadd.f32 %v2523, 1.0
      %v2604 = vadd.f32 %v2524, 1.0
      %v2605 = vadd.f32 %v2525, 1.0
      %v2606 = vadd.f32 %v2526, 1.0
      %v2607 = vadd.f32 %v2527, 1.0
      %v2608 = vadd.f32 %v2528, 1.0
      %v2609 = vadd.f32 %v2529, 1.0
      %v2610 = vadd.f32 %v2530, 1.0
      %v2611 = vadd.f32 %v2531, 1.0
      %v2612 = vadd.f32 %v2532, 1.0
      %v2613 = vadd.f32 %v2533, 1.0
      %v2614 = vadd.f32 %v2534, 1.0
      %v2615 = vadd.f32 %v2535, 1.0
      %v2616 = vadd.f32 %v2536, 1.0
      %v2617 = vadd.f32 %v2537, 1.0
      %v2618 = vadd.f32 %v2538, 1.0
      %v2619 = vadd.f32 %v2539, 1.0
      %v2620 = vadd.f32 %v2540, 1.0
      %v2621 = vadd.f32 %v2541, 1.0
      %v2622 = vadd.f32 %v2542, 1.0
      %v2623 = vadd.f32 %v2543, 1.0
      %v2624 = vadd.f32 %v2544, 1.0
      %v2625 = vadd.f32 %v2545, 1.0
      %v2626 = vadd.f32 %v2546, 1.0
      %v2627 = vadd.f32 %v2547, 1.0
      %v2628 = vadd.f32 %v2548, 1.0
      %v2629 = vadd.f32 %v2549, 1.0
      %v2630 = vadd.f32 %v2550, 1.0
      %v2631 = vadd.f32 %v2551, 1.0
      %v2632 = vadd.f32 %v2552, 1.0
      %v2633 = vadd.f32 %v2553, 1.0
      %v2634 = vadd.f32 %v2554, 1.0
      %v2635 = vadd.f32 %v2555, 1.0
      %v2636 = vadd.f32 %v2556, 1.0
      %v2637 = vadd.f32 %v2557, 1.0
      %v2638 = vadd.f32 %v2558, 1.0
      %v2639 = vadd.f32 %v2559, 1.0
      %v2640 = vadd.f32 %v2560, 1.0
      %v2641 = vadd.f32 %v2561, 1.0
      %v2642 = vadd.f32 %v2562, 1.0
      %v2643 = vadd.f32 %v2563, 1.0
      %v2644 = vadd.f32 %v2564, 1.0
      %v2645 = vadd.f32 %v2565, 1.0
      %v2646 = vadd.f32 %v2566, 1.0
      %v2647 = vadd.f32 %v2567, 1.0
      %v2648 = vadd.f32 %v2568, 1.0
      %v2649 = vadd.f32 %v2569, 1.0
      %v2650 = vadd.f32 %v2570, 1.0
      %v2651 = vadd.f32 %v2571, 1.0
      %v2652 = vadd.f32 %v2572, 1.0
      %v2653 = vadd.f32 %v2573, 1.0
      %v2654 = vadd.f32 %v2574, 1.0
      %v2655 = vadd.f32 %v2575, 1.0
      %v2656 = vadd.f32 %v2576, 1.0
      %v2657 = vadd.f32 %v2577, 1.0
      %v2658 = vadd.f32 %v2578, 1.0
      %v2659 = vadd.f32 %v2579, 1.0
      %v2660 = vadd.f32 %v2580, 1.0
      %v2661 = vadd.f32 %v2581, 1.0
      %v2662 = vadd.f32 %v2582, 1.0
      %v2663 = vadd.f32 %v2583, 1.0
      %v2664 = vadd.f32 %v2584, 1.0
      %v2665 = vadd.f32 %v2585, 1.0
      %v2666 = vadd.f32 %v2586, 1.0
      %v2667 = vadd.f32 %v2587, 1.0
      %v2668 = vadd.f32 %v2588, 1.0
      %v2669 = vadd.f32 %v2589, 1.0
      %v2670 = vadd.f32 %v2590, 1.0
      %v2671 = vadd.f32 %v2591, 1.0
      %v2672 = vadd.f32 %v2592, 1.0
      %v2673 = vmul.f32 %v2033, %v2593
      %v2674 = vmul.f32 %v2034, %v2594
      %v2675 = vmul.f32 %v2035, %v2595
      %v2676 = vmul.f32 %v2036, %v2596
      %v2677 = vmul.f32 %v2037, %v2597
      %v2678 = vmul.f32 %v2038, %v2598
      %v2679 = vmul.f32 %v2039, %v2599
      %v2680 = vmul.f32 %v2040, %v2600
      %v2681 = vmul.f32 %v2041, %v2601
      %v2682 = vmul.f32 %v2042, %v2602
      %v2683 = vmul.f32 %v2043, %v2603
      %v2684 = vmul.f32 %v2044, %v2604
      %v2685 = vmul.f32 %v2045, %v2605
      %v2686 = vmul.f32 %v2046, %v2606
      %v2687 = vmul.f32 %v2047, %v2607
      %v2688 = vmul.f32 %v2048, %v2608
      %v2689 = vmul.f32 %v2049, %v2609
      %v2690 = vmul.f32 %v2050, %v2610
      %v2691 = vmul.f32 %v2051, %v2611
      %v2692 = vmul.f32 %v2052, %v2612
      %v2693 = vmul.f32 %v2053, %v2613
      %v2694 = vmul.f32 %v2054, %v2614
      %v2695 = vmul.f32 %v2055, %v2615
      %v2696 = vmul.f32 %v2056, %v2616
      %v2697 = vmul.f32 %v2057, %v2617
      %v2698 = vmul.f32 %v2058, %v2618
      %v2699 = vmul.f32 %v2059, %v2619
      %v2700 = vmul.f32 %v2060, %v2620
      %v2701 = vmul.f32 %v2061, %v2621
      %v2702 = vmul.f32 %v2062, %v2622
      %v2703 = vmul.f32 %v2063, %v2623
      %v2704 = vmul.f32 %v2064, %v2624
      %v2705 = vmul.f32 %v2065, %v2625
      %v2706 = vmul.f32 %v2066, %v2626
      %v2707 = vmul.f32 %v2067, %v2627
      %v2708 = vmul.f32 %v2068, %v2628
      %v2709 = vmul.f32 %v2069, %v2629
      %v2710 = vmul.f32 %v2070, %v2630
      %v2711 = vmul.f32 %v2071, %v2631
      %v2712 = vmul.f32 %v2072, %v2632
      %v2713 = vmul.f32 %v2073, %v2633
      %v2714 = vmul.f32 %v2074, %v2634
      %v2715 = vmul.f32 %v2075, %v2635
      %v2716 = vmul.f32 %v2076, %v2636
      %v2717 = vmul.f32 %v2077, %v2637
      %v2718 = vmul.f32 %v2078, %v2638
      %v2719 = vmul.f32 %v2079, %v2639
      %v2720 = vmul.f32 %v2080, %v2640
      %v2721 = vmul.f32 %v2081, %v2641
      %v2722 = vmul.f32 %v2082, %v2642
      %v2723 = vmul.f32 %v2083, %v2643
      %v2724 = vmul.f32 %v2084, %v2644
      %v2725 = vmul.f32 %v2085, %v2645
      %v2726 = vmul.f32 %v2086, %v2646
      %v2727 = vmul.f32 %v2087, %v2647
      %v2728 = vmul.f32 %v2088, %v2648
      %v2729 = vmul.f32 %v2089, %v2649
      %v2730 = vmul.f32 %v2090, %v2650
      %v2731 = vmul.f32 %v2091, %v2651
      %v2732 = vmul.f32 %v2092, %v2652
      %v2733 = vmul.f32 %v2093, %v2653
      %v2734 = vmul.f32 %v2094, %v2654
      %v2735 = vmul.f32 %v2095, %v2655
      %v2736 = vmul.f32 %v2096, %v2656
      %v2737 = vmul.f32 %v2097, %v2657
      %v2738 = vmul.f32 %v2098, %v2658
      %v2739 = vmul.f32 %v2099, %v2659
      %v2740 = vmul.f32 %v2100, %v2660
      %v2741 = vmul.f32 %v2101, %v2661
      %v2742 = vmul.f32 %v2102, %v2662
      %v2743 = vmul.f32 %v2103, %v2663
      %v2744 = vmul.f32 %v2104, %v2664
      %v2745 = vmul.f32 %v2105, %v2665
      %v2746 = vmul.f32 %v2106, %v2666
      %v2747 = vmul.f32 %v2107, %v2667
      %v2748 = vmul.f32 %v2108, %v2668
      %v2749 = vmul.f32 %v2109, %v2669
      %v2750 = vmul.f32 %v2110, %v2670
      %v2751 = vmul.f32 %v2111, %v2671
      %v2752 = vmul.f32 %v2112, %v2672
      %2753 = vst.msk [vmem:[#allocation2] sm:$0xff] %vm1273, %v2673
      %2754 = vst.msk [vmem:[#allocation2 + $0x8] sm:$0xff] %vm1273, %v2674
      %2755 = vst.msk [vmem:[#allocation2 + $0x10] sm:$0xff] %vm1273, %v2675
      %2756 = vst.msk [vmem:[#allocation2 + $0x18] sm:$0xff] %vm1273, %v2676
      %2757 = vst.msk [vmem:[#allocation2 + $0x20] sm:$0xff] %vm1273, %v2677
      %2758 = vst.msk [vmem:[#allocation2 + $0x28] sm:$0xff] %vm1273, %v2678
      %2759 = vst.msk [vmem:[#allocation2 + $0x30] sm:$0xff] %vm1273, %v2679
      %2760 = vst.msk [vmem:[#allocation2 + $0x38] sm:$0xff] %vm1273, %v2680
      %2761 = vst.msk [vmem:[#allocation2 + $0x40] sm:$0xff] %vm1273, %v2681
      %2762 = vst.msk [vmem:[#allocation2 + $0x48] sm:$0xff] %vm1273, %v2682
      %2763 = vst.msk [vmem:[#allocation2 + $0x50] sm:$0xff] %vm1273, %v2683
      %2764 = vst.msk [vmem:[#allocation2 + $0x58] sm:$0xff] %vm1273, %v2684
      %2765 = vst.msk [vmem:[#allocation2 + $0x60] sm:$0xff] %vm1273, %v2685
      %2766 = vst.msk [vmem:[#allocation2 + $0x68] sm:$0xff] %vm1273, %v2686
      %2767 = vst.msk [vmem:[#allocation2 + $0x70] sm:$0xff] %vm1273, %v2687
      %2768 = vst.msk [vmem:[#allocation2 + $0x78] sm:$0xff] %vm1273, %v2688
      %2769 = vst.msk [vmem:[#allocation2 + $0x80] sm:$0xff] %vm1273, %v2689
      %2770 = vst.msk [vmem:[#allocation2 + $0x88] sm:$0xff] %vm1273, %v2690
      %2771 = vst.msk [vmem:[#allocation2 + $0x90] sm:$0xff] %vm1273, %v2691
      %2772 = vst.msk [vmem:[#allocation2 + $0x98] sm:$0xff] %vm1273, %v2692
      %2773 = vst.msk [vmem:[#allocation2 + $0xa0] sm:$0xff] %vm1273, %v2693
      %2774 = vst.msk [vmem:[#allocation2 + $0xa8] sm:$0xff] %vm1273, %v2694
      %2775 = vst.msk [vmem:[#allocation2 + $0xb0] sm:$0xff] %vm1273, %v2695
      %2776 = vst.msk [vmem:[#allocation2 + $0xb8] sm:$0xff] %vm1273, %v2696
      %2777 = vst.msk [vmem:[#allocation2 + $0xc0] sm:$0xff] %vm1273, %v2697
      %2778 = vst.msk [vmem:[#allocation2 + $0xc8] sm:$0xff] %vm1273, %v2698
      %2779 = vst.msk [vmem:[#allocation2 + $0xd0] sm:$0xff] %vm1273, %v2699
      %2780 = vst.msk [vmem:[#allocation2 + $0xd8] sm:$0xff] %vm1273, %v2700
      %2781 = vst.msk [vmem:[#allocation2 + $0xe0] sm:$0xff] %vm1273, %v2701
      %2782 = vst.msk [vmem:[#allocation2 + $0xe8] sm:$0xff] %vm1273, %v2702
      %2783 = vst.msk [vmem:[#allocation2 + $0xf0] sm:$0xff] %vm1273, %v2703
      %2784 = vst.msk [vmem:[#allocation2 + $0xf8] sm:$0xff] %vm1273, %v2704
      %2785 = vst.msk [vmem:[#allocation2 + $0x100] sm:$0xff] %vm1273, %v2705
      %2786 = vst.msk [vmem:[#allocation2 + $0x108] sm:$0xff] %vm1273, %v2706
      %2787 = vst.msk [vmem:[#allocation2 + $0x110] sm:$0xff] %vm1273, %v2707
      %2788 = vst.msk [vmem:[#allocation2 + $0x118] sm:$0xff] %vm1273, %v2708
      %2789 = vst.msk [vmem:[#allocation2 + $0x120] sm:$0xff] %vm1273, %v2709
      %2790 = vst.msk [vmem:[#allocation2 + $0x128] sm:$0xff] %vm1273, %v2710
      %2791 = vst.msk [vmem:[#allocation2 + $0x130] sm:$0xff] %vm1273, %v2711
      %2792 = vst.msk [vmem:[#allocation2 + $0x138] sm:$0xff] %vm1273, %v2712
      %2793 = vst.msk [vmem:[#allocation2 + $0x140] sm:$0xff] %vm1273, %v2713
      %2794 = vst.msk [vmem:[#allocation2 + $0x148] sm:$0xff] %vm1273, %v2714
      %2795 = vst.msk [vmem:[#allocation2 + $0x150] sm:$0xff] %vm1273, %v2715
      %2796 = vst.msk [vmem:[#allocation2 + $0x158] sm:$0xff] %vm1273, %v2716
      %2797 = vst.msk [vmem:[#allocation2 + $0x160] sm:$0xff] %vm1273, %v2717
      %2798 = vst.msk [vmem:[#allocation2 + $0x168] sm:$0xff] %vm1273, %v2718
      %2799 = vst.msk [vmem:[#allocation2 + $0x170] sm:$0xff] %vm1273, %v2719
      %2800 = vst.msk [vmem:[#allocation2 + $0x178] sm:$0xff] %vm1273, %v2720
      %2801 = vst.msk [vmem:[#allocation2 + $0x180] sm:$0xff] %vm1273, %v2721
      %2802 = vst.msk [vmem:[#allocation2 + $0x188] sm:$0xff] %vm1273, %v2722
      %2803 = vst.msk [vmem:[#allocation2 + $0x190] sm:$0xff] %vm1273, %v2723
      %2804 = vst.msk [vmem:[#allocation2 + $0x198] sm:$0xff] %vm1273, %v2724
      %2805 = vst.msk [vmem:[#allocation2 + $0x1a0] sm:$0xff] %vm1273, %v2725
      %2806 = vst.msk [vmem:[#allocation2 + $0x1a8] sm:$0xff] %vm1273, %v2726
      %2807 = vst.msk [vmem:[#allocation2 + $0x1b0] sm:$0xff] %vm1273, %v2727
      %2808 = vst.msk [vmem:[#allocation2 + $0x1b8] sm:$0xff] %vm1273, %v2728
      %2809 = vst.msk [vmem:[#allocation2 + $0x1c0] sm:$0xff] %vm1273, %v2729
      %2810 = vst.msk [vmem:[#allocation2 + $0x1c8] sm:$0xff] %vm1273, %v2730
      %2811 = vst.msk [vmem:[#allocation2 + $0x1d0] sm:$0xff] %vm1273, %v2731
      %2812 = vst.msk [vmem:[#allocation2 + $0x1d8] sm:$0xff] %vm1273, %v2732
      %2813 = vst.msk [vmem:[#allocation2 + $0x1e0] sm:$0xff] %vm1273, %v2733
      %2814 = vst.msk [vmem:[#allocation2 + $0x1e8] sm:$0xff] %vm1273, %v2734
      %2815 = vst.msk [vmem:[#allocation2 + $0x1f0] sm:$0xff] %vm1273, %v2735
      %2816 = vst.msk [vmem:[#allocation2 + $0x1f8] sm:$0xff] %vm1273, %v2736
      %2817 = vst.msk [vmem:[#allocation2 + $0x200] sm:$0xff] %vm1273, %v2737
      %2818 = vst.msk [vmem:[#allocation2 + $0x208] sm:$0xff] %vm1273, %v2738
      %2819 = vst.msk [vmem:[#allocation2 + $0x210] sm:$0xff] %vm1273, %v2739
      %2820 = vst.msk [vmem:[#allocation2 + $0x218] sm:$0xff] %vm1273, %v2740
      %2821 = vst.msk [vmem:[#allocation2 + $0x220] sm:$0xff] %vm1273, %v2741
      %2822 = vst.msk [vmem:[#allocation2 + $0x228] sm:$0xff] %vm1273, %v2742
      %2823 = vst.msk [vmem:[#allocation2 + $0x230] sm:$0xff] %vm1273, %v2743
      %2824 = vst.msk [vmem:[#allocation2 + $0x238] sm:$0xff] %vm1273, %v2744
      %2825 = vst.msk [vmem:[#allocation2 + $0x240] sm:$0xff] %vm1273, %v2745
      %2826 = vst.msk [vmem:[#allocation2 + $0x248] sm:$0xff] %vm1273, %v2746
      %2827 = vst.msk [vmem:[#allocation2 + $0x250] sm:$0xff] %vm1273, %v2747
      %2828 = vst.msk [vmem:[#allocation2 + $0x258] sm:$0xff] %vm1273, %v2748
      %2829 = vst.msk [vmem:[#allocation2 + $0x260] sm:$0xff] %vm1273, %v2749
      %2830 = vst.msk [vmem:[#allocation2 + $0x268] sm:$0xff] %vm1273, %v2750
      %2831 = vst.msk [vmem:[#allocation2 + $0x270] sm:$0xff] %vm1273, %v2751
      %2832 = vst.msk [vmem:[#allocation2 + $0x278] sm:$0x7f] %vm1431, %v2752
      %v2833 = vld [vmem:[#allocation2] ss:$2 sm:$0xff]
      %s2834 = scalar_lea.vmem [#allocation2], 16
      %v2835 = vld [vmem:[%s2834] ss:$2 sm:$0xff]
      %s2836 = scalar_lea.vmem [#allocation2], 32
      %v2837 = vld [vmem:[%s2836] ss:$2 sm:$0xff]
      %s2838 = scalar_lea.vmem [#allocation2], 48
      %v2839 = vld [vmem:[%s2838] ss:$2 sm:$0xff]
      %s2840 = scalar_lea.vmem [#allocation2], 64
      %v2841 = vld [vmem:[%s2840] ss:$2 sm:$0xff]
      %s2842 = scalar_lea.vmem [#allocation2], 80
      %v2843 = vld [vmem:[%s2842] ss:$2 sm:$0xff]
      %s2844 = scalar_lea.vmem [#allocation2], 96
      %v2845 = vld [vmem:[%s2844] ss:$2 sm:$0xff]
      %s2846 = scalar_lea.vmem [#allocation2], 112
      %v2847 = vld [vmem:[%s2846] ss:$2 sm:$0xff]
      %s2848 = scalar_lea.vmem [#allocation2], 128
      %v2849 = vld [vmem:[%s2848] ss:$2 sm:$0xff]
      %s2850 = scalar_lea.vmem [#allocation2], 144
      %v2851 = vld [vmem:[%s2850] ss:$2 sm:$0xff]
      %s2852 = scalar_lea.vmem [#allocation2], 160
      %v2853 = vld [vmem:[%s2852] ss:$2 sm:$0xff]
      %s2854 = scalar_lea.vmem [#allocation2], 176
      %v2855 = vld [vmem:[%s2854] ss:$2 sm:$0xff]
      %s2856 = scalar_lea.vmem [#allocation2], 192
      %v2857 = vld [vmem:[%s2856] ss:$2 sm:$0xff]
      %s2858 = scalar_lea.vmem [#allocation2], 208
      %v2859 = vld [vmem:[%s2858] ss:$2 sm:$0xff]
      %s2860 = scalar_lea.vmem [#allocation2], 224
      %v2861 = vld [vmem:[%s2860] ss:$2 sm:$0xff]
      %s2862 = scalar_lea.vmem [#allocation2], 240
      %v2863 = vld [vmem:[%s2862] ss:$2 sm:$0xff]
      %s2864 = scalar_lea.vmem [#allocation2], 256
      %v2865 = vld [vmem:[%s2864] ss:$2 sm:$0xff]
      %s2866 = scalar_lea.vmem [#allocation2], 272
      %v2867 = vld [vmem:[%s2866] ss:$2 sm:$0xff]
      %s2868 = scalar_lea.vmem [#allocation2], 288
      %v2869 = vld [vmem:[%s2868] ss:$2 sm:$0xff]
      %s2870 = scalar_lea.vmem [#allocation2], 304
      %v2871 = vld [vmem:[%s2870] ss:$2 sm:$0xff]
      %s2872 = scalar_lea.vmem [#allocation2], 320
      %v2873 = vld [vmem:[%s2872] ss:$2 sm:$0xff]
      %s2874 = scalar_lea.vmem [#allocation2], 336
      %v2875 = vld [vmem:[%s2874] ss:$2 sm:$0xff]
      %s2876 = scalar_lea.vmem [#allocation2], 352
      %v2877 = vld [vmem:[%s2876] ss:$2 sm:$0xff]
      %s2878 = scalar_lea.vmem [#allocation2], 368
      %v2879 = vld [vmem:[%s2878] ss:$2 sm:$0xff]
      %s2880 = scalar_lea.vmem [#allocation2], 384
      %v2881 = vld [vmem:[%s2880] ss:$2 sm:$0xff]
      %s2882 = scalar_lea.vmem [#allocation2], 400
      %v2883 = vld [vmem:[%s2882] ss:$2 sm:$0xff]
      %s2884 = scalar_lea.vmem [#allocation2], 416
      %v2885 = vld [vmem:[%s2884] ss:$2 sm:$0xff]
      %s2886 = scalar_lea.vmem [#allocation2], 432
      %v2887 = vld [vmem:[%s2886] ss:$2 sm:$0xff]
      %s2888 = scalar_lea.vmem [#allocation2], 448
      %v2889 = vld [vmem:[%s2888] ss:$2 sm:$0xff]
      %s2890 = scalar_lea.vmem [#allocation2], 464
      %v2891 = vld [vmem:[%s2890] ss:$2 sm:$0xff]
      %s2892 = scalar_lea.vmem [#allocation2], 480
      %v2893 = vld [vmem:[%s2892] ss:$2 sm:$0xff]
      %s2894 = scalar_lea.vmem [#allocation2], 496
      %v2895 = vld [vmem:[%s2894] ss:$2 sm:$0xff]
      %s2896 = scalar_lea.vmem [#allocation2], 512
      %v2897 = vld [vmem:[%s2896] ss:$2 sm:$0xff]
      %s2898 = scalar_lea.vmem [#allocation2], 528
      %v2899 = vld [vmem:[%s2898] ss:$2 sm:$0xff]
      %s2900 = scalar_lea.vmem [#allocation2], 544
      %v2901 = vld [vmem:[%s2900] ss:$2 sm:$0xff]
      %s2902 = scalar_lea.vmem [#allocation2], 560
      %v2903 = vld [vmem:[%s2902] ss:$2 sm:$0xff]
      %s2904 = scalar_lea.vmem [#allocation2], 576
      %v2905 = vld [vmem:[%s2904] ss:$2 sm:$0xff]
      %s2906 = scalar_lea.vmem [#allocation2], 592
      %v2907 = vld [vmem:[%s2906] ss:$2 sm:$0xff]
      %s2908 = scalar_lea.vmem [#allocation2], 608
      %v2909 = vld [vmem:[%s2908] ss:$2 sm:$0xff]
      %s2910 = scalar_lea.vmem [#allocation2], 624
      %v2911 = vld [vmem:[%s2910] ss:$2 sm:$0x7f]
      %v2912 = vpack.c.bf16 %v2835, %v2833
      %v2913 = vpack.c.bf16 %v2839, %v2837
      %v2914 = vpack.c.bf16 %v2843, %v2841
      %v2915 = vpack.c.bf16 %v2847, %v2845
      %v2916 = vpack.c.bf16 %v2851, %v2849
      %v2917 = vpack.c.bf16 %v2855, %v2853
      %v2918 = vpack.c.bf16 %v2859, %v2857
      %v2919 = vpack.c.bf16 %v2863, %v2861
      %v2920 = vpack.c.bf16 %v2867, %v2865
      %v2921 = vpack.c.bf16 %v2871, %v2869
      %v2922 = vpack.c.bf16 %v2875, %v2873
      %v2923 = vpack.c.bf16 %v2879, %v2877
      %v2924 = vpack.c.bf16 %v2883, %v2881
      %v2925 = vpack.c.bf16 %v2887, %v2885
      %v2926 = vpack.c.bf16 %v2891, %v2889
      %v2927 = vpack.c.bf16 %v2895, %v2893
      %v2928 = vpack.c.bf16 %v2899, %v2897
      %v2929 = vpack.c.bf16 %v2903, %v2901
      %v2930 = vpack.c.bf16 %v2907, %v2905
      %v2931 = vpack.c.bf16 %v2911, %v2909
      %v2932 = vld [vmem:[%s2] sm:$0xf]
      %v2933 = vld [vmem:[%s2 + $0x4] sm:$0xf]
      %v2934 = vld [vmem:[%s2 + $0x8] sm:$0xf]
      %s2935 = scalar_lea.vmem [#allocation2], 1
      %v2936 = vld [vmem:[%s2935] ss:$2 sm:$0xff]
      %s2937 = scalar_lea.vmem [#allocation2], 17
      %v2938 = vld [vmem:[%s2937] ss:$2 sm:$0xff]
      %s2939 = scalar_lea.vmem [#allocation2], 33
      %v2940 = vld [vmem:[%s2939] ss:$2 sm:$0xff]
      %s2941 = scalar_lea.vmem [#allocation2], 49
      %v2942 = vld [vmem:[%s2941] ss:$2 sm:$0xff]
      %s2943 = scalar_lea.vmem [#allocation2], 65
      %v2944 = vld [vmem:[%s2943] ss:$2 sm:$0xff]
      %s2945 = scalar_lea.vmem [#allocation2], 81
      %v2946 = vld [vmem:[%s2945] ss:$2 sm:$0xff]
      %s2947 = scalar_lea.vmem [#allocation2], 97
      %v2948 = vld [vmem:[%s2947] ss:$2 sm:$0xff]
      %s2949 = scalar_lea.vmem [#allocation2], 113
      %v2950 = vld [vmem:[%s2949] ss:$2 sm:$0xff]
      %s2951 = scalar_lea.vmem [#allocation2], 129
      %v2952 = vld [vmem:[%s2951] ss:$2 sm:$0xff]
      %s2953 = scalar_lea.vmem [#allocation2], 145
      %v2954 = vld [vmem:[%s2953] ss:$2 sm:$0xff]
      %s2955 = scalar_lea.vmem [#allocation2], 161
      %v2956 = vld [vmem:[%s2955] ss:$2 sm:$0xff]
      %s2957 = scalar_lea.vmem [#allocation2], 177
      %v2958 = vld [vmem:[%s2957] ss:$2 sm:$0xff]
      %s2959 = scalar_lea.vmem [#allocation2], 193
      %v2960 = vld [vmem:[%s2959] ss:$2 sm:$0xff]
      %s2961 = scalar_lea.vmem [#allocation2], 209
      %v2962 = vld [vmem:[%s2961] ss:$2 sm:$0xff]
      %s2963 = scalar_lea.vmem [#allocation2], 225
      %v2964 = vld [vmem:[%s2963] ss:$2 sm:$0xff]
      %s2965 = scalar_lea.vmem [#allocation2], 241
      %v2966 = vld [vmem:[%s2965] ss:$2 sm:$0xff]
      %s2967 = scalar_lea.vmem [#allocation2], 257
      %v2968 = vld [vmem:[%s2967] ss:$2 sm:$0xff]
      %s2969 = scalar_lea.vmem [#allocation2], 273
      %v2970 = vld [vmem:[%s2969] ss:$2 sm:$0xff]
      %s2971 = scalar_lea.vmem [#allocation2], 289
      %v2972 = vld [vmem:[%s2971] ss:$2 sm:$0xff]
      %s2973 = scalar_lea.vmem [#allocation2], 305
      %v2974 = vld [vmem:[%s2973] ss:$2 sm:$0xff]
      %s2975 = scalar_lea.vmem [#allocation2], 321
      %v2976 = vld [vmem:[%s2975] ss:$2 sm:$0xff]
      %s2977 = scalar_lea.vmem [#allocation2], 337
      %v2978 = vld [vmem:[%s2977] ss:$2 sm:$0xff]
      %s2979 = scalar_lea.vmem [#allocation2], 353
      %v2980 = vld [vmem:[%s2979] ss:$2 sm:$0xff]
      %s2981 = scalar_lea.vmem [#allocation2], 369
      %v2982 = vld [vmem:[%s2981] ss:$2 sm:$0xff]
      %s2983 = scalar_lea.vmem [#allocation2], 385
      %v2984 = vld [vmem:[%s2983] ss:$2 sm:$0xff]
      %s2985 = scalar_lea.vmem [#allocation2], 401
      %v2986 = vld [vmem:[%s2985] ss:$2 sm:$0xff]
      %s2987 = scalar_lea.vmem [#allocation2], 417
      %v2988 = vld [vmem:[%s2987] ss:$2 sm:$0xff]
      %s2989 = scalar_lea.vmem [#allocation2], 433
      %v2990 = vld [vmem:[%s2989] ss:$2 sm:$0xff]
      %s2991 = scalar_lea.vmem [#allocation2], 449
      %v2992 = vld [vmem:[%s2991] ss:$2 sm:$0xff]
      %s2993 = scalar_lea.vmem [#allocation2], 465
      %v2994 = vld [vmem:[%s2993] ss:$2 sm:$0xff]
      %s2995 = scalar_lea.vmem [#allocation2], 481
      %v2996 = vld [vmem:[%s2995] ss:$2 sm:$0xff]
      %s2997 = scalar_lea.vmem [#allocation2], 497
      %v2998 = vld [vmem:[%s2997] ss:$2 sm:$0xff]
      %s2999 = scalar_lea.vmem [#allocation2], 513
      %v3000 = vld [vmem:[%s2999] ss:$2 sm:$0xff]
      %s3001 = scalar_lea.vmem [#allocation2], 529
      %v3002 = vld [vmem:[%s3001] ss:$2 sm:$0xff]
      %s3003 = scalar_lea.vmem [#allocation2], 545
      %v3004 = vld [vmem:[%s3003] ss:$2 sm:$0xff]
      %s3005 = scalar_lea.vmem [#allocation2], 561
      %v3006 = vld [vmem:[%s3005] ss:$2 sm:$0xff]
      %s3007 = scalar_lea.vmem [#allocation2], 577
      %v3008 = vld [vmem:[%s3007] ss:$2 sm:$0xff]
      %s3009 = scalar_lea.vmem [#allocation2], 593
      %v3010 = vld [vmem:[%s3009] ss:$2 sm:$0xff]
      %s3011 = scalar_lea.vmem [#allocation2], 609
      %v3012 = vld [vmem:[%s3011] ss:$2 sm:$0xff]
      %s3013 = scalar_lea.vmem [#allocation2], 625
      %v3014 = vld [vmem:[%s3013] ss:$2 sm:$0x7f]
      %v3015 = vpack.c.bf16 %v2938, %v2936
      %v3016 = vpack.c.bf16 %v2942, %v2940
      %v3017 = vpack.c.bf16 %v2946, %v2944
      %v3018 = vpack.c.bf16 %v2950, %v2948
      %v3019 = vpack.c.bf16 %v2954, %v2952
      %v3020 = vpack.c.bf16 %v2958, %v2956
      %v3021 = vpack.c.bf16 %v2962, %v2960
      %v3022 = vpack.c.bf16 %v2966, %v2964
      %v3023 = vpack.c.bf16 %v2970, %v2968
      %v3024 = vpack.c.bf16 %v2974, %v2972
      %v3025 = vpack.c.bf16 %v2978, %v2976
      %v3026 = vpack.c.bf16 %v2982, %v2980
      %v3027 = vpack.c.bf16 %v2986, %v2984
      %v3028 = vpack.c.bf16 %v2990, %v2988
      %v3029 = vpack.c.bf16 %v2994, %v2992
      %v3030 = vpack.c.bf16 %v2998, %v2996
      %v3031 = vpack.c.bf16 %v3002, %v3000
      %v3032 = vpack.c.bf16 %v3006, %v3004
      %v3033 = vpack.c.bf16 %v3010, %v3008
      %v3034 = vpack.c.bf16 %v3014, %v3012
      %s3035 = scalar_lea.vmem %s2, 12
      %v3036 = vld [vmem:[%s3035] sm:$0xf]
      %v3037 = vld [vmem:[%s3035 + $0x4] sm:$0xf]
      %v3038 = vld [vmem:[%s3035 + $0x8] sm:$0xf]
      %v3042 = vunpack.c.l.b16 %v3036
      %v3043 = vunpack.c.l.b16 %v3037
      %v3044 = vunpack.c.l.b16 %v3038
      %v3045 = vpack.c.b16 %v3043, %v3042
      %v3046 = vpack.c.b16 %v3044, %v3044
      %v3049 = vsel %vm1273, %v3015, 0
      %v3052 = vsel %vm1273, %v3016, 0
      %v3055 = vsel %vm1273, %v3017, 0
      %v3058 = vsel %vm1273, %v3018, 0
      %v3061 = vsel %vm1273, %v3019, 0
      %v3064 = vsel %vm1273, %v3020, 0
      %v3067 = vsel %vm1273, %v3021, 0
      %v3070 = vsel %vm1273, %v3022, 0
      %v3073 = vsel %vm1273, %v3023, 0
      %v3076 = vsel %vm1273, %v3024, 0
      %v3079 = vsel %vm1273, %v3025, 0
      %v3082 = vsel %vm1273, %v3026, 0
      %v3085 = vsel %vm1273, %v3027, 0
      %v3088 = vsel %vm1273, %v3028, 0
      %v3091 = vsel %vm1273, %v3029, 0
      %v3094 = vsel %vm1273, %v3030, 0
      %v3097 = vsel %vm1273, %v3031, 0
      %v3100 = vsel %vm1273, %v3032, 0
      %v3103 = vsel %vm1273, %v3033, 0
      %v3106 = vsel %vm1273, %v3034, 0
      %vm3108 = vcmask 1043456
      %v3110 = vsel %vm3108, %v3046, 0
      %3112 = vmatpush.bf16.msra.mxu0 0
      %3113 = vmatpush.bf16.msra.mxu0 0
      %3114 = vmatpush.bf16.msra.mxu0 0
      %3115 = vmatpush.bf16.msra.mxu0 0
      %3116 = vmatpush.bf16.msra.mxu0 0
      %3117 = vmatpush.bf16.msra.mxu0 0
      %3118 = vmatpush.bf16.msra.mxu0 %v3110
      %3119 = vmatpush.bf16.msra.mxu0 %v3045
      %3120 = vmatmul.bf16.gmra.mxu0 %v3049
      %v3121 = vpop.f32.mrf.mxu0
      %v3122 = vadd.f32 0.0, %v3121
      %v3123 = vpop.f32.mrf.mxu0
      %v3124 = vadd.f32 0.0, %v3123
      %3125 = vmatmul.bf16.gmra.mxu0 %v3052
      %v3126 = vpop.f32.mrf.mxu0
      %v3127 = vadd.f32 0.0, %v3126
      %v3128 = vpop.f32.mrf.mxu0
      %v3129 = vadd.f32 0.0, %v3128
      %3130 = vmatmul.bf16.gmra.mxu0 %v3055
      %v3131 = vpop.f32.mrf.mxu0
      %v3132 = vadd.f32 0.0, %v3131
      %v3133 = vpop.f32.mrf.mxu0
      %v3134 = vadd.f32 0.0, %v3133
      %3135 = vmatmul.bf16.gmra.mxu0 %v3058
      %v3136 = vpop.f32.mrf.mxu0
      %v3137 = vadd.f32 0.0, %v3136
      %v3138 = vpop.f32.mrf.mxu0
      %v3139 = vadd.f32 0.0, %v3138
      %3140 = vmatmul.bf16.gmra.mxu0 %v3061
      %v3141 = vpop.f32.mrf.mxu0
      %v3142 = vadd.f32 0.0, %v3141
      %v3143 = vpop.f32.mrf.mxu0
      %v3144 = vadd.f32 0.0, %v3143
      %3145 = vmatmul.bf16.gmra.mxu0 %v3064
      %v3146 = vpop.f32.mrf.mxu0
      %v3147 = vadd.f32 0.0, %v3146
      %v3148 = vpop.f32.mrf.mxu0
      %v3149 = vadd.f32 0.0, %v3148
      %3150 = vmatmul.bf16.gmra.mxu0 %v3067
      %v3151 = vpop.f32.mrf.mxu0
      %v3152 = vadd.f32 0.0, %v3151
      %v3153 = vpop.f32.mrf.mxu0
      %v3154 = vadd.f32 0.0, %v3153
      %3155 = vmatmul.bf16.gmra.mxu0 %v3070
      %v3156 = vpop.f32.mrf.mxu0
      %v3157 = vadd.f32 0.0, %v3156
      %v3158 = vpop.f32.mrf.mxu0
      %v3159 = vadd.f32 0.0, %v3158
      %3160 = vmatmul.bf16.gmra.mxu0 %v3073
      %v3161 = vpop.f32.mrf.mxu0
      %v3162 = vadd.f32 0.0, %v3161
      %v3163 = vpop.f32.mrf.mxu0
      %v3164 = vadd.f32 0.0, %v3163
      %3165 = vmatmul.bf16.gmra.mxu0 %v3076
      %v3166 = vpop.f32.mrf.mxu0
      %v3167 = vadd.f32 0.0, %v3166
      %v3168 = vpop.f32.mrf.mxu0
      %v3169 = vadd.f32 0.0, %v3168
      %3170 = vmatmul.bf16.gmra.mxu0 %v3079
      %v3171 = vpop.f32.mrf.mxu0
      %v3172 = vadd.f32 0.0, %v3171
      %v3173 = vpop.f32.mrf.mxu0
      %v3174 = vadd.f32 0.0, %v3173
      %3175 = vmatmul.bf16.gmra.mxu0 %v3082
      %v3176 = vpop.f32.mrf.mxu0
      %v3177 = vadd.f32 0.0, %v3176
      %v3178 = vpop.f32.mrf.mxu0
      %v3179 = vadd.f32 0.0, %v3178
      %3180 = vmatmul.bf16.gmra.mxu0 %v3085
      %v3181 = vpop.f32.mrf.mxu0
      %v3182 = vadd.f32 0.0, %v3181
      %v3183 = vpop.f32.mrf.mxu0
      %v3184 = vadd.f32 0.0, %v3183
      %3185 = vmatmul.bf16.gmra.mxu0 %v3088
      %v3186 = vpop.f32.mrf.mxu0
      %v3187 = vadd.f32 0.0, %v3186
      %v3188 = vpop.f32.mrf.mxu0
      %v3189 = vadd.f32 0.0, %v3188
      %3190 = vmatmul.bf16.gmra.mxu0 %v3091
      %v3191 = vpop.f32.mrf.mxu0
      %v3192 = vadd.f32 0.0, %v3191
      %v3193 = vpop.f32.mrf.mxu0
      %v3194 = vadd.f32 0.0, %v3193
      %3195 = vmatmul.bf16.gmra.mxu0 %v3094
      %v3196 = vpop.f32.mrf.mxu0
      %v3197 = vadd.f32 0.0, %v3196
      %v3198 = vpop.f32.mrf.mxu0
      %v3199 = vadd.f32 0.0, %v3198
      %3200 = vmatmul.bf16.gmra.mxu0 %v3097
      %v3201 = vpop.f32.mrf.mxu0
      %v3202 = vadd.f32 0.0, %v3201
      %v3203 = vpop.f32.mrf.mxu0
      %v3204 = vadd.f32 0.0, %v3203
      %3205 = vmatmul.bf16.gmra.mxu0 %v3100
      %v3206 = vpop.f32.mrf.mxu0
      %v3207 = vadd.f32 0.0, %v3206
      %v3208 = vpop.f32.mrf.mxu0
      %v3209 = vadd.f32 0.0, %v3208
      %3210 = vmatmul.bf16.gmra.mxu0 %v3103
      %v3211 = vpop.f32.mrf.mxu0
      %v3212 = vadd.f32 0.0, %v3211
      %v3213 = vpop.f32.mrf.mxu0
      %v3214 = vadd.f32 0.0, %v3213
      %3215 = vmatmul.bf16.gmra.mxu0 %v3106
      %v3216 = vpop.f32.mrf.mxu0
      %v3217 = vadd.f32 0.0, %v3216
      %v3218 = vpop.f32.mrf.mxu0
      %v3219 = vadd.f32 0.0, %v3218
      %3220 = vdwg.mxu0
      %v3224 = vunpack.c.l.b16 %v2932
      %v3225 = vunpack.c.l.b16 %v2933
      %v3226 = vunpack.c.l.b16 %v2934
      %v3227 = vpack.c.b16 %v3225, %v3224
      %v3228 = vpack.c.b16 %v3226, %v3226
      %v3231 = vsel %vm1273, %v2912, 0
      %v3234 = vsel %vm1273, %v2913, 0
      %v3237 = vsel %vm1273, %v2914, 0
      %v3240 = vsel %vm1273, %v2915, 0
      %v3243 = vsel %vm1273, %v2916, 0
      %v3246 = vsel %vm1273, %v2917, 0
      %v3249 = vsel %vm1273, %v2918, 0
      %v3252 = vsel %vm1273, %v2919, 0
      %v3255 = vsel %vm1273, %v2920, 0
      %v3258 = vsel %vm1273, %v2921, 0
      %v3261 = vsel %vm1273, %v2922, 0
      %v3264 = vsel %vm1273, %v2923, 0
      %v3267 = vsel %vm1273, %v2924, 0
      %v3270 = vsel %vm1273, %v2925, 0
      %v3273 = vsel %vm1273, %v2926, 0
      %v3276 = vsel %vm1273, %v2927, 0
      %v3279 = vsel %vm1273, %v2928, 0
      %v3282 = vsel %vm1273, %v2929, 0
      %v3285 = vsel %vm1273, %v2930, 0
      %v3288 = vsel %vm1273, %v2931, 0
      %v3291 = vsel %vm3108, %v3228, 0
      %3293 = vmatpush.bf16.msra.mxu0 0
      %3294 = vmatpush.bf16.msra.mxu0 0
      %3295 = vmatpush.bf16.msra.mxu0 0
      %3296 = vmatpush.bf16.msra.mxu0 0
      %3297 = vmatpush.bf16.msra.mxu0 0
      %3298 = vmatpush.bf16.msra.mxu0 0
      %3299 = vmatpush.bf16.msra.mxu0 %v3291
      %3300 = vmatpush.bf16.msra.mxu0 %v3227
      %3301 = vmatmul.bf16.gmra.mxu0 %v3231
      %v3302 = vpop.f32.mrf.mxu0
      %v3303 = vadd.f32 %v3122, %v3302
      %v3304 = vpop.f32.mrf.mxu0
      %v3305 = vadd.f32 %v3124, %v3304
      %3306 = vmatmul.bf16.gmra.mxu0 %v3234
      %v3307 = vpop.f32.mrf.mxu0
      %v3308 = vadd.f32 %v3127, %v3307
      %v3309 = vpop.f32.mrf.mxu0
      %v3310 = vadd.f32 %v3129, %v3309
      %3311 = vmatmul.bf16.gmra.mxu0 %v3237
      %v3312 = vpop.f32.mrf.mxu0
      %v3313 = vadd.f32 %v3132, %v3312
      %v3314 = vpop.f32.mrf.mxu0
      %v3315 = vadd.f32 %v3134, %v3314
      %3316 = vmatmul.bf16.gmra.mxu0 %v3240
      %v3317 = vpop.f32.mrf.mxu0
      %v3318 = vadd.f32 %v3137, %v3317
      %v3319 = vpop.f32.mrf.mxu0
      %v3320 = vadd.f32 %v3139, %v3319
      %3321 = vmatmul.bf16.gmra.mxu0 %v3243
      %v3322 = vpop.f32.mrf.mxu0
      %v3323 = vadd.f32 %v3142, %v3322
      %v3324 = vpop.f32.mrf.mxu0
      %v3325 = vadd.f32 %v3144, %v3324
      %3326 = vmatmul.bf16.gmra.mxu0 %v3246
      %v3327 = vpop.f32.mrf.mxu0
      %v3328 = vadd.f32 %v3147, %v3327
      %v3329 = vpop.f32.mrf.mxu0
      %v3330 = vadd.f32 %v3149, %v3329
      %3331 = vmatmul.bf16.gmra.mxu0 %v3249
      %v3332 = vpop.f32.mrf.mxu0
      %v3333 = vadd.f32 %v3152, %v3332
      %v3334 = vpop.f32.mrf.mxu0
      %v3335 = vadd.f32 %v3154, %v3334
      %3336 = vmatmul.bf16.gmra.mxu0 %v3252
      %v3337 = vpop.f32.mrf.mxu0
      %v3338 = vadd.f32 %v3157, %v3337
      %v3339 = vpop.f32.mrf.mxu0
      %v3340 = vadd.f32 %v3159, %v3339
      %3341 = vmatmul.bf16.gmra.mxu0 %v3255
      %v3342 = vpop.f32.mrf.mxu0
      %v3343 = vadd.f32 %v3162, %v3342
      %v3344 = vpop.f32.mrf.mxu0
      %v3345 = vadd.f32 %v3164, %v3344
      %3346 = vmatmul.bf16.gmra.mxu0 %v3258
      %v3347 = vpop.f32.mrf.mxu0
      %v3348 = vadd.f32 %v3167, %v3347
      %v3349 = vpop.f32.mrf.mxu0
      %v3350 = vadd.f32 %v3169, %v3349
      %3351 = vmatmul.bf16.gmra.mxu0 %v3261
      %v3352 = vpop.f32.mrf.mxu0
      %v3353 = vadd.f32 %v3172, %v3352
      %v3354 = vpop.f32.mrf.mxu0
      %v3355 = vadd.f32 %v3174, %v3354
      %3356 = vmatmul.bf16.gmra.mxu0 %v3264
      %v3357 = vpop.f32.mrf.mxu0
      %v3358 = vadd.f32 %v3177, %v3357
      %v3359 = vpop.f32.mrf.mxu0
      %v3360 = vadd.f32 %v3179, %v3359
      %3361 = vmatmul.bf16.gmra.mxu0 %v3267
      %v3362 = vpop.f32.mrf.mxu0
      %v3363 = vadd.f32 %v3182, %v3362
      %v3364 = vpop.f32.mrf.mxu0
      %v3365 = vadd.f32 %v3184, %v3364
      %3366 = vmatmul.bf16.gmra.mxu0 %v3270
      %v3367 = vpop.f32.mrf.mxu0
      %v3368 = vadd.f32 %v3187, %v3367
      %v3369 = vpop.f32.mrf.mxu0
      %v3370 = vadd.f32 %v3189, %v3369
      %3371 = vmatmul.bf16.gmra.mxu0 %v3273
      %v3372 = vpop.f32.mrf.mxu0
      %v3373 = vadd.f32 %v3192, %v3372
      %v3374 = vpop.f32.mrf.mxu0
      %v3375 = vadd.f32 %v3194, %v3374
      %3376 = vmatmul.bf16.gmra.mxu0 %v3276
      %v3377 = vpop.f32.mrf.mxu0
      %v3378 = vadd.f32 %v3197, %v3377
      %v3379 = vpop.f32.mrf.mxu0
      %v3380 = vadd.f32 %v3199, %v3379
      %3381 = vmatmul.bf16.gmra.mxu0 %v3279
      %v3382 = vpop.f32.mrf.mxu0
      %v3383 = vadd.f32 %v3202, %v3382
      %v3384 = vpop.f32.mrf.mxu0
      %v3385 = vadd.f32 %v3204, %v3384
      %3386 = vmatmul.bf16.gmra.mxu0 %v3282
      %v3387 = vpop.f32.mrf.mxu0
      %v3388 = vadd.f32 %v3207, %v3387
      %v3389 = vpop.f32.mrf.mxu0
      %v3390 = vadd.f32 %v3209, %v3389
      %3391 = vmatmul.bf16.gmra.mxu0 %v3285
      %v3392 = vpop.f32.mrf.mxu0
      %v3393 = vadd.f32 %v3212, %v3392
      %v3394 = vpop.f32.mrf.mxu0
      %v3395 = vadd.f32 %v3214, %v3394
      %3396 = vmatmul.bf16.gmra.mxu0 %v3288
      %v3397 = vpop.f32.mrf.mxu0
      %v3398 = vadd.f32 %v3217, %v3397
      %v3399 = vpop.f32.mrf.mxu0
      %v3400 = vadd.f32 %v3219, %v3399
      %3401 = vdwg.mxu0
      %s3402 = scalar_lea.vmem [#allocation2], 2
      %v3403 = vld [vmem:[%s3402] ss:$2 sm:$0xff]
      %s3404 = scalar_lea.vmem [#allocation2], 18
      %v3405 = vld [vmem:[%s3404] ss:$2 sm:$0xff]
      %s3406 = scalar_lea.vmem [#allocation2], 34
      %v3407 = vld [vmem:[%s3406] ss:$2 sm:$0xff]
      %s3408 = scalar_lea.vmem [#allocation2], 50
      %v3409 = vld [vmem:[%s3408] ss:$2 sm:$0xff]
      %s3410 = scalar_lea.vmem [#allocation2], 66
      %v3411 = vld [vmem:[%s3410] ss:$2 sm:$0xff]
      %s3412 = scalar_lea.vmem [#allocation2], 82
      %v3413 = vld [vmem:[%s3412] ss:$2 sm:$0xff]
      %s3414 = scalar_lea.vmem [#allocation2], 98
      %v3415 = vld [vmem:[%s3414] ss:$2 sm:$0xff]
      %s3416 = scalar_lea.vmem [#allocation2], 114
      %v3417 = vld [vmem:[%s3416] ss:$2 sm:$0xff]
      %s3418 = scalar_lea.vmem [#allocation2], 130
      %v3419 = vld [vmem:[%s3418] ss:$2 sm:$0xff]
      %s3420 = scalar_lea.vmem [#allocation2], 146
      %v3421 = vld [vmem:[%s3420] ss:$2 sm:$0xff]
      %s3422 = scalar_lea.vmem [#allocation2], 162
      %v3423 = vld [vmem:[%s3422] ss:$2 sm:$0xff]
      %s3424 = scalar_lea.vmem [#allocation2], 178
      %v3425 = vld [vmem:[%s3424] ss:$2 sm:$0xff]
      %s3426 = scalar_lea.vmem [#allocation2], 194
      %v3427 = vld [vmem:[%s3426] ss:$2 sm:$0xff]
      %s3428 = scalar_lea.vmem [#allocation2], 210
      %v3429 = vld [vmem:[%s3428] ss:$2 sm:$0xff]
      %s3430 = scalar_lea.vmem [#allocation2], 226
      %v3431 = vld [vmem:[%s3430] ss:$2 sm:$0xff]
      %s3432 = scalar_lea.vmem [#allocation2], 242
      %v3433 = vld [vmem:[%s3432] ss:$2 sm:$0xff]
      %s3434 = scalar_lea.vmem [#allocation2], 258
      %v3435 = vld [vmem:[%s3434] ss:$2 sm:$0xff]
      %s3436 = scalar_lea.vmem [#allocation2], 274
      %v3437 = vld [vmem:[%s3436] ss:$2 sm:$0xff]
      %s3438 = scalar_lea.vmem [#allocation2], 290
      %v3439 = vld [vmem:[%s3438] ss:$2 sm:$0xff]
      %s3440 = scalar_lea.vmem [#allocation2], 306
      %v3441 = vld [vmem:[%s3440] ss:$2 sm:$0xff]
      %s3442 = scalar_lea.vmem [#allocation2], 322
      %v3443 = vld [vmem:[%s3442] ss:$2 sm:$0xff]
      %s3444 = scalar_lea.vmem [#allocation2], 338
      %v3445 = vld [vmem:[%s3444] ss:$2 sm:$0xff]
      %s3446 = scalar_lea.vmem [#allocation2], 354
      %v3447 = vld [vmem:[%s3446] ss:$2 sm:$0xff]
      %s3448 = scalar_lea.vmem [#allocation2], 370
      %v3449 = vld [vmem:[%s3448] ss:$2 sm:$0xff]
      %s3450 = scalar_lea.vmem [#allocation2], 386
      %v3451 = vld [vmem:[%s3450] ss:$2 sm:$0xff]
      %s3452 = scalar_lea.vmem [#allocation2], 402
      %v3453 = vld [vmem:[%s3452] ss:$2 sm:$0xff]
      %s3454 = scalar_lea.vmem [#allocation2], 418
      %v3455 = vld [vmem:[%s3454] ss:$2 sm:$0xff]
      %s3456 = scalar_lea.vmem [#allocation2], 434
      %v3457 = vld [vmem:[%s3456] ss:$2 sm:$0xff]
      %s3458 = scalar_lea.vmem [#allocation2], 450
      %v3459 = vld [vmem:[%s3458] ss:$2 sm:$0xff]
      %s3460 = scalar_lea.vmem [#allocation2], 466
      %v3461 = vld [vmem:[%s3460] ss:$2 sm:$0xff]
      %s3462 = scalar_lea.vmem [#allocation2], 482
      %v3463 = vld [vmem:[%s3462] ss:$2 sm:$0xff]
      %s3464 = scalar_lea.vmem [#allocation2], 498
      %v3465 = vld [vmem:[%s3464] ss:$2 sm:$0xff]
      %s3466 = scalar_lea.vmem [#allocation2], 514
      %v3467 = vld [vmem:[%s3466] ss:$2 sm:$0xff]
      %s3468 = scalar_lea.vmem [#allocation2], 530
      %v3469 = vld [vmem:[%s3468] ss:$2 sm:$0xff]
      %s3470 = scalar_lea.vmem [#allocation2], 546
      %v3471 = vld [vmem:[%s3470] ss:$2 sm:$0xff]
      %s3472 = scalar_lea.vmem [#allocation2], 562
      %v3473 = vld [vmem:[%s3472] ss:$2 sm:$0xff]
      %s3474 = scalar_lea.vmem [#allocation2], 578
      %v3475 = vld [vmem:[%s3474] ss:$2 sm:$0xff]
      %s3476 = scalar_lea.vmem [#allocation2], 594
      %v3477 = vld [vmem:[%s3476] ss:$2 sm:$0xff]
      %s3478 = scalar_lea.vmem [#allocation2], 610
      %v3479 = vld [vmem:[%s3478] ss:$2 sm:$0xff]
      %s3480 = scalar_lea.vmem [#allocation2], 626
      %v3481 = vld [vmem:[%s3480] ss:$2 sm:$0x7f]
      %v3482 = vpack.c.bf16 %v3405, %v3403
      %v3483 = vpack.c.bf16 %v3409, %v3407
      %v3484 = vpack.c.bf16 %v3413, %v3411
      %v3485 = vpack.c.bf16 %v3417, %v3415
      %v3486 = vpack.c.bf16 %v3421, %v3419
      %v3487 = vpack.c.bf16 %v3425, %v3423
      %v3488 = vpack.c.bf16 %v3429, %v3427
      %v3489 = vpack.c.bf16 %v3433, %v3431
      %v3490 = vpack.c.bf16 %v3437, %v3435
      %v3491 = vpack.c.bf16 %v3441, %v3439
      %v3492 = vpack.c.bf16 %v3445, %v3443
      %v3493 = vpack.c.bf16 %v3449, %v3447
      %v3494 = vpack.c.bf16 %v3453, %v3451
      %v3495 = vpack.c.bf16 %v3457, %v3455
      %v3496 = vpack.c.bf16 %v3461, %v3459
      %v3497 = vpack.c.bf16 %v3465, %v3463
      %v3498 = vpack.c.bf16 %v3469, %v3467
      %v3499 = vpack.c.bf16 %v3473, %v3471
      %v3500 = vpack.c.bf16 %v3477, %v3475
      %v3501 = vpack.c.bf16 %v3481, %v3479
      %s3502 = scalar_lea.vmem %s2, 24
      %v3503 = vld [vmem:[%s3502] sm:$0xf]
      %v3504 = vld [vmem:[%s3502 + $0x4] sm:$0xf]
      %v3505 = vld [vmem:[%s3502 + $0x8] sm:$0xf]
      %v3509 = vunpack.c.l.b16 %v3503
      %v3510 = vunpack.c.l.b16 %v3504
      %v3511 = vunpack.c.l.b16 %v3505
      %v3512 = vpack.c.b16 %v3510, %v3509
      %v3513 = vpack.c.b16 %v3511, %v3511
      %v3516 = vsel %vm1273, %v3482, 0
      %v3519 = vsel %vm1273, %v3483, 0
      %v3522 = vsel %vm1273, %v3484, 0
      %v3525 = vsel %vm1273, %v3485, 0
      %v3528 = vsel %vm1273, %v3486, 0
      %v3531 = vsel %vm1273, %v3487, 0
      %v3534 = vsel %vm1273, %v3488, 0
      %v3537 = vsel %vm1273, %v3489, 0
      %v3540 = vsel %vm1273, %v3490, 0
      %v3543 = vsel %vm1273, %v3491, 0
      %v3546 = vsel %vm1273, %v3492, 0
      %v3549 = vsel %vm1273, %v3493, 0
      %v3552 = vsel %vm1273, %v3494, 0
      %v3555 = vsel %vm1273, %v3495, 0
      %v3558 = vsel %vm1273, %v3496, 0
      %v3561 = vsel %vm1273, %v3497, 0
      %v3564 = vsel %vm1273, %v3498, 0
      %v3567 = vsel %vm1273, %v3499, 0
      %v3570 = vsel %vm1273, %v3500, 0
      %v3573 = vsel %vm1273, %v3501, 0
      %v3576 = vsel %vm3108, %v3513, 0
      %3578 = vmatpush.bf16.msra.mxu0 0
      %3579 = vmatpush.bf16.msra.mxu0 0
      %3580 = vmatpush.bf16.msra.mxu0 0
      %3581 = vmatpush.bf16.msra.mxu0 0
      %3582 = vmatpush.bf16.msra.mxu0 0
      %3583 = vmatpush.bf16.msra.mxu0 0
      %3584 = vmatpush.bf16.msra.mxu0 %v3576
      %3585 = vmatpush.bf16.msra.mxu0 %v3512
      %3586 = vmatmul.bf16.gmra.mxu0 %v3516
      %v3587 = vpop.f32.mrf.mxu0
      %v3588 = vadd.f32 0.0, %v3587
      %v3589 = vpop.f32.mrf.mxu0
      %v3590 = vadd.f32 0.0, %v3589
      %3591 = vmatmul.bf16.gmra.mxu0 %v3519
      %v3592 = vpop.f32.mrf.mxu0
      %v3593 = vadd.f32 0.0, %v3592
      %v3594 = vpop.f32.mrf.mxu0
      %v3595 = vadd.f32 0.0, %v3594
      %3596 = vmatmul.bf16.gmra.mxu0 %v3522
      %v3597 = vpop.f32.mrf.mxu0
      %v3598 = vadd.f32 0.0, %v3597
      %v3599 = vpop.f32.mrf.mxu0
      %v3600 = vadd.f32 0.0, %v3599
      %3601 = vmatmul.bf16.gmra.mxu0 %v3525
      %v3602 = vpop.f32.mrf.mxu0
      %v3603 = vadd.f32 0.0, %v3602
      %v3604 = vpop.f32.mrf.mxu0
      %v3605 = vadd.f32 0.0, %v3604
      %3606 = vmatmul.bf16.gmra.mxu0 %v3528
      %v3607 = vpop.f32.mrf.mxu0
      %v3608 = vadd.f32 0.0, %v3607
      %v3609 = vpop.f32.mrf.mxu0
      %v3610 = vadd.f32 0.0, %v3609
      %3611 = vmatmul.bf16.gmra.mxu0 %v3531
      %v3612 = vpop.f32.mrf.mxu0
      %v3613 = vadd.f32 0.0, %v3612
      %v3614 = vpop.f32.mrf.mxu0
      %v3615 = vadd.f32 0.0, %v3614
      %3616 = vmatmul.bf16.gmra.mxu0 %v3534
      %v3617 = vpop.f32.mrf.mxu0
      %v3618 = vadd.f32 0.0, %v3617
      %v3619 = vpop.f32.mrf.mxu0
      %v3620 = vadd.f32 0.0, %v3619
      %3621 = vmatmul.bf16.gmra.mxu0 %v3537
      %v3622 = vpop.f32.mrf.mxu0
      %v3623 = vadd.f32 0.0, %v3622
      %v3624 = vpop.f32.mrf.mxu0
      %v3625 = vadd.f32 0.0, %v3624
      %3626 = vmatmul.bf16.gmra.mxu0 %v3540
      %v3627 = vpop.f32.mrf.mxu0
      %v3628 = vadd.f32 0.0, %v3627
      %v3629 = vpop.f32.mrf.mxu0
      %v3630 = vadd.f32 0.0, %v3629
      %3631 = vmatmul.bf16.gmra.mxu0 %v3543
      %v3632 = vpop.f32.mrf.mxu0
      %v3633 = vadd.f32 0.0, %v3632
      %v3634 = vpop.f32.mrf.mxu0
      %v3635 = vadd.f32 0.0, %v3634
      %3636 = vmatmul.bf16.gmra.mxu0 %v3546
      %v3637 = vpop.f32.mrf.mxu0
      %v3638 = vadd.f32 0.0, %v3637
      %v3639 = vpop.f32.mrf.mxu0
      %v3640 = vadd.f32 0.0, %v3639
      %3641 = vmatmul.bf16.gmra.mxu0 %v3549
      %v3642 = vpop.f32.mrf.mxu0
      %v3643 = vadd.f32 0.0, %v3642
      %v3644 = vpop.f32.mrf.mxu0
      %v3645 = vadd.f32 0.0, %v3644
      %3646 = vmatmul.bf16.gmra.mxu0 %v3552
      %v3647 = vpop.f32.mrf.mxu0
      %v3648 = vadd.f32 0.0, %v3647
      %v3649 = vpop.f32.mrf.mxu0
      %v3650 = vadd.f32 0.0, %v3649
      %3651 = vmatmul.bf16.gmra.mxu0 %v3555
      %v3652 = vpop.f32.mrf.mxu0
      %v3653 = vadd.f32 0.0, %v3652
      %v3654 = vpop.f32.mrf.mxu0
      %v3655 = vadd.f32 0.0, %v3654
      %3656 = vmatmul.bf16.gmra.mxu0 %v3558
      %v3657 = vpop.f32.mrf.mxu0
      %v3658 = vadd.f32 0.0, %v3657
      %v3659 = vpop.f32.mrf.mxu0
      %v3660 = vadd.f32 0.0, %v3659
      %3661 = vmatmul.bf16.gmra.mxu0 %v3561
      %v3662 = vpop.f32.mrf.mxu0
      %v3663 = vadd.f32 0.0, %v3662
      %v3664 = vpop.f32.mrf.mxu0
      %v3665 = vadd.f32 0.0, %v3664
      %3666 = vmatmul.bf16.gmra.mxu0 %v3564
      %v3667 = vpop.f32.mrf.mxu0
      %v3668 = vadd.f32 0.0, %v3667
      %v3669 = vpop.f32.mrf.mxu0
      %v3670 = vadd.f32 0.0, %v3669
      %3671 = vmatmul.bf16.gmra.mxu0 %v3567
      %v3672 = vpop.f32.mrf.mxu0
      %v3673 = vadd.f32 0.0, %v3672
      %v3674 = vpop.f32.mrf.mxu0
      %v3675 = vadd.f32 0.0, %v3674
      %3676 = vmatmul.bf16.gmra.mxu0 %v3570
      %v3677 = vpop.f32.mrf.mxu0
      %v3678 = vadd.f32 0.0, %v3677
      %v3679 = vpop.f32.mrf.mxu0
      %v3680 = vadd.f32 0.0, %v3679
      %3681 = vmatmul.bf16.gmra.mxu0 %v3573
      %v3682 = vpop.f32.mrf.mxu0
      %v3683 = vadd.f32 0.0, %v3682
      %v3684 = vpop.f32.mrf.mxu0
      %v3685 = vadd.f32 0.0, %v3684
      %3686 = vdwg.mxu0
      %v3687 = vadd.f32 %v3303, %v3588
      %v3688 = vadd.f32 %v3305, %v3590
      %v3689 = vadd.f32 %v3308, %v3593
      %v3690 = vadd.f32 %v3310, %v3595
      %v3691 = vadd.f32 %v3313, %v3598
      %v3692 = vadd.f32 %v3315, %v3600
      %v3693 = vadd.f32 %v3318, %v3603
      %v3694 = vadd.f32 %v3320, %v3605
      %v3695 = vadd.f32 %v3323, %v3608
      %v3696 = vadd.f32 %v3325, %v3610
      %v3697 = vadd.f32 %v3328, %v3613
      %v3698 = vadd.f32 %v3330, %v3615
      %v3699 = vadd.f32 %v3333, %v3618
      %v3700 = vadd.f32 %v3335, %v3620
      %v3701 = vadd.f32 %v3338, %v3623
      %v3702 = vadd.f32 %v3340, %v3625
      %v3703 = vadd.f32 %v3343, %v3628
      %v3704 = vadd.f32 %v3345, %v3630
      %v3705 = vadd.f32 %v3348, %v3633
      %v3706 = vadd.f32 %v3350, %v3635
      %v3707 = vadd.f32 %v3353, %v3638
      %v3708 = vadd.f32 %v3355, %v3640
      %v3709 = vadd.f32 %v3358, %v3643
      %v3710 = vadd.f32 %v3360, %v3645
      %v3711 = vadd.f32 %v3363, %v3648
      %v3712 = vadd.f32 %v3365, %v3650
      %v3713 = vadd.f32 %v3368, %v3653
      %v3714 = vadd.f32 %v3370, %v3655
      %v3715 = vadd.f32 %v3373, %v3658
      %v3716 = vadd.f32 %v3375, %v3660
      %v3717 = vadd.f32 %v3378, %v3663
      %v3718 = vadd.f32 %v3380, %v3665
      %v3719 = vadd.f32 %v3383, %v3668
      %v3720 = vadd.f32 %v3385, %v3670
      %v3721 = vadd.f32 %v3388, %v3673
      %v3722 = vadd.f32 %v3390, %v3675
      %v3723 = vadd.f32 %v3393, %v3678
      %v3724 = vadd.f32 %v3395, %v3680
      %v3725 = vadd.f32 %v3398, %v3683
      %v3726 = vadd.f32 %v3400, %v3685
      %v3727 = vmul.f32 %v3687, 0.5
      %v3728 = vmul.f32 %v3688, 0.5
      %v3729 = vmul.f32 %v3689, 0.5
      %v3730 = vmul.f32 %v3690, 0.5
      %v3731 = vmul.f32 %v3691, 0.5
      %v3732 = vmul.f32 %v3692, 0.5
      %v3733 = vmul.f32 %v3693, 0.5
      %v3734 = vmul.f32 %v3694, 0.5
      %v3735 = vmul.f32 %v3695, 0.5
      %v3736 = vmul.f32 %v3696, 0.5
      %v3737 = vmul.f32 %v3697, 0.5
      %v3738 = vmul.f32 %v3698, 0.5
      %v3739 = vmul.f32 %v3699, 0.5
      %v3740 = vmul.f32 %v3700, 0.5
      %v3741 = vmul.f32 %v3701, 0.5
      %v3742 = vmul.f32 %v3702, 0.5
      %v3743 = vmul.f32 %v3703, 0.5
      %v3744 = vmul.f32 %v3704, 0.5
      %v3745 = vmul.f32 %v3705, 0.5
      %v3746 = vmul.f32 %v3706, 0.5
      %v3747 = vmul.f32 %v3707, 0.5
      %v3748 = vmul.f32 %v3708, 0.5
      %v3749 = vmul.f32 %v3709, 0.5
      %v3750 = vmul.f32 %v3710, 0.5
      %v3751 = vmul.f32 %v3711, 0.5
      %v3752 = vmul.f32 %v3712, 0.5
      %v3753 = vmul.f32 %v3713, 0.5
      %v3754 = vmul.f32 %v3714, 0.5
      %v3755 = vmul.f32 %v3715, 0.5
      %v3756 = vmul.f32 %v3716, 0.5
      %v3757 = vmul.f32 %v3717, 0.5
      %v3758 = vmul.f32 %v3718, 0.5
      %v3759 = vmul.f32 %v3719, 0.5
      %v3760 = vmul.f32 %v3720, 0.5
      %v3761 = vmul.f32 %v3721, 0.5
      %v3762 = vmul.f32 %v3722, 0.5
      %v3763 = vmul.f32 %v3723, 0.5
      %v3764 = vmul.f32 %v3724, 0.5
      %v3765 = vmul.f32 %v3725, 0.5
      %v3766 = vmul.f32 %v3726, 0.5
      %v3767 = vmul.f32 %v3687, 0.044715
      %v3768 = vmul.f32 %v3688, 0.044715
      %v3769 = vmul.f32 %v3689, 0.044715
      %v3770 = vmul.f32 %v3690, 0.044715
      %v3771 = vmul.f32 %v3691, 0.044715
      %v3772 = vmul.f32 %v3692, 0.044715
      %v3773 = vmul.f32 %v3693, 0.044715
      %v3774 = vmul.f32 %v3694, 0.044715
      %v3775 = vmul.f32 %v3695, 0.044715
      %v3776 = vmul.f32 %v3696, 0.044715
      %v3777 = vmul.f32 %v3697, 0.044715
      %v3778 = vmul.f32 %v3698, 0.044715
      %v3779 = vmul.f32 %v3699, 0.044715
      %v3780 = vmul.f32 %v3700, 0.044715
      %v3781 = vmul.f32 %v3701, 0.044715
      %v3782 = vmul.f32 %v3702, 0.044715
      %v3783 = vmul.f32 %v3703, 0.044715
      %v3784 = vmul.f32 %v3704, 0.044715
      %v3785 = vmul.f32 %v3705, 0.044715
      %v3786 = vmul.f32 %v3706, 0.044715
      %v3787 = vmul.f32 %v3707, 0.044715
      %v3788 = vmul.f32 %v3708, 0.044715
      %v3789 = vmul.f32 %v3709, 0.044715
      %v3790 = vmul.f32 %v3710, 0.044715
      %v3791 = vmul.f32 %v3711, 0.044715
      %v3792 = vmul.f32 %v3712, 0.044715
      %v3793 = vmul.f32 %v3713, 0.044715
      %v3794 = vmul.f32 %v3714, 0.044715
      %v3795 = vmul.f32 %v3715, 0.044715
      %v3796 = vmul.f32 %v3716, 0.044715
      %v3797 = vmul.f32 %v3717, 0.044715
      %v3798 = vmul.f32 %v3718, 0.044715
      %v3799 = vmul.f32 %v3719, 0.044715
      %v3800 = vmul.f32 %v3720, 0.044715
      %v3801 = vmul.f32 %v3721, 0.044715
      %v3802 = vmul.f32 %v3722, 0.044715
      %v3803 = vmul.f32 %v3723, 0.044715
      %v3804 = vmul.f32 %v3724, 0.044715
      %v3805 = vmul.f32 %v3725, 0.044715
      %v3806 = vmul.f32 %v3726, 0.044715
      %v3807 = vmul.f32 %v3767, %v3687
      %v3808 = vmul.f32 %v3768, %v3688
      %v3809 = vmul.f32 %v3769, %v3689
      %v3810 = vmul.f32 %v3770, %v3690
      %v3811 = vmul.f32 %v3771, %v3691
      %v3812 = vmul.f32 %v3772, %v3692
      %v3813 = vmul.f32 %v3773, %v3693
      %v3814 = vmul.f32 %v3774, %v3694
      %v3815 = vmul.f32 %v3775, %v3695
      %v3816 = vmul.f32 %v3776, %v3696
      %v3817 = vmul.f32 %v3777, %v3697
      %v3818 = vmul.f32 %v3778, %v3698
      %v3819 = vmul.f32 %v3779, %v3699
      %v3820 = vmul.f32 %v3780, %v3700
      %v3821 = vmul.f32 %v3781, %v3701
      %v3822 = vmul.f32 %v3782, %v3702
      %v3823 = vmul.f32 %v3783, %v3703
      %v3824 = vmul.f32 %v3784, %v3704
      %v3825 = vmul.f32 %v3785, %v3705
      %v3826 = vmul.f32 %v3786, %v3706
      %v3827 = vmul.f32 %v3787, %v3707
      %v3828 = vmul.f32 %v3788, %v3708
      %v3829 = vmul.f32 %v3789, %v3709
      %v3830 = vmul.f32 %v3790, %v3710
      %v3831 = vmul.f32 %v3791, %v3711
      %v3832 = vmul.f32 %v3792, %v3712
      %v3833 = vmul.f32 %v3793, %v3713
      %v3834 = vmul.f32 %v3794, %v3714
      %v3835 = vmul.f32 %v3795, %v3715
      %v3836 = vmul.f32 %v3796, %v3716
      %v3837 = vmul.f32 %v3797, %v3717
      %v3838 = vmul.f32 %v3798, %v3718
      %v3839 = vmul.f32 %v3799, %v3719
      %v3840 = vmul.f32 %v3800, %v3720
      %v3841 = vmul.f32 %v3801, %v3721
      %v3842 = vmul.f32 %v3802, %v3722
      %v3843 = vmul.f32 %v3803, %v3723
      %v3844 = vmul.f32 %v3804, %v3724
      %v3845 = vmul.f32 %v3805, %v3725
      %v3846 = vmul.f32 %v3806, %v3726
      %v3847 = vmul.f32 %v3807, %v3687
      %v3848 = vmul.f32 %v3808, %v3688
      %v3849 = vmul.f32 %v3809, %v3689
      %v3850 = vmul.f32 %v3810, %v3690
      %v3851 = vmul.f32 %v3811, %v3691
      %v3852 = vmul.f32 %v3812, %v3692
      %v3853 = vmul.f32 %v3813, %v3693
      %v3854 = vmul.f32 %v3814, %v3694
      %v3855 = vmul.f32 %v3815, %v3695
      %v3856 = vmul.f32 %v3816, %v3696
      %v3857 = vmul.f32 %v3817, %v3697
      %v3858 = vmul.f32 %v3818, %v3698
      %v3859 = vmul.f32 %v3819, %v3699
      %v3860 = vmul.f32 %v3820, %v3700
      %v3861 = vmul.f32 %v3821, %v3701
      %v3862 = vmul.f32 %v3822, %v3702
      %v3863 = vmul.f32 %v3823, %v3703
      %v3864 = vmul.f32 %v3824, %v3704
      %v3865 = vmul.f32 %v3825, %v3705
      %v3866 = vmul.f32 %v3826, %v3706
      %v3867 = vmul.f32 %v3827, %v3707
      %v3868 = vmul.f32 %v3828, %v3708
      %v3869 = vmul.f32 %v3829, %v3709
      %v3870 = vmul.f32 %v3830, %v3710
      %v3871 = vmul.f32 %v3831, %v3711
      %v3872 = vmul.f32 %v3832, %v3712
      %v3873 = vmul.f32 %v3833, %v3713
      %v3874 = vmul.f32 %v3834, %v3714
      %v3875 = vmul.f32 %v3835, %v3715
      %v3876 = vmul.f32 %v3836, %v3716
      %v3877 = vmul.f32 %v3837, %v3717
      %v3878 = vmul.f32 %v3838, %v3718
      %v3879 = vmul.f32 %v3839, %v3719
      %v3880 = vmul.f32 %v3840, %v3720
      %v3881 = vmul.f32 %v3841, %v3721
      %v3882 = vmul.f32 %v3842, %v3722
      %v3883 = vmul.f32 %v3843, %v3723
      %v3884 = vmul.f32 %v3844, %v3724
      %v3885 = vmul.f32 %v3845, %v3725
      %v3886 = vmul.f32 %v3846, %v3726
      %v3887 = vadd.f32 %v3687, %v3847
      %v3888 = vadd.f32 %v3688, %v3848
      %v3889 = vadd.f32 %v3689, %v3849
      %v3890 = vadd.f32 %v3690, %v3850
      %v3891 = vadd.f32 %v3691, %v3851
      %v3892 = vadd.f32 %v3692, %v3852
      %v3893 = vadd.f32 %v3693, %v3853
      %v3894 = vadd.f32 %v3694, %v3854
      %v3895 = vadd.f32 %v3695, %v3855
      %v3896 = vadd.f32 %v3696, %v3856
      %v3897 = vadd.f32 %v3697, %v3857
      %v3898 = vadd.f32 %v3698, %v3858
      %v3899 = vadd.f32 %v3699, %v3859
      %v3900 = vadd.f32 %v3700, %v3860
      %v3901 = vadd.f32 %v3701, %v3861
      %v3902 = vadd.f32 %v3702, %v3862
      %v3903 = vadd.f32 %v3703, %v3863
      %v3904 = vadd.f32 %v3704, %v3864
      %v3905 = vadd.f32 %v3705, %v3865
      %v3906 = vadd.f32 %v3706, %v3866
      %v3907 = vadd.f32 %v3707, %v3867
      %v3908 = vadd.f32 %v3708, %v3868
      %v3909 = vadd.f32 %v3709, %v3869
      %v3910 = vadd.f32 %v3710, %v3870
      %v3911 = vadd.f32 %v3711, %v3871
      %v3912 = vadd.f32 %v3712, %v3872
      %v3913 = vadd.f32 %v3713, %v3873
      %v3914 = vadd.f32 %v3714, %v3874
      %v3915 = vadd.f32 %v3715, %v3875
      %v3916 = vadd.f32 %v3716, %v3876
      %v3917 = vadd.f32 %v3717, %v3877
      %v3918 = vadd.f32 %v3718, %v3878
      %v3919 = vadd.f32 %v3719, %v3879
      %v3920 = vadd.f32 %v3720, %v3880
      %v3921 = vadd.f32 %v3721, %v3881
      %v3922 = vadd.f32 %v3722, %v3882
      %v3923 = vadd.f32 %v3723, %v3883
      %v3924 = vadd.f32 %v3724, %v3884
      %v3925 = vadd.f32 %v3725, %v3885
      %v3926 = vadd.f32 %v3726, %v3886
      %v3927 = vmul.f32 %v3887, 0.7978846
      %v3928 = vmul.f32 %v3888, 0.7978846
      %v3929 = vmul.f32 %v3889, 0.7978846
      %v3930 = vmul.f32 %v3890, 0.7978846
      %v3931 = vmul.f32 %v3891, 0.7978846
      %v3932 = vmul.f32 %v3892, 0.7978846
      %v3933 = vmul.f32 %v3893, 0.7978846
      %v3934 = vmul.f32 %v3894, 0.7978846
      %v3935 = vmul.f32 %v3895, 0.7978846
      %v3936 = vmul.f32 %v3896, 0.7978846
      %v3937 = vmul.f32 %v3897, 0.7978846
      %v3938 = vmul.f32 %v3898, 0.7978846
      %v3939 = vmul.f32 %v3899, 0.7978846
      %v3940 = vmul.f32 %v3900, 0.7978846
      %v3941 = vmul.f32 %v3901, 0.7978846
      %v3942 = vmul.f32 %v3902, 0.7978846
      %v3943 = vmul.f32 %v3903, 0.7978846
      %v3944 = vmul.f32 %v3904, 0.7978846
      %v3945 = vmul.f32 %v3905, 0.7978846
      %v3946 = vmul.f32 %v3906, 0.7978846
      %v3947 = vmul.f32 %v3907, 0.7978846
      %v3948 = vmul.f32 %v3908, 0.7978846
      %v3949 = vmul.f32 %v3909, 0.7978846
      %v3950 = vmul.f32 %v3910, 0.7978846
      %v3951 = vmul.f32 %v3911, 0.7978846
      %v3952 = vmul.f32 %v3912, 0.7978846
      %v3953 = vmul.f32 %v3913, 0.7978846
      %v3954 = vmul.f32 %v3914, 0.7978846
      %v3955 = vmul.f32 %v3915, 0.7978846
      %v3956 = vmul.f32 %v3916, 0.7978846
      %v3957 = vmul.f32 %v3917, 0.7978846
      %v3958 = vmul.f32 %v3918, 0.7978846
      %v3959 = vmul.f32 %v3919, 0.7978846
      %v3960 = vmul.f32 %v3920, 0.7978846
      %v3961 = vmul.f32 %v3921, 0.7978846
      %v3962 = vmul.f32 %v3922, 0.7978846
      %v3963 = vmul.f32 %v3923, 0.7978846
      %v3964 = vmul.f32 %v3924, 0.7978846
      %v3965 = vmul.f32 %v3925, 0.7978846
      %v3966 = vmul.f32 %v3926, 0.7978846
      %v3967 = vtanh.pop %v3927
      %v3968 = vtanh.pop %v3928
      %v3969 = vtanh.pop %v3929
      %v3970 = vtanh.pop %v3930
      %v3971 = vtanh.pop %v3931
      %v3972 = vtanh.pop %v3932
      %v3973 = vtanh.pop %v3933
      %v3974 = vtanh.pop %v3934
      %v3975 = vtanh.pop %v3935
      %v3976 = vtanh.pop %v3936
      %v3977 = vtanh.pop %v3937
      %v3978 = vtanh.pop %v3938
      %v3979 = vtanh.pop %v3939
      %v3980 = vtanh.pop %v3940
      %v3981 = vtanh.pop %v3941
      %v3982 = vtanh.pop %v3942
      %v3983 = vtanh.pop %v3943
      %v3984 = vtanh.pop %v3944
      %v3985 = vtanh.pop %v3945
      %v3986 = vtanh.pop %v3946
      %v3987 = vtanh.pop %v3947
      %v3988 = vtanh.pop %v3948
      %v3989 = vtanh.pop %v3949
      %v3990 = vtanh.pop %v3950
      %v3991 = vtanh.pop %v3951
      %v3992 = vtanh.pop %v3952
      %v3993 = vtanh.pop %v3953
      %v3994 = vtanh.pop %v3954
      %v3995 = vtanh.pop %v3955
      %v3996 = vtanh.pop %v3956
      %v3997 = vtanh.pop %v3957
      %v3998 = vtanh.pop %v3958
      %v3999 = vtanh.pop %v3959
      %v4000 = vtanh.pop %v3960
      %v4001 = vtanh.pop %v3961
      %v4002 = vtanh.pop %v3962
      %v4003 = vtanh.pop %v3963
      %v4004 = vtanh.pop %v3964
      %v4005 = vtanh.pop %v3965
      %v4006 = vtanh.pop %v3966
      %v4007 = vadd.f32 %v3967, 1.0
      %v4008 = vadd.f32 %v3968, 1.0
      %v4009 = vadd.f32 %v3969, 1.0
      %v4010 = vadd.f32 %v3970, 1.0
      %v4011 = vadd.f32 %v3971, 1.0
      %v4012 = vadd.f32 %v3972, 1.0
      %v4013 = vadd.f32 %v3973, 1.0
      %v4014 = vadd.f32 %v3974, 1.0
      %v4015 = vadd.f32 %v3975, 1.0
      %v4016 = vadd.f32 %v3976, 1.0
      %v4017 = vadd.f32 %v3977, 1.0
      %v4018 = vadd.f32 %v3978, 1.0
      %v4019 = vadd.f32 %v3979, 1.0
      %v4020 = vadd.f32 %v3980, 1.0
      %v4021 = vadd.f32 %v3981, 1.0
      %v4022 = vadd.f32 %v3982, 1.0
      %v4023 = vadd.f32 %v3983, 1.0
      %v4024 = vadd.f32 %v3984, 1.0
      %v4025 = vadd.f32 %v3985, 1.0
      %v4026 = vadd.f32 %v3986, 1.0
      %v4027 = vadd.f32 %v3987, 1.0
      %v4028 = vadd.f32 %v3988, 1.0
      %v4029 = vadd.f32 %v3989, 1.0
      %v4030 = vadd.f32 %v3990, 1.0
      %v4031 = vadd.f32 %v3991, 1.0
      %v4032 = vadd.f32 %v3992, 1.0
      %v4033 = vadd.f32 %v3993, 1.0
      %v4034 = vadd.f32 %v3994, 1.0
      %v4035 = vadd.f32 %v3995, 1.0
      %v4036 = vadd.f32 %v3996, 1.0
      %v4037 = vadd.f32 %v3997, 1.0
      %v4038 = vadd.f32 %v3998, 1.0
      %v4039 = vadd.f32 %v3999, 1.0
      %v4040 = vadd.f32 %v4000, 1.0
      %v4041 = vadd.f32 %v4001, 1.0
      %v4042 = vadd.f32 %v4002, 1.0
      %v4043 = vadd.f32 %v4003, 1.0
      %v4044 = vadd.f32 %v4004, 1.0
      %v4045 = vadd.f32 %v4005, 1.0
      %v4046 = vadd.f32 %v4006, 1.0
      %v4047 = vmul.f32 %v3727, %v4007
      %v4048 = vmul.f32 %v3728, %v4008
      %v4049 = vmul.f32 %v3729, %v4009
      %v4050 = vmul.f32 %v3730, %v4010
      %v4051 = vmul.f32 %v3731, %v4011
      %v4052 = vmul.f32 %v3732, %v4012
      %v4053 = vmul.f32 %v3733, %v4013
      %v4054 = vmul.f32 %v3734, %v4014
      %v4055 = vmul.f32 %v3735, %v4015
      %v4056 = vmul.f32 %v3736, %v4016
      %v4057 = vmul.f32 %v3737, %v4017
      %v4058 = vmul.f32 %v3738, %v4018
      %v4059 = vmul.f32 %v3739, %v4019
      %v4060 = vmul.f32 %v3740, %v4020
      %v4061 = vmul.f32 %v3741, %v4021
      %v4062 = vmul.f32 %v3742, %v4022
      %v4063 = vmul.f32 %v3743, %v4023
      %v4064 = vmul.f32 %v3744, %v4024
      %v4065 = vmul.f32 %v3745, %v4025
      %v4066 = vmul.f32 %v3746, %v4026
      %v4067 = vmul.f32 %v3747, %v4027
      %v4068 = vmul.f32 %v3748, %v4028
      %v4069 = vmul.f32 %v3749, %v4029
      %v4070 = vmul.f32 %v3750, %v4030
      %v4071 = vmul.f32 %v3751, %v4031
      %v4072 = vmul.f32 %v3752, %v4032
      %v4073 = vmul.f32 %v3753, %v4033
      %v4074 = vmul.f32 %v3754, %v4034
      %v4075 = vmul.f32 %v3755, %v4035
      %v4076 = vmul.f32 %v3756, %v4036
      %v4077 = vmul.f32 %v3757, %v4037
      %v4078 = vmul.f32 %v3758, %v4038
      %v4079 = vmul.f32 %v3759, %v4039
      %v4080 = vmul.f32 %v3760, %v4040
      %v4081 = vmul.f32 %v3761, %v4041
      %v4082 = vmul.f32 %v3762, %v4042
      %v4083 = vmul.f32 %v3763, %v4043
      %v4084 = vmul.f32 %v3764, %v4044
      %v4085 = vmul.f32 %v3765, %v4045
      %v4086 = vmul.f32 %v3766, %v4046
      %4087 = vst.msk [vmem:[#allocation3] sm:$0xff] %vm1273, %v4047
      %4088 = vst.msk [vmem:[#allocation3 + $0x8] sm:$0xff] %vm1273, %v4048
      %4089 = vst.msk [vmem:[#allocation3 + $0x10] sm:$0xff] %vm1273, %v4049
      %4090 = vst.msk [vmem:[#allocation3 + $0x18] sm:$0xff] %vm1273, %v4050
      %4091 = vst.msk [vmem:[#allocation3 + $0x20] sm:$0xff] %vm1273, %v4051
      %4092 = vst.msk [vmem:[#allocation3 + $0x28] sm:$0xff] %vm1273, %v4052
      %4093 = vst.msk [vmem:[#allocation3 + $0x30] sm:$0xff] %vm1273, %v4053
      %4094 = vst.msk [vmem:[#allocation3 + $0x38] sm:$0xff] %vm1273, %v4054
      %4095 = vst.msk [vmem:[#allocation3 + $0x40] sm:$0xff] %vm1273, %v4055
      %4096 = vst.msk [vmem:[#allocation3 + $0x48] sm:$0xff] %vm1273, %v4056
      %4097 = vst.msk [vmem:[#allocation3 + $0x50] sm:$0xff] %vm1273, %v4057
      %4098 = vst.msk [vmem:[#allocation3 + $0x58] sm:$0xff] %vm1273, %v4058
      %4099 = vst.msk [vmem:[#allocation3 + $0x60] sm:$0xff] %vm1273, %v4059
      %4100 = vst.msk [vmem:[#allocation3 + $0x68] sm:$0xff] %vm1273, %v4060
      %4101 = vst.msk [vmem:[#allocation3 + $0x70] sm:$0xff] %vm1273, %v4061
      %4102 = vst.msk [vmem:[#allocation3 + $0x78] sm:$0xff] %vm1273, %v4062
      %4103 = vst.msk [vmem:[#allocation3 + $0x80] sm:$0xff] %vm1273, %v4063
      %4104 = vst.msk [vmem:[#allocation3 + $0x88] sm:$0xff] %vm1273, %v4064
      %4105 = vst.msk [vmem:[#allocation3 + $0x90] sm:$0xff] %vm1273, %v4065
      %4106 = vst.msk [vmem:[#allocation3 + $0x98] sm:$0xff] %vm1273, %v4066
      %4107 = vst.msk [vmem:[#allocation3 + $0xa0] sm:$0xff] %vm1273, %v4067
      %4108 = vst.msk [vmem:[#allocation3 + $0xa8] sm:$0xff] %vm1273, %v4068
      %4109 = vst.msk [vmem:[#allocation3 + $0xb0] sm:$0xff] %vm1273, %v4069
      %4110 = vst.msk [vmem:[#allocation3 + $0xb8] sm:$0xff] %vm1273, %v4070
      %4111 = vst.msk [vmem:[#allocation3 + $0xc0] sm:$0xff] %vm1273, %v4071
      %4112 = vst.msk [vmem:[#allocation3 + $0xc8] sm:$0xff] %vm1273, %v4072
      %4113 = vst.msk [vmem:[#allocation3 + $0xd0] sm:$0xff] %vm1273, %v4073
      %4114 = vst.msk [vmem:[#allocation3 + $0xd8] sm:$0xff] %vm1273, %v4074
      %4115 = vst.msk [vmem:[#allocation3 + $0xe0] sm:$0xff] %vm1273, %v4075
      %4116 = vst.msk [vmem:[#allocation3 + $0xe8] sm:$0xff] %vm1273, %v4076
      %4117 = vst.msk [vmem:[#allocation3 + $0xf0] sm:$0xff] %vm1273, %v4077
      %4118 = vst.msk [vmem:[#allocation3 + $0xf8] sm:$0xff] %vm1273, %v4078
      %4119 = vst.msk [vmem:[#allocation3 + $0x100] sm:$0xff] %vm1273, %v4079
      %4120 = vst.msk [vmem:[#allocation3 + $0x108] sm:$0xff] %vm1273, %v4080
      %4121 = vst.msk [vmem:[#allocation3 + $0x110] sm:$0xff] %vm1273, %v4081
      %4122 = vst.msk [vmem:[#allocation3 + $0x118] sm:$0xff] %vm1273, %v4082
      %4123 = vst.msk [vmem:[#allocation3 + $0x120] sm:$0xff] %vm1273, %v4083
      %4124 = vst.msk [vmem:[#allocation3 + $0x128] sm:$0xff] %vm1273, %v4084
      %4125 = vst.msk [vmem:[#allocation3 + $0x130] sm:$0xff] %vm1273, %v4085
      %4126 = vst.msk [vmem:[#allocation3 + $0x138] sm:$0x7f] %vm1431, %v4086
      %v4127 = vld [vmem:[#allocation3] ss:$2 sm:$0xff]
      %s4128 = scalar_lea.vmem [#allocation3], 16
      %v4129 = vld [vmem:[%s4128] ss:$2 sm:$0xff]
      %s4130 = scalar_lea.vmem [#allocation3], 32
      %v4131 = vld [vmem:[%s4130] ss:$2 sm:$0xff]
      %s4132 = scalar_lea.vmem [#allocation3], 48
      %v4133 = vld [vmem:[%s4132] ss:$2 sm:$0xff]
      %s4134 = scalar_lea.vmem [#allocation3], 64
      %v4135 = vld [vmem:[%s4134] ss:$2 sm:$0xff]
      %s4136 = scalar_lea.vmem [#allocation3], 80
      %v4137 = vld [vmem:[%s4136] ss:$2 sm:$0xff]
      %s4138 = scalar_lea.vmem [#allocation3], 96
      %v4139 = vld [vmem:[%s4138] ss:$2 sm:$0xff]
      %s4140 = scalar_lea.vmem [#allocation3], 112
      %v4141 = vld [vmem:[%s4140] ss:$2 sm:$0xff]
      %s4142 = scalar_lea.vmem [#allocation3], 128
      %v4143 = vld [vmem:[%s4142] ss:$2 sm:$0xff]
      %s4144 = scalar_lea.vmem [#allocation3], 144
      %v4145 = vld [vmem:[%s4144] ss:$2 sm:$0xff]
      %s4146 = scalar_lea.vmem [#allocation3], 160
      %v4147 = vld [vmem:[%s4146] ss:$2 sm:$0xff]
      %s4148 = scalar_lea.vmem [#allocation3], 176
      %v4149 = vld [vmem:[%s4148] ss:$2 sm:$0xff]
      %s4150 = scalar_lea.vmem [#allocation3], 192
      %v4151 = vld [vmem:[%s4150] ss:$2 sm:$0xff]
      %s4152 = scalar_lea.vmem [#allocation3], 208
      %v4153 = vld [vmem:[%s4152] ss:$2 sm:$0xff]
      %s4154 = scalar_lea.vmem [#allocation3], 224
      %v4155 = vld [vmem:[%s4154] ss:$2 sm:$0xff]
      %s4156 = scalar_lea.vmem [#allocation3], 240
      %v4157 = vld [vmem:[%s4156] ss:$2 sm:$0xff]
      %s4158 = scalar_lea.vmem [#allocation3], 256
      %v4159 = vld [vmem:[%s4158] ss:$2 sm:$0xff]
      %s4160 = scalar_lea.vmem [#allocation3], 272
      %v4161 = vld [vmem:[%s4160] ss:$2 sm:$0xff]
      %s4162 = scalar_lea.vmem [#allocation3], 288
      %v4163 = vld [vmem:[%s4162] ss:$2 sm:$0xff]
      %s4164 = scalar_lea.vmem [#allocation3], 304
      %v4165 = vld [vmem:[%s4164] ss:$2 sm:$0x7f]
      %v4166 = vpack.c.bf16 %v4129, %v4127
      %v4167 = vpack.c.bf16 %v4133, %v4131
      %v4168 = vpack.c.bf16 %v4137, %v4135
      %v4169 = vpack.c.bf16 %v4141, %v4139
      %v4170 = vpack.c.bf16 %v4145, %v4143
      %v4171 = vpack.c.bf16 %v4149, %v4147
      %v4172 = vpack.c.bf16 %v4153, %v4151
      %v4173 = vpack.c.bf16 %v4157, %v4155
      %v4174 = vpack.c.bf16 %v4161, %v4159
      %v4175 = vpack.c.bf16 %v4165, %v4163
      %v4176 = vld [vmem:[%s3] sm:$0xf]
      %v4177 = vld [vmem:[%s3 + $0x4] sm:$0xf]
      %v4178 = vld [vmem:[%s3 + $0x8] sm:$0xf]
      %s4179 = scalar_lea.vmem [#allocation3], 1
      %v4180 = vld [vmem:[%s4179] ss:$2 sm:$0xff]
      %s4181 = scalar_lea.vmem [#allocation3], 17
      %v4182 = vld [vmem:[%s4181] ss:$2 sm:$0xff]
      %s4183 = scalar_lea.vmem [#allocation3], 33
      %v4184 = vld [vmem:[%s4183] ss:$2 sm:$0xff]
      %s4185 = scalar_lea.vmem [#allocation3], 49
      %v4186 = vld [vmem:[%s4185] ss:$2 sm:$0xff]
      %s4187 = scalar_lea.vmem [#allocation3], 65
      %v4188 = vld [vmem:[%s4187] ss:$2 sm:$0xff]
      %s4189 = scalar_lea.vmem [#allocation3], 81
      %v4190 = vld [vmem:[%s4189] ss:$2 sm:$0xff]
      %s4191 = scalar_lea.vmem [#allocation3], 97
      %v4192 = vld [vmem:[%s4191] ss:$2 sm:$0xff]
      %s4193 = scalar_lea.vmem [#allocation3], 113
      %v4194 = vld [vmem:[%s4193] ss:$2 sm:$0xff]
      %s4195 = scalar_lea.vmem [#allocation3], 129
      %v4196 = vld [vmem:[%s4195] ss:$2 sm:$0xff]
      %s4197 = scalar_lea.vmem [#allocation3], 145
      %v4198 = vld [vmem:[%s4197] ss:$2 sm:$0xff]
      %s4199 = scalar_lea.vmem [#allocation3], 161
      %v4200 = vld [vmem:[%s4199] ss:$2 sm:$0xff]
      %s4201 = scalar_lea.vmem [#allocation3], 177
      %v4202 = vld [vmem:[%s4201] ss:$2 sm:$0xff]
      %s4203 = scalar_lea.vmem [#allocation3], 193
      %v4204 = vld [vmem:[%s4203] ss:$2 sm:$0xff]
      %s4205 = scalar_lea.vmem [#allocation3], 209
      %v4206 = vld [vmem:[%s4205] ss:$2 sm:$0xff]
      %s4207 = scalar_lea.vmem [#allocation3], 225
      %v4208 = vld [vmem:[%s4207] ss:$2 sm:$0xff]
      %s4209 = scalar_lea.vmem [#allocation3], 241
      %v4210 = vld [vmem:[%s4209] ss:$2 sm:$0xff]
      %s4211 = scalar_lea.vmem [#allocation3], 257
      %v4212 = vld [vmem:[%s4211] ss:$2 sm:$0xff]
      %s4213 = scalar_lea.vmem [#allocation3], 273
      %v4214 = vld [vmem:[%s4213] ss:$2 sm:$0xff]
      %s4215 = scalar_lea.vmem [#allocation3], 289
      %v4216 = vld [vmem:[%s4215] ss:$2 sm:$0xff]
      %s4217 = scalar_lea.vmem [#allocation3], 305
      %v4218 = vld [vmem:[%s4217] ss:$2 sm:$0x7f]
      %v4219 = vpack.c.bf16 %v4182, %v4180
      %v4220 = vpack.c.bf16 %v4186, %v4184
      %v4221 = vpack.c.bf16 %v4190, %v4188
      %v4222 = vpack.c.bf16 %v4194, %v4192
      %v4223 = vpack.c.bf16 %v4198, %v4196
      %v4224 = vpack.c.bf16 %v4202, %v4200
      %v4225 = vpack.c.bf16 %v4206, %v4204
      %v4226 = vpack.c.bf16 %v4210, %v4208
      %v4227 = vpack.c.bf16 %v4214, %v4212
      %v4228 = vpack.c.bf16 %v4218, %v4216
      %s4229 = scalar_lea.vmem %s3, 12
      %v4230 = vld [vmem:[%s4229] sm:$0xf]
      %v4231 = vld [vmem:[%s4229 + $0x4] sm:$0xf]
      %v4232 = vld [vmem:[%s4229 + $0x8] sm:$0xf]
      %v4236 = vunpack.c.l.b16 %v4230
      %v4237 = vunpack.c.l.b16 %v4231
      %v4238 = vunpack.c.l.b16 %v4232
      %v4239 = vpack.c.b16 %v4237, %v4236
      %v4240 = vpack.c.b16 %v4238, %v4238
      %v4243 = vsel %vm1273, %v4219, 0
      %v4246 = vsel %vm1273, %v4220, 0
      %v4249 = vsel %vm1273, %v4221, 0
      %v4252 = vsel %vm1273, %v4222, 0
      %v4255 = vsel %vm1273, %v4223, 0
      %v4258 = vsel %vm1273, %v4224, 0
      %v4261 = vsel %vm1273, %v4225, 0
      %v4264 = vsel %vm1273, %v4226, 0
      %v4267 = vsel %vm1273, %v4227, 0
      %v4270 = vsel %vm1273, %v4228, 0
      %v4273 = vsel %vm3108, %v4240, 0
      %4275 = vmatpush.bf16.msra.mxu0 0
      %4276 = vmatpush.bf16.msra.mxu0 0
      %4277 = vmatpush.bf16.msra.mxu0 0
      %4278 = vmatpush.bf16.msra.mxu0 0
      %4279 = vmatpush.bf16.msra.mxu0 0
      %4280 = vmatpush.bf16.msra.mxu0 0
      %4281 = vmatpush.bf16.msra.mxu0 %v4273
      %4282 = vmatpush.bf16.msra.mxu0 %v4239
      %4283 = vmatmul.bf16.gmra.mxu0 %v4243
      %v4284 = vpop.f32.mrf.mxu0
      %v4285 = vadd.f32 0.0, %v4284
      %v4286 = vpop.f32.mrf.mxu0
      %v4287 = vadd.f32 0.0, %v4286
      %4288 = vmatmul.bf16.gmra.mxu0 %v4246
      %v4289 = vpop.f32.mrf.mxu0
      %v4290 = vadd.f32 0.0, %v4289
      %v4291 = vpop.f32.mrf.mxu0
      %v4292 = vadd.f32 0.0, %v4291
      %4293 = vmatmul.bf16.gmra.mxu0 %v4249
      %v4294 = vpop.f32.mrf.mxu0
      %v4295 = vadd.f32 0.0, %v4294
      %v4296 = vpop.f32.mrf.mxu0
      %v4297 = vadd.f32 0.0, %v4296
      %4298 = vmatmul.bf16.gmra.mxu0 %v4252
      %v4299 = vpop.f32.mrf.mxu0
      %v4300 = vadd.f32 0.0, %v4299
      %v4301 = vpop.f32.mrf.mxu0
      %v4302 = vadd.f32 0.0, %v4301
      %4303 = vmatmul.bf16.gmra.mxu0 %v4255
      %v4304 = vpop.f32.mrf.mxu0
      %v4305 = vadd.f32 0.0, %v4304
      %v4306 = vpop.f32.mrf.mxu0
      %v4307 = vadd.f32 0.0, %v4306
      %4308 = vmatmul.bf16.gmra.mxu0 %v4258
      %v4309 = vpop.f32.mrf.mxu0
      %v4310 = vadd.f32 0.0, %v4309
      %v4311 = vpop.f32.mrf.mxu0
      %v4312 = vadd.f32 0.0, %v4311
      %4313 = vmatmul.bf16.gmra.mxu0 %v4261
      %v4314 = vpop.f32.mrf.mxu0
      %v4315 = vadd.f32 0.0, %v4314
      %v4316 = vpop.f32.mrf.mxu0
      %v4317 = vadd.f32 0.0, %v4316
      %4318 = vmatmul.bf16.gmra.mxu0 %v4264
      %v4319 = vpop.f32.mrf.mxu0
      %v4320 = vadd.f32 0.0, %v4319
      %v4321 = vpop.f32.mrf.mxu0
      %v4322 = vadd.f32 0.0, %v4321
      %4323 = vmatmul.bf16.gmra.mxu0 %v4267
      %v4324 = vpop.f32.mrf.mxu0
      %v4325 = vadd.f32 0.0, %v4324
      %v4326 = vpop.f32.mrf.mxu0
      %v4327 = vadd.f32 0.0, %v4326
      %4328 = vmatmul.bf16.gmra.mxu0 %v4270
      %v4329 = vpop.f32.mrf.mxu0
      %v4330 = vadd.f32 0.0, %v4329
      %v4331 = vpop.f32.mrf.mxu0
      %v4332 = vadd.f32 0.0, %v4331
      %4333 = vdwg.mxu0
      %v4337 = vunpack.c.l.b16 %v4176
      %v4338 = vunpack.c.l.b16 %v4177
      %v4339 = vunpack.c.l.b16 %v4178
      %v4340 = vpack.c.b16 %v4338, %v4337
      %v4341 = vpack.c.b16 %v4339, %v4339
      %v4344 = vsel %vm1273, %v4166, 0
      %v4347 = vsel %vm1273, %v4167, 0
      %v4350 = vsel %vm1273, %v4168, 0
      %v4353 = vsel %vm1273, %v4169, 0
      %v4356 = vsel %vm1273, %v4170, 0
      %v4359 = vsel %vm1273, %v4171, 0
      %v4362 = vsel %vm1273, %v4172, 0
      %v4365 = vsel %vm1273, %v4173, 0
      %v4368 = vsel %vm1273, %v4174, 0
      %v4371 = vsel %vm1273, %v4175, 0
      %v4374 = vsel %vm3108, %v4341, 0
      %4376 = vmatpush.bf16.msra.mxu0 0
      %4377 = vmatpush.bf16.msra.mxu0 0
      %4378 = vmatpush.bf16.msra.mxu0 0
      %4379 = vmatpush.bf16.msra.mxu0 0
      %4380 = vmatpush.bf16.msra.mxu0 0
      %4381 = vmatpush.bf16.msra.mxu0 0
      %4382 = vmatpush.bf16.msra.mxu0 %v4374
      %4383 = vmatpush.bf16.msra.mxu0 %v4340
      %4384 = vmatmul.bf16.gmra.mxu0 %v4344
      %v4385 = vpop.f32.mrf.mxu0
      %v4386 = vadd.f32 %v4285, %v4385
      %v4387 = vpop.f32.mrf.mxu0
      %v4388 = vadd.f32 %v4287, %v4387
      %4389 = vmatmul.bf16.gmra.mxu0 %v4347
      %v4390 = vpop.f32.mrf.mxu0
      %v4391 = vadd.f32 %v4290, %v4390
      %v4392 = vpop.f32.mrf.mxu0
      %v4393 = vadd.f32 %v4292, %v4392
      %4394 = vmatmul.bf16.gmra.mxu0 %v4350
      %v4395 = vpop.f32.mrf.mxu0
      %v4396 = vadd.f32 %v4295, %v4395
      %v4397 = vpop.f32.mrf.mxu0
      %v4398 = vadd.f32 %v4297, %v4397
      %4399 = vmatmul.bf16.gmra.mxu0 %v4353
      %v4400 = vpop.f32.mrf.mxu0
      %v4401 = vadd.f32 %v4300, %v4400
      %v4402 = vpop.f32.mrf.mxu0
      %v4403 = vadd.f32 %v4302, %v4402
      %4404 = vmatmul.bf16.gmra.mxu0 %v4356
      %v4405 = vpop.f32.mrf.mxu0
      %v4406 = vadd.f32 %v4305, %v4405
      %v4407 = vpop.f32.mrf.mxu0
      %v4408 = vadd.f32 %v4307, %v4407
      %4409 = vmatmul.bf16.gmra.mxu0 %v4359
      %v4410 = vpop.f32.mrf.mxu0
      %v4411 = vadd.f32 %v4310, %v4410
      %v4412 = vpop.f32.mrf.mxu0
      %v4413 = vadd.f32 %v4312, %v4412
      %4414 = vmatmul.bf16.gmra.mxu0 %v4362
      %v4415 = vpop.f32.mrf.mxu0
      %v4416 = vadd.f32 %v4315, %v4415
      %v4417 = vpop.f32.mrf.mxu0
      %v4418 = vadd.f32 %v4317, %v4417
      %4419 = vmatmul.bf16.gmra.mxu0 %v4365
      %v4420 = vpop.f32.mrf.mxu0
      %v4421 = vadd.f32 %v4320, %v4420
      %v4422 = vpop.f32.mrf.mxu0
      %v4423 = vadd.f32 %v4322, %v4422
      %4424 = vmatmul.bf16.gmra.mxu0 %v4368
      %v4425 = vpop.f32.mrf.mxu0
      %v4426 = vadd.f32 %v4325, %v4425
      %v4427 = vpop.f32.mrf.mxu0
      %v4428 = vadd.f32 %v4327, %v4427
      %4429 = vmatmul.bf16.gmra.mxu0 %v4371
      %v4430 = vpop.f32.mrf.mxu0
      %v4431 = vadd.f32 %v4330, %v4430
      %v4432 = vpop.f32.mrf.mxu0
      %v4433 = vadd.f32 %v4332, %v4432
      %4434 = vdwg.mxu0
      %s4435 = scalar_lea.vmem [#allocation3], 2
      %v4436 = vld [vmem:[%s4435] ss:$2 sm:$0xff]
      %s4437 = scalar_lea.vmem [#allocation3], 18
      %v4438 = vld [vmem:[%s4437] ss:$2 sm:$0xff]
      %s4439 = scalar_lea.vmem [#allocation3], 34
      %v4440 = vld [vmem:[%s4439] ss:$2 sm:$0xff]
      %s4441 = scalar_lea.vmem [#allocation3], 50
      %v4442 = vld [vmem:[%s4441] ss:$2 sm:$0xff]
      %s4443 = scalar_lea.vmem [#allocation3], 66
      %v4444 = vld [vmem:[%s4443] ss:$2 sm:$0xff]
      %s4445 = scalar_lea.vmem [#allocation3], 82
      %v4446 = vld [vmem:[%s4445] ss:$2 sm:$0xff]
      %s4447 = scalar_lea.vmem [#allocation3], 98
      %v4448 = vld [vmem:[%s4447] ss:$2 sm:$0xff]
      %s4449 = scalar_lea.vmem [#allocation3], 114
      %v4450 = vld [vmem:[%s4449] ss:$2 sm:$0xff]
      %s4451 = scalar_lea.vmem [#allocation3], 130
      %v4452 = vld [vmem:[%s4451] ss:$2 sm:$0xff]
      %s4453 = scalar_lea.vmem [#allocation3], 146
      %v4454 = vld [vmem:[%s4453] ss:$2 sm:$0xff]
      %s4455 = scalar_lea.vmem [#allocation3], 162
      %v4456 = vld [vmem:[%s4455] ss:$2 sm:$0xff]
      %s4457 = scalar_lea.vmem [#allocation3], 178
      %v4458 = vld [vmem:[%s4457] ss:$2 sm:$0xff]
      %s4459 = scalar_lea.vmem [#allocation3], 194
      %v4460 = vld [vmem:[%s4459] ss:$2 sm:$0xff]
      %s4461 = scalar_lea.vmem [#allocation3], 210
      %v4462 = vld [vmem:[%s4461] ss:$2 sm:$0xff]
      %s4463 = scalar_lea.vmem [#allocation3], 226
      %v4464 = vld [vmem:[%s4463] ss:$2 sm:$0xff]
      %s4465 = scalar_lea.vmem [#allocation3], 242
      %v4466 = vld [vmem:[%s4465] ss:$2 sm:$0xff]
      %s4467 = scalar_lea.vmem [#allocation3], 258
      %v4468 = vld [vmem:[%s4467] ss:$2 sm:$0xff]
      %s4469 = scalar_lea.vmem [#allocation3], 274
      %v4470 = vld [vmem:[%s4469] ss:$2 sm:$0xff]
      %s4471 = scalar_lea.vmem [#allocation3], 290
      %v4472 = vld [vmem:[%s4471] ss:$2 sm:$0xff]
      %s4473 = scalar_lea.vmem [#allocation3], 306
      %v4474 = vld [vmem:[%s4473] ss:$2 sm:$0x7f]
      %v4475 = vpack.c.bf16 %v4438, %v4436
      %v4476 = vpack.c.bf16 %v4442, %v4440
      %v4477 = vpack.c.bf16 %v4446, %v4444
      %v4478 = vpack.c.bf16 %v4450, %v4448
      %v4479 = vpack.c.bf16 %v4454, %v4452
      %v4480 = vpack.c.bf16 %v4458, %v4456
      %v4481 = vpack.c.bf16 %v4462, %v4460
      %v4482 = vpack.c.bf16 %v4466, %v4464
      %v4483 = vpack.c.bf16 %v4470, %v4468
      %v4484 = vpack.c.bf16 %v4474, %v4472
      %s4485 = scalar_lea.vmem %s3, 24
      %v4486 = vld [vmem:[%s4485] sm:$0xf]
      %v4487 = vld [vmem:[%s4485 + $0x4] sm:$0xf]
      %v4488 = vld [vmem:[%s4485 + $0x8] sm:$0xf]
      %v4492 = vunpack.c.l.b16 %v4486
      %v4493 = vunpack.c.l.b16 %v4487
      %v4494 = vunpack.c.l.b16 %v4488
      %v4495 = vpack.c.b16 %v4493, %v4492
      %v4496 = vpack.c.b16 %v4494, %v4494
      %v4499 = vsel %vm1273, %v4475, 0
      %v4502 = vsel %vm1273, %v4476, 0
      %v4505 = vsel %vm1273, %v4477, 0
      %v4508 = vsel %vm1273, %v4478, 0
      %v4511 = vsel %vm1273, %v4479, 0
      %v4514 = vsel %vm1273, %v4480, 0
      %v4517 = vsel %vm1273, %v4481, 0
      %v4520 = vsel %vm1273, %v4482, 0
      %v4523 = vsel %vm1273, %v4483, 0
      %v4526 = vsel %vm1273, %v4484, 0
      %v4529 = vsel %vm3108, %v4496, 0
      %4531 = vmatpush.bf16.msra.mxu0 0
      %4532 = vmatpush.bf16.msra.mxu0 0
      %4533 = vmatpush.bf16.msra.mxu0 0
      %4534 = vmatpush.bf16.msra.mxu0 0
      %4535 = vmatpush.bf16.msra.mxu0 0
      %4536 = vmatpush.bf16.msra.mxu0 0
      %4537 = vmatpush.bf16.msra.mxu0 %v4529
      %4538 = vmatpush.bf16.msra.mxu0 %v4495
      %4539 = vmatmul.bf16.gmra.mxu0 %v4499
      %v4540 = vpop.f32.mrf.mxu0
      %v4541 = vadd.f32 0.0, %v4540
      %v4542 = vpop.f32.mrf.mxu0
      %v4543 = vadd.f32 0.0, %v4542
      %4544 = vmatmul.bf16.gmra.mxu0 %v4502
      %v4545 = vpop.f32.mrf.mxu0
      %v4546 = vadd.f32 0.0, %v4545
      %v4547 = vpop.f32.mrf.mxu0
      %v4548 = vadd.f32 0.0, %v4547
      %4549 = vmatmul.bf16.gmra.mxu0 %v4505
      %v4550 = vpop.f32.mrf.mxu0
      %v4551 = vadd.f32 0.0, %v4550
      %v4552 = vpop.f32.mrf.mxu0
      %v4553 = vadd.f32 0.0, %v4552
      %4554 = vmatmul.bf16.gmra.mxu0 %v4508
      %v4555 = vpop.f32.mrf.mxu0
      %v4556 = vadd.f32 0.0, %v4555
      %v4557 = vpop.f32.mrf.mxu0
      %v4558 = vadd.f32 0.0, %v4557
      %4559 = vmatmul.bf16.gmra.mxu0 %v4511
      %v4560 = vpop.f32.mrf.mxu0
      %v4561 = vadd.f32 0.0, %v4560
      %v4562 = vpop.f32.mrf.mxu0
      %v4563 = vadd.f32 0.0, %v4562
      %4564 = vmatmul.bf16.gmra.mxu0 %v4514
      %v4565 = vpop.f32.mrf.mxu0
      %v4566 = vadd.f32 0.0, %v4565
      %v4567 = vpop.f32.mrf.mxu0
      %v4568 = vadd.f32 0.0, %v4567
      %4569 = vmatmul.bf16.gmra.mxu0 %v4517
      %v4570 = vpop.f32.mrf.mxu0
      %v4571 = vadd.f32 0.0, %v4570
      %v4572 = vpop.f32.mrf.mxu0
      %v4573 = vadd.f32 0.0, %v4572
      %4574 = vmatmul.bf16.gmra.mxu0 %v4520
      %v4575 = vpop.f32.mrf.mxu0
      %v4576 = vadd.f32 0.0, %v4575
      %v4577 = vpop.f32.mrf.mxu0
      %v4578 = vadd.f32 0.0, %v4577
      %4579 = vmatmul.bf16.gmra.mxu0 %v4523
      %v4580 = vpop.f32.mrf.mxu0
      %v4581 = vadd.f32 0.0, %v4580
      %v4582 = vpop.f32.mrf.mxu0
      %v4583 = vadd.f32 0.0, %v4582
      %4584 = vmatmul.bf16.gmra.mxu0 %v4526
      %v4585 = vpop.f32.mrf.mxu0
      %v4586 = vadd.f32 0.0, %v4585
      %v4587 = vpop.f32.mrf.mxu0
      %v4588 = vadd.f32 0.0, %v4587
      %4589 = vdwg.mxu0
      %v4590 = vadd.f32 %v4386, %v4541
      %v4591 = vadd.f32 %v4388, %v4543
      %v4592 = vadd.f32 %v4391, %v4546
      %v4593 = vadd.f32 %v4393, %v4548
      %v4594 = vadd.f32 %v4396, %v4551
      %v4595 = vadd.f32 %v4398, %v4553
      %v4596 = vadd.f32 %v4401, %v4556
      %v4597 = vadd.f32 %v4403, %v4558
      %v4598 = vadd.f32 %v4406, %v4561
      %v4599 = vadd.f32 %v4408, %v4563
      %v4600 = vadd.f32 %v4411, %v4566
      %v4601 = vadd.f32 %v4413, %v4568
      %v4602 = vadd.f32 %v4416, %v4571
      %v4603 = vadd.f32 %v4418, %v4573
      %v4604 = vadd.f32 %v4421, %v4576
      %v4605 = vadd.f32 %v4423, %v4578
      %v4606 = vadd.f32 %v4426, %v4581
      %v4607 = vadd.f32 %v4428, %v4583
      %v4608 = vadd.f32 %v4431, %v4586
      %v4609 = vadd.f32 %v4433, %v4588
      %v4610 = vmul.f32 %v4590, 0.5
      %v4611 = vmul.f32 %v4591, 0.5
      %v4612 = vmul.f32 %v4592, 0.5
      %v4613 = vmul.f32 %v4593, 0.5
      %v4614 = vmul.f32 %v4594, 0.5
      %v4615 = vmul.f32 %v4595, 0.5
      %v4616 = vmul.f32 %v4596, 0.5
      %v4617 = vmul.f32 %v4597, 0.5
      %v4618 = vmul.f32 %v4598, 0.5
      %v4619 = vmul.f32 %v4599, 0.5
      %v4620 = vmul.f32 %v4600, 0.5
      %v4621 = vmul.f32 %v4601, 0.5
      %v4622 = vmul.f32 %v4602, 0.5
      %v4623 = vmul.f32 %v4603, 0.5
      %v4624 = vmul.f32 %v4604, 0.5
      %v4625 = vmul.f32 %v4605, 0.5
      %v4626 = vmul.f32 %v4606, 0.5
      %v4627 = vmul.f32 %v4607, 0.5
      %v4628 = vmul.f32 %v4608, 0.5
      %v4629 = vmul.f32 %v4609, 0.5
      %v4630 = vmul.f32 %v4590, 0.044715
      %v4631 = vmul.f32 %v4591, 0.044715
      %v4632 = vmul.f32 %v4592, 0.044715
      %v4633 = vmul.f32 %v4593, 0.044715
      %v4634 = vmul.f32 %v4594, 0.044715
      %v4635 = vmul.f32 %v4595, 0.044715
      %v4636 = vmul.f32 %v4596, 0.044715
      %v4637 = vmul.f32 %v4597, 0.044715
      %v4638 = vmul.f32 %v4598, 0.044715
      %v4639 = vmul.f32 %v4599, 0.044715
      %v4640 = vmul.f32 %v4600, 0.044715
      %v4641 = vmul.f32 %v4601, 0.044715
      %v4642 = vmul.f32 %v4602, 0.044715
      %v4643 = vmul.f32 %v4603, 0.044715
      %v4644 = vmul.f32 %v4604, 0.044715
      %v4645 = vmul.f32 %v4605, 0.044715
      %v4646 = vmul.f32 %v4606, 0.044715
      %v4647 = vmul.f32 %v4607, 0.044715
      %v4648 = vmul.f32 %v4608, 0.044715
      %v4649 = vmul.f32 %v4609, 0.044715
      %v4650 = vmul.f32 %v4630, %v4590
      %v4651 = vmul.f32 %v4631, %v4591
      %v4652 = vmul.f32 %v4632, %v4592
      %v4653 = vmul.f32 %v4633, %v4593
      %v4654 = vmul.f32 %v4634, %v4594
      %v4655 = vmul.f32 %v4635, %v4595
      %v4656 = vmul.f32 %v4636, %v4596
      %v4657 = vmul.f32 %v4637, %v4597
      %v4658 = vmul.f32 %v4638, %v4598
      %v4659 = vmul.f32 %v4639, %v4599
      %v4660 = vmul.f32 %v4640, %v4600
      %v4661 = vmul.f32 %v4641, %v4601
      %v4662 = vmul.f32 %v4642, %v4602
      %v4663 = vmul.f32 %v4643, %v4603
      %v4664 = vmul.f32 %v4644, %v4604
      %v4665 = vmul.f32 %v4645, %v4605
      %v4666 = vmul.f32 %v4646, %v4606
      %v4667 = vmul.f32 %v4647, %v4607
      %v4668 = vmul.f32 %v4648, %v4608
      %v4669 = vmul.f32 %v4649, %v4609
      %v4670 = vmul.f32 %v4650, %v4590
      %v4671 = vmul.f32 %v4651, %v4591
      %v4672 = vmul.f32 %v4652, %v4592
      %v4673 = vmul.f32 %v4653, %v4593
      %v4674 = vmul.f32 %v4654, %v4594
      %v4675 = vmul.f32 %v4655, %v4595
      %v4676 = vmul.f32 %v4656, %v4596
      %v4677 = vmul.f32 %v4657, %v4597
      %v4678 = vmul.f32 %v4658, %v4598
      %v4679 = vmul.f32 %v4659, %v4599
      %v4680 = vmul.f32 %v4660, %v4600
      %v4681 = vmul.f32 %v4661, %v4601
      %v4682 = vmul.f32 %v4662, %v4602
      %v4683 = vmul.f32 %v4663, %v4603
      %v4684 = vmul.f32 %v4664, %v4604
      %v4685 = vmul.f32 %v4665, %v4605
      %v4686 = vmul.f32 %v4666, %v4606
      %v4687 = vmul.f32 %v4667, %v4607
      %v4688 = vmul.f32 %v4668, %v4608
      %v4689 = vmul.f32 %v4669, %v4609
      %v4690 = vadd.f32 %v4590, %v4670
      %v4691 = vadd.f32 %v4591, %v4671
      %v4692 = vadd.f32 %v4592, %v4672
      %v4693 = vadd.f32 %v4593, %v4673
      %v4694 = vadd.f32 %v4594, %v4674
      %v4695 = vadd.f32 %v4595, %v4675
      %v4696 = vadd.f32 %v4596, %v4676
      %v4697 = vadd.f32 %v4597, %v4677
      %v4698 = vadd.f32 %v4598, %v4678
      %v4699 = vadd.f32 %v4599, %v4679
      %v4700 = vadd.f32 %v4600, %v4680
      %v4701 = vadd.f32 %v4601, %v4681
      %v4702 = vadd.f32 %v4602, %v4682
      %v4703 = vadd.f32 %v4603, %v4683
      %v4704 = vadd.f32 %v4604, %v4684
      %v4705 = vadd.f32 %v4605, %v4685
      %v4706 = vadd.f32 %v4606, %v4686
      %v4707 = vadd.f32 %v4607, %v4687
      %v4708 = vadd.f32 %v4608, %v4688
      %v4709 = vadd.f32 %v4609, %v4689
      %v4710 = vmul.f32 %v4690, 0.7978846
      %v4711 = vmul.f32 %v4691, 0.7978846
      %v4712 = vmul.f32 %v4692, 0.7978846
      %v4713 = vmul.f32 %v4693, 0.7978846
      %v4714 = vmul.f32 %v4694, 0.7978846
      %v4715 = vmul.f32 %v4695, 0.7978846
      %v4716 = vmul.f32 %v4696, 0.7978846
      %v4717 = vmul.f32 %v4697, 0.7978846
      %v4718 = vmul.f32 %v4698, 0.7978846
      %v4719 = vmul.f32 %v4699, 0.7978846
      %v4720 = vmul.f32 %v4700, 0.7978846
      %v4721 = vmul.f32 %v4701, 0.7978846
      %v4722 = vmul.f32 %v4702, 0.7978846
      %v4723 = vmul.f32 %v4703, 0.7978846
      %v4724 = vmul.f32 %v4704, 0.7978846
      %v4725 = vmul.f32 %v4705, 0.7978846
      %v4726 = vmul.f32 %v4706, 0.7978846
      %v4727 = vmul.f32 %v4707, 0.7978846
      %v4728 = vmul.f32 %v4708, 0.7978846
      %v4729 = vmul.f32 %v4709, 0.7978846
      %v4730 = vtanh.pop %v4710
      %v4731 = vtanh.pop %v4711
      %v4732 = vtanh.pop %v4712
      %v4733 = vtanh.pop %v4713
      %v4734 = vtanh.pop %v4714
      %v4735 = vtanh.pop %v4715
      %v4736 = vtanh.pop %v4716
      %v4737 = vtanh.pop %v4717
      %v4738 = vtanh.pop %v4718
      %v4739 = vtanh.pop %v4719
      %v4740 = vtanh.pop %v4720
      %v4741 = vtanh.pop %v4721
      %v4742 = vtanh.pop %v4722
      %v4743 = vtanh.pop %v4723
      %v4744 = vtanh.pop %v4724
      %v4745 = vtanh.pop %v4725
      %v4746 = vtanh.pop %v4726
      %v4747 = vtanh.pop %v4727
      %v4748 = vtanh.pop %v4728
      %v4749 = vtanh.pop %v4729
      %v4750 = vadd.f32 %v4730, 1.0
      %v4751 = vadd.f32 %v4731, 1.0
      %v4752 = vadd.f32 %v4732, 1.0
      %v4753 = vadd.f32 %v4733, 1.0
      %v4754 = vadd.f32 %v4734, 1.0
      %v4755 = vadd.f32 %v4735, 1.0
      %v4756 = vadd.f32 %v4736, 1.0
      %v4757 = vadd.f32 %v4737, 1.0
      %v4758 = vadd.f32 %v4738, 1.0
      %v4759 = vadd.f32 %v4739, 1.0
      %v4760 = vadd.f32 %v4740, 1.0
      %v4761 = vadd.f32 %v4741, 1.0
      %v4762 = vadd.f32 %v4742, 1.0
      %v4763 = vadd.f32 %v4743, 1.0
      %v4764 = vadd.f32 %v4744, 1.0
      %v4765 = vadd.f32 %v4745, 1.0
      %v4766 = vadd.f32 %v4746, 1.0
      %v4767 = vadd.f32 %v4747, 1.0
      %v4768 = vadd.f32 %v4748, 1.0
      %v4769 = vadd.f32 %v4749, 1.0
      %v4770 = vmul.f32 %v4610, %v4750
      %v4771 = vmul.f32 %v4611, %v4751
      %v4772 = vmul.f32 %v4612, %v4752
      %v4773 = vmul.f32 %v4613, %v4753
      %v4774 = vmul.f32 %v4614, %v4754
      %v4775 = vmul.f32 %v4615, %v4755
      %v4776 = vmul.f32 %v4616, %v4756
      %v4777 = vmul.f32 %v4617, %v4757
      %v4778 = vmul.f32 %v4618, %v4758
      %v4779 = vmul.f32 %v4619, %v4759
      %v4780 = vmul.f32 %v4620, %v4760
      %v4781 = vmul.f32 %v4621, %v4761
      %v4782 = vmul.f32 %v4622, %v4762
      %v4783 = vmul.f32 %v4623, %v4763
      %v4784 = vmul.f32 %v4624, %v4764
      %v4785 = vmul.f32 %v4625, %v4765
      %v4786 = vmul.f32 %v4626, %v4766
      %v4787 = vmul.f32 %v4627, %v4767
      %v4788 = vmul.f32 %v4628, %v4768
      %v4789 = vmul.f32 %v4629, %v4769
      %4790 = vst.msk [vmem:[#allocation2] sm:$0xff] %vm1273, %v4770
      %4791 = vst.msk [vmem:[#allocation2 + $0x8] sm:$0xff] %vm1273, %v4771
      %4792 = vst.msk [vmem:[#allocation2 + $0x10] sm:$0xff] %vm1273, %v4772
      %4793 = vst.msk [vmem:[#allocation2 + $0x18] sm:$0xff] %vm1273, %v4773
      %4794 = vst.msk [vmem:[#allocation2 + $0x20] sm:$0xff] %vm1273, %v4774
      %4795 = vst.msk [vmem:[#allocation2 + $0x28] sm:$0xff] %vm1273, %v4775
      %4796 = vst.msk [vmem:[#allocation2 + $0x30] sm:$0xff] %vm1273, %v4776
      %4797 = vst.msk [vmem:[#allocation2 + $0x38] sm:$0xff] %vm1273, %v4777
      %4798 = vst.msk [vmem:[#allocation2 + $0x40] sm:$0xff] %vm1273, %v4778
      %4799 = vst.msk [vmem:[#allocation2 + $0x48] sm:$0xff] %vm1273, %v4779
      %4800 = vst.msk [vmem:[#allocation2 + $0x50] sm:$0xff] %vm1273, %v4780
      %4801 = vst.msk [vmem:[#allocation2 + $0x58] sm:$0xff] %vm1273, %v4781
      %4802 = vst.msk [vmem:[#allocation2 + $0x60] sm:$0xff] %vm1273, %v4782
      %4803 = vst.msk [vmem:[#allocation2 + $0x68] sm:$0xff] %vm1273, %v4783
      %4804 = vst.msk [vmem:[#allocation2 + $0x70] sm:$0xff] %vm1273, %v4784
      %4805 = vst.msk [vmem:[#allocation2 + $0x78] sm:$0xff] %vm1273, %v4785
      %4806 = vst.msk [vmem:[#allocation2 + $0x80] sm:$0xff] %vm1273, %v4786
      %4807 = vst.msk [vmem:[#allocation2 + $0x88] sm:$0xff] %vm1273, %v4787
      %4808 = vst.msk [vmem:[#allocation2 + $0x90] sm:$0xff] %vm1273, %v4788
      %4809 = vst.msk [vmem:[#allocation2 + $0x98] sm:$0x7f] %vm1431, %v4789
      %v4810 = vld [vmem:[#allocation2] ss:$2 sm:$0xff]
      %v4811 = vld [vmem:[%s2834] ss:$2 sm:$0xff]
      %v4812 = vld [vmem:[%s2836] ss:$2 sm:$0xff]
      %v4813 = vld [vmem:[%s2838] ss:$2 sm:$0xff]
      %v4814 = vld [vmem:[%s2840] ss:$2 sm:$0xff]
      %v4815 = vld [vmem:[%s2842] ss:$2 sm:$0xff]
      %v4816 = vld [vmem:[%s2844] ss:$2 sm:$0xff]
      %v4817 = vld [vmem:[%s2846] ss:$2 sm:$0xff]
      %v4818 = vld [vmem:[%s2848] ss:$2 sm:$0xff]
      %v4819 = vld [vmem:[%s2850] ss:$2 sm:$0x7f]
      %v4820 = vpack.c.bf16 %v4811, %v4810
      %v4821 = vpack.c.bf16 %v4813, %v4812
      %v4822 = vpack.c.bf16 %v4815, %v4814
      %v4823 = vpack.c.bf16 %v4817, %v4816
      %v4824 = vpack.c.bf16 %v4819, %v4818
      %v4825 = vld [vmem:[%s4] sm:$0xf]
      %v4826 = vld [vmem:[%s4 + $0x4] sm:$0xf]
      %v4827 = vld [vmem:[%s4 + $0x8] sm:$0xf]
      %v4828 = vld [vmem:[%s2935] ss:$2 sm:$0xff]
      %v4829 = vld [vmem:[%s2937] ss:$2 sm:$0xff]
      %v4830 = vld [vmem:[%s2939] ss:$2 sm:$0xff]
      %v4831 = vld [vmem:[%s2941] ss:$2 sm:$0xff]
      %v4832 = vld [vmem:[%s2943] ss:$2 sm:$0xff]
      %v4833 = vld [vmem:[%s2945] ss:$2 sm:$0xff]
      %v4834 = vld [vmem:[%s2947] ss:$2 sm:$0xff]
      %v4835 = vld [vmem:[%s2949] ss:$2 sm:$0xff]
      %v4836 = vld [vmem:[%s2951] ss:$2 sm:$0xff]
      %v4837 = vld [vmem:[%s2953] ss:$2 sm:$0x7f]
      %v4838 = vpack.c.bf16 %v4829, %v4828
      %v4839 = vpack.c.bf16 %v4831, %v4830
      %v4840 = vpack.c.bf16 %v4833, %v4832
      %v4841 = vpack.c.bf16 %v4835, %v4834
      %v4842 = vpack.c.bf16 %v4837, %v4836
      %s4843 = scalar_lea.vmem %s4, 12
      %v4844 = vld [vmem:[%s4843] sm:$0xf]
      %v4845 = vld [vmem:[%s4843 + $0x4] sm:$0xf]
      %v4846 = vld [vmem:[%s4843 + $0x8] sm:$0xf]
      %v4850 = vunpack.c.l.b16 %v4844
      %v4851 = vunpack.c.l.b16 %v4845
      %v4852 = vunpack.c.l.b16 %v4846
      %v4853 = vpack.c.b16 %v4851, %v4850
      %v4854 = vpack.c.b16 %v4852, %v4852
      %v4857 = vsel %vm1273, %v4838, 0
      %v4860 = vsel %vm1273, %v4839, 0
      %v4863 = vsel %vm1273, %v4840, 0
      %v4866 = vsel %vm1273, %v4841, 0
      %v4869 = vsel %vm1273, %v4842, 0
      %v4872 = vsel %vm3108, %v4854, 0
      %4874 = vmatpush.bf16.msra.mxu0 0
      %4875 = vmatpush.bf16.msra.mxu0 0
      %4876 = vmatpush.bf16.msra.mxu0 0
      %4877 = vmatpush.bf16.msra.mxu0 0
      %4878 = vmatpush.bf16.msra.mxu0 0
      %4879 = vmatpush.bf16.msra.mxu0 0
      %4880 = vmatpush.bf16.msra.mxu0 %v4872
      %4881 = vmatpush.bf16.msra.mxu0 %v4853
      %4882 = vmatmul.bf16.gmra.mxu0 %v4857
      %v4883 = vpop.f32.mrf.mxu0
      %v4884 = vadd.f32 0.0, %v4883
      %v4885 = vpop.f32.mrf.mxu0
      %v4886 = vadd.f32 0.0, %v4885
      %4887 = vmatmul.bf16.gmra.mxu0 %v4860
      %v4888 = vpop.f32.mrf.mxu0
      %v4889 = vadd.f32 0.0, %v4888
      %v4890 = vpop.f32.mrf.mxu0
      %v4891 = vadd.f32 0.0, %v4890
      %4892 = vmatmul.bf16.gmra.mxu0 %v4863
      %v4893 = vpop.f32.mrf.mxu0
      %v4894 = vadd.f32 0.0, %v4893
      %v4895 = vpop.f32.mrf.mxu0
      %v4896 = vadd.f32 0.0, %v4895
      %4897 = vmatmul.bf16.gmra.mxu0 %v4866
      %v4898 = vpop.f32.mrf.mxu0
      %v4899 = vadd.f32 0.0, %v4898
      %v4900 = vpop.f32.mrf.mxu0
      %v4901 = vadd.f32 0.0, %v4900
      %4902 = vmatmul.bf16.gmra.mxu0 %v4869
      %v4903 = vpop.f32.mrf.mxu0
      %v4904 = vadd.f32 0.0, %v4903
      %v4905 = vpop.f32.mrf.mxu0
      %v4906 = vadd.f32 0.0, %v4905
      %4907 = vdwg.mxu0
      %v4911 = vunpack.c.l.b16 %v4825
      %v4912 = vunpack.c.l.b16 %v4826
      %v4913 = vunpack.c.l.b16 %v4827
      %v4914 = vpack.c.b16 %v4912, %v4911
      %v4915 = vpack.c.b16 %v4913, %v4913
      %v4918 = vsel %vm1273, %v4820, 0
      %v4921 = vsel %vm1273, %v4821, 0
      %v4924 = vsel %vm1273, %v4822, 0
      %v4927 = vsel %vm1273, %v4823, 0
      %v4930 = vsel %vm1273, %v4824, 0
      %v4933 = vsel %vm3108, %v4915, 0
      %4935 = vmatpush.bf16.msra.mxu0 0
      %4936 = vmatpush.bf16.msra.mxu0 0
      %4937 = vmatpush.bf16.msra.mxu0 0
      %4938 = vmatpush.bf16.msra.mxu0 0
      %4939 = vmatpush.bf16.msra.mxu0 0
      %4940 = vmatpush.bf16.msra.mxu0 0
      %4941 = vmatpush.bf16.msra.mxu0 %v4933
      %4942 = vmatpush.bf16.msra.mxu0 %v4914
      %4943 = vmatmul.bf16.gmra.mxu0 %v4918
      %v4944 = vpop.f32.mrf.mxu0
      %v4945 = vadd.f32 %v4884, %v4944
      %v4946 = vpop.f32.mrf.mxu0
      %v4947 = vadd.f32 %v4886, %v4946
      %4948 = vmatmul.bf16.gmra.mxu0 %v4921
      %v4949 = vpop.f32.mrf.mxu0
      %v4950 = vadd.f32 %v4889, %v4949
      %v4951 = vpop.f32.mrf.mxu0
      %v4952 = vadd.f32 %v4891, %v4951
      %4953 = vmatmul.bf16.gmra.mxu0 %v4924
      %v4954 = vpop.f32.mrf.mxu0
      %v4955 = vadd.f32 %v4894, %v4954
      %v4956 = vpop.f32.mrf.mxu0
      %v4957 = vadd.f32 %v4896, %v4956
      %4958 = vmatmul.bf16.gmra.mxu0 %v4927
      %v4959 = vpop.f32.mrf.mxu0
      %v4960 = vadd.f32 %v4899, %v4959
      %v4961 = vpop.f32.mrf.mxu0
      %v4962 = vadd.f32 %v4901, %v4961
      %4963 = vmatmul.bf16.gmra.mxu0 %v4930
      %v4964 = vpop.f32.mrf.mxu0
      %v4965 = vadd.f32 %v4904, %v4964
      %v4966 = vpop.f32.mrf.mxu0
      %v4967 = vadd.f32 %v4906, %v4966
      %4968 = vdwg.mxu0
      %v4969 = vld [vmem:[%s3402] ss:$2 sm:$0xff]
      %v4970 = vld [vmem:[%s3404] ss:$2 sm:$0xff]
      %v4971 = vld [vmem:[%s3406] ss:$2 sm:$0xff]
      %v4972 = vld [vmem:[%s3408] ss:$2 sm:$0xff]
      %v4973 = vld [vmem:[%s3410] ss:$2 sm:$0xff]
      %v4974 = vld [vmem:[%s3412] ss:$2 sm:$0xff]
      %v4975 = vld [vmem:[%s3414] ss:$2 sm:$0xff]
      %v4976 = vld [vmem:[%s3416] ss:$2 sm:$0xff]
      %v4977 = vld [vmem:[%s3418] ss:$2 sm:$0xff]
      %v4978 = vld [vmem:[%s3420] ss:$2 sm:$0x7f]
      %v4979 = vpack.c.bf16 %v4970, %v4969
      %v4980 = vpack.c.bf16 %v4972, %v4971
      %v4981 = vpack.c.bf16 %v4974, %v4973
      %v4982 = vpack.c.bf16 %v4976, %v4975
      %v4983 = vpack.c.bf16 %v4978, %v4977
      %s4984 = scalar_lea.vmem %s4, 24
      %v4985 = vld [vmem:[%s4984] sm:$0xf]
      %v4986 = vld [vmem:[%s4984 + $0x4] sm:$0xf]
      %v4987 = vld [vmem:[%s4984 + $0x8] sm:$0xf]
      %v4991 = vunpack.c.l.b16 %v4985
      %v4992 = vunpack.c.l.b16 %v4986
      %v4993 = vunpack.c.l.b16 %v4987
      %v4994 = vpack.c.b16 %v4992, %v4991
      %v4995 = vpack.c.b16 %v4993, %v4993
      %v4998 = vsel %vm1273, %v4979, 0
      %v5001 = vsel %vm1273, %v4980, 0
      %v5004 = vsel %vm1273, %v4981, 0
      %v5007 = vsel %vm1273, %v4982, 0
      %v5010 = vsel %vm1273, %v4983, 0
      %v5013 = vsel %vm3108, %v4995, 0
      %5015 = vmatpush.bf16.msra.mxu0 0
      %5016 = vmatpush.bf16.msra.mxu0 0
      %5017 = vmatpush.bf16.msra.mxu0 0
      %5018 = vmatpush.bf16.msra.mxu0 0
      %5019 = vmatpush.bf16.msra.mxu0 0
      %5020 = vmatpush.bf16.msra.mxu0 0
      %5021 = vmatpush.bf16.msra.mxu0 %v5013
      %5022 = vmatpush.bf16.msra.mxu0 %v4994
      %5023 = vmatmul.bf16.gmra.mxu0 %v4998
      %v5024 = vpop.f32.mrf.mxu0
      %v5025 = vadd.f32 0.0, %v5024
      %v5026 = vpop.f32.mrf.mxu0
      %v5027 = vadd.f32 0.0, %v5026
      %5028 = vmatmul.bf16.gmra.mxu0 %v5001
      %v5029 = vpop.f32.mrf.mxu0
      %v5030 = vadd.f32 0.0, %v5029
      %v5031 = vpop.f32.mrf.mxu0
      %v5032 = vadd.f32 0.0, %v5031
      %5033 = vmatmul.bf16.gmra.mxu0 %v5004
      %v5034 = vpop.f32.mrf.mxu0
      %v5035 = vadd.f32 0.0, %v5034
      %v5036 = vpop.f32.mrf.mxu0
      %v5037 = vadd.f32 0.0, %v5036
      %5038 = vmatmul.bf16.gmra.mxu0 %v5007
      %v5039 = vpop.f32.mrf.mxu0
      %v5040 = vadd.f32 0.0, %v5039
      %v5041 = vpop.f32.mrf.mxu0
      %v5042 = vadd.f32 0.0, %v5041
      %5043 = vmatmul.bf16.gmra.mxu0 %v5010
      %v5044 = vpop.f32.mrf.mxu0
      %v5045 = vadd.f32 0.0, %v5044
      %v5046 = vpop.f32.mrf.mxu0
      %v5047 = vadd.f32 0.0, %v5046
      %5048 = vdwg.mxu0
      %v5049 = vadd.f32 %v4945, %v5025
      %v5050 = vadd.f32 %v4947, %v5027
      %v5051 = vadd.f32 %v4950, %v5030
      %v5052 = vadd.f32 %v4952, %v5032
      %v5053 = vadd.f32 %v4955, %v5035
      %v5054 = vadd.f32 %v4957, %v5037
      %v5055 = vadd.f32 %v4960, %v5040
      %v5056 = vadd.f32 %v4962, %v5042
      %v5057 = vadd.f32 %v4965, %v5045
      %v5058 = vadd.f32 %v4967, %v5047
      %v5059 = vmul.f32 %v5049, 0.5
      %v5060 = vmul.f32 %v5050, 0.5
      %v5061 = vmul.f32 %v5051, 0.5
      %v5062 = vmul.f32 %v5052, 0.5
      %v5063 = vmul.f32 %v5053, 0.5
      %v5064 = vmul.f32 %v5054, 0.5
      %v5065 = vmul.f32 %v5055, 0.5
      %v5066 = vmul.f32 %v5056, 0.5
      %v5067 = vmul.f32 %v5057, 0.5
      %v5068 = vmul.f32 %v5058, 0.5
      %v5069 = vmul.f32 %v5049, 0.044715
      %v5070 = vmul.f32 %v5050, 0.044715
      %v5071 = vmul.f32 %v5051, 0.044715
      %v5072 = vmul.f32 %v5052, 0.044715
      %v5073 = vmul.f32 %v5053, 0.044715
      %v5074 = vmul.f32 %v5054, 0.044715
      %v5075 = vmul.f32 %v5055, 0.044715
      %v5076 = vmul.f32 %v5056, 0.044715
      %v5077 = vmul.f32 %v5057, 0.044715
      %v5078 = vmul.f32 %v5058, 0.044715
      %v5079 = vmul.f32 %v5069, %v5049
      %v5080 = vmul.f32 %v5070, %v5050
      %v5081 = vmul.f32 %v5071, %v5051
      %v5082 = vmul.f32 %v5072, %v5052
      %v5083 = vmul.f32 %v5073, %v5053
      %v5084 = vmul.f32 %v5074, %v5054
      %v5085 = vmul.f32 %v5075, %v5055
      %v5086 = vmul.f32 %v5076, %v5056
      %v5087 = vmul.f32 %v5077, %v5057
      %v5088 = vmul.f32 %v5078, %v5058
      %v5089 = vmul.f32 %v5079, %v5049
      %v5090 = vmul.f32 %v5080, %v5050
      %v5091 = vmul.f32 %v5081, %v5051
      %v5092 = vmul.f32 %v5082, %v5052
      %v5093 = vmul.f32 %v5083, %v5053
      %v5094 = vmul.f32 %v5084, %v5054
      %v5095 = vmul.f32 %v5085, %v5055
      %v5096 = vmul.f32 %v5086, %v5056
      %v5097 = vmul.f32 %v5087, %v5057
      %v5098 = vmul.f32 %v5088, %v5058
      %v5099 = vadd.f32 %v5049, %v5089
      %v5100 = vadd.f32 %v5050, %v5090
      %v5101 = vadd.f32 %v5051, %v5091
      %v5102 = vadd.f32 %v5052, %v5092
      %v5103 = vadd.f32 %v5053, %v5093
      %v5104 = vadd.f32 %v5054, %v5094
      %v5105 = vadd.f32 %v5055, %v5095
      %v5106 = vadd.f32 %v5056, %v5096
      %v5107 = vadd.f32 %v5057, %v5097
      %v5108 = vadd.f32 %v5058, %v5098
      %v5109 = vmul.f32 %v5099, 0.7978846
      %v5110 = vmul.f32 %v5100, 0.7978846
      %v5111 = vmul.f32 %v5101, 0.7978846
      %v5112 = vmul.f32 %v5102, 0.7978846
      %v5113 = vmul.f32 %v5103, 0.7978846
      %v5114 = vmul.f32 %v5104, 0.7978846
      %v5115 = vmul.f32 %v5105, 0.7978846
      %v5116 = vmul.f32 %v5106, 0.7978846
      %v5117 = vmul.f32 %v5107, 0.7978846
      %v5118 = vmul.f32 %v5108, 0.7978846
      %v5119 = vtanh.pop %v5109
      %v5120 = vtanh.pop %v5110
      %v5121 = vtanh.pop %v5111
      %v5122 = vtanh.pop %v5112
      %v5123 = vtanh.pop %v5113
      %v5124 = vtanh.pop %v5114
      %v5125 = vtanh.pop %v5115
      %v5126 = vtanh.pop %v5116
      %v5127 = vtanh.pop %v5117
      %v5128 = vtanh.pop %v5118
      %v5129 = vadd.f32 %v5119, 1.0
      %v5130 = vadd.f32 %v5120, 1.0
      %v5131 = vadd.f32 %v5121, 1.0
      %v5132 = vadd.f32 %v5122, 1.0
      %v5133 = vadd.f32 %v5123, 1.0
      %v5134 = vadd.f32 %v5124, 1.0
      %v5135 = vadd.f32 %v5125, 1.0
      %v5136 = vadd.f32 %v5126, 1.0
      %v5137 = vadd.f32 %v5127, 1.0
      %v5138 = vadd.f32 %v5128, 1.0
      %v5139 = vmul.f32 %v5059, %v5129
      %v5140 = vmul.f32 %v5060, %v5130
      %v5141 = vmul.f32 %v5061, %v5131
      %v5142 = vmul.f32 %v5062, %v5132
      %v5143 = vmul.f32 %v5063, %v5133
      %v5144 = vmul.f32 %v5064, %v5134
      %v5145 = vmul.f32 %v5065, %v5135
      %v5146 = vmul.f32 %v5066, %v5136
      %v5147 = vmul.f32 %v5067, %v5137
      %v5148 = vmul.f32 %v5068, %v5138
      %5149 = vst.msk [vmem:[#allocation3] sm:$0xff] %vm1273, %v5139
      %5150 = vst.msk [vmem:[#allocation3 + $0x8] sm:$0xff] %vm1273, %v5140
      %5151 = vst.msk [vmem:[#allocation3 + $0x10] sm:$0xff] %vm1273, %v5141
      %5152 = vst.msk [vmem:[#allocation3 + $0x18] sm:$0xff] %vm1273, %v5142
      %5153 = vst.msk [vmem:[#allocation3 + $0x20] sm:$0xff] %vm1273, %v5143
      %5154 = vst.msk [vmem:[#allocation3 + $0x28] sm:$0xff] %vm1273, %v5144
      %5155 = vst.msk [vmem:[#allocation3 + $0x30] sm:$0xff] %vm1273, %v5145
      %5156 = vst.msk [vmem:[#allocation3 + $0x38] sm:$0xff] %vm1273, %v5146
      %5157 = vst.msk [vmem:[#allocation3 + $0x40] sm:$0xff] %vm1273, %v5147
      %5158 = vst.msk [vmem:[#allocation3 + $0x48] sm:$0x7f] %vm1431, %v5148
      %v5159 = vld [vmem:[#allocation3] ss:$2 sm:$0xff]
      %v5160 = vld [vmem:[%s4128] ss:$2 sm:$0xff]
      %v5161 = vld [vmem:[%s4130] ss:$2 sm:$0xff]
      %v5162 = vld [vmem:[%s4132] ss:$2 sm:$0xff]
      %v5163 = vld [vmem:[%s4134] ss:$2 sm:$0x7f]
      %v5164 = vpack.c.bf16 %v5160, %v5159
      %v5165 = vpack.c.bf16 %v5162, %v5161
      %v5166 = vpack.c.bf16 %v5163, %v5163
      %v5167 = vld [vmem:[%s5] sm:$0xf]
      %v5168 = vld [vmem:[%s5 + $0x4] sm:$0xf]
      %v5169 = vld [vmem:[%s5 + $0x8] sm:$0xf]
      %v5170 = vld [vmem:[%s4179] ss:$2 sm:$0xff]
      %v5171 = vld [vmem:[%s4181] ss:$2 sm:$0xff]
      %v5172 = vld [vmem:[%s4183] ss:$2 sm:$0xff]
      %v5173 = vld [vmem:[%s4185] ss:$2 sm:$0xff]
      %v5174 = vld [vmem:[%s4187] ss:$2 sm:$0x7f]
      %v5175 = vpack.c.bf16 %v5171, %v5170
      %v5176 = vpack.c.bf16 %v5173, %v5172
      %v5177 = vpack.c.bf16 %v5174, %v5174
      %s5178 = scalar_lea.vmem %s5, 12
      %v5179 = vld [vmem:[%s5178] sm:$0xf]
      %v5180 = vld [vmem:[%s5178 + $0x4] sm:$0xf]
      %v5181 = vld [vmem:[%s5178 + $0x8] sm:$0xf]
      %v5185 = vunpack.c.l.b16 %v5179
      %v5186 = vunpack.c.l.b16 %v5180
      %v5187 = vunpack.c.l.b16 %v5181
      %v5188 = vpack.c.b16 %v5186, %v5185
      %v5189 = vpack.c.b16 %v5187, %v5187
      %v5192 = vsel %vm1273, %v5175, 0
      %v5195 = vsel %vm1273, %v5176, 0
      %v5198 = vsel %vm1273, %v5177, 0
      %v5201 = vsel %vm3108, %v5189, 0
      %5203 = vmatpush.bf16.msra.mxu0 0
      %5204 = vmatpush.bf16.msra.mxu0 0
      %5205 = vmatpush.bf16.msra.mxu0 0
      %5206 = vmatpush.bf16.msra.mxu0 0
      %5207 = vmatpush.bf16.msra.mxu0 0
      %5208 = vmatpush.bf16.msra.mxu0 0
      %5209 = vmatpush.bf16.msra.mxu0 %v5201
      %5210 = vmatpush.bf16.msra.mxu0 %v5188
      %5211 = vmatmul.bf16.gmra.mxu0 %v5192
      %v5212 = vpop.f32.mrf.mxu0
      %v5213 = vadd.f32 0.0, %v5212
      %v5214 = vpop.f32.mrf.mxu0
      %v5215 = vadd.f32 0.0, %v5214
      %5216 = vmatmul.bf16.gmra.mxu0 %v5195
      %v5217 = vpop.f32.mrf.mxu0
      %v5218 = vadd.f32 0.0, %v5217
      %v5219 = vpop.f32.mrf.mxu0
      %v5220 = vadd.f32 0.0, %v5219
      %5221 = vmatmul.bf16.gmra.mxu0 %v5198
      %v5222 = vpop.f32.mrf.mxu0
      %v5223 = vadd.f32 0.0, %v5222
      %v5224 = vpop.f32.mrf.mxu0
      %5225 = vdwg.mxu0
      %v5229 = vunpack.c.l.b16 %v5167
      %v5230 = vunpack.c.l.b16 %v5168
      %v5231 = vunpack.c.l.b16 %v5169
      %v5232 = vpack.c.b16 %v5230, %v5229
      %v5233 = vpack.c.b16 %v5231, %v5231
      %v5236 = vsel %vm1273, %v5164, 0
      %v5239 = vsel %vm1273, %v5165, 0
      %v5242 = vsel %vm1273, %v5166, 0
      %v5245 = vsel %vm3108, %v5233, 0
      %5247 = vmatpush.bf16.msra.mxu0 0
      %5248 = vmatpush.bf16.msra.mxu0 0
      %5249 = vmatpush.bf16.msra.mxu0 0
      %5250 = vmatpush.bf16.msra.mxu0 0
      %5251 = vmatpush.bf16.msra.mxu0 0
      %5252 = vmatpush.bf16.msra.mxu0 0
      %5253 = vmatpush.bf16.msra.mxu0 %v5245
      %5254 = vmatpush.bf16.msra.mxu0 %v5232
      %5255 = vmatmul.bf16.gmra.mxu0 %v5236
      %v5256 = vpop.f32.mrf.mxu0
      %v5257 = vadd.f32 %v5213, %v5256
      %v5258 = vpop.f32.mrf.mxu0
      %v5259 = vadd.f32 %v5215, %v5258
      %5260 = vmatmul.bf16.gmra.mxu0 %v5239
      %v5261 = vpop.f32.mrf.mxu0
      %v5262 = vadd.f32 %v5218, %v5261
      %v5263 = vpop.f32.mrf.mxu0
      %v5264 = vadd.f32 %v5220, %v5263
      %5265 = vmatmul.bf16.gmra.mxu0 %v5242
      %v5266 = vpop.f32.mrf.mxu0
      %v5267 = vadd.f32 %v5223, %v5266
      %v5268 = vpop.f32.mrf.mxu0
      %5269 = vdwg.mxu0
      %v5270 = vld [vmem:[%s4435] ss:$2 sm:$0xff]
      %v5271 = vld [vmem:[%s4437] ss:$2 sm:$0xff]
      %v5272 = vld [vmem:[%s4439] ss:$2 sm:$0xff]
      %v5273 = vld [vmem:[%s4441] ss:$2 sm:$0xff]
      %v5274 = vld [vmem:[%s4443] ss:$2 sm:$0x7f]
      %v5275 = vpack.c.bf16 %v5271, %v5270
      %v5276 = vpack.c.bf16 %v5273, %v5272
      %v5277 = vpack.c.bf16 %v5274, %v5274
      %s5278 = scalar_lea.vmem %s5, 24
      %v5279 = vld [vmem:[%s5278] sm:$0xf]
      %v5280 = vld [vmem:[%s5278 + $0x4] sm:$0xf]
      %v5281 = vld [vmem:[%s5278 + $0x8] sm:$0xf]
      %v5285 = vunpack.c.l.b16 %v5279
      %v5286 = vunpack.c.l.b16 %v5280
      %v5287 = vunpack.c.l.b16 %v5281
      %v5288 = vpack.c.b16 %v5286, %v5285
      %v5289 = vpack.c.b16 %v5287, %v5287
      %v5292 = vsel %vm1273, %v5275, 0
      %v5295 = vsel %vm1273, %v5276, 0
      %v5298 = vsel %vm1273, %v5277, 0
      %v5301 = vsel %vm3108, %v5289, 0
      %5303 = vmatpush.bf16.msra.mxu0 0
      %5304 = vmatpush.bf16.msra.mxu0 0
      %5305 = vmatpush.bf16.msra.mxu0 0
      %5306 = vmatpush.bf16.msra.mxu0 0
      %5307 = vmatpush.bf16.msra.mxu0 0
      %5308 = vmatpush.bf16.msra.mxu0 0
      %5309 = vmatpush.bf16.msra.mxu0 %v5301
      %5310 = vmatpush.bf16.msra.mxu0 %v5288
      %5311 = vmatmul.bf16.gmra.mxu0 %v5292
      %v5312 = vpop.f32.mrf.mxu0
      %v5313 = vadd.f32 0.0, %v5312
      %v5314 = vpop.f32.mrf.mxu0
      %v5315 = vadd.f32 0.0, %v5314
      %5316 = vmatmul.bf16.gmra.mxu0 %v5295
      %v5317 = vpop.f32.mrf.mxu0
      %v5318 = vadd.f32 0.0, %v5317
      %v5319 = vpop.f32.mrf.mxu0
      %v5320 = vadd.f32 0.0, %v5319
      %5321 = vmatmul.bf16.gmra.mxu0 %v5298
      %v5322 = vpop.f32.mrf.mxu0
      %v5323 = vadd.f32 0.0, %v5322
      %v5324 = vpop.f32.mrf.mxu0
      %5325 = vdwg.mxu0
      %v5326 = vadd.f32 %v5257, %v5313
      %v5327 = vadd.f32 %v5259, %v5315
      %v5328 = vadd.f32 %v5262, %v5318
      %v5329 = vadd.f32 %v5264, %v5320
      %v5330 = vadd.f32 %v5267, %v5323
      %v5331 = vmul.f32 %v5326, 0.5
      %v5332 = vmul.f32 %v5327, 0.5
      %v5333 = vmul.f32 %v5328, 0.5
      %v5334 = vmul.f32 %v5329, 0.5
      %v5335 = vmul.f32 %v5330, 0.5
      %v5336 = vmul.f32 %v5326, 0.044715
      %v5337 = vmul.f32 %v5327, 0.044715
      %v5338 = vmul.f32 %v5328, 0.044715
      %v5339 = vmul.f32 %v5329, 0.044715
      %v5340 = vmul.f32 %v5330, 0.044715
      %v5341 = vmul.f32 %v5336, %v5326
      %v5342 = vmul.f32 %v5337, %v5327
      %v5343 = vmul.f32 %v5338, %v5328
      %v5344 = vmul.f32 %v5339, %v5329
      %v5345 = vmul.f32 %v5340, %v5330
      %v5346 = vmul.f32 %v5341, %v5326
      %v5347 = vmul.f32 %v5342, %v5327
      %v5348 = vmul.f32 %v5343, %v5328
      %v5349 = vmul.f32 %v5344, %v5329
      %v5350 = vmul.f32 %v5345, %v5330
      %v5351 = vadd.f32 %v5326, %v5346
      %v5352 = vadd.f32 %v5327, %v5347
      %v5353 = vadd.f32 %v5328, %v5348
      %v5354 = vadd.f32 %v5329, %v5349
      %v5355 = vadd.f32 %v5330, %v5350
      %v5356 = vmul.f32 %v5351, 0.7978846
      %v5357 = vmul.f32 %v5352, 0.7978846
      %v5358 = vmul.f32 %v5353, 0.7978846
      %v5359 = vmul.f32 %v5354, 0.7978846
      %v5360 = vmul.f32 %v5355, 0.7978846
      %v5361 = vtanh.pop %v5356
      %v5362 = vtanh.pop %v5357
      %v5363 = vtanh.pop %v5358
      %v5364 = vtanh.pop %v5359
      %v5365 = vtanh.pop %v5360
      %v5366 = vadd.f32 %v5361, 1.0
      %v5367 = vadd.f32 %v5362, 1.0
      %v5368 = vadd.f32 %v5363, 1.0
      %v5369 = vadd.f32 %v5364, 1.0
      %v5370 = vadd.f32 %v5365, 1.0
      %v5371 = vmul.f32 %v5331, %v5366
      %v5372 = vmul.f32 %v5332, %v5367
      %v5373 = vmul.f32 %v5333, %v5368
      %v5374 = vmul.f32 %v5334, %v5369
      %v5375 = vmul.f32 %v5335, %v5370
      %5376 = vst.msk [vmem:[#allocation2] sm:$0xff] %vm1273, %v5371
      %5377 = vst.msk [vmem:[#allocation2 + $0x8] sm:$0xff] %vm1273, %v5372
      %5378 = vst.msk [vmem:[#allocation2 + $0x10] sm:$0xff] %vm1273, %v5373
      %5379 = vst.msk [vmem:[#allocation2 + $0x18] sm:$0xff] %vm1273, %v5374
      %5380 = vst.msk [vmem:[#allocation2 + $0x20] sm:$0x7f] %vm1431, %v5375
      %v5381 = vld [vmem:[#allocation2] ss:$2 sm:$0xff]
      %v5382 = vld [vmem:[%s2834] ss:$2 sm:$0xff]
      %v5383 = vld [vmem:[%s2836] ss:$2 sm:$0x7]
      %v5384 = vpack.c.bf16 %v5382, %v5381
      %v5385 = vpack.c.bf16 %v5383, %v5383
      %v5386 = vld [vmem:[%s6] sm:$0xf]
      %v5387 = vld [vmem:[%s6 + $0x4] sm:$0xf]
      %v5388 = vld [vmem:[%s6 + $0x8] sm:$0xf]
      %v5389 = vld [vmem:[%s2935] ss:$2 sm:$0xff]
      %v5390 = vld [vmem:[%s2937] ss:$2 sm:$0xff]
      %v5391 = vld [vmem:[%s2939] ss:$2 sm:$0x7]
      %v5392 = vpack.c.bf16 %v5390, %v5389
      %v5393 = vpack.c.bf16 %v5391, %v5391
      %s5394 = scalar_lea.vmem %s6, 12
      %v5395 = vld [vmem:[%s5394] sm:$0xf]
      %v5396 = vld [vmem:[%s5394 + $0x4] sm:$0xf]
      %v5397 = vld [vmem:[%s5394 + $0x8] sm:$0xf]
      %v5401 = vunpack.c.l.b16 %v5395
      %v5402 = vunpack.c.l.b16 %v5396
      %v5403 = vunpack.c.l.b16 %v5397
      %v5404 = vpack.c.b16 %v5402, %v5401
      %v5405 = vpack.c.b16 %v5403, %v5403
      %v5408 = vsel %vm1273, %v5392, 0
      %v5411 = vsel %vm1273, %v5393, 0
      %v5414 = vsel %vm3108, %v5405, 0
      %5416 = vmatpush.bf16.msra.mxu0 0
      %5417 = vmatpush.bf16.msra.mxu0 0
      %5418 = vmatpush.bf16.msra.mxu0 0
      %5419 = vmatpush.bf16.msra.mxu0 0
      %5420 = vmatpush.bf16.msra.mxu0 0
      %5421 = vmatpush.bf16.msra.mxu0 0
      %5422 = vmatpush.bf16.msra.mxu0 %v5414
      %5423 = vmatpush.bf16.msra.mxu0 %v5404
      %5424 = vmatmul.bf16.gmra.mxu0 %v5408
      %v5425 = vpop.f32.mrf.mxu0
      %v5426 = vadd.f32 0.0, %v5425
      %v5427 = vpop.f32.mrf.mxu0
      %v5428 = vadd.f32 0.0, %v5427
      %5429 = vmatmul.bf16.gmra.mxu0 %v5411
      %v5430 = vpop.f32.mrf.mxu0
      %v5431 = vadd.f32 0.0, %v5430
      %v5432 = vpop.f32.mrf.mxu0
      %5433 = vdwg.mxu0
      %v5437 = vunpack.c.l.b16 %v5386
      %v5438 = vunpack.c.l.b16 %v5387
      %v5439 = vunpack.c.l.b16 %v5388
      %v5440 = vpack.c.b16 %v5438, %v5437
      %v5441 = vpack.c.b16 %v5439, %v5439
      %v5444 = vsel %vm1273, %v5384, 0
      %v5447 = vsel %vm1273, %v5385, 0
      %v5450 = vsel %vm3108, %v5441, 0
      %5452 = vmatpush.bf16.msra.mxu0 0
      %5453 = vmatpush.bf16.msra.mxu0 0
      %5454 = vmatpush.bf16.msra.mxu0 0
      %5455 = vmatpush.bf16.msra.mxu0 0
      %5456 = vmatpush.bf16.msra.mxu0 0
      %5457 = vmatpush.bf16.msra.mxu0 0
      %5458 = vmatpush.bf16.msra.mxu0 %v5450
      %5459 = vmatpush.bf16.msra.mxu0 %v5440
      %5460 = vmatmul.bf16.gmra.mxu0 %v5444
      %v5461 = vpop.f32.mrf.mxu0
      %v5462 = vadd.f32 %v5426, %v5461
      %v5463 = vpop.f32.mrf.mxu0
      %v5464 = vadd.f32 %v5428, %v5463
      %5465 = vmatmul.bf16.gmra.mxu0 %v5447
      %v5466 = vpop.f32.mrf.mxu0
      %v5467 = vadd.f32 %v5431, %v5466
      %v5468 = vpop.f32.mrf.mxu0
      %5469 = vdwg.mxu0
      %v5470 = vmul.f32 %v5462, 0.5
      %v5471 = vmul.f32 %v5464, 0.5
      %v5472 = vmul.f32 %v5467, 0.5
      %v5473 = vmul.f32 %v5462, 0.044715
      %v5474 = vmul.f32 %v5464, 0.044715
      %v5475 = vmul.f32 %v5467, 0.044715
      %v5476 = vmul.f32 %v5473, %v5462
      %v5477 = vmul.f32 %v5474, %v5464
      %v5478 = vmul.f32 %v5475, %v5467
      %v5479 = vmul.f32 %v5476, %v5462
      %v5480 = vmul.f32 %v5477, %v5464
      %v5481 = vmul.f32 %v5478, %v5467
      %v5482 = vadd.f32 %v5462, %v5479
      %v5483 = vadd.f32 %v5464, %v5480
      %v5484 = vadd.f32 %v5467, %v5481
      %v5485 = vmul.f32 %v5482, 0.7978846
      %v5486 = vmul.f32 %v5483, 0.7978846
      %v5487 = vmul.f32 %v5484, 0.7978846
      %v5488 = vtanh.pop %v5485
      %v5489 = vtanh.pop %v5486
      %v5490 = vtanh.pop %v5487
      %v5491 = vadd.f32 %v5488, 1.0
      %v5492 = vadd.f32 %v5489, 1.0
      %v5493 = vadd.f32 %v5490, 1.0
      %v5494 = vmul.f32 %v5470, %v5491
      %v5495 = vmul.f32 %v5471, %v5492
      %v5496 = vmul.f32 %v5472, %v5493
      %5497 = vst.msk [vmem:[#allocation3] sm:$0xff] %vm1273, %v5494
      %5498 = vst.msk [vmem:[#allocation3 + $0x8] sm:$0xff] %vm1273, %v5495
      %vm5499 = vcmask 190464
      %5500 = vst.msk [vmem:[#allocation3 + $0x10] sm:$0x7] %vm5499, %v5496
      %v5501 = vld [vmem:[#allocation3] ss:$2 sm:$0xff]
      %v5502 = vld [vmem:[%s4128] ss:$2 sm:$0x1]
      %v5503 = vpack.c.bf16 %v5502, %v5501
      %v5504 = vld [vmem:[%s7] sm:$0xf]
      %v5505 = vld [vmem:[%s7 + $0x4] sm:$0xf]
      %v5506 = vld [vmem:[%s7 + $0x8] sm:$0xf]
      %v5507 = vld [vmem:[%s4179] ss:$2 sm:$0xff]
      %v5508 = vld [vmem:[%s4181] ss:$2 sm:$0x1]
      %v5509 = vpack.c.bf16 %v5508, %v5507
      %s5510 = scalar_lea.vmem %s7, 12
      %v5511 = vld [vmem:[%s5510] sm:$0xf]
      %v5512 = vld [vmem:[%s5510 + $0x4] sm:$0xf]
      %v5513 = vld [vmem:[%s5510 + $0x8] sm:$0xf]
      %v5517 = vunpack.c.l.b16 %v5511
      %v5518 = vunpack.c.l.b16 %v5512
      %v5519 = vunpack.c.l.b16 %v5513
      %v5520 = vpack.c.b16 %v5518, %v5517
      %v5521 = vpack.c.b16 %v5519, %v5519
      %v5524 = vsel %vm1273, %v5509, 0
      %v5527 = vsel %vm3108, %v5521, 0
      %5529 = vmatpush.bf16.msra.mxu0 0
      %5530 = vmatpush.bf16.msra.mxu0 0
      %5531 = vmatpush.bf16.msra.mxu0 0
      %5532 = vmatpush.bf16.msra.mxu0 0
      %5533 = vmatpush.bf16.msra.mxu0 0
      %5534 = vmatpush.bf16.msra.mxu0 0
      %5535 = vmatpush.bf16.msra.mxu0 %v5527
      %5536 = vmatpush.bf16.msra.mxu0 %v5520
      %5537 = vmatmul.bf16.gmra.mxu0 %v5524
      %v5538 = vpop.f32.mrf.mxu0
      %v5539 = vadd.f32 0.0, %v5538
      %v5540 = vpop.f32.mrf.mxu0
      %v5541 = vadd.f32 0.0, %v5540
      %5542 = vdwg.mxu0
      %v5546 = vunpack.c.l.b16 %v5504
      %v5547 = vunpack.c.l.b16 %v5505
      %v5548 = vunpack.c.l.b16 %v5506
      %v5549 = vpack.c.b16 %v5547, %v5546
      %v5550 = vpack.c.b16 %v5548, %v5548
      %v5553 = vsel %vm1273, %v5503, 0
      %v5556 = vsel %vm3108, %v5550, 0
      %5558 = vmatpush.bf16.msra.mxu0 0
      %5559 = vmatpush.bf16.msra.mxu0 0
      %5560 = vmatpush.bf16.msra.mxu0 0
      %5561 = vmatpush.bf16.msra.mxu0 0
      %5562 = vmatpush.bf16.msra.mxu0 0
      %5563 = vmatpush.bf16.msra.mxu0 0
      %5564 = vmatpush.bf16.msra.mxu0 %v5556
      %5565 = vmatpush.bf16.msra.mxu0 %v5549
      %5566 = vmatmul.bf16.gmra.mxu0 %v5553
      %v5567 = vpop.f32.mrf.mxu0
      %v5568 = vadd.f32 %v5539, %v5567
      %v5569 = vpop.f32.mrf.mxu0
      %v5570 = vadd.f32 %v5541, %v5569
      %5571 = vdwg.mxu0
      %v5572 = vmul.f32 %v5568, 0.5
      %v5573 = vmul.f32 %v5570, 0.5
      %v5574 = vmul.f32 %v5568, 0.044715
      %v5575 = vmul.f32 %v5570, 0.044715
      %v5576 = vmul.f32 %v5574, %v5568
      %v5577 = vmul.f32 %v5575, %v5570
      %v5578 = vmul.f32 %v5576, %v5568
      %v5579 = vmul.f32 %v5577, %v5570
      %v5580 = vadd.f32 %v5568, %v5578
      %v5581 = vadd.f32 %v5570, %v5579
      %v5582 = vmul.f32 %v5580, 0.7978846
      %v5583 = vmul.f32 %v5581, 0.7978846
      %v5584 = vtanh.pop %v5582
      %v5585 = vtanh.pop %v5583
      %v5586 = vadd.f32 %v5584, 1.0
      %v5587 = vadd.f32 %v5585, 1.0
      %v5588 = vmul.f32 %v5572, %v5586
      %v5589 = vmul.f32 %v5573, %v5587
      %5590 = vst.msk [vmem:[%s359] sm:$0xff] %vm1273, %v5588
      %vm5591 = vcmask 188416
      %5592 = vst.msk [vmem:[%s359 + $0x8] sm:$0x1] %vm5591, %v5589
      %p5593 = scmp.lt.s32.totalorder %s21, 1
      %s5594 = scalar_select %p5593, %s21, 1
      %s5595 = smul.addr %s5594, 2
      %s5596 = smul.addr %s5595, 8
      %s5597 = scalar_lea.vmem %s10, %s5596
      // Predicated region
      $region61: #{extract_features.2} parent=59 // pred_check
        %p5598 = pneg %p254
      $region62: #{extract_features.2} parent=59 // pred_check_branch
        %5600 = sbr.rel (%p5598) target = $region64
      $region63: #{extract_features.2} parent=59 // pred_region
        _
      $region64: #{extract_features.2} parent=59 // pred_fallthru
        _
    $region60: #{extract_features.2} parent=5 // pred_fallthru
      _
    %p5601 = scmp.le.s32.totalorder 2, %s16
    // Predicated region
    $region65: #{extract_features.2} parent=5 // pred_check
      %p5602 = pneg %p5601
    $region66: #{extract_features.2} parent=5 // pred_check_branch
      %5604 = sbr.rel (%p5602) target = $region68
    $region67: #{extract_features.2} parent=5 // pred_region
      %s5605 = ssub.s32 %s16, 2
      // Predicated region
      $region69: #{extract_features.2} parent=67 // pred_check
        %p5606 = pneg %p260
      $region70: #{extract_features.2} parent=67 // pred_check_branch
        %5608 = sbr.rel (%p5606) target = $region72
      $region71: #{extract_features.2} parent=67 // pred_region
        %p5609 = scmp.lt.s32.totalorder %s22, 1
        %s5610 = scalar_select %p5609, %s22, 1
        %s5611 = smul.addr %s5610, 2
        %s5612 = smul.addr %s5611, 8
        %s5613 = scalar_lea.vmem %s10, %s5612
      $region72: #{extract_features.2} parent=67 // pred_fallthru
        _
    $region68: #{extract_features.2} parent=5 // pred_fallthru
      _
  $region6: #{extract_features.2} parent=0 // loop_footer
    %s20 = sadd.s32 1, %s16
  $region7: #{extract_features.2} parent=0 // loop_footer_branch
    %15 = sbr.rel target = $region3
  $region8: #{extract_features.2} parent=0 // loop_exit
    _

</llo_original>
